<compile_context>
chip_gen: v5e
topology: v5e:2x2
jax: 0.10.0
libtpu: 0.0.40
codegen_flags: <defaults>
</compile_context>

<pallas_src>
import functools

import jax
import jax.numpy as jnp
from jax.experimental import pallas as pl
from jax.experimental.pallas import tpu as pltpu

BN_EPS = 1e-5


# ----------------------------------------------------------------------------
# Fused kernel: conv1(3x3,stride)+bn1+relu -> conv2(3x3)+bn2 + skip -> relu
# ----------------------------------------------------------------------------
def _residual_kernel(x_ref, w1_ref, b1_ref, w2_ref, b2_ref, wsk_ref,
                     out_ref, xpad_ref, h_ref,
                     *, stride, rows, wo, h_img, w_img):
    """One (batch, row-band) grid step.

      x_ref   : (1, H, W, Cin)        whole NHWC image of this batch element
      w1_ref  : (9*Cin, Cp)           conv1 weights, all taps folded into K
      b1_ref  : (1, Cp)               f32 bn1 bias
      w2_ref  : (3, 3*Cp, Cp)         conv2 weights, kx folded into K (per ky)
      b2_ref  : (1, Cp)               f32 bn2 bias (+ skip BN bias if 1x1 skip)
      wsk_ref : (Cin, Cp)             1x1 skip weights (identity for id skip)
      out_ref : (1, rows, wo, Cp)     bf16, channel-padded
      xpad_ref: (in_rows, W+2, Cin)   zero-padded input band (+ conv1 halo)
      h_ref   : (rows+2, wo+2, Cp)    zero-padded conv1-output band (conv2 halo)
    """
    band = pl.program_id(1)
    nb = pl.num_programs(1)
    cin = x_ref.shape[3]
    cp = out_ref.shape[3]
    in_rows = xpad_ref.shape[0]
    m1 = (rows + 2) * wo
    m2 = rows * wo

    # --- stage 0: input row band (+1px halo) into a zero-padded VMEM scratch.
    # The conv halo never touches HBM; rows outside the image stay zero.
    xpad_ref[...] = jnp.zeros_like(xpad_ref)
    x_base = band * (rows * stride) - stride - 1        # x row of xpad row 0

    def copy_row(p):
        src = x_base + p
        @pl.when(jnp.logical_and(src >= 0, src < h_img))
        def _():
            xpad_ref[p, pl.ds(1, w_img), :] = x_ref[0, src, :, :]

    for p in range(in_rows):
        copy_row(p)

    # --- stage 1: conv1 (3x3, stride) + bn1 + relu over rows+2 output rows ---
    taps = []
    for ky in range(3):
        for kx in range(3):
            if stride == 1:
                taps.append(xpad_ref[pl.ds(ky, rows + 2), pl.ds(kx, wo), :])
            else:
                taps.append(xpad_ref[pl.ds(ky, rows + 2, stride=stride),
                                     pl.ds(kx, wo, stride=stride), :])
    patch1 = jnp.concatenate(taps, axis=-1).reshape(m1, 9 * cin)
    acc1 = jnp.broadcast_to(b1_ref[...], (m1, cp))           # f32 bias init
    acc1 = acc1 + jnp.dot(patch1, w1_ref[...],
                          preferred_element_type=jnp.float32)
    hv = jnp.maximum(acc1, 0.0).astype(jnp.bfloat16).reshape(rows + 2, wo, cp)

    # Store into the padded h band; borders are conv2's zero padding and the
    # top/bottom halo rows are zeroed when they fall outside [0, Ho).
    h_ref[:, pl.ds(0, 1), :] = jnp.zeros((rows + 2, 1, cp), jnp.bfloat16)
    h_ref[:, pl.ds(wo + 1, 1), :] = jnp.zeros((rows + 2, 1, cp), jnp.bfloat16)
    h_ref[:, pl.ds(1, wo), :] = hv

    @pl.when(band == 0)
    def _():
        h_ref[0, :, :] = jnp.zeros((wo + 2, cp), jnp.bfloat16)

    @pl.when(band == nb - 1)
    def _():
        h_ref[rows + 1, :, :] = jnp.zeros((wo + 2, cp), jnp.bfloat16)

    # --- stage 2: conv2 (3x3, stride 1) + bn2 + fused skip + relu ------------
    acc = jnp.broadcast_to(b2_ref[...], (m2, cp))            # f32 bias init
    for ky in range(3):
        t2 = [h_ref[pl.ds(ky, rows), pl.ds(kx, wo), :] for kx in range(3)]
        patch2 = jnp.concatenate(t2, axis=-1).reshape(m2, 3 * cp)
        acc = acc + jnp.dot(patch2, w2_ref[ky],
                            preferred_element_type=jnp.float32)

    # Skip path: 1x1 conv (stride) + BN, or identity (wsk == I), on the bf16
    # x band already resident in VMEM -> no extra HBM pass for the residual.
    r0 = band * rows
    if stride == 1:
        xs = x_ref[0, pl.ds(r0, rows), :, :]
    else:
        xs = x_ref[0, pl.ds(r0 * stride, rows, stride=stride),
                   pl.ds(0, wo, stride=stride), :]
    acc = acc + jnp.dot(xs.reshape(m2, cin), wsk_ref[...],
                        preferred_element_type=jnp.float32)

    y = jnp.maximum(acc, 0.0)
    out_ref[0, :, :, :] = y.reshape(rows, wo, cp).astype(out_ref.dtype)


# ----------------------------------------------------------------------------
# Wrapper glue
# ----------------------------------------------------------------------------
def _round_up(x, m):
    return (x + m - 1) // m * m


def _pad_last(a, cp):
    pad = cp - a.shape[-1]
    if pad == 0:
        return a
    return jnp.pad(a, [(0, 0)] * (a.ndim - 1) + [(0, pad)])


def _pick_rows(ho, wo, target=512):
    """Largest divisor of Ho such that rows*Wo <= target (MXU-shaped M).

    Prefer Wo a multiple of 8 so the (rows, wo, c) -> (m, c) flatten stays
    sublane-aligned (true for the shapes tested here)."""
    best = 1
    for r in range(1, ho + 1):
        if ho % r == 0 and r * wo <= target:
            best = r
    return best


def _fold_bn(bnp, eps=BN_EPS):
    gamma, beta, mean, var = bnp
    scale = gamma / jnp.sqrt(var + eps)
    return scale.astype(jnp.float32), (beta - mean * scale).astype(jnp.float32)


def _residual_pallas(x, w1, b1, w2, b2, wsk, *, stride, rows, ho, wo, cp):
    N, H, W, Cin = x.shape
    nb = ho // rows
    in_rows = (rows + 1) * stride + 3      # input rows per band incl. halos

    kernel = functools.partial(_residual_kernel, stride=stride, rows=rows,
                               wo=wo, h_img=H, w_img=W)

    return pl.pallas_call(
        kernel,
        out_shape=jax.ShapeDtypeStruct((N, ho, wo, cp), jnp.bfloat16),
        grid=(N, nb),
        in_specs=[
            # whole (unpadded) image resident per batch element; the block
            # index ignores the band axis so it is DMA'd once per n.
            # TODO(synk): for very large feature maps switch this to a
            # row-band + halo block (memory_space=pl.ANY + manual DMA).
            pl.BlockSpec((1, H, W, Cin), lambda n, b: (n, 0, 0, 0)),
            pl.BlockSpec(w1.shape, lambda n, b: (0, 0)),
            pl.BlockSpec(b1.shape, lambda n, b: (0, 0)),
            pl.BlockSpec(w2.shape, lambda n, b: (0, 0, 0)),
            pl.BlockSpec(b2.shape, lambda n, b: (0, 0)),
            pl.BlockSpec(wsk.shape, lambda n, b: (0, 0)),
        ],
        out_specs=pl.BlockSpec((1, rows, wo, cp), lambda n, b: (n, b, 0, 0)),
        scratch_shapes=[
            pltpu.VMEM((in_rows, W + 2, Cin), jnp.bfloat16),   # padded x band
            pltpu.VMEM((rows + 2, wo + 2, cp), jnp.bfloat16),  # padded h band
        ],
        compiler_params=pltpu.CompilerParams(
            dimension_semantics=("parallel", "parallel"),
            vmem_limit_bytes=48 * 1024 * 1024),
    )(x, w1, b1, w2, b2, wsk)


def residual_forward(x_nchw, p, stride=1, m_target=512):
    """Pallas implementation of the PyTorch `residual` forward (eval-mode BN)."""
    x = jnp.transpose(x_nchw, (0, 2, 3, 1)).astype(jnp.bfloat16)  # NCHW->NHWC
    N, H, W, Cin = x.shape
    Cout = p["w1"].shape[0]
    Cp = _round_up(Cout, 128)                         # lane-dense channels
    Ho = (H - 1) // stride + 1
    Wo = (W - 1) // stride + 1
    rows = _pick_rows(Ho, Wo, m_target)

    s1, b1 = _fold_bn(p["bn1"])
    s2, b2 = _fold_bn(p["bn2"])

    # conv1: OIHW -> HWIO, BN scale folded, Cout padded to Cp, all 9 taps
    # folded into the contraction dim -> (9*Cin, Cp), bf16.
    w1 = jnp.transpose(p["w1"], (2, 3, 1, 0)) * s1
    w1 = _pad_last(w1, Cp).reshape(9 * Cin, Cp).astype(jnp.bfloat16)
    b1p = _pad_last(b1[None, :], Cp)

    # conv2: pad both in/out channels to Cp (h is stored channel-padded; the
    # padded h channels are exactly zero), kx folded -> (3, 3*Cp, Cp), bf16.
    w2 = jnp.transpose(p["w2"], (2, 3, 1, 0)) * s2
    w2 = _pad_last(w2, Cp)
    w2 = jnp.pad(w2, ((0, 0), (0, 0), (0, Cp - Cout), (0, 0)))
    w2 = w2.reshape(3, 3 * Cp, Cp).astype(jnp.bfloat16)

    if stride != 1 or Cin != Cout:
        # skip = 1x1 conv (stride) + BN, fused into the kernel epilogue.
        ssk, bsk = _fold_bn(p["bns"])
        wsk = jnp.transpose(p["wskip"], (2, 3, 1, 0))[0, 0] * ssk   # (Cin,Cout)
        b2p = _pad_last((b2 + bsk)[None, :], Cp)
    else:
        # identity skip implemented as a matmul with the identity matrix
        # against the resident bf16 x band (exact for bf16 values).
        wsk = jnp.eye(Cin, dtype=jnp.float32)
        b2p = _pad_last(b2[None, :], Cp)
    wsk = _pad_last(wsk, Cp).astype(jnp.bfloat16)

    out = _residual_pallas(x, w1, b1p, w2, b2p, wsk,
                           stride=stride, rows=rows, ho=Ho, wo=Wo, cp=Cp)
    out = out[..., :Cout]                             # slice on bf16
    return jnp.transpose(out, (0, 3, 1, 2)).astype(jnp.float32)  # NHWC->NCHW


# ----------------------------------------------------------------------------
# Pure-JAX reference (matches PyTorch semantics) + deterministic params
# ----------------------------------------------------------------------------
def _reference(x, p, stride, eps=BN_EPS):
    def conv(x, w, s, pad):
        return jax.lax.conv_general_dilated(
            x, w, (s, s), ((pad, pad), (pad, pad)),
            dimension_numbers=("NCHW", "OIHW", "NCHW"))

    def bn(x, bnp):
        g, b, m, v = bnp
        return ((x - m[None, :, None, None]) / jnp.sqrt(v[None, :, None, None] + eps)
                * g[None, :, None, None] + b[None, :, None, None])

    c1 = jnp.maximum(bn(conv(x, p["w1"], stride, 1), p["bn1"]), 0.0)
    c2 = bn(conv(c1, p["w2"], 1, 1), p["bn2"])
    if stride != 1 or x.shape[1] != p["w1"].shape[0]:
        sk = bn(conv(x, p["wskip"], stride, 0), p["bns"])
    else:
        sk = x
    return jnp.maximum(c2 + sk, 0.0)


def init_params(key, inp_dim, out_dim, stride):
    ks = jax.random.split(key, 6)

    def bn(k, c):
        ka, kb, km, kv = jax.random.split(k, 4)
        return (1.0 + 0.1 * jax.random.normal(ka, (c,), jnp.float32),
                0.1 * jax.random.normal(kb, (c,), jnp.float32),
                0.1 * jax.random.normal(km, (c,), jnp.float32),
                jax.random.uniform(kv, (c,), jnp.float32, 0.5, 1.5))

    p = {
        "w1": 0.1 * jax.random.normal(ks[0], (out_dim, inp_dim, 3, 3), jnp.float32),
        "bn1": bn(ks[1], out_dim),
        "w2": 0.1 * jax.random.normal(ks[2], (out_dim, out_dim, 3, 3), jnp.float32),
        "bn2": bn(ks[3], out_dim),
    }
    if stride != 1 or inp_dim != out_dim:
        p["wskip"] = 0.1 * jax.random.normal(ks[4], (out_dim, inp_dim, 1, 1), jnp.float32)
        p["bns"] = bn(ks[5], out_dim)
    return p


if __name__ == "__main__":
    key = jax.random.PRNGKey(0)
    N, H, W = 2, 16, 16
    configs = [
        dict(cin=4, cout=8, stride=1),   # Cin != Cout -> fused 1x1-conv+BN skip
        dict(cin=4, cout=4, stride=1),   # identity skip (fused as I matmul)
    ]

    for i, cfg in enumerate(configs):
        kx, kp = jax.random.split(jax.random.fold_in(key, i))
        x = jax.random.normal(kx, (N, cfg["cin"], H, W), jnp.float32)
        params = init_params(kp, cfg["cin"], cfg["cout"], cfg["stride"])

        y = residual_forward(x, params, stride=cfg["stride"])
        y = jax.block_until_ready(y)

        y_ref = _reference(x, params, cfg["stride"])
        ho = (H - 1) // cfg["stride"] + 1
        wo = (W - 1) // cfg["stride"] + 1
        assert y.shape == y_ref.shape == (N, cfg["cout"], ho, wo), (y.shape, y_ref.shape)
        max_err = float(jnp.max(jnp.abs(y - y_ref)))
        # bf16 MXU operands, bf16 h / residual / output storage, f32 accumulation
        # -> loosened tolerance vs the pure-f32 reference.
        assert max_err < 1e-1, f"config {cfg}: mismatch vs reference, max abs err = {max_err}"

    print("KERNEL_OK")
</pallas_src>

<mosaic_0001>
module attributes {stable_mosaic.version = 11 : i64} {
  func.func @_residual_kernel(%arg0: i32, %arg1: i32, %arg2: memref<1x16x16x4xbf16, #tpu.memory_space<vmem>>, %arg3: memref<36x128xbf16, #tpu.memory_space<vmem>>, %arg4: memref<1x128xf32, #tpu.memory_space<vmem>>, %arg5: memref<3x384x128xbf16, #tpu.memory_space<vmem>>, %arg6: memref<1x128xf32, #tpu.memory_space<vmem>>, %arg7: memref<4x128xbf16, #tpu.memory_space<vmem>>, %arg8: memref<1x16x16x128xbf16, #tpu.memory_space<vmem>>, %arg9: memref<20x18x4xbf16, #tpu.memory_space<vmem>>, %arg10: memref<18x18x128xbf16, #tpu.memory_space<vmem>>) attributes {dimension_semantics = [#tpu.dimension_semantics<parallel>, #tpu.dimension_semantics<parallel>], iteration_bounds = array<i64: 2, 1>, scalar_prefetch = 0 : i64, scratch_operands = 2 : i64, tpu.core_type = #tpu.core_type<tc>, window_params = [{transform_indices = @transform_0, window_bounds = array<i64: 1, 16, 16, 4>}, {pipeline_mode = #tpu.pipeline_mode<synchronous>, transform_indices = @transform_1, window_bounds = array<i64: 36, 128>}, {pipeline_mode = #tpu.pipeline_mode<synchronous>, transform_indices = @transform_2, window_bounds = array<i64: 1, 128>}, {pipeline_mode = #tpu.pipeline_mode<synchronous>, transform_indices = @transform_3, window_bounds = array<i64: 3, 384, 128>}, {pipeline_mode = #tpu.pipeline_mode<synchronous>, transform_indices = @transform_4, window_bounds = array<i64: 1, 128>}, {pipeline_mode = #tpu.pipeline_mode<synchronous>, transform_indices = @transform_5, window_bounds = array<i64: 4, 128>}, {transform_indices = @transform_6, window_bounds = array<i64: 1, 16, 16, 128>}]} {
    %cst = arith.constant 0.000000e+00 : bf16
    %0 = vector.broadcast %cst : bf16 to vector<20x18x4xbf16>
    %c0 = arith.constant 0 : index
    %c0_0 = arith.constant 0 : index
    %c0_1 = arith.constant 0 : index
    %1 = vector.load %arg9[%c0, %c0_0, %c0_1] : memref<20x18x4xbf16, #tpu.memory_space<vmem>>, vector<20x18x4xbf16>
    tpu.vector_store %arg9[%c0, %c0_0, %c0_1], %0 {strides = array<i32>} : memref<20x18x4xbf16, #tpu.memory_space<vmem>>, vector<20x18x4xbf16>,
    %c16_i32 = arith.constant 16 : i32
    %2 = arith.muli %arg1, %c16_i32 : i32
    %c1_i32 = arith.constant 1 : i32
    %3 = arith.subi %2, %c1_i32 : i32
    %c1_i32_2 = arith.constant 1 : i32
    %4 = arith.subi %3, %c1_i32_2 : i32
    %c0_i32 = arith.constant 0 : i32
    %5 = arith.addi %4, %c0_i32 : i32
    %c0_i32_3 = arith.constant 0 : i32
    %6 = arith.cmpi sge, %5, %c0_i32_3 : i32
    %c16_i32_4 = arith.constant 16 : i32
    %7 = arith.cmpi slt, %5, %c16_i32_4 : i32
    %8 = arith.andi %6, %7 : i1
    %9 = arith.extui %8 : i1 to i32
    %c0_i32_5 = arith.constant 0 : i32
    %10 = arith.cmpi ne, %9, %c0_i32_5 : i32
    scf.if %10 {
      %c0_163 = arith.constant 0 : index
      %202 = arith.index_cast %5 : i32 to index
      %c0_164 = arith.constant 0 : index
      %c0_165 = arith.constant 0 : index
      %203 = vector.load %arg2[%c0_163, %202, %c0_164, %c0_165] : memref<1x16x16x4xbf16, #tpu.memory_space<vmem>>, vector<1x1x16x4xbf16>
      %204 = vector.shape_cast %203 : vector<1x1x16x4xbf16> to vector<16x4xbf16>
      %c0_166 = arith.constant 0 : index
      %c1_167 = arith.constant 1 : index
      %c0_168 = arith.constant 0 : index
      %205 = vector.load %arg9[%c0_166, %c1_167, %c0_168] : memref<20x18x4xbf16, #tpu.memory_space<vmem>>, vector<1x16x4xbf16>
      %206 = vector.shape_cast %205 : vector<1x16x4xbf16> to vector<16x4xbf16>
      %207 = vector.shape_cast %204 : vector<16x4xbf16> to vector<1x16x4xbf16>
      tpu.vector_store %arg9[%c0_166, %c1_167, %c0_168], %207 {strides = array<i32>} : memref<20x18x4xbf16, #tpu.memory_space<vmem>>, vector<1x16x4xbf16>,
    } else {
    }
    %c1_i32_6 = arith.constant 1 : i32
    %11 = arith.addi %4, %c1_i32_6 : i32
    %c0_i32_7 = arith.constant 0 : i32
    %12 = arith.cmpi sge, %11, %c0_i32_7 : i32
    %c16_i32_8 = arith.constant 16 : i32
    %13 = arith.cmpi slt, %11, %c16_i32_8 : i32
    %14 = arith.andi %12, %13 : i1
    %15 = arith.extui %14 : i1 to i32
    %c0_i32_9 = arith.constant 0 : i32
    %16 = arith.cmpi ne, %15, %c0_i32_9 : i32
    scf.if %16 {
      %c0_163 = arith.constant 0 : index
      %202 = arith.index_cast %11 : i32 to index
      %c0_164 = arith.constant 0 : index
      %c0_165 = arith.constant 0 : index
      %203 = vector.load %arg2[%c0_163, %202, %c0_164, %c0_165] : memref<1x16x16x4xbf16, #tpu.memory_space<vmem>>, vector<1x1x16x4xbf16>
      %204 = vector.shape_cast %203 : vector<1x1x16x4xbf16> to vector<16x4xbf16>
      %c1_166 = arith.constant 1 : index
      %c1_167 = arith.constant 1 : index
      %c0_168 = arith.constant 0 : index
      %205 = vector.load %arg9[%c1_166, %c1_167, %c0_168] : memref<20x18x4xbf16, #tpu.memory_space<vmem>>, vector<1x16x4xbf16>
      %206 = vector.shape_cast %205 : vector<1x16x4xbf16> to vector<16x4xbf16>
      %207 = vector.shape_cast %204 : vector<16x4xbf16> to vector<1x16x4xbf16>
      tpu.vector_store %arg9[%c1_166, %c1_167, %c0_168], %207 {strides = array<i32>} : memref<20x18x4xbf16, #tpu.memory_space<vmem>>, vector<1x16x4xbf16>,
    } else {
    }
    %c2_i32 = arith.constant 2 : i32
    %17 = arith.addi %4, %c2_i32 : i32
    %c0_i32_10 = arith.constant 0 : i32
    %18 = arith.cmpi sge, %17, %c0_i32_10 : i32
    %c16_i32_11 = arith.constant 16 : i32
    %19 = arith.cmpi slt, %17, %c16_i32_11 : i32
    %20 = arith.andi %18, %19 : i1
    %21 = arith.extui %20 : i1 to i32
    %c0_i32_12 = arith.constant 0 : i32
    %22 = arith.cmpi ne, %21, %c0_i32_12 : i32
    scf.if %22 {
      %c0_163 = arith.constant 0 : index
      %202 = arith.index_cast %17 : i32 to index
      %c0_164 = arith.constant 0 : index
      %c0_165 = arith.constant 0 : index
      %203 = vector.load %arg2[%c0_163, %202, %c0_164, %c0_165] : memref<1x16x16x4xbf16, #tpu.memory_space<vmem>>, vector<1x1x16x4xbf16>
      %204 = vector.shape_cast %203 : vector<1x1x16x4xbf16> to vector<16x4xbf16>
      %c2_166 = arith.constant 2 : index
      %c1_167 = arith.constant 1 : index
      %c0_168 = arith.constant 0 : index
      %205 = vector.load %arg9[%c2_166, %c1_167, %c0_168] : memref<20x18x4xbf16, #tpu.memory_space<vmem>>, vector<1x16x4xbf16>
      %206 = vector.shape_cast %205 : vector<1x16x4xbf16> to vector<16x4xbf16>
      %207 = vector.shape_cast %204 : vector<16x4xbf16> to vector<1x16x4xbf16>
      tpu.vector_store %arg9[%c2_166, %c1_167, %c0_168], %207 {strides = array<i32>} : memref<20x18x4xbf16, #tpu.memory_space<vmem>>, vector<1x16x4xbf16>,
    } else {
    }
    %c3_i32 = arith.constant 3 : i32
    %23 = arith.addi %4, %c3_i32 : i32
    %c0_i32_13 = arith.constant 0 : i32
    %24 = arith.cmpi sge, %23, %c0_i32_13 : i32
    %c16_i32_14 = arith.constant 16 : i32
    %25 = arith.cmpi slt, %23, %c16_i32_14 : i32
    %26 = arith.andi %24, %25 : i1
    %27 = arith.extui %26 : i1 to i32
    %c0_i32_15 = arith.constant 0 : i32
    %28 = arith.cmpi ne, %27, %c0_i32_15 : i32
    scf.if %28 {
      %c0_163 = arith.constant 0 : index
      %202 = arith.index_cast %23 : i32 to index
      %c0_164 = arith.constant 0 : index
      %c0_165 = arith.constant 0 : index
      %203 = vector.load %arg2[%c0_163, %202, %c0_164, %c0_165] : memref<1x16x16x4xbf16, #tpu.memory_space<vmem>>, vector<1x1x16x4xbf16>
      %204 = vector.shape_cast %203 : vector<1x1x16x4xbf16> to vector<16x4xbf16>
      %c3 = arith.constant 3 : index
      %c1_166 = arith.constant 1 : index
      %c0_167 = arith.constant 0 : index
      %205 = vector.load %arg9[%c3, %c1_166, %c0_167] : memref<20x18x4xbf16, #tpu.memory_space<vmem>>, vector<1x16x4xbf16>
      %206 = vector.shape_cast %205 : vector<1x16x4xbf16> to vector<16x4xbf16>
      %207 = vector.shape_cast %204 : vector<16x4xbf16> to vector<1x16x4xbf16>
      tpu.vector_store %arg9[%c3, %c1_166, %c0_167], %207 {strides = array<i32>} : memref<20x18x4xbf16, #tpu.memory_space<vmem>>, vector<1x16x4xbf16>,
    } else {
    }
    %c4_i32 = arith.constant 4 : i32
    %29 = arith.addi %4, %c4_i32 : i32
    %c0_i32_16 = arith.constant 0 : i32
    %30 = arith.cmpi sge, %29, %c0_i32_16 : i32
    %c16_i32_17 = arith.constant 16 : i32
    %31 = arith.cmpi slt, %29, %c16_i32_17 : i32
    %32 = arith.andi %30, %31 : i1
    %33 = arith.extui %32 : i1 to i32
    %c0_i32_18 = arith.constant 0 : i32
    %34 = arith.cmpi ne, %33, %c0_i32_18 : i32
    scf.if %34 {
      %c0_163 = arith.constant 0 : index
      %202 = arith.index_cast %29 : i32 to index
      %c0_164 = arith.constant 0 : index
      %c0_165 = arith.constant 0 : index
      %203 = vector.load %arg2[%c0_163, %202, %c0_164, %c0_165] : memref<1x16x16x4xbf16, #tpu.memory_space<vmem>>, vector<1x1x16x4xbf16>
      %204 = vector.shape_cast %203 : vector<1x1x16x4xbf16> to vector<16x4xbf16>
      %c4 = arith.constant 4 : index
      %c1_166 = arith.constant 1 : index
      %c0_167 = arith.constant 0 : index
      %205 = vector.load %arg9[%c4, %c1_166, %c0_167] : memref<20x18x4xbf16, #tpu.memory_space<vmem>>, vector<1x16x4xbf16>
      %206 = vector.shape_cast %205 : vector<1x16x4xbf16> to vector<16x4xbf16>
      %207 = vector.shape_cast %204 : vector<16x4xbf16> to vector<1x16x4xbf16>
      tpu.vector_store %arg9[%c4, %c1_166, %c0_167], %207 {strides = array<i32>} : memref<20x18x4xbf16, #tpu.memory_space<vmem>>, vector<1x16x4xbf16>,
    } else {
    }
    %c5_i32 = arith.constant 5 : i32
    %35 = arith.addi %4, %c5_i32 : i32
    %c0_i32_19 = arith.constant 0 : i32
    %36 = arith.cmpi sge, %35, %c0_i32_19 : i32
    %c16_i32_20 = arith.constant 16 : i32
    %37 = arith.cmpi slt, %35, %c16_i32_20 : i32
    %38 = arith.andi %36, %37 : i1
    %39 = arith.extui %38 : i1 to i32
    %c0_i32_21 = arith.constant 0 : i32
    %40 = arith.cmpi ne, %39, %c0_i32_21 : i32
    scf.if %40 {
      %c0_163 = arith.constant 0 : index
      %202 = arith.index_cast %35 : i32 to index
      %c0_164 = arith.constant 0 : index
      %c0_165 = arith.constant 0 : index
      %203 = vector.load %arg2[%c0_163, %202, %c0_164, %c0_165] : memref<1x16x16x4xbf16, #tpu.memory_space<vmem>>, vector<1x1x16x4xbf16>
      %204 = vector.shape_cast %203 : vector<1x1x16x4xbf16> to vector<16x4xbf16>
      %c5 = arith.constant 5 : index
      %c1_166 = arith.constant 1 : index
      %c0_167 = arith.constant 0 : index
      %205 = vector.load %arg9[%c5, %c1_166, %c0_167] : memref<20x18x4xbf16, #tpu.memory_space<vmem>>, vector<1x16x4xbf16>
      %206 = vector.shape_cast %205 : vector<1x16x4xbf16> to vector<16x4xbf16>
      %207 = vector.shape_cast %204 : vector<16x4xbf16> to vector<1x16x4xbf16>
      tpu.vector_store %arg9[%c5, %c1_166, %c0_167], %207 {strides = array<i32>} : memref<20x18x4xbf16, #tpu.memory_space<vmem>>, vector<1x16x4xbf16>,
    } else {
    }
    %c6_i32 = arith.constant 6 : i32
    %41 = arith.addi %4, %c6_i32 : i32
    %c0_i32_22 = arith.constant 0 : i32
    %42 = arith.cmpi sge, %41, %c0_i32_22 : i32
    %c16_i32_23 = arith.constant 16 : i32
    %43 = arith.cmpi slt, %41, %c16_i32_23 : i32
    %44 = arith.andi %42, %43 : i1
    %45 = arith.extui %44 : i1 to i32
    %c0_i32_24 = arith.constant 0 : i32
    %46 = arith.cmpi ne, %45, %c0_i32_24 : i32
    scf.if %46 {
      %c0_163 = arith.constant 0 : index
      %202 = arith.index_cast %41 : i32 to index
      %c0_164 = arith.constant 0 : index
      %c0_165 = arith.constant 0 : index
      %203 = vector.load %arg2[%c0_163, %202, %c0_164, %c0_165] : memref<1x16x16x4xbf16, #tpu.memory_space<vmem>>, vector<1x1x16x4xbf16>
      %204 = vector.shape_cast %203 : vector<1x1x16x4xbf16> to vector<16x4xbf16>
      %c6 = arith.constant 6 : index
      %c1_166 = arith.constant 1 : index
      %c0_167 = arith.constant 0 : index
      %205 = vector.load %arg9[%c6, %c1_166, %c0_167] : memref<20x18x4xbf16, #tpu.memory_space<vmem>>, vector<1x16x4xbf16>
      %206 = vector.shape_cast %205 : vector<1x16x4xbf16> to vector<16x4xbf16>
      %207 = vector.shape_cast %204 : vector<16x4xbf16> to vector<1x16x4xbf16>
      tpu.vector_store %arg9[%c6, %c1_166, %c0_167], %207 {strides = array<i32>} : memref<20x18x4xbf16, #tpu.memory_space<vmem>>, vector<1x16x4xbf16>,
    } else {
    }
    %c7_i32 = arith.constant 7 : i32
    %47 = arith.addi %4, %c7_i32 : i32
    %c0_i32_25 = arith.constant 0 : i32
    %48 = arith.cmpi sge, %47, %c0_i32_25 : i32
    %c16_i32_26 = arith.constant 16 : i32
    %49 = arith.cmpi slt, %47, %c16_i32_26 : i32
    %50 = arith.andi %48, %49 : i1
    %51 = arith.extui %50 : i1 to i32
    %c0_i32_27 = arith.constant 0 : i32
    %52 = arith.cmpi ne, %51, %c0_i32_27 : i32
    scf.if %52 {
      %c0_163 = arith.constant 0 : index
      %202 = arith.index_cast %47 : i32 to index
      %c0_164 = arith.constant 0 : index
      %c0_165 = arith.constant 0 : index
      %203 = vector.load %arg2[%c0_163, %202, %c0_164, %c0_165] : memref<1x16x16x4xbf16, #tpu.memory_space<vmem>>, vector<1x1x16x4xbf16>
      %204 = vector.shape_cast %203 : vector<1x1x16x4xbf16> to vector<16x4xbf16>
      %c7 = arith.constant 7 : index
      %c1_166 = arith.constant 1 : index
      %c0_167 = arith.constant 0 : index
      %205 = vector.load %arg9[%c7, %c1_166, %c0_167] : memref<20x18x4xbf16, #tpu.memory_space<vmem>>, vector<1x16x4xbf16>
      %206 = vector.shape_cast %205 : vector<1x16x4xbf16> to vector<16x4xbf16>
      %207 = vector.shape_cast %204 : vector<16x4xbf16> to vector<1x16x4xbf16>
      tpu.vector_store %arg9[%c7, %c1_166, %c0_167], %207 {strides = array<i32>} : memref<20x18x4xbf16, #tpu.memory_space<vmem>>, vector<1x16x4xbf16>,
    } else {
    }
    %c8_i32 = arith.constant 8 : i32
    %53 = arith.addi %4, %c8_i32 : i32
    %c0_i32_28 = arith.constant 0 : i32
    %54 = arith.cmpi sge, %53, %c0_i32_28 : i32
    %c16_i32_29 = arith.constant 16 : i32
    %55 = arith.cmpi slt, %53, %c16_i32_29 : i32
    %56 = arith.andi %54, %55 : i1
    %57 = arith.extui %56 : i1 to i32
    %c0_i32_30 = arith.constant 0 : i32
    %58 = arith.cmpi ne, %57, %c0_i32_30 : i32
    scf.if %58 {
      %c0_163 = arith.constant 0 : index
      %202 = arith.index_cast %53 : i32 to index
      %c0_164 = arith.constant 0 : index
      %c0_165 = arith.constant 0 : index
      %203 = vector.load %arg2[%c0_163, %202, %c0_164, %c0_165] : memref<1x16x16x4xbf16, #tpu.memory_space<vmem>>, vector<1x1x16x4xbf16>
      %204 = vector.shape_cast %203 : vector<1x1x16x4xbf16> to vector<16x4xbf16>
      %c8 = arith.constant 8 : index
      %c1_166 = arith.constant 1 : index
      %c0_167 = arith.constant 0 : index
      %205 = vector.load %arg9[%c8, %c1_166, %c0_167] : memref<20x18x4xbf16, #tpu.memory_space<vmem>>, vector<1x16x4xbf16>
      %206 = vector.shape_cast %205 : vector<1x16x4xbf16> to vector<16x4xbf16>
      %207 = vector.shape_cast %204 : vector<16x4xbf16> to vector<1x16x4xbf16>
      tpu.vector_store %arg9[%c8, %c1_166, %c0_167], %207 {strides = array<i32>} : memref<20x18x4xbf16, #tpu.memory_space<vmem>>, vector<1x16x4xbf16>,
    } else {
    }
    %c9_i32 = arith.constant 9 : i32
    %59 = arith.addi %4, %c9_i32 : i32
    %c0_i32_31 = arith.constant 0 : i32
    %60 = arith.cmpi sge, %59, %c0_i32_31 : i32
    %c16_i32_32 = arith.constant 16 : i32
    %61 = arith.cmpi slt, %59, %c16_i32_32 : i32
    %62 = arith.andi %60, %61 : i1
    %63 = arith.extui %62 : i1 to i32
    %c0_i32_33 = arith.constant 0 : i32
    %64 = arith.cmpi ne, %63, %c0_i32_33 : i32
    scf.if %64 {
      %c0_163 = arith.constant 0 : index
      %202 = arith.index_cast %59 : i32 to index
      %c0_164 = arith.constant 0 : index
      %c0_165 = arith.constant 0 : index
      %203 = vector.load %arg2[%c0_163, %202, %c0_164, %c0_165] : memref<1x16x16x4xbf16, #tpu.memory_space<vmem>>, vector<1x1x16x4xbf16>
      %204 = vector.shape_cast %203 : vector<1x1x16x4xbf16> to vector<16x4xbf16>
      %c9 = arith.constant 9 : index
      %c1_166 = arith.constant 1 : index
      %c0_167 = arith.constant 0 : index
      %205 = vector.load %arg9[%c9, %c1_166, %c0_167] : memref<20x18x4xbf16, #tpu.memory_space<vmem>>, vector<1x16x4xbf16>
      %206 = vector.shape_cast %205 : vector<1x16x4xbf16> to vector<16x4xbf16>
      %207 = vector.shape_cast %204 : vector<16x4xbf16> to vector<1x16x4xbf16>
      tpu.vector_store %arg9[%c9, %c1_166, %c0_167], %207 {strides = array<i32>} : memref<20x18x4xbf16, #tpu.memory_space<vmem>>, vector<1x16x4xbf16>,
    } else {
    }
    %c10_i32 = arith.constant 10 : i32
    %65 = arith.addi %4, %c10_i32 : i32
    %c0_i32_34 = arith.constant 0 : i32
    %66 = arith.cmpi sge, %65, %c0_i32_34 : i32
    %c16_i32_35 = arith.constant 16 : i32
    %67 = arith.cmpi slt, %65, %c16_i32_35 : i32
    %68 = arith.andi %66, %67 : i1
    %69 = arith.extui %68 : i1 to i32
    %c0_i32_36 = arith.constant 0 : i32
    %70 = arith.cmpi ne, %69, %c0_i32_36 : i32
    scf.if %70 {
      %c0_163 = arith.constant 0 : index
      %202 = arith.index_cast %65 : i32 to index
      %c0_164 = arith.constant 0 : index
      %c0_165 = arith.constant 0 : index
      %203 = vector.load %arg2[%c0_163, %202, %c0_164, %c0_165] : memref<1x16x16x4xbf16, #tpu.memory_space<vmem>>, vector<1x1x16x4xbf16>
      %204 = vector.shape_cast %203 : vector<1x1x16x4xbf16> to vector<16x4xbf16>
      %c10 = arith.constant 10 : index
      %c1_166 = arith.constant 1 : index
      %c0_167 = arith.constant 0 : index
      %205 = vector.load %arg9[%c10, %c1_166, %c0_167] : memref<20x18x4xbf16, #tpu.memory_space<vmem>>, vector<1x16x4xbf16>
      %206 = vector.shape_cast %205 : vector<1x16x4xbf16> to vector<16x4xbf16>
      %207 = vector.shape_cast %204 : vector<16x4xbf16> to vector<1x16x4xbf16>
      tpu.vector_store %arg9[%c10, %c1_166, %c0_167], %207 {strides = array<i32>} : memref<20x18x4xbf16, #tpu.memory_space<vmem>>, vector<1x16x4xbf16>,
    } else {
    }
    %c11_i32 = arith.constant 11 : i32
    %71 = arith.addi %4, %c11_i32 : i32
    %c0_i32_37 = arith.constant 0 : i32
    %72 = arith.cmpi sge, %71, %c0_i32_37 : i32
    %c16_i32_38 = arith.constant 16 : i32
    %73 = arith.cmpi slt, %71, %c16_i32_38 : i32
    %74 = arith.andi %72, %73 : i1
    %75 = arith.extui %74 : i1 to i32
    %c0_i32_39 = arith.constant 0 : i32
    %76 = arith.cmpi ne, %75, %c0_i32_39 : i32
    scf.if %76 {
      %c0_163 = arith.constant 0 : index
      %202 = arith.index_cast %71 : i32 to index
      %c0_164 = arith.constant 0 : index
      %c0_165 = arith.constant 0 : index
      %203 = vector.load %arg2[%c0_163, %202, %c0_164, %c0_165] : memref<1x16x16x4xbf16, #tpu.memory_space<vmem>>, vector<1x1x16x4xbf16>
      %204 = vector.shape_cast %203 : vector<1x1x16x4xbf16> to vector<16x4xbf16>
      %c11 = arith.constant 11 : index
      %c1_166 = arith.constant 1 : index
      %c0_167 = arith.constant 0 : index
      %205 = vector.load %arg9[%c11, %c1_166, %c0_167] : memref<20x18x4xbf16, #tpu.memory_space<vmem>>, vector<1x16x4xbf16>
      %206 = vector.shape_cast %205 : vector<1x16x4xbf16> to vector<16x4xbf16>
      %207 = vector.shape_cast %204 : vector<16x4xbf16> to vector<1x16x4xbf16>
      tpu.vector_store %arg9[%c11, %c1_166, %c0_167], %207 {strides = array<i32>} : memref<20x18x4xbf16, #tpu.memory_space<vmem>>, vector<1x16x4xbf16>,
    } else {
    }
    %c12_i32 = arith.constant 12 : i32
    %77 = arith.addi %4, %c12_i32 : i32
    %c0_i32_40 = arith.constant 0 : i32
    %78 = arith.cmpi sge, %77, %c0_i32_40 : i32
    %c16_i32_41 = arith.constant 16 : i32
    %79 = arith.cmpi slt, %77, %c16_i32_41 : i32
    %80 = arith.andi %78, %79 : i1
    %81 = arith.extui %80 : i1 to i32
    %c0_i32_42 = arith.constant 0 : i32
    %82 = arith.cmpi ne, %81, %c0_i32_42 : i32
    scf.if %82 {
      %c0_163 = arith.constant 0 : index
      %202 = arith.index_cast %77 : i32 to index
      %c0_164 = arith.constant 0 : index
      %c0_165 = arith.constant 0 : index
      %203 = vector.load %arg2[%c0_163, %202, %c0_164, %c0_165] : memref<1x16x16x4xbf16, #tpu.memory_space<vmem>>, vector<1x1x16x4xbf16>
      %204 = vector.shape_cast %203 : vector<1x1x16x4xbf16> to vector<16x4xbf16>
      %c12 = arith.constant 12 : index
      %c1_166 = arith.constant 1 : index
      %c0_167 = arith.constant 0 : index
      %205 = vector.load %arg9[%c12, %c1_166, %c0_167] : memref<20x18x4xbf16, #tpu.memory_space<vmem>>, vector<1x16x4xbf16>
      %206 = vector.shape_cast %205 : vector<1x16x4xbf16> to vector<16x4xbf16>
      %207 = vector.shape_cast %204 : vector<16x4xbf16> to vector<1x16x4xbf16>
      tpu.vector_store %arg9[%c12, %c1_166, %c0_167], %207 {strides = array<i32>} : memref<20x18x4xbf16, #tpu.memory_space<vmem>>, vector<1x16x4xbf16>,
    } else {
    }
    %c13_i32 = arith.constant 13 : i32
    %83 = arith.addi %4, %c13_i32 : i32
    %c0_i32_43 = arith.constant 0 : i32
    %84 = arith.cmpi sge, %83, %c0_i32_43 : i32
    %c16_i32_44 = arith.constant 16 : i32
    %85 = arith.cmpi slt, %83, %c16_i32_44 : i32
    %86 = arith.andi %84, %85 : i1
    %87 = arith.extui %86 : i1 to i32
    %c0_i32_45 = arith.constant 0 : i32
    %88 = arith.cmpi ne, %87, %c0_i32_45 : i32
    scf.if %88 {
      %c0_163 = arith.constant 0 : index
      %202 = arith.index_cast %83 : i32 to index
      %c0_164 = arith.constant 0 : index
      %c0_165 = arith.constant 0 : index
      %203 = vector.load %arg2[%c0_163, %202, %c0_164, %c0_165] : memref<1x16x16x4xbf16, #tpu.memory_space<vmem>>, vector<1x1x16x4xbf16>
      %204 = vector.shape_cast %203 : vector<1x1x16x4xbf16> to vector<16x4xbf16>
      %c13 = arith.constant 13 : index
      %c1_166 = arith.constant 1 : index
      %c0_167 = arith.constant 0 : index
      %205 = vector.load %arg9[%c13, %c1_166, %c0_167] : memref<20x18x4xbf16, #tpu.memory_space<vmem>>, vector<1x16x4xbf16>
      %206 = vector.shape_cast %205 : vector<1x16x4xbf16> to vector<16x4xbf16>
      %207 = vector.shape_cast %204 : vector<16x4xbf16> to vector<1x16x4xbf16>
      tpu.vector_store %arg9[%c13, %c1_166, %c0_167], %207 {strides = array<i32>} : memref<20x18x4xbf16, #tpu.memory_space<vmem>>, vector<1x16x4xbf16>,
    } else {
    }
    %c14_i32 = arith.constant 14 : i32
    %89 = arith.addi %4, %c14_i32 : i32
    %c0_i32_46 = arith.constant 0 : i32
    %90 = arith.cmpi sge, %89, %c0_i32_46 : i32
    %c16_i32_47 = arith.constant 16 : i32
    %91 = arith.cmpi slt, %89, %c16_i32_47 : i32
    %92 = arith.andi %90, %91 : i1
    %93 = arith.extui %92 : i1 to i32
    %c0_i32_48 = arith.constant 0 : i32
    %94 = arith.cmpi ne, %93, %c0_i32_48 : i32
    scf.if %94 {
      %c0_163 = arith.constant 0 : index
      %202 = arith.index_cast %89 : i32 to index
      %c0_164 = arith.constant 0 : index
      %c0_165 = arith.constant 0 : index
      %203 = vector.load %arg2[%c0_163, %202, %c0_164, %c0_165] : memref<1x16x16x4xbf16, #tpu.memory_space<vmem>>, vector<1x1x16x4xbf16>
      %204 = vector.shape_cast %203 : vector<1x1x16x4xbf16> to vector<16x4xbf16>
      %c14 = arith.constant 14 : index
      %c1_166 = arith.constant 1 : index
      %c0_167 = arith.constant 0 : index
      %205 = vector.load %arg9[%c14, %c1_166, %c0_167] : memref<20x18x4xbf16, #tpu.memory_space<vmem>>, vector<1x16x4xbf16>
      %206 = vector.shape_cast %205 : vector<1x16x4xbf16> to vector<16x4xbf16>
      %207 = vector.shape_cast %204 : vector<16x4xbf16> to vector<1x16x4xbf16>
      tpu.vector_store %arg9[%c14, %c1_166, %c0_167], %207 {strides = array<i32>} : memref<20x18x4xbf16, #tpu.memory_space<vmem>>, vector<1x16x4xbf16>,
    } else {
    }
    %c15_i32 = arith.constant 15 : i32
    %95 = arith.addi %4, %c15_i32 : i32
    %c0_i32_49 = arith.constant 0 : i32
    %96 = arith.cmpi sge, %95, %c0_i32_49 : i32
    %c16_i32_50 = arith.constant 16 : i32
    %97 = arith.cmpi slt, %95, %c16_i32_50 : i32
    %98 = arith.andi %96, %97 : i1
    %99 = arith.extui %98 : i1 to i32
    %c0_i32_51 = arith.constant 0 : i32
    %100 = arith.cmpi ne, %99, %c0_i32_51 : i32
    scf.if %100 {
      %c0_163 = arith.constant 0 : index
      %202 = arith.index_cast %95 : i32 to index
      %c0_164 = arith.constant 0 : index
      %c0_165 = arith.constant 0 : index
      %203 = vector.load %arg2[%c0_163, %202, %c0_164, %c0_165] : memref<1x16x16x4xbf16, #tpu.memory_space<vmem>>, vector<1x1x16x4xbf16>
      %204 = vector.shape_cast %203 : vector<1x1x16x4xbf16> to vector<16x4xbf16>
      %c15 = arith.constant 15 : index
      %c1_166 = arith.constant 1 : index
      %c0_167 = arith.constant 0 : index
      %205 = vector.load %arg9[%c15, %c1_166, %c0_167] : memref<20x18x4xbf16, #tpu.memory_space<vmem>>, vector<1x16x4xbf16>
      %206 = vector.shape_cast %205 : vector<1x16x4xbf16> to vector<16x4xbf16>
      %207 = vector.shape_cast %204 : vector<16x4xbf16> to vector<1x16x4xbf16>
      tpu.vector_store %arg9[%c15, %c1_166, %c0_167], %207 {strides = array<i32>} : memref<20x18x4xbf16, #tpu.memory_space<vmem>>, vector<1x16x4xbf16>,
    } else {
    }
    %c16_i32_52 = arith.constant 16 : i32
    %101 = arith.addi %4, %c16_i32_52 : i32
    %c0_i32_53 = arith.constant 0 : i32
    %102 = arith.cmpi sge, %101, %c0_i32_53 : i32
    %c16_i32_54 = arith.constant 16 : i32
    %103 = arith.cmpi slt, %101, %c16_i32_54 : i32
    %104 = arith.andi %102, %103 : i1
    %105 = arith.extui %104 : i1 to i32
    %c0_i32_55 = arith.constant 0 : i32
    %106 = arith.cmpi ne, %105, %c0_i32_55 : i32
    scf.if %106 {
      %c0_163 = arith.constant 0 : index
      %202 = arith.index_cast %101 : i32 to index
      %c0_164 = arith.constant 0 : index
      %c0_165 = arith.constant 0 : index
      %203 = vector.load %arg2[%c0_163, %202, %c0_164, %c0_165] : memref<1x16x16x4xbf16, #tpu.memory_space<vmem>>, vector<1x1x16x4xbf16>
      %204 = vector.shape_cast %203 : vector<1x1x16x4xbf16> to vector<16x4xbf16>
      %c16 = arith.constant 16 : index
      %c1_166 = arith.constant 1 : index
      %c0_167 = arith.constant 0 : index
      %205 = vector.load %arg9[%c16, %c1_166, %c0_167] : memref<20x18x4xbf16, #tpu.memory_space<vmem>>, vector<1x16x4xbf16>
      %206 = vector.shape_cast %205 : vector<1x16x4xbf16> to vector<16x4xbf16>
      %207 = vector.shape_cast %204 : vector<16x4xbf16> to vector<1x16x4xbf16>
      tpu.vector_store %arg9[%c16, %c1_166, %c0_167], %207 {strides = array<i32>} : memref<20x18x4xbf16, #tpu.memory_space<vmem>>, vector<1x16x4xbf16>,
    } else {
    }
    %c17_i32 = arith.constant 17 : i32
    %107 = arith.addi %4, %c17_i32 : i32
    %c0_i32_56 = arith.constant 0 : i32
    %108 = arith.cmpi sge, %107, %c0_i32_56 : i32
    %c16_i32_57 = arith.constant 16 : i32
    %109 = arith.cmpi slt, %107, %c16_i32_57 : i32
    %110 = arith.andi %108, %109 : i1
    %111 = arith.extui %110 : i1 to i32
    %c0_i32_58 = arith.constant 0 : i32
    %112 = arith.cmpi ne, %111, %c0_i32_58 : i32
    scf.if %112 {
      %c0_163 = arith.constant 0 : index
      %202 = arith.index_cast %107 : i32 to index
      %c0_164 = arith.constant 0 : index
      %c0_165 = arith.constant 0 : index
      %203 = vector.load %arg2[%c0_163, %202, %c0_164, %c0_165] : memref<1x16x16x4xbf16, #tpu.memory_space<vmem>>, vector<1x1x16x4xbf16>
      %204 = vector.shape_cast %203 : vector<1x1x16x4xbf16> to vector<16x4xbf16>
      %c17_166 = arith.constant 17 : index
      %c1_167 = arith.constant 1 : index
      %c0_168 = arith.constant 0 : index
      %205 = vector.load %arg9[%c17_166, %c1_167, %c0_168] : memref<20x18x4xbf16, #tpu.memory_space<vmem>>, vector<1x16x4xbf16>
      %206 = vector.shape_cast %205 : vector<1x16x4xbf16> to vector<16x4xbf16>
      %207 = vector.shape_cast %204 : vector<16x4xbf16> to vector<1x16x4xbf16>
      tpu.vector_store %arg9[%c17_166, %c1_167, %c0_168], %207 {strides = array<i32>} : memref<20x18x4xbf16, #tpu.memory_space<vmem>>, vector<1x16x4xbf16>,
    } else {
    }
    %c18_i32 = arith.constant 18 : i32
    %113 = arith.addi %4, %c18_i32 : i32
    %c0_i32_59 = arith.constant 0 : i32
    %114 = arith.cmpi sge, %113, %c0_i32_59 : i32
    %c16_i32_60 = arith.constant 16 : i32
    %115 = arith.cmpi slt, %113, %c16_i32_60 : i32
    %116 = arith.andi %114, %115 : i1
    %117 = arith.extui %116 : i1 to i32
    %c0_i32_61 = arith.constant 0 : i32
    %118 = arith.cmpi ne, %117, %c0_i32_61 : i32
    scf.if %118 {
      %c0_163 = arith.constant 0 : index
      %202 = arith.index_cast %113 : i32 to index
      %c0_164 = arith.constant 0 : index
      %c0_165 = arith.constant 0 : index
      %203 = vector.load %arg2[%c0_163, %202, %c0_164, %c0_165] : memref<1x16x16x4xbf16, #tpu.memory_space<vmem>>, vector<1x1x16x4xbf16>
      %204 = vector.shape_cast %203 : vector<1x1x16x4xbf16> to vector<16x4xbf16>
      %c18 = arith.constant 18 : index
      %c1_166 = arith.constant 1 : index
      %c0_167 = arith.constant 0 : index
      %205 = vector.load %arg9[%c18, %c1_166, %c0_167] : memref<20x18x4xbf16, #tpu.memory_space<vmem>>, vector<1x16x4xbf16>
      %206 = vector.shape_cast %205 : vector<1x16x4xbf16> to vector<16x4xbf16>
      %207 = vector.shape_cast %204 : vector<16x4xbf16> to vector<1x16x4xbf16>
      tpu.vector_store %arg9[%c18, %c1_166, %c0_167], %207 {strides = array<i32>} : memref<20x18x4xbf16, #tpu.memory_space<vmem>>, vector<1x16x4xbf16>,
    } else {
    }
    %c19_i32 = arith.constant 19 : i32
    %119 = arith.addi %4, %c19_i32 : i32
    %c0_i32_62 = arith.constant 0 : i32
    %120 = arith.cmpi sge, %119, %c0_i32_62 : i32
    %c16_i32_63 = arith.constant 16 : i32
    %121 = arith.cmpi slt, %119, %c16_i32_63 : i32
    %122 = arith.andi %120, %121 : i1
    %123 = arith.extui %122 : i1 to i32
    %c0_i32_64 = arith.constant 0 : i32
    %124 = arith.cmpi ne, %123, %c0_i32_64 : i32
    scf.if %124 {
      %c0_163 = arith.constant 0 : index
      %202 = arith.index_cast %119 : i32 to index
      %c0_164 = arith.constant 0 : index
      %c0_165 = arith.constant 0 : index
      %203 = vector.load %arg2[%c0_163, %202, %c0_164, %c0_165] : memref<1x16x16x4xbf16, #tpu.memory_space<vmem>>, vector<1x1x16x4xbf16>
      %204 = vector.shape_cast %203 : vector<1x1x16x4xbf16> to vector<16x4xbf16>
      %c19 = arith.constant 19 : index
      %c1_166 = arith.constant 1 : index
      %c0_167 = arith.constant 0 : index
      %205 = vector.load %arg9[%c19, %c1_166, %c0_167] : memref<20x18x4xbf16, #tpu.memory_space<vmem>>, vector<1x16x4xbf16>
      %206 = vector.shape_cast %205 : vector<1x16x4xbf16> to vector<16x4xbf16>
      %207 = vector.shape_cast %204 : vector<16x4xbf16> to vector<1x16x4xbf16>
      tpu.vector_store %arg9[%c19, %c1_166, %c0_167], %207 {strides = array<i32>} : memref<20x18x4xbf16, #tpu.memory_space<vmem>>, vector<1x16x4xbf16>,
    } else {
    }
    %c0_65 = arith.constant 0 : index
    %c0_66 = arith.constant 0 : index
    %c0_67 = arith.constant 0 : index
    %125 = vector.load %arg9[%c0_65, %c0_66, %c0_67] : memref<20x18x4xbf16, #tpu.memory_space<vmem>>, vector<18x16x4xbf16>
    %c0_68 = arith.constant 0 : index
    %c1 = arith.constant 1 : index
    %c0_69 = arith.constant 0 : index
    %126 = vector.load %arg9[%c0_68, %c1, %c0_69] : memref<20x18x4xbf16, #tpu.memory_space<vmem>>, vector<18x16x4xbf16>
    %c0_70 = arith.constant 0 : index
    %c2 = arith.constant 2 : index
    %c0_71 = arith.constant 0 : index
    %127 = vector.load %arg9[%c0_70, %c2, %c0_71] : memref<20x18x4xbf16, #tpu.memory_space<vmem>>, vector<18x16x4xbf16>
    %c1_72 = arith.constant 1 : index
    %c0_73 = arith.constant 0 : index
    %c0_74 = arith.constant 0 : index
    %128 = vector.load %arg9[%c1_72, %c0_73, %c0_74] : memref<20x18x4xbf16, #tpu.memory_space<vmem>>, vector<18x16x4xbf16>
    %c1_75 = arith.constant 1 : index
    %c1_76 = arith.constant 1 : index
    %c0_77 = arith.constant 0 : index
    %129 = vector.load %arg9[%c1_75, %c1_76, %c0_77] : memref<20x18x4xbf16, #tpu.memory_space<vmem>>, vector<18x16x4xbf16>
    %c1_78 = arith.constant 1 : index
    %c2_79 = arith.constant 2 : index
    %c0_80 = arith.constant 0 : index
    %130 = vector.load %arg9[%c1_78, %c2_79, %c0_80] : memref<20x18x4xbf16, #tpu.memory_space<vmem>>, vector<18x16x4xbf16>
    %c2_81 = arith.constant 2 : index
    %c0_82 = arith.constant 0 : index
    %c0_83 = arith.constant 0 : index
    %131 = vector.load %arg9[%c2_81, %c0_82, %c0_83] : memref<20x18x4xbf16, #tpu.memory_space<vmem>>, vector<18x16x4xbf16>
    %c2_84 = arith.constant 2 : index
    %c1_85 = arith.constant 1 : index
    %c0_86 = arith.constant 0 : index
    %132 = vector.load %arg9[%c2_84, %c1_85, %c0_86] : memref<20x18x4xbf16, #tpu.memory_space<vmem>>, vector<18x16x4xbf16>
    %c2_87 = arith.constant 2 : index
    %c2_88 = arith.constant 2 : index
    %c0_89 = arith.constant 0 : index
    %133 = vector.load %arg9[%c2_87, %c2_88, %c0_89] : memref<20x18x4xbf16, #tpu.memory_space<vmem>>, vector<18x16x4xbf16>
    %134 = tpu.concatenate %125, %126, %127, %128, %129, %130, %131, %132, %133 in 2 : vector<18x16x4xbf16>, vector<18x16x4xbf16>, vector<18x16x4xbf16>, vector<18x16x4xbf16>, vector<18x16x4xbf16>, vector<18x16x4xbf16>, vector<18x16x4xbf16>, vector<18x16x4xbf16>, vector<18x16x4xbf16> -> vector<18x16x36xbf16>
    %135 = vector.shape_cast %134 : vector<18x16x36xbf16> to vector<288x36xbf16>
    %c0_90 = arith.constant 0 : index
    %c0_91 = arith.constant 0 : index
    %136 = vector.load %arg4[%c0_90, %c0_91] : memref<1x128xf32, #tpu.memory_space<vmem>>, vector<1x128xf32>
    %137 = vector.shape_cast %136 : vector<1x128xf32> to vector<1x128xf32>
    %138 = vector.broadcast %137 : vector<1x128xf32> to vector<288x128xf32>
    %c0_92 = arith.constant 0 : index
    %c0_93 = arith.constant 0 : index
    %139 = vector.load %arg3[%c0_92, %c0_93] : memref<36x128xbf16, #tpu.memory_space<vmem>>, vector<36x128xbf16>
    %cst_94 = arith.constant dense<0.000000e+00> : vector<288x128xf32>
    %140 = tpu.matmul %135, %139, %cst_94 {dimension_numbers = #tpu.dot_dimension_numbers<[1], [0], [0], [1], [0, 0, 1, 1], [], []>} : vector<288x36xbf16>, vector<36x128xbf16>, vector<288x128xf32> -> vector<288x128xf32>
    %141 = arith.addf %138, %140 : vector<288x128xf32>
    %cst_95 = arith.constant 0.000000e+00 : f32
    %142 = vector.broadcast %cst_95 : f32 to vector<288x128xf32>
    %143 = arith.maximumf %141, %142 : vector<288x128xf32>
    %144 = arith.truncf %143 : vector<288x128xf32> to vector<288x128xbf16>
    %145 = vector.shape_cast %144 : vector<288x128xbf16> to vector<18x16x128xbf16>
    %cst_96 = arith.constant 0.000000e+00 : bf16
    %146 = vector.broadcast %cst_96 : bf16 to vector<18x1x128xbf16>
    %c0_97 = arith.constant 0 : index
    %c0_98 = arith.constant 0 : index
    %c0_99 = arith.constant 0 : index
    %147 = vector.load %arg10[%c0_97, %c0_98, %c0_99] : memref<18x18x128xbf16, #tpu.memory_space<vmem>>, vector<18x1x128xbf16>
    tpu.vector_store %arg10[%c0_97, %c0_98, %c0_99], %146 {strides = array<i32>} : memref<18x18x128xbf16, #tpu.memory_space<vmem>>, vector<18x1x128xbf16>,
    %cst_100 = arith.constant 0.000000e+00 : bf16
    %148 = vector.broadcast %cst_100 : bf16 to vector<18x1x128xbf16>
    %c0_101 = arith.constant 0 : index
    %c17 = arith.constant 17 : index
    %c0_102 = arith.constant 0 : index
    %149 = vector.load %arg10[%c0_101, %c17, %c0_102] : memref<18x18x128xbf16, #tpu.memory_space<vmem>>, vector<18x1x128xbf16>
    tpu.vector_store %arg10[%c0_101, %c17, %c0_102], %148 {strides = array<i32>} : memref<18x18x128xbf16, #tpu.memory_space<vmem>>, vector<18x1x128xbf16>,
    %c0_103 = arith.constant 0 : index
    %c1_104 = arith.constant 1 : index
    %c0_105 = arith.constant 0 : index
    %150 = vector.load %arg10[%c0_103, %c1_104, %c0_105] : memref<18x18x128xbf16, #tpu.memory_space<vmem>>, vector<18x16x128xbf16>
    tpu.vector_store %arg10[%c0_103, %c1_104, %c0_105], %145 {strides = array<i32>} : memref<18x18x128xbf16, #tpu.memory_space<vmem>>, vector<18x16x128xbf16>,
    %c0_i32_106 = arith.constant 0 : i32
    %151 = arith.cmpi eq, %arg1, %c0_i32_106 : i32
    %152 = arith.extui %151 : i1 to i32
    %c0_i32_107 = arith.constant 0 : i32
    %153 = arith.cmpi ne, %152, %c0_i32_107 : i32
    scf.if %153 {
      %cst_163 = arith.constant 0.000000e+00 : bf16
      %202 = vector.broadcast %cst_163 : bf16 to vector<18x128xbf16>
      %c0_164 = arith.constant 0 : index
      %c0_165 = arith.constant 0 : index
      %c0_166 = arith.constant 0 : index
      %203 = vector.load %arg10[%c0_164, %c0_165, %c0_166] : memref<18x18x128xbf16, #tpu.memory_space<vmem>>, vector<1x18x128xbf16>
      %204 = vector.shape_cast %203 : vector<1x18x128xbf16> to vector<18x128xbf16>
      %205 = vector.shape_cast %202 : vector<18x128xbf16> to vector<1x18x128xbf16>
      tpu.vector_store %arg10[%c0_164, %c0_165, %c0_166], %205 {strides = array<i32>} : memref<18x18x128xbf16, #tpu.memory_space<vmem>>, vector<1x18x128xbf16>,
    } else {
    }
    %c0_i32_108 = arith.constant 0 : i32
    %154 = arith.cmpi eq, %arg1, %c0_i32_108 : i32
    %155 = arith.extui %154 : i1 to i32
    %c0_i32_109 = arith.constant 0 : i32
    %156 = arith.cmpi ne, %155, %c0_i32_109 : i32
    scf.if %156 {
      %cst_163 = arith.constant 0.000000e+00 : bf16
      %202 = vector.broadcast %cst_163 : bf16 to vector<18x128xbf16>
      %c17_164 = arith.constant 17 : index
      %c0_165 = arith.constant 0 : index
      %c0_166 = arith.constant 0 : index
      %203 = vector.load %arg10[%c17_164, %c0_165, %c0_166] : memref<18x18x128xbf16, #tpu.memory_space<vmem>>, vector<1x18x128xbf16>
      %204 = vector.shape_cast %203 : vector<1x18x128xbf16> to vector<18x128xbf16>
      %205 = vector.shape_cast %202 : vector<18x128xbf16> to vector<1x18x128xbf16>
      tpu.vector_store %arg10[%c17_164, %c0_165, %c0_166], %205 {strides = array<i32>} : memref<18x18x128xbf16, #tpu.memory_space<vmem>>, vector<1x18x128xbf16>,
    } else {
    }
    %c0_110 = arith.constant 0 : index
    %c0_111 = arith.constant 0 : index
    %157 = vector.load %arg6[%c0_110, %c0_111] : memref<1x128xf32, #tpu.memory_space<vmem>>, vector<1x128xf32>
    %158 = vector.shape_cast %157 : vector<1x128xf32> to vector<1x128xf32>
    %159 = vector.broadcast %158 : vector<1x128xf32> to vector<256x128xf32>
    %c0_112 = arith.constant 0 : index
    %c0_113 = arith.constant 0 : index
    %c0_114 = arith.constant 0 : index
    %160 = vector.load %arg10[%c0_112, %c0_113, %c0_114] : memref<18x18x128xbf16, #tpu.memory_space<vmem>>, vector<16x16x128xbf16>
    %c0_115 = arith.constant 0 : index
    %c1_116 = arith.constant 1 : index
    %c0_117 = arith.constant 0 : index
    %161 = vector.load %arg10[%c0_115, %c1_116, %c0_117] : memref<18x18x128xbf16, #tpu.memory_space<vmem>>, vector<16x16x128xbf16>
    %c0_118 = arith.constant 0 : index
    %c2_119 = arith.constant 2 : index
    %c0_120 = arith.constant 0 : index
    %162 = vector.load %arg10[%c0_118, %c2_119, %c0_120] : memref<18x18x128xbf16, #tpu.memory_space<vmem>>, vector<16x16x128xbf16>
    %163 = tpu.concatenate %160, %161, %162 in 2 : vector<16x16x128xbf16>, vector<16x16x128xbf16>, vector<16x16x128xbf16> -> vector<16x16x384xbf16>
    %164 = vector.shape_cast %163 : vector<16x16x384xbf16> to vector<256x384xbf16>
    %c0_121 = arith.constant 0 : index
    %c0_122 = arith.constant 0 : index
    %c0_123 = arith.constant 0 : index
    %165 = vector.load %arg5[%c0_121, %c0_122, %c0_123] : memref<3x384x128xbf16, #tpu.memory_space<vmem>>, vector<1x384x128xbf16>
    %166 = vector.shape_cast %165 : vector<1x384x128xbf16> to vector<384x128xbf16>
    %cst_124 = arith.constant dense<0.000000e+00> : vector<256x128xf32>
    %167 = tpu.matmul %164, %166, %cst_124 {dimension_numbers = #tpu.dot_dimension_numbers<[1], [0], [0], [1], [0, 0, 1, 1], [], []>} : vector<256x384xbf16>, vector<384x128xbf16>, vector<256x128xf32> -> vector<256x128xf32>
    %168 = arith.addf %159, %167 : vector<256x128xf32>
    %c1_125 = arith.constant 1 : index
    %c0_126 = arith.constant 0 : index
    %c0_127 = arith.constant 0 : index
    %169 = vector.load %arg10[%c1_125, %c0_126, %c0_127] : memref<18x18x128xbf16, #tpu.memory_space<vmem>>, vector<16x16x128xbf16>
    %c1_128 = arith.constant 1 : index
    %c1_129 = arith.constant 1 : index
    %c0_130 = arith.constant 0 : index
    %170 = vector.load %arg10[%c1_128, %c1_129, %c0_130] : memref<18x18x128xbf16, #tpu.memory_space<vmem>>, vector<16x16x128xbf16>
    %c1_131 = arith.constant 1 : index
    %c2_132 = arith.constant 2 : index
    %c0_133 = arith.constant 0 : index
    %171 = vector.load %arg10[%c1_131, %c2_132, %c0_133] : memref<18x18x128xbf16, #tpu.memory_space<vmem>>, vector<16x16x128xbf16>
    %172 = tpu.concatenate %169, %170, %171 in 2 : vector<16x16x128xbf16>, vector<16x16x128xbf16>, vector<16x16x128xbf16> -> vector<16x16x384xbf16>
    %173 = vector.shape_cast %172 : vector<16x16x384xbf16> to vector<256x384xbf16>
    %c1_134 = arith.constant 1 : index
    %c0_135 = arith.constant 0 : index
    %c0_136 = arith.constant 0 : index
    %174 = vector.load %arg5[%c1_134, %c0_135, %c0_136] : memref<3x384x128xbf16, #tpu.memory_space<vmem>>, vector<1x384x128xbf16>
    %175 = vector.shape_cast %174 : vector<1x384x128xbf16> to vector<384x128xbf16>
    %cst_137 = arith.constant dense<0.000000e+00> : vector<256x128xf32>
    %176 = tpu.matmul %173, %175, %cst_137 {dimension_numbers = #tpu.dot_dimension_numbers<[1], [0], [0], [1], [0, 0, 1, 1], [], []>} : vector<256x384xbf16>, vector<384x128xbf16>, vector<256x128xf32> -> vector<256x128xf32>
    %177 = arith.addf %168, %176 : vector<256x128xf32>
    %c2_138 = arith.constant 2 : index
    %c0_139 = arith.constant 0 : index
    %c0_140 = arith.constant 0 : index
    %178 = vector.load %arg10[%c2_138, %c0_139, %c0_140] : memref<18x18x128xbf16, #tpu.memory_space<vmem>>, vector<16x16x128xbf16>
    %c2_141 = arith.constant 2 : index
    %c1_142 = arith.constant 1 : index
    %c0_143 = arith.constant 0 : index
    %179 = vector.load %arg10[%c2_141, %c1_142, %c0_143] : memref<18x18x128xbf16, #tpu.memory_space<vmem>>, vector<16x16x128xbf16>
    %c2_144 = arith.constant 2 : index
    %c2_145 = arith.constant 2 : index
    %c0_146 = arith.constant 0 : index
    %180 = vector.load %arg10[%c2_144, %c2_145, %c0_146] : memref<18x18x128xbf16, #tpu.memory_space<vmem>>, vector<16x16x128xbf16>
    %181 = tpu.concatenate %178, %179, %180 in 2 : vector<16x16x128xbf16>, vector<16x16x128xbf16>, vector<16x16x128xbf16> -> vector<16x16x384xbf16>
    %182 = vector.shape_cast %181 : vector<16x16x384xbf16> to vector<256x384xbf16>
    %c2_147 = arith.constant 2 : index
    %c0_148 = arith.constant 0 : index
    %c0_149 = arith.constant 0 : index
    %183 = vector.load %arg5[%c2_147, %c0_148, %c0_149] : memref<3x384x128xbf16, #tpu.memory_space<vmem>>, vector<1x384x128xbf16>
    %184 = vector.shape_cast %183 : vector<1x384x128xbf16> to vector<384x128xbf16>
    %cst_150 = arith.constant dense<0.000000e+00> : vector<256x128xf32>
    %185 = tpu.matmul %182, %184, %cst_150 {dimension_numbers = #tpu.dot_dimension_numbers<[1], [0], [0], [1], [0, 0, 1, 1], [], []>} : vector<256x384xbf16>, vector<384x128xbf16>, vector<256x128xf32> -> vector<256x128xf32>
    %186 = arith.addf %177, %185 : vector<256x128xf32>
    %c16_i32_151 = arith.constant 16 : i32
    %187 = arith.muli %arg1, %c16_i32_151 : i32
    %c0_152 = arith.constant 0 : index
    %188 = arith.index_cast %187 : i32 to index
    %c0_153 = arith.constant 0 : index
    %c0_154 = arith.constant 0 : index
    %189 = vector.load %arg2[%c0_152, %188, %c0_153, %c0_154] : memref<1x16x16x4xbf16, #tpu.memory_space<vmem>>, vector<1x16x16x4xbf16>
    %190 = vector.shape_cast %189 : vector<1x16x16x4xbf16> to vector<16x16x4xbf16>
    %191 = vector.shape_cast %190 : vector<16x16x4xbf16> to vector<256x4xbf16>
    %c0_155 = arith.constant 0 : index
    %c0_156 = arith.constant 0 : index
    %192 = vector.load %arg7[%c0_155, %c0_156] : memref<4x128xbf16, #tpu.memory_space<vmem>>, vector<4x128xbf16>
    %cst_157 = arith.constant dense<0.000000e+00> : vector<256x128xf32>
    %193 = tpu.matmul %191, %192, %cst_157 {dimension_numbers = #tpu.dot_dimension_numbers<[1], [0], [0], [1], [0, 0, 1, 1], [], []>} : vector<256x4xbf16>, vector<4x128xbf16>, vector<256x128xf32> -> vector<256x128xf32>
    %194 = arith.addf %186, %193 : vector<256x128xf32>
    %cst_158 = arith.constant 0.000000e+00 : f32
    %195 = vector.broadcast %cst_158 : f32 to vector<256x128xf32>
    %196 = arith.maximumf %194, %195 : vector<256x128xf32>
    %197 = vector.shape_cast %196 : vector<256x128xf32> to vector<16x16x128xf32>
    %198 = arith.truncf %197 : vector<16x16x128xf32> to vector<16x16x128xbf16>
    %c0_159 = arith.constant 0 : index
    %c0_160 = arith.constant 0 : index
    %c0_161 = arith.constant 0 : index
    %c0_162 = arith.constant 0 : index
    %199 = vector.load %arg8[%c0_159, %c0_160, %c0_161, %c0_162] : memref<1x16x16x128xbf16, #tpu.memory_space<vmem>>, vector<1x16x16x128xbf16>
    %200 = vector.shape_cast %199 : vector<1x16x16x128xbf16> to vector<16x16x128xbf16>
    %201 = vector.shape_cast %198 : vector<16x16x128xbf16> to vector<1x16x16x128xbf16>
    tpu.vector_store %arg8[%c0_159, %c0_160, %c0_161, %c0_162], %201 {strides = array<i32>} : memref<1x16x16x128xbf16, #tpu.memory_space<vmem>>, vector<1x16x16x128xbf16>,
    return
  }
  func.func @transform_0(%arg0: i32, %arg1: i32) -> (i32, i32, i32, i32) {
    %c0_i32 = arith.constant 0 : i32
    %c0_i32_0 = arith.constant 0 : i32
    %c0_i32_1 = arith.constant 0 : i32
    %c0_i32_2 = arith.constant 0 : i32
    return %arg0, %c0_i32, %c0_i32_0, %c0_i32_1 : i32, i32, i32, i32
  }
  func.func @transform_1(%arg0: i32, %arg1: i32) -> (i32, i32) {
    %c0_i32 = arith.constant 0 : i32
    %c0_i32_0 = arith.constant 0 : i32
    %c0_i32_1 = arith.constant 0 : i32
    return %c0_i32, %c0_i32_0 : i32, i32
  }
  func.func @transform_2(%arg0: i32, %arg1: i32) -> (i32, i32) {
    %c0_i32 = arith.constant 0 : i32
    %c0_i32_0 = arith.constant 0 : i32
    %c0_i32_1 = arith.constant 0 : i32
    return %c0_i32, %c0_i32_0 : i32, i32
  }
  func.func @transform_3(%arg0: i32, %arg1: i32) -> (i32, i32, i32) {
    %c0_i32 = arith.constant 0 : i32
    %c0_i32_0 = arith.constant 0 : i32
    %c0_i32_1 = arith.constant 0 : i32
    %c0_i32_2 = arith.constant 0 : i32
    return %c0_i32, %c0_i32_0, %c0_i32_1 : i32, i32, i32
  }
  func.func @transform_4(%arg0: i32, %arg1: i32) -> (i32, i32) {
    %c0_i32 = arith.constant 0 : i32
    %c0_i32_0 = arith.constant 0 : i32
    %c0_i32_1 = arith.constant 0 : i32
    return %c0_i32, %c0_i32_0 : i32, i32
  }
  func.func @transform_5(%arg0: i32, %arg1: i32) -> (i32, i32) {
    %c0_i32 = arith.constant 0 : i32
    %c0_i32_0 = arith.constant 0 : i32
    %c0_i32_1 = arith.constant 0 : i32
    return %c0_i32, %c0_i32_0 : i32, i32
  }
  func.func @transform_6(%arg0: i32, %arg1: i32) -> (i32, i32, i32, i32) {
    %c0_i32 = arith.constant 0 : i32
    %c0_i32_0 = arith.constant 0 : i32
    %c0_i32_1 = arith.constant 0 : i32
    return %arg0, %arg1, %c0_i32, %c0_i32_0 : i32, i32, i32, i32
  }
}

</mosaic_0001>

<llo_original>
// kernel: tpu_custom_call.1
$region0: #{tpu_custom_call.1}
  #allocation0 [shape = 'u32[]', space=smem, size = 0x4, offset = 0x4, fixed_abs, tag = 'smem constant byte address 0x4 - core index']
  #allocation1 [shape = 'u32[72,128]{1,0:T(1,128)}', space=vmem, size = 0x9000, scoped, tag = 'internal scratch']
  #allocation2 [shape = 'bf16[20,18,4]{2,1,0:T(8,128)(2,1)}', space=vmem, size = 0x1e000, scoped, tag = 'scratch operand']
  #allocation3 [shape = 'bf16[18,18,128]{2,1,0:T(8,128)(2,1)}', space=vmem, size = 0x1b000, scoped, tag = 'scratch operand']
  %s0 = inlined_call_operand.vmem [shape: bf16[2,16,16,4], index: 0, kind: input, shape index: {}]
  %s1 = inlined_call_operand.vmem [shape: bf16[36,128], index: 1, kind: input, shape index: {}]
  %s2 = inlined_call_operand.vmem [shape: f32[1,128], index: 2, kind: input, shape index: {}]
  %s3 = inlined_call_operand.hbm [shape: bf16[3,384,128], index: 3, kind: input, shape index: {}]
  %s4 = inlined_call_operand.vmem [shape: f32[1,128], index: 4, kind: input, shape index: {}]
  %s5 = inlined_call_operand.vmem [shape: bf16[4,128], index: 5, kind: input, shape index: {}]
  %s6 = inlined_call_operand.hbm [shape: bf16[2,16,16,128], index: 6, kind: output, shape index: {}]
  %s7 = sld [smem:[#allocation0]]
  $region145: #{tpu_custom_call.1} parent=0
    _
  %s9 = ssub.s32 1, %s7
  %s10 = scalar_select 0, %s9, %s7
  $region1: #{tpu_custom_call.1} parent=0
    #allocation4 [shape = 'u8[294912]{0}', space=vmem, size = 0x48000, scoped, tag = 'input window, operand 3, single buffered']
    #allocation5 [shape = 's32[2]{0}', space=sflag, size = 0x8, scoped, tag = 'scoped memory for tpu_custom_call.1']
    #allocation6 [shape = 's32[2]{0}', space=sflag, size = 0x8, scoped, tag = 'scoped memory for tpu_custom_call.1']
    #allocation7 [shape = 'u8[131072]{0}', space=vmem, size = 0x20000, scoped, tag = 'output window, operand 0']
    %11 = vsyncpa [#allocation5], 0
    %12 = vsyncpa [#allocation6], 0
    %s13 = scalar_lea.sflag [#allocation6], 1
    %14 = vsyncpa %s13, 0
    loop: start=0, step=1, limit=4
    $region2: #{tpu_custom_call.1} parent=1 // loop_pre_header
      _
    $region3: #{tpu_custom_call.1} parent=1 // loop_header
      %s16 = sphi 0, %s20
      %p17 = scmp.ge.s32.totalorder %s16, 4
      %s23 = sphi 0, %s35
      %s24 = sphi 0, %s31
      %s25 = sphi 0, %s23
      %s26 = sphi 0, %s24
      %s27 = sphi 0, %s25
      %s28 = sphi 0, %s26
      %s38 = sphi 0, %s40
      %s41 = sphi 0, %s38
      %s42 = sphi 0, %s41
      %s58 = sphi 0, %s42
      %s62 = sphi 0, %s62
      %s64 = sphi 0, %s62
      %s65 = sphi 0, %s64
      %s79 = sphi 0, %s65
      %s83 = sphi 0, %s83
      %s85 = sphi 0, %s83
      %s86 = sphi 0, %s85
      %s100 = sphi 0, %s86
      %s104 = sphi 0, %s104
      %s106 = sphi 0, %s104
      %s107 = sphi 0, %s106
      %s121 = sphi 0, %s107
      %s125 = sphi 0, %s125
      %s127 = sphi 0, %s125
      %s128 = sphi 0, %s127
      %s142 = sphi 0, %s128
      %s146 = sphi 0, %s146
      %s148 = sphi 0, %s146
      %s149 = sphi 0, %s148
      %s163 = sphi 0, %s149
      %s171 = sphi 0, %s173
      %s174 = sphi 0, %s171
      %s175 = sphi 0, %s174
      %s191 = sphi 0, %s175
    $region4: #{tpu_custom_call.1} parent=1 // loop_header_branch
      %19 = sbr.rel (%p17) target = $region8
    $region5: #{tpu_custom_call.1} parent=1 // loop_body
      %s21 = ssub.s32 %s16, 1
      %s22 = ssub.s32 %s16, 2
      %s29 = sadd.s32 1, %s24
      %p30 = scmp.ge.s32.totalorder %s29, 1
      %s31 = scalar_select %p30, 0, %s29
      %s32 = sadd.s32 1, %s23
      %s33 = scalar_select %p30, %s32, %s23
      %p34 = scmp.ge.s32.totalorder %s33, 2
      %s35 = scalar_select %p34, 0, %s33
      %s36 = ssub.s32 %s23, %s35
      %p37 = scmp.eq.s32.totalorder %s36, 0
      %s39 = sadd.s32 %s38, 1
      %s40 = scalar_select %p37, %s38, %s39
      %p43 = pneg %p37
      %p44 = scmp.eq.s32.totalorder %s16, 1
      %p45 = por %p43, %p44
      %p46 = scmp.ne.s32.totalorder %s38, %s41
      %p47 = scmp.eq.s32.totalorder %s16, 0
      %p48 = por %p46, %p47
      %p49 = scmp.ne.s32.totalorder %s38, %s41
      %p50 = scmp.eq.s32.totalorder %s21, 1
      %p51 = por %p49, %p50
      %p52 = scmp.ne.s32.totalorder %s41, %s42
      %p53 = scmp.eq.s32.totalorder %s21, 0
      %p54 = por %p52, %p53
      %p55 = scmp.ne.s32.totalorder %s41, %s42
      %p56 = scmp.eq.s32.totalorder %s22, 1
      %p57 = por %p55, %p56
      %p59 = scmp.ne.s32.totalorder %s42, %s58
      %p60 = scmp.eq.s32.totalorder %s22, 0
      %p61 = por %p59, %p60
      %s63 = sadd.s32 %s62, 1
      %p66 = scmp.eq.s32.totalorder %s16, 1
      %p67 = scmp.ne.s32.totalorder %s62, %s64
      %p68 = scmp.eq.s32.totalorder %s16, 0
      %p69 = por %p67, %p68
      %p70 = scmp.ne.s32.totalorder %s62, %s64
      %p71 = scmp.eq.s32.totalorder %s21, 1
      %p72 = por %p70, %p71
      %p73 = scmp.ne.s32.totalorder %s64, %s65
      %p74 = scmp.eq.s32.totalorder %s21, 0
      %p75 = por %p73, %p74
      %p76 = scmp.ne.s32.totalorder %s64, %s65
      %p77 = scmp.eq.s32.totalorder %s22, 1
      %p78 = por %p76, %p77
      %p80 = scmp.ne.s32.totalorder %s65, %s79
      %p81 = scmp.eq.s32.totalorder %s22, 0
      %p82 = por %p80, %p81
      %s84 = sadd.s32 %s83, 1
      %p87 = scmp.eq.s32.totalorder %s16, 1
      %p88 = scmp.ne.s32.totalorder %s83, %s85
      %p89 = scmp.eq.s32.totalorder %s16, 0
      %p90 = por %p88, %p89
      %p91 = scmp.ne.s32.totalorder %s83, %s85
      %p92 = scmp.eq.s32.totalorder %s21, 1
      %p93 = por %p91, %p92
      %p94 = scmp.ne.s32.totalorder %s85, %s86
      %p95 = scmp.eq.s32.totalorder %s21, 0
      %p96 = por %p94, %p95
      %p97 = scmp.ne.s32.totalorder %s85, %s86
      %p98 = scmp.eq.s32.totalorder %s22, 1
      %p99 = por %p97, %p98
      %p101 = scmp.ne.s32.totalorder %s86, %s100
      %p102 = scmp.eq.s32.totalorder %s22, 0
      %p103 = por %p101, %p102
      %s105 = sadd.s32 %s104, 1
      %p108 = scmp.eq.s32.totalorder %s16, 1
      %p109 = scmp.ne.s32.totalorder %s104, %s106
      %p110 = scmp.eq.s32.totalorder %s16, 0
      %p111 = por %p109, %p110
      %p112 = scmp.ne.s32.totalorder %s104, %s106
      %p113 = scmp.eq.s32.totalorder %s21, 1
      %p114 = por %p112, %p113
      %p115 = scmp.ne.s32.totalorder %s106, %s107
      %p116 = scmp.eq.s32.totalorder %s21, 0
      %p117 = por %p115, %p116
      %p118 = scmp.ne.s32.totalorder %s106, %s107
      %p119 = scmp.eq.s32.totalorder %s22, 1
      %p120 = por %p118, %p119
      %p122 = scmp.ne.s32.totalorder %s107, %s121
      %p123 = scmp.eq.s32.totalorder %s22, 0
      %p124 = por %p122, %p123
      %s126 = sadd.s32 %s125, 1
      %p129 = scmp.eq.s32.totalorder %s16, 1
      %p130 = scmp.ne.s32.totalorder %s125, %s127
      %p131 = scmp.eq.s32.totalorder %s16, 0
      %p132 = por %p130, %p131
      %p133 = scmp.ne.s32.totalorder %s125, %s127
      %p134 = scmp.eq.s32.totalorder %s21, 1
      %p135 = por %p133, %p134
      %p136 = scmp.ne.s32.totalorder %s127, %s128
      %p137 = scmp.eq.s32.totalorder %s21, 0
      %p138 = por %p136, %p137
      %p139 = scmp.ne.s32.totalorder %s127, %s128
      %p140 = scmp.eq.s32.totalorder %s22, 1
      %p141 = por %p139, %p140
      %p143 = scmp.ne.s32.totalorder %s128, %s142
      %p144 = scmp.eq.s32.totalorder %s22, 0
      %p145 = por %p143, %p144
      %s147 = sadd.s32 %s146, 1
      %p150 = scmp.eq.s32.totalorder %s16, 1
      %p151 = scmp.ne.s32.totalorder %s146, %s148
      %p152 = scmp.eq.s32.totalorder %s16, 0
      %p153 = por %p151, %p152
      %p154 = scmp.ne.s32.totalorder %s146, %s148
      %p155 = scmp.eq.s32.totalorder %s21, 1
      %p156 = por %p154, %p155
      %p157 = scmp.ne.s32.totalorder %s148, %s149
      %p158 = scmp.eq.s32.totalorder %s21, 0
      %p159 = por %p157, %p158
      %p160 = scmp.ne.s32.totalorder %s148, %s149
      %p161 = scmp.eq.s32.totalorder %s22, 1
      %p162 = por %p160, %p161
      %p164 = scmp.ne.s32.totalorder %s149, %s163
      %p165 = scmp.eq.s32.totalorder %s22, 0
      %p166 = por %p164, %p165
      %s167 = ssub.s32 %s23, %s35
      %s168 = ssub.s32 %s24, %s31
      %s169 = sor.u32 %s167, %s168
      %p170 = scmp.eq.s32.totalorder %s169, 0
      %s172 = sadd.s32 %s171, 1
      %s173 = scalar_select %p170, %s171, %s172
      %p176 = pneg %p170
      %p177 = scmp.eq.s32.totalorder %s16, 1
      %p178 = por %p176, %p177
      %p179 = scmp.ne.s32.totalorder %s171, %s174
      %p180 = scmp.eq.s32.totalorder %s16, 0
      %p181 = por %p179, %p180
      %p182 = scmp.ne.s32.totalorder %s171, %s174
      %p183 = scmp.eq.s32.totalorder %s21, 1
      %p184 = por %p182, %p183
      %p185 = scmp.ne.s32.totalorder %s174, %s175
      %p186 = scmp.eq.s32.totalorder %s21, 0
      %p187 = por %p185, %p186
      %p188 = scmp.ne.s32.totalorder %s174, %s175
      %p189 = scmp.eq.s32.totalorder %s22, 1
      %p190 = por %p188, %p189
      %p192 = scmp.ne.s32.totalorder %s175, %s191
      %p193 = scmp.eq.s32.totalorder %s22, 0
      %p194 = por %p192, %p193
      %p195 = scmp.le.s32.totalorder 1, %s16
      %p196 = scmp.lt.s32.totalorder %s16, 3
      %p197 = pnand %p195, %p196
      %p198 = pneg %p197
      // Predicated region
      $region9: #{tpu_custom_call.1} parent=5 // pred_check
        _
      $region10: #{tpu_custom_call.1} parent=5 // pred_check_branch
        %200 = sbr.rel (%p197) target = $region12
      $region11: #{tpu_custom_call.1} parent=5 // pred_region
        %s201 = ssub.s32 %s16, 1
        // Predicated region
        $region13: #{tpu_custom_call.1} parent=11 // pred_check
          %p202 = pneg %p75
        $region14: #{tpu_custom_call.1} parent=11 // pred_check_branch
          %204 = sbr.rel (%p202) target = $region16
        $region15: #{tpu_custom_call.1} parent=11 // pred_region
          _
        $region16: #{tpu_custom_call.1} parent=11 // pred_fallthru
          _
        // Predicated region
        $region17: #{tpu_custom_call.1} parent=11 // pred_check
          %p205 = pneg %p96
        $region18: #{tpu_custom_call.1} parent=11 // pred_check_branch
          %207 = sbr.rel (%p205) target = $region20
        $region19: #{tpu_custom_call.1} parent=11 // pred_region
          _
        $region20: #{tpu_custom_call.1} parent=11 // pred_fallthru
          _
        // Predicated region
        $region21: #{tpu_custom_call.1} parent=11 // pred_check
          %p208 = pneg %p117
        $region22: #{tpu_custom_call.1} parent=11 // pred_check_branch
          %210 = sbr.rel (%p208) target = $region24
        $region23: #{tpu_custom_call.1} parent=11 // pred_region
          %212 = vsyncadd [#allocation5], 0
          %s213 = sshll.u32 %s3, 4
          %s214 = int_to_ptr.hbm [resolvable:$true] %s213
          %s215 = sshll.u32 [#allocation4], 4
          %s216 = int_to_ptr.vmem [resolvable:$true] %s215
          %221 = dma.hbm_to_vmem [thread:$0]  %s214, 9216, %s216, [#allocation5], 64, 64, 4
        $region24: #{tpu_custom_call.1} parent=11 // pred_fallthru
          _
        // Predicated region
        $region25: #{tpu_custom_call.1} parent=11 // pred_check
          %p222 = pneg %p138
        $region26: #{tpu_custom_call.1} parent=11 // pred_check_branch
          %224 = sbr.rel (%p222) target = $region28
        $region27: #{tpu_custom_call.1} parent=11 // pred_region
          _
        $region28: #{tpu_custom_call.1} parent=11 // pred_fallthru
          _
        // Predicated region
        $region29: #{tpu_custom_call.1} parent=11 // pred_check
          %p225 = pneg %p159
        $region30: #{tpu_custom_call.1} parent=11 // pred_check_branch
          %227 = sbr.rel (%p225) target = $region32
        $region31: #{tpu_custom_call.1} parent=11 // pred_region
          _
        $region32: #{tpu_custom_call.1} parent=11 // pred_fallthru
          _
      $region12: #{tpu_custom_call.1} parent=5 // pred_fallthru
        _
      %p228 = scmp.lt.s32.totalorder %s16, 2
      // Predicated region
      $region33: #{tpu_custom_call.1} parent=5 // pred_check
        %p229 = pneg %p228
      $region34: #{tpu_custom_call.1} parent=5 // pred_check_branch
        %231 = sbr.rel (%p229) target = $region36
      $region35: #{tpu_custom_call.1} parent=5 // pred_region
        // Predicated region
        $region37: #{tpu_custom_call.1} parent=35 // pred_check
          %p232 = pneg %p48
        $region38: #{tpu_custom_call.1} parent=35 // pred_check_branch
          %234 = sbr.rel (%p232) target = $region40
        $region39: #{tpu_custom_call.1} parent=35 // pred_region
          %p235 = scmp.lt.s32.totalorder %s23, 1
          %s236 = scalar_select %p235, %s23, 1
          %s237 = smul.addr %s236, 32
          %s238 = smul.addr %s237, 4
          %s239 = scalar_lea.vmem %s0, %s238
        $region40: #{tpu_custom_call.1} parent=35 // pred_fallthru
          _
      $region36: #{tpu_custom_call.1} parent=5 // pred_fallthru
        _
      %p240 = scmp.le.s32.totalorder 1, %s16
      %p241 = scmp.lt.s32.totalorder %s16, 3
      %p242 = pnand %p240, %p241
      %p243 = pneg %p242
      // Predicated region
      $region41: #{tpu_custom_call.1} parent=5 // pred_check
        _
      $region42: #{tpu_custom_call.1} parent=5 // pred_check_branch
        %245 = sbr.rel (%p242) target = $region44
      $region43: #{tpu_custom_call.1} parent=5 // pred_region
        %s246 = ssub.s32 %s16, 1
        // Predicated region
        $region45: #{tpu_custom_call.1} parent=43 // pred_check
          %p247 = pneg %p117
        $region46: #{tpu_custom_call.1} parent=43 // pred_check_branch
          %249 = sbr.rel (%p247) target = $region48
        $region47: #{tpu_custom_call.1} parent=43 // pred_region
          %251 = dma.done [#allocation5], 9216
        $region48: #{tpu_custom_call.1} parent=43 // pred_fallthru
          _
        %p252 = scmp.lt.s32.totalorder %s25, 1
        %s253 = scalar_select %p252, %s25, 1
        %s254 = smul.addr %s253, 32
        %s255 = smul.addr %s254, 4
        %s256 = scalar_lea.vmem %s0, %s255
        %p257 = pneg %p54
        %p258 = pneg %p51
        %p259 = pneg %p75
        %p260 = pneg %p72
        %p261 = pneg %p96
        %p262 = pneg %p93
        %p263 = pneg %p117
        %p264 = pneg %p114
        %p265 = pneg %p138
        %p266 = pneg %p135
        %p267 = pneg %p159
        %p268 = pneg %p156
        %p269 = pneg %p187
        %p270 = pneg %p184
        %s271 = sand.u32 %s174, 1
        %s272 = scalar_lea.sflag [#allocation6], %s271
        %s273 = sand.u32 %s174, 1
        %s274 = smul.addr %s273, 128
        %s275 = scalar_lea.vmem [#allocation7], %s274
        %p276 = scmp.lt.s32.totalorder %s25, 1
        %s277 = scalar_select %p276, %s25, 1
        %s278 = smul.addr %s277, 32
        %s279 = smul.addr %s278, 4
        %s280 = scalar_lea.vmem %s0, %s279
        %s281 = smul.u32 16, %s26
        %vm283 = vcmask 27648
        %284 = vst.msk [vmem:[#allocation2] sm:$0xf] %vm283, 0
        %285 = vst.msk [vmem:[#allocation2 + $0x4] sm:$0xf] %vm283, 0
        %vm286 = vcmask 24576
        %287 = vst.msk [vmem:[#allocation2 + $0x8] sm:$0x1] %vm286, 0
        %288 = vst.msk [vmem:[#allocation2 + $0xc] sm:$0xf] %vm283, 0
        %289 = vst.msk [vmem:[#allocation2 + $0x10] sm:$0xf] %vm283, 0
        %290 = vst.msk [vmem:[#allocation2 + $0x14] sm:$0x1] %vm286, 0
        %291 = vst.msk [vmem:[#allocation2 + $0x18] sm:$0xf] %vm283, 0
        %292 = vst.msk [vmem:[#allocation2 + $0x1c] sm:$0xf] %vm283, 0
        %293 = vst.msk [vmem:[#allocation2 + $0x20] sm:$0x1] %vm286, 0
        %294 = vst.msk [vmem:[#allocation2 + $0x24] sm:$0xf] %vm283, 0
        %295 = vst.msk [vmem:[#allocation2 + $0x28] sm:$0xf] %vm283, 0
        %296 = vst.msk [vmem:[#allocation2 + $0x2c] sm:$0x1] %vm286, 0
        %297 = vst.msk [vmem:[#allocation2 + $0x30] sm:$0xf] %vm283, 0
        %298 = vst.msk [vmem:[#allocation2 + $0x34] sm:$0xf] %vm283, 0
        %299 = vst.msk [vmem:[#allocation2 + $0x38] sm:$0x1] %vm286, 0
        %300 = vst.msk [vmem:[#allocation2 + $0x3c] sm:$0xf] %vm283, 0
        %301 = vst.msk [vmem:[#allocation2 + $0x40] sm:$0xf] %vm283, 0
        %302 = vst.msk [vmem:[#allocation2 + $0x44] sm:$0x1] %vm286, 0
        %303 = vst.msk [vmem:[#allocation2 + $0x48] sm:$0xf] %vm283, 0
        %304 = vst.msk [vmem:[#allocation2 + $0x4c] sm:$0xf] %vm283, 0
        %305 = vst.msk [vmem:[#allocation2 + $0x50] sm:$0x1] %vm286, 0
        %306 = vst.msk [vmem:[#allocation2 + $0x54] sm:$0xf] %vm283, 0
        %307 = vst.msk [vmem:[#allocation2 + $0x58] sm:$0xf] %vm283, 0
        %308 = vst.msk [vmem:[#allocation2 + $0x5c] sm:$0x1] %vm286, 0
        %309 = vst.msk [vmem:[#allocation2 + $0x60] sm:$0xf] %vm283, 0
        %310 = vst.msk [vmem:[#allocation2 + $0x64] sm:$0xf] %vm283, 0
        %311 = vst.msk [vmem:[#allocation2 + $0x68] sm:$0x1] %vm286, 0
        %312 = vst.msk [vmem:[#allocation2 + $0x6c] sm:$0xf] %vm283, 0
        %313 = vst.msk [vmem:[#allocation2 + $0x70] sm:$0xf] %vm283, 0
        %314 = vst.msk [vmem:[#allocation2 + $0x74] sm:$0x1] %vm286, 0
        %315 = vst.msk [vmem:[#allocation2 + $0x78] sm:$0xf] %vm283, 0
        %316 = vst.msk [vmem:[#allocation2 + $0x7c] sm:$0xf] %vm283, 0
        %317 = vst.msk [vmem:[#allocation2 + $0x80] sm:$0x1] %vm286, 0
        %318 = vst.msk [vmem:[#allocation2 + $0x84] sm:$0xf] %vm283, 0
        %319 = vst.msk [vmem:[#allocation2 + $0x88] sm:$0xf] %vm283, 0
        %320 = vst.msk [vmem:[#allocation2 + $0x8c] sm:$0x1] %vm286, 0
        %321 = vst.msk [vmem:[#allocation2 + $0x90] sm:$0xf] %vm283, 0
        %322 = vst.msk [vmem:[#allocation2 + $0x94] sm:$0xf] %vm283, 0
        %323 = vst.msk [vmem:[#allocation2 + $0x98] sm:$0x1] %vm286, 0
        %324 = vst.msk [vmem:[#allocation2 + $0x9c] sm:$0xf] %vm283, 0
        %325 = vst.msk [vmem:[#allocation2 + $0xa0] sm:$0xf] %vm283, 0
        %326 = vst.msk [vmem:[#allocation2 + $0xa4] sm:$0x1] %vm286, 0
        %327 = vst.msk [vmem:[#allocation2 + $0xa8] sm:$0xf] %vm283, 0
        %328 = vst.msk [vmem:[#allocation2 + $0xac] sm:$0xf] %vm283, 0
        %329 = vst.msk [vmem:[#allocation2 + $0xb0] sm:$0x1] %vm286, 0
        %330 = vst.msk [vmem:[#allocation2 + $0xb4] sm:$0xf] %vm283, 0
        %331 = vst.msk [vmem:[#allocation2 + $0xb8] sm:$0xf] %vm283, 0
        %332 = vst.msk [vmem:[#allocation2 + $0xbc] sm:$0x1] %vm286, 0
        %333 = vst.msk [vmem:[#allocation2 + $0xc0] sm:$0xf] %vm283, 0
        %334 = vst.msk [vmem:[#allocation2 + $0xc4] sm:$0xf] %vm283, 0
        %335 = vst.msk [vmem:[#allocation2 + $0xc8] sm:$0x1] %vm286, 0
        %336 = vst.msk [vmem:[#allocation2 + $0xcc] sm:$0xf] %vm283, 0
        %337 = vst.msk [vmem:[#allocation2 + $0xd0] sm:$0xf] %vm283, 0
        %338 = vst.msk [vmem:[#allocation2 + $0xd4] sm:$0x1] %vm286, 0
        %339 = vst.msk [vmem:[#allocation2 + $0xd8] sm:$0xf] %vm283, 0
        %340 = vst.msk [vmem:[#allocation2 + $0xdc] sm:$0xf] %vm283, 0
        %341 = vst.msk [vmem:[#allocation2 + $0xe0] sm:$0x1] %vm286, 0
        %342 = vst.msk [vmem:[#allocation2 + $0xe4] sm:$0xf] %vm283, 0
        %343 = vst.msk [vmem:[#allocation2 + $0xe8] sm:$0xf] %vm283, 0
        %344 = vst.msk [vmem:[#allocation2 + $0xec] sm:$0x1] %vm286, 0
        %s345 = smul.u32 %s26, 16
        %s346 = ssub.s32 %s345, 1
        %s347 = ssub.s32 %s345, 2
        %p348 = scmp.ge.s32.totalorder %s347, 0
        %p349 = scmp.lt.s32.totalorder %s347, 16
        %p350 = pnand %p348, %p349
        %p351 = pneg %p350
        // Predicated region
        $region49: #{tpu_custom_call.1} parent=43 // pred_check
          _
        $region50: #{tpu_custom_call.1} parent=43 // pred_check_branch
          %353 = sbr.rel (%p350) target = $region52
        $region51: #{tpu_custom_call.1} parent=43 // pred_region
          %s354 = smul.u32 %s347, 2
          %s355 = smul.addr %s354, 4
          %s356 = scalar_lea.vmem %s280, %s355
          %v357 = vld [vmem:[%s356] sm:$0xf]
          %v358 = vld [vmem:[%s356 + $0x4] sm:$0xf]
          %vm359 = vsmask.f32 256
          %vm360 = vsmask.f32 4368
          %vm361 = vmor %vm359, %vm360
          %v363 = vshrl.u32 %v357, 16
          %v365 = vrot.slane %v363, 7
          %v366 = vshll.u32 %v357, 16
          %v368 = vor.u32 %v365, %v366
          %v369 = vrot.slane %v365, 4
          %v371 = vshrl.u32 %v358, 16
          %v373 = vrot.slane %v371, 7
          %v374 = vshll.u32 %v358, 16
          %v376 = vor.u32 %v373, %v374
          %v377 = vsel %vm361, %v369, %v376
          %v378 = vrot.slane %v373, 4
          %vm382 = vcmask 27648
          %vm383 = vsmask.f32 7938
          %vm384 = vmand %vm382, %vm383
          %v385 = vld [vmem:[#allocation2] sm:$0xf]
          %v386 = vsel %vm384, %v368, %v385
          %387 = vst [vmem:[#allocation2] sm:$0xf] %v386
          %388 = vst.msk [vmem:[#allocation2 + $0x4] sm:$0xf] %vm283, %v377
          %vm389 = vcmask 24576
          %vm390 = vmand %vm389, %vm359
          %v391 = vld [vmem:[#allocation2 + $0x8] sm:$0x1]
          %v392 = vsel %vm390, %v378, %v391
          %393 = vst [vmem:[#allocation2 + $0x8] sm:$0x1] %v392
        $region52: #{tpu_custom_call.1} parent=43 // pred_fallthru
          _
        %p394 = scmp.ge.s32.totalorder %s346, 0
        %p395 = scmp.lt.s32.totalorder %s346, 16
        %p396 = pnand %p394, %p395
        %p397 = pneg %p396
        // Predicated region
        $region53: #{tpu_custom_call.1} parent=43 // pred_check
          _
        $region54: #{tpu_custom_call.1} parent=43 // pred_check_branch
          %399 = sbr.rel (%p396) target = $region56
        $region55: #{tpu_custom_call.1} parent=43 // pred_region
          %s400 = smul.u32 %s346, 2
          %s401 = smul.addr %s400, 4
          %s402 = scalar_lea.vmem %s280, %s401
          %v403 = vld [vmem:[%s402] sm:$0xf]
          %v404 = vld [vmem:[%s402 + $0x4] sm:$0xf]
          %vm405 = vsmask.f32 256
          %vm406 = vsmask.f32 4368
          %vm407 = vmor %vm405, %vm406
          %v409 = vshrl.u32 %v403, 16
          %v411 = vrot.slane %v409, 7
          %v412 = vshll.u32 %v403, 16
          %v414 = vor.u32 %v411, %v412
          %v415 = vrot.slane %v411, 4
          %v417 = vshrl.u32 %v404, 16
          %v419 = vrot.slane %v417, 7
          %v420 = vshll.u32 %v404, 16
          %v422 = vor.u32 %v419, %v420
          %v423 = vsel %vm407, %v415, %v422
          %v424 = vrot.slane %v419, 4
          %s428 = scalar_lea.vmem [#allocation2], 12
          %vm429 = vcmask 27648
          %vm430 = vsmask.f32 7938
          %vm431 = vmand %vm429, %vm430
          %v432 = vld [vmem:[%s428] sm:$0xf]
          %v433 = vsel %vm431, %v414, %v432
          %434 = vst [vmem:[%s428] sm:$0xf] %v433
          %435 = vst.msk [vmem:[%s428 + $0x4] sm:$0xf] %vm283, %v423
          %vm436 = vcmask 24576
          %vm437 = vmand %vm436, %vm405
          %v438 = vld [vmem:[%s428 + $0x8] sm:$0x1]
          %v439 = vsel %vm437, %v424, %v438
          %440 = vst [vmem:[%s428 + $0x8] sm:$0x1] %v439
        $region56: #{tpu_custom_call.1} parent=43 // pred_fallthru
          _
        %p441 = scmp.ge.s32.totalorder %s345, 0
        %p442 = scmp.lt.s32.totalorder %s345, 16
        %p443 = pnand %p441, %p442
        %p444 = pneg %p443
        // Predicated region
        $region57: #{tpu_custom_call.1} parent=43 // pred_check
          _
        $region58: #{tpu_custom_call.1} parent=43 // pred_check_branch
          %446 = sbr.rel (%p443) target = $region60
        $region59: #{tpu_custom_call.1} parent=43 // pred_region
          %s447 = smul.u32 %s345, 2
          %s448 = smul.addr %s447, 4
          %s449 = scalar_lea.vmem %s280, %s448
          %v450 = vld [vmem:[%s449] sm:$0xf]
          %v451 = vld [vmem:[%s449 + $0x4] sm:$0xf]
          %vm452 = vsmask.f32 256
          %vm453 = vsmask.f32 4368
          %vm454 = vmor %vm452, %vm453
          %v456 = vshrl.u32 %v450, 16
          %v458 = vrot.slane %v456, 7
          %v459 = vshll.u32 %v450, 16
          %v461 = vor.u32 %v458, %v459
          %v462 = vrot.slane %v458, 4
          %v464 = vshrl.u32 %v451, 16
          %v466 = vrot.slane %v464, 7
          %v467 = vshll.u32 %v451, 16
          %v469 = vor.u32 %v466, %v467
          %v470 = vsel %vm454, %v462, %v469
          %v471 = vrot.slane %v466, 4
          %s475 = scalar_lea.vmem [#allocation2], 24
          %vm476 = vcmask 27648
          %vm477 = vsmask.f32 7938
          %vm478 = vmand %vm476, %vm477
          %v479 = vld [vmem:[%s475] sm:$0xf]
          %v480 = vsel %vm478, %v461, %v479
          %481 = vst [vmem:[%s475] sm:$0xf] %v480
          %482 = vst.msk [vmem:[%s475 + $0x4] sm:$0xf] %vm283, %v470
          %vm483 = vcmask 24576
          %vm484 = vmand %vm483, %vm452
          %v485 = vld [vmem:[%s475 + $0x8] sm:$0x1]
          %v486 = vsel %vm484, %v471, %v485
          %487 = vst [vmem:[%s475 + $0x8] sm:$0x1] %v486
        $region60: #{tpu_custom_call.1} parent=43 // pred_fallthru
          _
        %s488 = sadd.s32 %s345, 1
        %p489 = scmp.ge.s32.totalorder %s488, 0
        %p490 = scmp.lt.s32.totalorder %s488, 16
        %p491 = pnand %p489, %p490
        %p492 = pneg %p491
        // Predicated region
        $region61: #{tpu_custom_call.1} parent=43 // pred_check
          _
        $region62: #{tpu_custom_call.1} parent=43 // pred_check_branch
          %494 = sbr.rel (%p491) target = $region64
        $region63: #{tpu_custom_call.1} parent=43 // pred_region
          %s495 = smul.u32 %s488, 2
          %s496 = smul.addr %s495, 4
          %s497 = scalar_lea.vmem %s280, %s496
          %v498 = vld [vmem:[%s497] sm:$0xf]
          %v499 = vld [vmem:[%s497 + $0x4] sm:$0xf]
          %vm500 = vsmask.f32 256
          %vm501 = vsmask.f32 4368
          %vm502 = vmor %vm500, %vm501
          %v504 = vshrl.u32 %v498, 16
          %v506 = vrot.slane %v504, 7
          %v507 = vshll.u32 %v498, 16
          %v509 = vor.u32 %v506, %v507
          %v510 = vrot.slane %v506, 4
          %v512 = vshrl.u32 %v499, 16
          %v514 = vrot.slane %v512, 7
          %v515 = vshll.u32 %v499, 16
          %v517 = vor.u32 %v514, %v515
          %v518 = vsel %vm502, %v510, %v517
          %v519 = vrot.slane %v514, 4
          %s523 = scalar_lea.vmem [#allocation2], 36
          %vm524 = vcmask 27648
          %vm525 = vsmask.f32 7938
          %vm526 = vmand %vm524, %vm525
          %v527 = vld [vmem:[%s523] sm:$0xf]
          %v528 = vsel %vm526, %v509, %v527
          %529 = vst [vmem:[%s523] sm:$0xf] %v528
          %530 = vst.msk [vmem:[%s523 + $0x4] sm:$0xf] %vm283, %v518
          %vm531 = vcmask 24576
          %vm532 = vmand %vm531, %vm500
          %v533 = vld [vmem:[%s523 + $0x8] sm:$0x1]
          %v534 = vsel %vm532, %v519, %v533
          %535 = vst [vmem:[%s523 + $0x8] sm:$0x1] %v534
        $region64: #{tpu_custom_call.1} parent=43 // pred_fallthru
          _
        %s536 = sadd.s32 %s345, 2
        %p537 = scmp.ge.s32.totalorder %s536, 0
        %p538 = scmp.lt.s32.totalorder %s536, 16
        %p539 = pnand %p537, %p538
        %p540 = pneg %p539
        // Predicated region
        $region65: #{tpu_custom_call.1} parent=43 // pred_check
          _
        $region66: #{tpu_custom_call.1} parent=43 // pred_check_branch
          %542 = sbr.rel (%p539) target = $region68
        $region67: #{tpu_custom_call.1} parent=43 // pred_region
          %s543 = smul.u32 %s536, 2
          %s544 = smul.addr %s543, 4
          %s545 = scalar_lea.vmem %s280, %s544
          %v546 = vld [vmem:[%s545] sm:$0xf]
          %v547 = vld [vmem:[%s545 + $0x4] sm:$0xf]
          %vm548 = vsmask.f32 256
          %vm549 = vsmask.f32 4368
          %vm550 = vmor %vm548, %vm549
          %v552 = vshrl.u32 %v546, 16
          %v554 = vrot.slane %v552, 7
          %v555 = vshll.u32 %v546, 16
          %v557 = vor.u32 %v554, %v555
          %v558 = vrot.slane %v554, 4
          %v560 = vshrl.u32 %v547, 16
          %v562 = vrot.slane %v560, 7
          %v563 = vshll.u32 %v547, 16
          %v565 = vor.u32 %v562, %v563
          %v566 = vsel %vm550, %v558, %v565
          %v567 = vrot.slane %v562, 4
          %s571 = scalar_lea.vmem [#allocation2], 48
          %vm572 = vcmask 27648
          %vm573 = vsmask.f32 7938
          %vm574 = vmand %vm572, %vm573
          %v575 = vld [vmem:[%s571] sm:$0xf]
          %v576 = vsel %vm574, %v557, %v575
          %577 = vst [vmem:[%s571] sm:$0xf] %v576
          %578 = vst.msk [vmem:[%s571 + $0x4] sm:$0xf] %vm283, %v566
          %vm579 = vcmask 24576
          %vm580 = vmand %vm579, %vm548
          %v581 = vld [vmem:[%s571 + $0x8] sm:$0x1]
          %v582 = vsel %vm580, %v567, %v581
          %583 = vst [vmem:[%s571 + $0x8] sm:$0x1] %v582
        $region68: #{tpu_custom_call.1} parent=43 // pred_fallthru
          _
        %s584 = sadd.s32 %s345, 3
        %p585 = scmp.ge.s32.totalorder %s584, 0
        %p586 = scmp.lt.s32.totalorder %s584, 16
        %p587 = pnand %p585, %p586
        %p588 = pneg %p587
        // Predicated region
        $region69: #{tpu_custom_call.1} parent=43 // pred_check
          _
        $region70: #{tpu_custom_call.1} parent=43 // pred_check_branch
          %590 = sbr.rel (%p587) target = $region72
        $region71: #{tpu_custom_call.1} parent=43 // pred_region
          %s591 = smul.u32 %s584, 2
          %s592 = smul.addr %s591, 4
          %s593 = scalar_lea.vmem %s280, %s592
          %v594 = vld [vmem:[%s593] sm:$0xf]
          %v595 = vld [vmem:[%s593 + $0x4] sm:$0xf]
          %vm596 = vsmask.f32 256
          %vm597 = vsmask.f32 4368
          %vm598 = vmor %vm596, %vm597
          %v600 = vshrl.u32 %v594, 16
          %v602 = vrot.slane %v600, 7
          %v603 = vshll.u32 %v594, 16
          %v605 = vor.u32 %v602, %v603
          %v606 = vrot.slane %v602, 4
          %v608 = vshrl.u32 %v595, 16
          %v610 = vrot.slane %v608, 7
          %v611 = vshll.u32 %v595, 16
          %v613 = vor.u32 %v610, %v611
          %v614 = vsel %vm598, %v606, %v613
          %v615 = vrot.slane %v610, 4
          %s619 = scalar_lea.vmem [#allocation2], 60
          %vm620 = vcmask 27648
          %vm621 = vsmask.f32 7938
          %vm622 = vmand %vm620, %vm621
          %v623 = vld [vmem:[%s619] sm:$0xf]
          %v624 = vsel %vm622, %v605, %v623
          %625 = vst [vmem:[%s619] sm:$0xf] %v624
          %626 = vst.msk [vmem:[%s619 + $0x4] sm:$0xf] %vm283, %v614
          %vm627 = vcmask 24576
          %vm628 = vmand %vm627, %vm596
          %v629 = vld [vmem:[%s619 + $0x8] sm:$0x1]
          %v630 = vsel %vm628, %v615, %v629
          %631 = vst [vmem:[%s619 + $0x8] sm:$0x1] %v630
        $region72: #{tpu_custom_call.1} parent=43 // pred_fallthru
          _
        %s632 = sadd.s32 %s345, 4
        %p633 = scmp.ge.s32.totalorder %s632, 0
        %p634 = scmp.lt.s32.totalorder %s632, 16
        %p635 = pnand %p633, %p634
        %p636 = pneg %p635
        // Predicated region
        $region73: #{tpu_custom_call.1} parent=43 // pred_check
          _
        $region74: #{tpu_custom_call.1} parent=43 // pred_check_branch
          %638 = sbr.rel (%p635) target = $region76
        $region75: #{tpu_custom_call.1} parent=43 // pred_region
          %s639 = smul.u32 %s632, 2
          %s640 = smul.addr %s639, 4
          %s641 = scalar_lea.vmem %s280, %s640
          %v642 = vld [vmem:[%s641] sm:$0xf]
          %v643 = vld [vmem:[%s641 + $0x4] sm:$0xf]
          %vm644 = vsmask.f32 256
          %vm645 = vsmask.f32 4368
          %vm646 = vmor %vm644, %vm645
          %v648 = vshrl.u32 %v642, 16
          %v650 = vrot.slane %v648, 7
          %v651 = vshll.u32 %v642, 16
          %v653 = vor.u32 %v650, %v651
          %v654 = vrot.slane %v650, 4
          %v656 = vshrl.u32 %v643, 16
          %v658 = vrot.slane %v656, 7
          %v659 = vshll.u32 %v643, 16
          %v661 = vor.u32 %v658, %v659
          %v662 = vsel %vm646, %v654, %v661
          %v663 = vrot.slane %v658, 4
          %s667 = scalar_lea.vmem [#allocation2], 72
          %vm668 = vcmask 27648
          %vm669 = vsmask.f32 7938
          %vm670 = vmand %vm668, %vm669
          %v671 = vld [vmem:[%s667] sm:$0xf]
          %v672 = vsel %vm670, %v653, %v671
          %673 = vst [vmem:[%s667] sm:$0xf] %v672
          %674 = vst.msk [vmem:[%s667 + $0x4] sm:$0xf] %vm283, %v662
          %vm675 = vcmask 24576
          %vm676 = vmand %vm675, %vm644
          %v677 = vld [vmem:[%s667 + $0x8] sm:$0x1]
          %v678 = vsel %vm676, %v663, %v677
          %679 = vst [vmem:[%s667 + $0x8] sm:$0x1] %v678
        $region76: #{tpu_custom_call.1} parent=43 // pred_fallthru
          _
        %s680 = sadd.s32 %s345, 5
        %p681 = scmp.ge.s32.totalorder %s680, 0
        %p682 = scmp.lt.s32.totalorder %s680, 16
        %p683 = pnand %p681, %p682
        %p684 = pneg %p683
        // Predicated region
        $region77: #{tpu_custom_call.1} parent=43 // pred_check
          _
        $region78: #{tpu_custom_call.1} parent=43 // pred_check_branch
          %686 = sbr.rel (%p683) target = $region80
        $region79: #{tpu_custom_call.1} parent=43 // pred_region
          %s687 = smul.u32 %s680, 2
          %s688 = smul.addr %s687, 4
          %s689 = scalar_lea.vmem %s280, %s688
          %v690 = vld [vmem:[%s689] sm:$0xf]
          %v691 = vld [vmem:[%s689 + $0x4] sm:$0xf]
          %vm692 = vsmask.f32 256
          %vm693 = vsmask.f32 4368
          %vm694 = vmor %vm692, %vm693
          %v696 = vshrl.u32 %v690, 16
          %v698 = vrot.slane %v696, 7
          %v699 = vshll.u32 %v690, 16
          %v701 = vor.u32 %v698, %v699
          %v702 = vrot.slane %v698, 4
          %v704 = vshrl.u32 %v691, 16
          %v706 = vrot.slane %v704, 7
          %v707 = vshll.u32 %v691, 16
          %v709 = vor.u32 %v706, %v707
          %v710 = vsel %vm694, %v702, %v709
          %v711 = vrot.slane %v706, 4
          %s715 = scalar_lea.vmem [#allocation2], 84
          %vm716 = vcmask 27648
          %vm717 = vsmask.f32 7938
          %vm718 = vmand %vm716, %vm717
          %v719 = vld [vmem:[%s715] sm:$0xf]
          %v720 = vsel %vm718, %v701, %v719
          %721 = vst [vmem:[%s715] sm:$0xf] %v720
          %722 = vst.msk [vmem:[%s715 + $0x4] sm:$0xf] %vm283, %v710
          %vm723 = vcmask 24576
          %vm724 = vmand %vm723, %vm692
          %v725 = vld [vmem:[%s715 + $0x8] sm:$0x1]
          %v726 = vsel %vm724, %v711, %v725
          %727 = vst [vmem:[%s715 + $0x8] sm:$0x1] %v726
        $region80: #{tpu_custom_call.1} parent=43 // pred_fallthru
          _
        %s728 = sadd.s32 %s345, 6
        %p729 = scmp.ge.s32.totalorder %s728, 0
        %p730 = scmp.lt.s32.totalorder %s728, 16
        %p731 = pnand %p729, %p730
        %p732 = pneg %p731
        // Predicated region
        $region81: #{tpu_custom_call.1} parent=43 // pred_check
          _
        $region82: #{tpu_custom_call.1} parent=43 // pred_check_branch
          %734 = sbr.rel (%p731) target = $region84
        $region83: #{tpu_custom_call.1} parent=43 // pred_region
          %s735 = smul.u32 %s728, 2
          %s736 = smul.addr %s735, 4
          %s737 = scalar_lea.vmem %s280, %s736
          %v738 = vld [vmem:[%s737] sm:$0xf]
          %v739 = vld [vmem:[%s737 + $0x4] sm:$0xf]
          %vm740 = vsmask.f32 256
          %vm741 = vsmask.f32 4368
          %vm742 = vmor %vm740, %vm741
          %v744 = vshrl.u32 %v738, 16
          %v746 = vrot.slane %v744, 7
          %v747 = vshll.u32 %v738, 16
          %v749 = vor.u32 %v746, %v747
          %v750 = vrot.slane %v746, 4
          %v752 = vshrl.u32 %v739, 16
          %v754 = vrot.slane %v752, 7
          %v755 = vshll.u32 %v739, 16
          %v757 = vor.u32 %v754, %v755
          %v758 = vsel %vm742, %v750, %v757
          %v759 = vrot.slane %v754, 4
          %s763 = scalar_lea.vmem [#allocation2], 96
          %vm764 = vcmask 27648
          %vm765 = vsmask.f32 7938
          %vm766 = vmand %vm764, %vm765
          %v767 = vld [vmem:[%s763] sm:$0xf]
          %v768 = vsel %vm766, %v749, %v767
          %769 = vst [vmem:[%s763] sm:$0xf] %v768
          %770 = vst.msk [vmem:[%s763 + $0x4] sm:$0xf] %vm283, %v758
          %vm771 = vcmask 24576
          %vm772 = vmand %vm771, %vm740
          %v773 = vld [vmem:[%s763 + $0x8] sm:$0x1]
          %v774 = vsel %vm772, %v759, %v773
          %775 = vst [vmem:[%s763 + $0x8] sm:$0x1] %v774
        $region84: #{tpu_custom_call.1} parent=43 // pred_fallthru
          _
        %s776 = sadd.s32 %s345, 7
        %p777 = scmp.ge.s32.totalorder %s776, 0
        %p778 = scmp.lt.s32.totalorder %s776, 16
        %p779 = pnand %p777, %p778
        %p780 = pneg %p779
        // Predicated region
        $region85: #{tpu_custom_call.1} parent=43 // pred_check
          _
        $region86: #{tpu_custom_call.1} parent=43 // pred_check_branch
          %782 = sbr.rel (%p779) target = $region88
        $region87: #{tpu_custom_call.1} parent=43 // pred_region
          %s783 = smul.u32 %s776, 2
          %s784 = smul.addr %s783, 4
          %s785 = scalar_lea.vmem %s280, %s784
          %v786 = vld [vmem:[%s785] sm:$0xf]
          %v787 = vld [vmem:[%s785 + $0x4] sm:$0xf]
          %vm788 = vsmask.f32 256
          %vm789 = vsmask.f32 4368
          %vm790 = vmor %vm788, %vm789
          %v792 = vshrl.u32 %v786, 16
          %v794 = vrot.slane %v792, 7
          %v795 = vshll.u32 %v786, 16
          %v797 = vor.u32 %v794, %v795
          %v798 = vrot.slane %v794, 4
          %v800 = vshrl.u32 %v787, 16
          %v802 = vrot.slane %v800, 7
          %v803 = vshll.u32 %v787, 16
          %v805 = vor.u32 %v802, %v803
          %v806 = vsel %vm790, %v798, %v805
          %v807 = vrot.slane %v802, 4
          %s811 = scalar_lea.vmem [#allocation2], 108
          %vm812 = vcmask 27648
          %vm813 = vsmask.f32 7938
          %vm814 = vmand %vm812, %vm813
          %v815 = vld [vmem:[%s811] sm:$0xf]
          %v816 = vsel %vm814, %v797, %v815
          %817 = vst [vmem:[%s811] sm:$0xf] %v816
          %818 = vst.msk [vmem:[%s811 + $0x4] sm:$0xf] %vm283, %v806
          %vm819 = vcmask 24576
          %vm820 = vmand %vm819, %vm788
          %v821 = vld [vmem:[%s811 + $0x8] sm:$0x1]
          %v822 = vsel %vm820, %v807, %v821
          %823 = vst [vmem:[%s811 + $0x8] sm:$0x1] %v822
        $region88: #{tpu_custom_call.1} parent=43 // pred_fallthru
          _
        %s824 = sadd.s32 %s345, 8
        %p825 = scmp.ge.s32.totalorder %s824, 0
        %p826 = scmp.lt.s32.totalorder %s824, 16
        %p827 = pnand %p825, %p826
        %p828 = pneg %p827
        // Predicated region
        $region89: #{tpu_custom_call.1} parent=43 // pred_check
          _
        $region90: #{tpu_custom_call.1} parent=43 // pred_check_branch
          %830 = sbr.rel (%p827) target = $region92
        $region91: #{tpu_custom_call.1} parent=43 // pred_region
          %s831 = smul.u32 %s824, 2
          %s832 = smul.addr %s831, 4
          %s833 = scalar_lea.vmem %s280, %s832
          %v834 = vld [vmem:[%s833] sm:$0xf]
          %v835 = vld [vmem:[%s833 + $0x4] sm:$0xf]
          %vm836 = vsmask.f32 256
          %vm837 = vsmask.f32 4368
          %vm838 = vmor %vm836, %vm837
          %v840 = vshrl.u32 %v834, 16
          %v842 = vrot.slane %v840, 7
          %v843 = vshll.u32 %v834, 16
          %v845 = vor.u32 %v842, %v843
          %v846 = vrot.slane %v842, 4
          %v848 = vshrl.u32 %v835, 16
          %v850 = vrot.slane %v848, 7
          %v851 = vshll.u32 %v835, 16
          %v853 = vor.u32 %v850, %v851
          %v854 = vsel %vm838, %v846, %v853
          %v855 = vrot.slane %v850, 4
          %s859 = scalar_lea.vmem [#allocation2], 120
          %vm860 = vcmask 27648
          %vm861 = vsmask.f32 7938
          %vm862 = vmand %vm860, %vm861
          %v863 = vld [vmem:[%s859] sm:$0xf]
          %v864 = vsel %vm862, %v845, %v863
          %865 = vst [vmem:[%s859] sm:$0xf] %v864
          %866 = vst.msk [vmem:[%s859 + $0x4] sm:$0xf] %vm283, %v854
          %vm867 = vcmask 24576
          %vm868 = vmand %vm867, %vm836
          %v869 = vld [vmem:[%s859 + $0x8] sm:$0x1]
          %v870 = vsel %vm868, %v855, %v869
          %871 = vst [vmem:[%s859 + $0x8] sm:$0x1] %v870
        $region92: #{tpu_custom_call.1} parent=43 // pred_fallthru
          _
        %s872 = sadd.s32 %s345, 9
        %p873 = scmp.ge.s32.totalorder %s872, 0
        %p874 = scmp.lt.s32.totalorder %s872, 16
        %p875 = pnand %p873, %p874
        %p876 = pneg %p875
        // Predicated region
        $region93: #{tpu_custom_call.1} parent=43 // pred_check
          _
        $region94: #{tpu_custom_call.1} parent=43 // pred_check_branch
          %878 = sbr.rel (%p875) target = $region96
        $region95: #{tpu_custom_call.1} parent=43 // pred_region
          %s879 = smul.u32 %s872, 2
          %s880 = smul.addr %s879, 4
          %s881 = scalar_lea.vmem %s280, %s880
          %v882 = vld [vmem:[%s881] sm:$0xf]
          %v883 = vld [vmem:[%s881 + $0x4] sm:$0xf]
          %vm884 = vsmask.f32 256
          %vm885 = vsmask.f32 4368
          %vm886 = vmor %vm884, %vm885
          %v888 = vshrl.u32 %v882, 16
          %v890 = vrot.slane %v888, 7
          %v891 = vshll.u32 %v882, 16
          %v893 = vor.u32 %v890, %v891
          %v894 = vrot.slane %v890, 4
          %v896 = vshrl.u32 %v883, 16
          %v898 = vrot.slane %v896, 7
          %v899 = vshll.u32 %v883, 16
          %v901 = vor.u32 %v898, %v899
          %v902 = vsel %vm886, %v894, %v901
          %v903 = vrot.slane %v898, 4
          %s907 = scalar_lea.vmem [#allocation2], 132
          %vm908 = vcmask 27648
          %vm909 = vsmask.f32 7938
          %vm910 = vmand %vm908, %vm909
          %v911 = vld [vmem:[%s907] sm:$0xf]
          %v912 = vsel %vm910, %v893, %v911
          %913 = vst [vmem:[%s907] sm:$0xf] %v912
          %914 = vst.msk [vmem:[%s907 + $0x4] sm:$0xf] %vm283, %v902
          %vm915 = vcmask 24576
          %vm916 = vmand %vm915, %vm884
          %v917 = vld [vmem:[%s907 + $0x8] sm:$0x1]
          %v918 = vsel %vm916, %v903, %v917
          %919 = vst [vmem:[%s907 + $0x8] sm:$0x1] %v918
        $region96: #{tpu_custom_call.1} parent=43 // pred_fallthru
          _
        %s920 = sadd.s32 %s345, 10
        %p921 = scmp.ge.s32.totalorder %s920, 0
        %p922 = scmp.lt.s32.totalorder %s920, 16
        %p923 = pnand %p921, %p922
        %p924 = pneg %p923
        // Predicated region
        $region97: #{tpu_custom_call.1} parent=43 // pred_check
          _
        $region98: #{tpu_custom_call.1} parent=43 // pred_check_branch
          %926 = sbr.rel (%p923) target = $region100
        $region99: #{tpu_custom_call.1} parent=43 // pred_region
          %s927 = smul.u32 %s920, 2
          %s928 = smul.addr %s927, 4
          %s929 = scalar_lea.vmem %s280, %s928
          %v930 = vld [vmem:[%s929] sm:$0xf]
          %v931 = vld [vmem:[%s929 + $0x4] sm:$0xf]
          %vm932 = vsmask.f32 256
          %vm933 = vsmask.f32 4368
          %vm934 = vmor %vm932, %vm933
          %v936 = vshrl.u32 %v930, 16
          %v938 = vrot.slane %v936, 7
          %v939 = vshll.u32 %v930, 16
          %v941 = vor.u32 %v938, %v939
          %v942 = vrot.slane %v938, 4
          %v944 = vshrl.u32 %v931, 16
          %v946 = vrot.slane %v944, 7
          %v947 = vshll.u32 %v931, 16
          %v949 = vor.u32 %v946, %v947
          %v950 = vsel %vm934, %v942, %v949
          %v951 = vrot.slane %v946, 4
          %s955 = scalar_lea.vmem [#allocation2], 144
          %vm956 = vcmask 27648
          %vm957 = vsmask.f32 7938
          %vm958 = vmand %vm956, %vm957
          %v959 = vld [vmem:[%s955] sm:$0xf]
          %v960 = vsel %vm958, %v941, %v959
          %961 = vst [vmem:[%s955] sm:$0xf] %v960
          %962 = vst.msk [vmem:[%s955 + $0x4] sm:$0xf] %vm283, %v950
          %vm963 = vcmask 24576
          %vm964 = vmand %vm963, %vm932
          %v965 = vld [vmem:[%s955 + $0x8] sm:$0x1]
          %v966 = vsel %vm964, %v951, %v965
          %967 = vst [vmem:[%s955 + $0x8] sm:$0x1] %v966
        $region100: #{tpu_custom_call.1} parent=43 // pred_fallthru
          _
        %s968 = sadd.s32 %s345, 11
        %p969 = scmp.ge.s32.totalorder %s968, 0
        %p970 = scmp.lt.s32.totalorder %s968, 16
        %p971 = pnand %p969, %p970
        %p972 = pneg %p971
        // Predicated region
        $region101: #{tpu_custom_call.1} parent=43 // pred_check
          _
        $region102: #{tpu_custom_call.1} parent=43 // pred_check_branch
          %974 = sbr.rel (%p971) target = $region104
        $region103: #{tpu_custom_call.1} parent=43 // pred_region
          %s975 = smul.u32 %s968, 2
          %s976 = smul.addr %s975, 4
          %s977 = scalar_lea.vmem %s280, %s976
          %v978 = vld [vmem:[%s977] sm:$0xf]
          %v979 = vld [vmem:[%s977 + $0x4] sm:$0xf]
          %vm980 = vsmask.f32 256
          %vm981 = vsmask.f32 4368
          %vm982 = vmor %vm980, %vm981
          %v984 = vshrl.u32 %v978, 16
          %v986 = vrot.slane %v984, 7
          %v987 = vshll.u32 %v978, 16
          %v989 = vor.u32 %v986, %v987
          %v990 = vrot.slane %v986, 4
          %v992 = vshrl.u32 %v979, 16
          %v994 = vrot.slane %v992, 7
          %v995 = vshll.u32 %v979, 16
          %v997 = vor.u32 %v994, %v995
          %v998 = vsel %vm982, %v990, %v997
          %v999 = vrot.slane %v994, 4
          %s1003 = scalar_lea.vmem [#allocation2], 156
          %vm1004 = vcmask 27648
          %vm1005 = vsmask.f32 7938
          %vm1006 = vmand %vm1004, %vm1005
          %v1007 = vld [vmem:[%s1003] sm:$0xf]
          %v1008 = vsel %vm1006, %v989, %v1007
          %1009 = vst [vmem:[%s1003] sm:$0xf] %v1008
          %1010 = vst.msk [vmem:[%s1003 + $0x4] sm:$0xf] %vm283, %v998
          %vm1011 = vcmask 24576
          %vm1012 = vmand %vm1011, %vm980
          %v1013 = vld [vmem:[%s1003 + $0x8] sm:$0x1]
          %v1014 = vsel %vm1012, %v999, %v1013
          %1015 = vst [vmem:[%s1003 + $0x8] sm:$0x1] %v1014
        $region104: #{tpu_custom_call.1} parent=43 // pred_fallthru
          _
        %s1016 = sadd.s32 %s345, 12
        %p1017 = scmp.ge.s32.totalorder %s1016, 0
        %p1018 = scmp.lt.s32.totalorder %s1016, 16
        %p1019 = pnand %p1017, %p1018
        %p1020 = pneg %p1019
        // Predicated region
        $region105: #{tpu_custom_call.1} parent=43 // pred_check
          _
        $region106: #{tpu_custom_call.1} parent=43 // pred_check_branch
          %1022 = sbr.rel (%p1019) target = $region108
        $region107: #{tpu_custom_call.1} parent=43 // pred_region
          %s1023 = smul.u32 %s1016, 2
          %s1024 = smul.addr %s1023, 4
          %s1025 = scalar_lea.vmem %s280, %s1024
          %v1026 = vld [vmem:[%s1025] sm:$0xf]
          %v1027 = vld [vmem:[%s1025 + $0x4] sm:$0xf]
          %vm1028 = vsmask.f32 256
          %vm1029 = vsmask.f32 4368
          %vm1030 = vmor %vm1028, %vm1029
          %v1032 = vshrl.u32 %v1026, 16
          %v1034 = vrot.slane %v1032, 7
          %v1035 = vshll.u32 %v1026, 16
          %v1037 = vor.u32 %v1034, %v1035
          %v1038 = vrot.slane %v1034, 4
          %v1040 = vshrl.u32 %v1027, 16
          %v1042 = vrot.slane %v1040, 7
          %v1043 = vshll.u32 %v1027, 16
          %v1045 = vor.u32 %v1042, %v1043
          %v1046 = vsel %vm1030, %v1038, %v1045
          %v1047 = vrot.slane %v1042, 4
          %s1051 = scalar_lea.vmem [#allocation2], 168
          %vm1052 = vcmask 27648
          %vm1053 = vsmask.f32 7938
          %vm1054 = vmand %vm1052, %vm1053
          %v1055 = vld [vmem:[%s1051] sm:$0xf]
          %v1056 = vsel %vm1054, %v1037, %v1055
          %1057 = vst [vmem:[%s1051] sm:$0xf] %v1056
          %1058 = vst.msk [vmem:[%s1051 + $0x4] sm:$0xf] %vm283, %v1046
          %vm1059 = vcmask 24576
          %vm1060 = vmand %vm1059, %vm1028
          %v1061 = vld [vmem:[%s1051 + $0x8] sm:$0x1]
          %v1062 = vsel %vm1060, %v1047, %v1061
          %1063 = vst [vmem:[%s1051 + $0x8] sm:$0x1] %v1062
        $region108: #{tpu_custom_call.1} parent=43 // pred_fallthru
          _
        %s1064 = sadd.s32 %s345, 13
        %p1065 = scmp.ge.s32.totalorder %s1064, 0
        %p1066 = scmp.lt.s32.totalorder %s1064, 16
        %p1067 = pnand %p1065, %p1066
        %p1068 = pneg %p1067
        // Predicated region
        $region109: #{tpu_custom_call.1} parent=43 // pred_check
          _
        $region110: #{tpu_custom_call.1} parent=43 // pred_check_branch
          %1070 = sbr.rel (%p1067) target = $region112
        $region111: #{tpu_custom_call.1} parent=43 // pred_region
          %s1071 = smul.u32 %s1064, 2
          %s1072 = smul.addr %s1071, 4
          %s1073 = scalar_lea.vmem %s280, %s1072
          %v1074 = vld [vmem:[%s1073] sm:$0xf]
          %v1075 = vld [vmem:[%s1073 + $0x4] sm:$0xf]
          %vm1076 = vsmask.f32 256
          %vm1077 = vsmask.f32 4368
          %vm1078 = vmor %vm1076, %vm1077
          %v1080 = vshrl.u32 %v1074, 16
          %v1082 = vrot.slane %v1080, 7
          %v1083 = vshll.u32 %v1074, 16
          %v1085 = vor.u32 %v1082, %v1083
          %v1086 = vrot.slane %v1082, 4
          %v1088 = vshrl.u32 %v1075, 16
          %v1090 = vrot.slane %v1088, 7
          %v1091 = vshll.u32 %v1075, 16
          %v1093 = vor.u32 %v1090, %v1091
          %v1094 = vsel %vm1078, %v1086, %v1093
          %v1095 = vrot.slane %v1090, 4
          %s1099 = scalar_lea.vmem [#allocation2], 180
          %vm1100 = vcmask 27648
          %vm1101 = vsmask.f32 7938
          %vm1102 = vmand %vm1100, %vm1101
          %v1103 = vld [vmem:[%s1099] sm:$0xf]
          %v1104 = vsel %vm1102, %v1085, %v1103
          %1105 = vst [vmem:[%s1099] sm:$0xf] %v1104
          %1106 = vst.msk [vmem:[%s1099 + $0x4] sm:$0xf] %vm283, %v1094
          %vm1107 = vcmask 24576
          %vm1108 = vmand %vm1107, %vm1076
          %v1109 = vld [vmem:[%s1099 + $0x8] sm:$0x1]
          %v1110 = vsel %vm1108, %v1095, %v1109
          %1111 = vst [vmem:[%s1099 + $0x8] sm:$0x1] %v1110
        $region112: #{tpu_custom_call.1} parent=43 // pred_fallthru
          _
        %s1112 = sadd.s32 %s345, 14
        %p1113 = scmp.ge.s32.totalorder %s1112, 0
        %p1114 = scmp.lt.s32.totalorder %s1112, 16
        %p1115 = pnand %p1113, %p1114
        %p1116 = pneg %p1115
        // Predicated region
        $region113: #{tpu_custom_call.1} parent=43 // pred_check
          _
        $region114: #{tpu_custom_call.1} parent=43 // pred_check_branch
          %1118 = sbr.rel (%p1115) target = $region116
        $region115: #{tpu_custom_call.1} parent=43 // pred_region
          %s1119 = smul.u32 %s1112, 2
          %s1120 = smul.addr %s1119, 4
          %s1121 = scalar_lea.vmem %s280, %s1120
          %v1122 = vld [vmem:[%s1121] sm:$0xf]
          %v1123 = vld [vmem:[%s1121 + $0x4] sm:$0xf]
          %vm1124 = vsmask.f32 256
          %vm1125 = vsmask.f32 4368
          %vm1126 = vmor %vm1124, %vm1125
          %v1128 = vshrl.u32 %v1122, 16
          %v1130 = vrot.slane %v1128, 7
          %v1131 = vshll.u32 %v1122, 16
          %v1133 = vor.u32 %v1130, %v1131
          %v1134 = vrot.slane %v1130, 4
          %v1136 = vshrl.u32 %v1123, 16
          %v1138 = vrot.slane %v1136, 7
          %v1139 = vshll.u32 %v1123, 16
          %v1141 = vor.u32 %v1138, %v1139
          %v1142 = vsel %vm1126, %v1134, %v1141
          %v1143 = vrot.slane %v1138, 4
          %s1147 = scalar_lea.vmem [#allocation2], 192
          %vm1148 = vcmask 27648
          %vm1149 = vsmask.f32 7938
          %vm1150 = vmand %vm1148, %vm1149
          %v1151 = vld [vmem:[%s1147] sm:$0xf]
          %v1152 = vsel %vm1150, %v1133, %v1151
          %1153 = vst [vmem:[%s1147] sm:$0xf] %v1152
          %1154 = vst.msk [vmem:[%s1147 + $0x4] sm:$0xf] %vm283, %v1142
          %vm1155 = vcmask 24576
          %vm1156 = vmand %vm1155, %vm1124
          %v1157 = vld [vmem:[%s1147 + $0x8] sm:$0x1]
          %v1158 = vsel %vm1156, %v1143, %v1157
          %1159 = vst [vmem:[%s1147 + $0x8] sm:$0x1] %v1158
        $region116: #{tpu_custom_call.1} parent=43 // pred_fallthru
          _
        %s1160 = sadd.s32 %s345, 15
        %p1161 = scmp.ge.s32.totalorder %s1160, 0
        %p1162 = scmp.lt.s32.totalorder %s1160, 16
        %p1163 = pnand %p1161, %p1162
        %p1164 = pneg %p1163
        // Predicated region
        $region117: #{tpu_custom_call.1} parent=43 // pred_check
          _
        $region118: #{tpu_custom_call.1} parent=43 // pred_check_branch
          %1166 = sbr.rel (%p1163) target = $region120
        $region119: #{tpu_custom_call.1} parent=43 // pred_region
          %s1167 = smul.u32 %s1160, 2
          %s1168 = smul.addr %s1167, 4
          %s1169 = scalar_lea.vmem %s280, %s1168
          %v1170 = vld [vmem:[%s1169] sm:$0xf]
          %v1171 = vld [vmem:[%s1169 + $0x4] sm:$0xf]
          %vm1172 = vsmask.f32 256
          %vm1173 = vsmask.f32 4368
          %vm1174 = vmor %vm1172, %vm1173
          %v1176 = vshrl.u32 %v1170, 16
          %v1178 = vrot.slane %v1176, 7
          %v1179 = vshll.u32 %v1170, 16
          %v1181 = vor.u32 %v1178, %v1179
          %v1182 = vrot.slane %v1178, 4
          %v1184 = vshrl.u32 %v1171, 16
          %v1186 = vrot.slane %v1184, 7
          %v1187 = vshll.u32 %v1171, 16
          %v1189 = vor.u32 %v1186, %v1187
          %v1190 = vsel %vm1174, %v1182, %v1189
          %v1191 = vrot.slane %v1186, 4
          %s1195 = scalar_lea.vmem [#allocation2], 204
          %vm1196 = vcmask 27648
          %vm1197 = vsmask.f32 7938
          %vm1198 = vmand %vm1196, %vm1197
          %v1199 = vld [vmem:[%s1195] sm:$0xf]
          %v1200 = vsel %vm1198, %v1181, %v1199
          %1201 = vst [vmem:[%s1195] sm:$0xf] %v1200
          %1202 = vst.msk [vmem:[%s1195 + $0x4] sm:$0xf] %vm283, %v1190
          %vm1203 = vcmask 24576
          %vm1204 = vmand %vm1203, %vm1172
          %v1205 = vld [vmem:[%s1195 + $0x8] sm:$0x1]
          %v1206 = vsel %vm1204, %v1191, %v1205
          %1207 = vst [vmem:[%s1195 + $0x8] sm:$0x1] %v1206
        $region120: #{tpu_custom_call.1} parent=43 // pred_fallthru
          _
        %s1208 = sadd.s32 %s345, 16
        %p1209 = scmp.ge.s32.totalorder %s1208, 0
        %p1210 = scmp.lt.s32.totalorder %s1208, 16
        %p1211 = pnand %p1209, %p1210
        %p1212 = pneg %p1211
        // Predicated region
        $region121: #{tpu_custom_call.1} parent=43 // pred_check
          _
        $region122: #{tpu_custom_call.1} parent=43 // pred_check_branch
          %1214 = sbr.rel (%p1211) target = $region124
        $region123: #{tpu_custom_call.1} parent=43 // pred_region
          %s1215 = smul.u32 %s1208, 2
          %s1216 = smul.addr %s1215, 4
          %s1217 = scalar_lea.vmem %s280, %s1216
          %v1218 = vld [vmem:[%s1217] sm:$0xf]
          %v1219 = vld [vmem:[%s1217 + $0x4] sm:$0xf]
          %vm1220 = vsmask.f32 256
          %vm1221 = vsmask.f32 4368
          %vm1222 = vmor %vm1220, %vm1221
          %v1224 = vshrl.u32 %v1218, 16
          %v1226 = vrot.slane %v1224, 7
          %v1227 = vshll.u32 %v1218, 16
          %v1229 = vor.u32 %v1226, %v1227
          %v1230 = vrot.slane %v1226, 4
          %v1232 = vshrl.u32 %v1219, 16
          %v1234 = vrot.slane %v1232, 7
          %v1235 = vshll.u32 %v1219, 16
          %v1237 = vor.u32 %v1234, %v1235
          %v1238 = vsel %vm1222, %v1230, %v1237
          %v1239 = vrot.slane %v1234, 4
          %s1243 = scalar_lea.vmem [#allocation2], 216
          %vm1244 = vcmask 27648
          %vm1245 = vsmask.f32 7938
          %vm1246 = vmand %vm1244, %vm1245
          %v1247 = vld [vmem:[%s1243] sm:$0xf]
          %v1248 = vsel %vm1246, %v1229, %v1247
          %1249 = vst [vmem:[%s1243] sm:$0xf] %v1248
          %1250 = vst.msk [vmem:[%s1243 + $0x4] sm:$0xf] %vm283, %v1238
          %vm1251 = vcmask 24576
          %vm1252 = vmand %vm1251, %vm1220
          %v1253 = vld [vmem:[%s1243 + $0x8] sm:$0x1]
          %v1254 = vsel %vm1252, %v1239, %v1253
          %1255 = vst [vmem:[%s1243 + $0x8] sm:$0x1] %v1254
        $region124: #{tpu_custom_call.1} parent=43 // pred_fallthru
          _
        %s1256 = sadd.s32 %s345, 17
        %p1257 = scmp.ge.s32.totalorder %s1256, 0
        %p1258 = scmp.lt.s32.totalorder %s1256, 16
        %p1259 = pnand %p1257, %p1258
        %p1260 = pneg %p1259
        // Predicated region
        $region125: #{tpu_custom_call.1} parent=43 // pred_check
          _
        $region126: #{tpu_custom_call.1} parent=43 // pred_check_branch
          %1262 = sbr.rel (%p1259) target = $region128
        $region127: #{tpu_custom_call.1} parent=43 // pred_region
          %s1263 = smul.u32 %s1256, 2
          %s1264 = smul.addr %s1263, 4
          %s1265 = scalar_lea.vmem %s280, %s1264
          %v1266 = vld [vmem:[%s1265] sm:$0xf]
          %v1267 = vld [vmem:[%s1265 + $0x4] sm:$0xf]
          %vm1268 = vsmask.f32 256
          %vm1269 = vsmask.f32 4368
          %vm1270 = vmor %vm1268, %vm1269
          %v1272 = vshrl.u32 %v1266, 16
          %v1274 = vrot.slane %v1272, 7
          %v1275 = vshll.u32 %v1266, 16
          %v1277 = vor.u32 %v1274, %v1275
          %v1278 = vrot.slane %v1274, 4
          %v1280 = vshrl.u32 %v1267, 16
          %v1282 = vrot.slane %v1280, 7
          %v1283 = vshll.u32 %v1267, 16
          %v1285 = vor.u32 %v1282, %v1283
          %v1286 = vsel %vm1270, %v1278, %v1285
          %v1287 = vrot.slane %v1282, 4
          %s1291 = scalar_lea.vmem [#allocation2], 228
          %vm1292 = vcmask 27648
          %vm1293 = vsmask.f32 7938
          %vm1294 = vmand %vm1292, %vm1293
          %v1295 = vld [vmem:[%s1291] sm:$0xf]
          %v1296 = vsel %vm1294, %v1277, %v1295
          %1297 = vst [vmem:[%s1291] sm:$0xf] %v1296
          %1298 = vst.msk [vmem:[%s1291 + $0x4] sm:$0xf] %vm283, %v1286
          %vm1299 = vcmask 24576
          %vm1300 = vmand %vm1299, %vm1268
          %v1301 = vld [vmem:[%s1291 + $0x8] sm:$0x1]
          %v1302 = vsel %vm1300, %v1287, %v1301
          %1303 = vst [vmem:[%s1291 + $0x8] sm:$0x1] %v1302
        $region128: #{tpu_custom_call.1} parent=43 // pred_fallthru
          _
        %v1304 = vld [vmem:[#allocation2] sm:$0xf]
        %v1305 = vld [vmem:[#allocation2 + $0x4] sm:$0xf]
        %v1306 = vld [vmem:[#allocation2 + $0xc] sm:$0xf]
        %v1307 = vld [vmem:[#allocation2 + $0x10] sm:$0xf]
        %v1308 = vld [vmem:[#allocation2 + $0x18] sm:$0xf]
        %v1309 = vld [vmem:[#allocation2 + $0x1c] sm:$0xf]
        %v1310 = vld [vmem:[#allocation2 + $0x24] sm:$0xf]
        %v1311 = vld [vmem:[#allocation2 + $0x28] sm:$0xf]
        %v1312 = vld [vmem:[#allocation2 + $0x30] sm:$0xf]
        %v1313 = vld [vmem:[#allocation2 + $0x34] sm:$0xf]
        %v1314 = vld [vmem:[#allocation2 + $0x3c] sm:$0xf]
        %v1315 = vld [vmem:[#allocation2 + $0x40] sm:$0xf]
        %v1316 = vld [vmem:[#allocation2 + $0x48] sm:$0xf]
        %v1317 = vld [vmem:[#allocation2 + $0x4c] sm:$0xf]
        %v1318 = vld [vmem:[#allocation2 + $0x54] sm:$0xf]
        %v1319 = vld [vmem:[#allocation2 + $0x58] sm:$0xf]
        %v1320 = vld [vmem:[#allocation2 + $0x60] sm:$0xf]
        %v1321 = vld [vmem:[#allocation2 + $0x64] sm:$0xf]
        %v1322 = vld [vmem:[#allocation2 + $0x6c] sm:$0xf]
        %v1323 = vld [vmem:[#allocation2 + $0x70] sm:$0xf]
        %v1324 = vld [vmem:[#allocation2 + $0x78] sm:$0xf]
        %v1325 = vld [vmem:[#allocation2 + $0x7c] sm:$0xf]
        %v1326 = vld [vmem:[#allocation2 + $0x84] sm:$0xf]
        %v1327 = vld [vmem:[#allocation2 + $0x88] sm:$0xf]
        %v1328 = vld [vmem:[#allocation2 + $0x90] sm:$0xf]
        %v1329 = vld [vmem:[#allocation2 + $0x94] sm:$0xf]
        %v1330 = vld [vmem:[#allocation2 + $0x9c] sm:$0xf]
        %v1331 = vld [vmem:[#allocation2 + $0xa0] sm:$0xf]
        %v1332 = vld [vmem:[#allocation2 + $0xa8] sm:$0xf]
        %v1333 = vld [vmem:[#allocation2 + $0xac] sm:$0xf]
        %v1334 = vld [vmem:[#allocation2 + $0xb4] sm:$0xf]
        %v1335 = vld [vmem:[#allocation2 + $0xb8] sm:$0xf]
        %v1336 = vld [vmem:[#allocation2 + $0xc0] sm:$0xf]
        %v1337 = vld [vmem:[#allocation2 + $0xc4] sm:$0xf]
        %v1338 = vld [vmem:[#allocation2 + $0xcc] sm:$0xf]
        %v1339 = vld [vmem:[#allocation2 + $0xd0] sm:$0xf]
        %v1340 = vld [vmem:[#allocation2 + $0x8] sm:$0x1]
        %v1341 = vld [vmem:[#allocation2 + $0x14] sm:$0x1]
        %v1342 = vld [vmem:[#allocation2 + $0x20] sm:$0x1]
        %v1343 = vld [vmem:[#allocation2 + $0x2c] sm:$0x1]
        %v1344 = vld [vmem:[#allocation2 + $0x38] sm:$0x1]
        %v1345 = vld [vmem:[#allocation2 + $0x44] sm:$0x1]
        %v1346 = vld [vmem:[#allocation2 + $0x50] sm:$0x1]
        %v1347 = vld [vmem:[#allocation2 + $0x5c] sm:$0x1]
        %v1348 = vld [vmem:[#allocation2 + $0x68] sm:$0x1]
        %v1349 = vld [vmem:[#allocation2 + $0x74] sm:$0x1]
        %v1350 = vld [vmem:[#allocation2 + $0x80] sm:$0x1]
        %v1351 = vld [vmem:[#allocation2 + $0x8c] sm:$0x1]
        %v1352 = vld [vmem:[#allocation2 + $0x98] sm:$0x1]
        %v1353 = vld [vmem:[#allocation2 + $0xa4] sm:$0x1]
        %v1354 = vld [vmem:[#allocation2 + $0xb0] sm:$0x1]
        %v1355 = vld [vmem:[#allocation2 + $0xbc] sm:$0x1]
        %v1356 = vld [vmem:[#allocation2 + $0xc8] sm:$0x1]
        %v1357 = vld [vmem:[#allocation2 + $0xd4] sm:$0x1]
        %v1358 = vld [vmem:[#allocation2] sm:$0xe]
        %v1359 = vld [vmem:[#allocation2 + $0xc] sm:$0xe]
        %v1360 = vld [vmem:[#allocation2 + $0x18] sm:$0xe]
        %v1361 = vld [vmem:[#allocation2 + $0x24] sm:$0xe]
        %v1362 = vld [vmem:[#allocation2 + $0x30] sm:$0xe]
        %v1363 = vld [vmem:[#allocation2 + $0x3c] sm:$0xe]
        %v1364 = vld [vmem:[#allocation2 + $0x48] sm:$0xe]
        %v1365 = vld [vmem:[#allocation2 + $0x54] sm:$0xe]
        %v1366 = vld [vmem:[#allocation2 + $0x60] sm:$0xe]
        %v1367 = vld [vmem:[#allocation2 + $0x6c] sm:$0xe]
        %v1368 = vld [vmem:[#allocation2 + $0x78] sm:$0xe]
        %v1369 = vld [vmem:[#allocation2 + $0x84] sm:$0xe]
        %v1370 = vld [vmem:[#allocation2 + $0x90] sm:$0xe]
        %v1371 = vld [vmem:[#allocation2 + $0x9c] sm:$0xe]
        %v1372 = vld [vmem:[#allocation2 + $0xa8] sm:$0xe]
        %v1373 = vld [vmem:[#allocation2 + $0xb4] sm:$0xe]
        %v1374 = vld [vmem:[#allocation2 + $0xc0] sm:$0xe]
        %v1375 = vld [vmem:[#allocation2 + $0xcc] sm:$0xe]
        %s1376 = scalar_lea.vmem [#allocation2], 12
        %v1377 = vld [vmem:[%s1376] sm:$0xf]
        %v1378 = vld [vmem:[%s1376 + $0x4] sm:$0xf]
        %v1379 = vld [vmem:[%s1376 + $0xc] sm:$0xf]
        %v1380 = vld [vmem:[%s1376 + $0x10] sm:$0xf]
        %v1381 = vld [vmem:[%s1376 + $0x18] sm:$0xf]
        %v1382 = vld [vmem:[%s1376 + $0x1c] sm:$0xf]
        %v1383 = vld [vmem:[%s1376 + $0x24] sm:$0xf]
        %v1384 = vld [vmem:[%s1376 + $0x28] sm:$0xf]
        %v1385 = vld [vmem:[%s1376 + $0x30] sm:$0xf]
        %v1386 = vld [vmem:[%s1376 + $0x34] sm:$0xf]
        %v1387 = vld [vmem:[%s1376 + $0x3c] sm:$0xf]
        %v1388 = vld [vmem:[%s1376 + $0x40] sm:$0xf]
        %v1389 = vld [vmem:[%s1376 + $0x48] sm:$0xf]
        %v1390 = vld [vmem:[%s1376 + $0x4c] sm:$0xf]
        %v1391 = vld [vmem:[%s1376 + $0x54] sm:$0xf]
        %v1392 = vld [vmem:[%s1376 + $0x58] sm:$0xf]
        %v1393 = vld [vmem:[%s1376 + $0x60] sm:$0xf]
        %v1394 = vld [vmem:[%s1376 + $0x64] sm:$0xf]
        %v1395 = vld [vmem:[%s1376 + $0x6c] sm:$0xf]
        %v1396 = vld [vmem:[%s1376 + $0x70] sm:$0xf]
        %v1397 = vld [vmem:[%s1376 + $0x78] sm:$0xf]
        %v1398 = vld [vmem:[%s1376 + $0x7c] sm:$0xf]
        %v1399 = vld [vmem:[%s1376 + $0x84] sm:$0xf]
        %v1400 = vld [vmem:[%s1376 + $0x88] sm:$0xf]
        %v1401 = vld [vmem:[%s1376 + $0x90] sm:$0xf]
        %v1402 = vld [vmem:[%s1376 + $0x94] sm:$0xf]
        %v1403 = vld [vmem:[%s1376 + $0x9c] sm:$0xf]
        %v1404 = vld [vmem:[%s1376 + $0xa0] sm:$0xf]
        %v1405 = vld [vmem:[%s1376 + $0xa8] sm:$0xf]
        %v1406 = vld [vmem:[%s1376 + $0xac] sm:$0xf]
        %v1407 = vld [vmem:[%s1376 + $0xb4] sm:$0xf]
        %v1408 = vld [vmem:[%s1376 + $0xb8] sm:$0xf]
        %v1409 = vld [vmem:[%s1376 + $0xc0] sm:$0xf]
        %v1410 = vld [vmem:[%s1376 + $0xc4] sm:$0xf]
        %v1411 = vld [vmem:[%s1376 + $0xcc] sm:$0xf]
        %v1412 = vld [vmem:[%s1376 + $0xd0] sm:$0xf]
        %v1413 = vld [vmem:[%s1376 + $0x8] sm:$0x1]
        %v1414 = vld [vmem:[%s1376 + $0x14] sm:$0x1]
        %v1415 = vld [vmem:[%s1376 + $0x20] sm:$0x1]
        %v1416 = vld [vmem:[%s1376 + $0x2c] sm:$0x1]
        %v1417 = vld [vmem:[%s1376 + $0x38] sm:$0x1]
        %v1418 = vld [vmem:[%s1376 + $0x44] sm:$0x1]
        %v1419 = vld [vmem:[%s1376 + $0x50] sm:$0x1]
        %v1420 = vld [vmem:[%s1376 + $0x5c] sm:$0x1]
        %v1421 = vld [vmem:[%s1376 + $0x68] sm:$0x1]
        %v1422 = vld [vmem:[%s1376 + $0x74] sm:$0x1]
        %v1423 = vld [vmem:[%s1376 + $0x80] sm:$0x1]
        %v1424 = vld [vmem:[%s1376 + $0x8c] sm:$0x1]
        %v1425 = vld [vmem:[%s1376 + $0x98] sm:$0x1]
        %v1426 = vld [vmem:[%s1376 + $0xa4] sm:$0x1]
        %v1427 = vld [vmem:[%s1376 + $0xb0] sm:$0x1]
        %v1428 = vld [vmem:[%s1376 + $0xbc] sm:$0x1]
        %v1429 = vld [vmem:[%s1376 + $0xc8] sm:$0x1]
        %v1430 = vld [vmem:[%s1376 + $0xd4] sm:$0x1]
        %v1431 = vld [vmem:[%s1376] sm:$0xe]
        %v1432 = vld [vmem:[%s1376 + $0xc] sm:$0xe]
        %v1433 = vld [vmem:[%s1376 + $0x18] sm:$0xe]
        %v1434 = vld [vmem:[%s1376 + $0x24] sm:$0xe]
        %v1435 = vld [vmem:[%s1376 + $0x30] sm:$0xe]
        %v1436 = vld [vmem:[%s1376 + $0x3c] sm:$0xe]
        %v1437 = vld [vmem:[%s1376 + $0x48] sm:$0xe]
        %v1438 = vld [vmem:[%s1376 + $0x54] sm:$0xe]
        %v1439 = vld [vmem:[%s1376 + $0x60] sm:$0xe]
        %v1440 = vld [vmem:[%s1376 + $0x6c] sm:$0xe]
        %v1441 = vld [vmem:[%s1376 + $0x78] sm:$0xe]
        %v1442 = vld [vmem:[%s1376 + $0x84] sm:$0xe]
        %v1443 = vld [vmem:[%s1376 + $0x90] sm:$0xe]
        %v1444 = vld [vmem:[%s1376 + $0x9c] sm:$0xe]
        %v1445 = vld [vmem:[%s1376 + $0xa8] sm:$0xe]
        %v1446 = vld [vmem:[%s1376 + $0xb4] sm:$0xe]
        %v1447 = vld [vmem:[%s1376 + $0xc0] sm:$0xe]
        %v1448 = vld [vmem:[%s1376 + $0xcc] sm:$0xe]
        %s1449 = scalar_lea.vmem [#allocation2], 24
        %v1450 = vld [vmem:[%s1449] sm:$0xf]
        %v1451 = vld [vmem:[%s1449 + $0x4] sm:$0xf]
        %v1452 = vld [vmem:[%s1449 + $0xc] sm:$0xf]
        %v1453 = vld [vmem:[%s1449 + $0x10] sm:$0xf]
        %v1454 = vld [vmem:[%s1449 + $0x18] sm:$0xf]
        %v1455 = vld [vmem:[%s1449 + $0x1c] sm:$0xf]
        %v1456 = vld [vmem:[%s1449 + $0x24] sm:$0xf]
        %v1457 = vld [vmem:[%s1449 + $0x28] sm:$0xf]
        %v1458 = vld [vmem:[%s1449 + $0x30] sm:$0xf]
        %v1459 = vld [vmem:[%s1449 + $0x34] sm:$0xf]
        %v1460 = vld [vmem:[%s1449 + $0x3c] sm:$0xf]
        %v1461 = vld [vmem:[%s1449 + $0x40] sm:$0xf]
        %v1462 = vld [vmem:[%s1449 + $0x48] sm:$0xf]
        %v1463 = vld [vmem:[%s1449 + $0x4c] sm:$0xf]
        %v1464 = vld [vmem:[%s1449 + $0x54] sm:$0xf]
        %v1465 = vld [vmem:[%s1449 + $0x58] sm:$0xf]
        %v1466 = vld [vmem:[%s1449 + $0x60] sm:$0xf]
        %v1467 = vld [vmem:[%s1449 + $0x64] sm:$0xf]
        %v1468 = vld [vmem:[%s1449 + $0x6c] sm:$0xf]
        %v1469 = vld [vmem:[%s1449 + $0x70] sm:$0xf]
        %v1470 = vld [vmem:[%s1449 + $0x78] sm:$0xf]
        %v1471 = vld [vmem:[%s1449 + $0x7c] sm:$0xf]
        %v1472 = vld [vmem:[%s1449 + $0x84] sm:$0xf]
        %v1473 = vld [vmem:[%s1449 + $0x88] sm:$0xf]
        %v1474 = vld [vmem:[%s1449 + $0x90] sm:$0xf]
        %v1475 = vld [vmem:[%s1449 + $0x94] sm:$0xf]
        %v1476 = vld [vmem:[%s1449 + $0x9c] sm:$0xf]
        %v1477 = vld [vmem:[%s1449 + $0xa0] sm:$0xf]
        %v1478 = vld [vmem:[%s1449 + $0xa8] sm:$0xf]
        %v1479 = vld [vmem:[%s1449 + $0xac] sm:$0xf]
        %v1480 = vld [vmem:[%s1449 + $0xb4] sm:$0xf]
        %v1481 = vld [vmem:[%s1449 + $0xb8] sm:$0xf]
        %v1482 = vld [vmem:[%s1449 + $0xc0] sm:$0xf]
        %v1483 = vld [vmem:[%s1449 + $0xc4] sm:$0xf]
        %v1484 = vld [vmem:[%s1449 + $0xcc] sm:$0xf]
        %v1485 = vld [vmem:[%s1449 + $0xd0] sm:$0xf]
        %v1486 = vld [vmem:[%s1449 + $0x8] sm:$0x1]
        %v1487 = vld [vmem:[%s1449 + $0x14] sm:$0x1]
        %v1488 = vld [vmem:[%s1449 + $0x20] sm:$0x1]
        %v1489 = vld [vmem:[%s1449 + $0x2c] sm:$0x1]
        %v1490 = vld [vmem:[%s1449 + $0x38] sm:$0x1]
        %v1491 = vld [vmem:[%s1449 + $0x44] sm:$0x1]
        %v1492 = vld [vmem:[%s1449 + $0x50] sm:$0x1]
        %v1493 = vld [vmem:[%s1449 + $0x5c] sm:$0x1]
        %v1494 = vld [vmem:[%s1449 + $0x68] sm:$0x1]
        %v1495 = vld [vmem:[%s1449 + $0x74] sm:$0x1]
        %v1496 = vld [vmem:[%s1449 + $0x80] sm:$0x1]
        %v1497 = vld [vmem:[%s1449 + $0x8c] sm:$0x1]
        %v1498 = vld [vmem:[%s1449 + $0x98] sm:$0x1]
        %v1499 = vld [vmem:[%s1449 + $0xa4] sm:$0x1]
        %v1500 = vld [vmem:[%s1449 + $0xb0] sm:$0x1]
        %v1501 = vld [vmem:[%s1449 + $0xbc] sm:$0x1]
        %v1502 = vld [vmem:[%s1449 + $0xc8] sm:$0x1]
        %v1503 = vld [vmem:[%s1449 + $0xd4] sm:$0x1]
        %v1504 = vld [vmem:[%s1449] sm:$0xe]
        %v1505 = vld [vmem:[%s1449 + $0xc] sm:$0xe]
        %v1506 = vld [vmem:[%s1449 + $0x18] sm:$0xe]
        %v1507 = vld [vmem:[%s1449 + $0x24] sm:$0xe]
        %v1508 = vld [vmem:[%s1449 + $0x30] sm:$0xe]
        %v1509 = vld [vmem:[%s1449 + $0x3c] sm:$0xe]
        %v1510 = vld [vmem:[%s1449 + $0x48] sm:$0xe]
        %v1511 = vld [vmem:[%s1449 + $0x54] sm:$0xe]
        %v1512 = vld [vmem:[%s1449 + $0x60] sm:$0xe]
        %v1513 = vld [vmem:[%s1449 + $0x6c] sm:$0xe]
        %v1514 = vld [vmem:[%s1449 + $0x78] sm:$0xe]
        %v1515 = vld [vmem:[%s1449 + $0x84] sm:$0xe]
        %v1516 = vld [vmem:[%s1449 + $0x90] sm:$0xe]
        %v1517 = vld [vmem:[%s1449 + $0x9c] sm:$0xe]
        %v1518 = vld [vmem:[%s1449 + $0xa8] sm:$0xe]
        %v1519 = vld [vmem:[%s1449 + $0xb4] sm:$0xe]
        %v1520 = vld [vmem:[%s1449 + $0xc0] sm:$0xe]
        %v1521 = vld [vmem:[%s1449 + $0xcc] sm:$0xe]
        %v1558 = vunpack.c.l.b16 %v1304
        %v1559 = vunpack.c.l.b16 %v1305
        %v1560 = vunpack.c.l.b16 %v1306
        %v1561 = vunpack.c.l.b16 %v1307
        %v1562 = vunpack.c.l.b16 %v1308
        %v1563 = vunpack.c.l.b16 %v1309
        %v1564 = vunpack.c.l.b16 %v1310
        %v1565 = vunpack.c.l.b16 %v1311
        %v1566 = vunpack.c.l.b16 %v1312
        %v1567 = vunpack.c.l.b16 %v1313
        %v1568 = vunpack.c.l.b16 %v1314
        %v1569 = vunpack.c.l.b16 %v1315
        %v1570 = vunpack.c.l.b16 %v1316
        %v1571 = vunpack.c.l.b16 %v1317
        %v1572 = vunpack.c.l.b16 %v1318
        %v1573 = vunpack.c.l.b16 %v1319
        %v1574 = vunpack.c.l.b16 %v1320
        %v1575 = vunpack.c.l.b16 %v1321
        %v1576 = vunpack.c.l.b16 %v1322
        %v1577 = vunpack.c.l.b16 %v1323
        %v1578 = vunpack.c.l.b16 %v1324
        %v1579 = vunpack.c.l.b16 %v1325
        %v1580 = vunpack.c.l.b16 %v1326
        %v1581 = vunpack.c.l.b16 %v1327
        %v1582 = vunpack.c.l.b16 %v1328
        %v1583 = vunpack.c.l.b16 %v1329
        %v1584 = vunpack.c.l.b16 %v1330
        %v1585 = vunpack.c.l.b16 %v1331
        %v1586 = vunpack.c.l.b16 %v1332
        %v1587 = vunpack.c.l.b16 %v1333
        %v1588 = vunpack.c.l.b16 %v1334
        %v1589 = vunpack.c.l.b16 %v1335
        %v1590 = vunpack.c.l.b16 %v1336
        %v1591 = vunpack.c.l.b16 %v1337
        %v1592 = vunpack.c.l.b16 %v1338
        %v1593 = vunpack.c.l.b16 %v1339
        %v1594 = vpack.c.b16 %v1559, %v1558
        %v1595 = vpack.c.b16 %v1561, %v1560
        %v1596 = vpack.c.b16 %v1563, %v1562
        %v1597 = vpack.c.b16 %v1565, %v1564
        %v1598 = vpack.c.b16 %v1567, %v1566
        %v1599 = vpack.c.b16 %v1569, %v1568
        %v1600 = vpack.c.b16 %v1571, %v1570
        %v1601 = vpack.c.b16 %v1573, %v1572
        %v1602 = vpack.c.b16 %v1575, %v1574
        %v1603 = vpack.c.b16 %v1577, %v1576
        %v1604 = vpack.c.b16 %v1579, %v1578
        %v1605 = vpack.c.b16 %v1581, %v1580
        %v1606 = vpack.c.b16 %v1583, %v1582
        %v1607 = vpack.c.b16 %v1585, %v1584
        %v1608 = vpack.c.b16 %v1587, %v1586
        %v1609 = vpack.c.b16 %v1589, %v1588
        %v1610 = vpack.c.b16 %v1591, %v1590
        %v1611 = vpack.c.b16 %v1593, %v1592
        %v1630 = vunpack.c.l.b16 %v1340
        %v1631 = vunpack.c.l.b16 %v1341
        %v1632 = vunpack.c.l.b16 %v1342
        %v1633 = vunpack.c.l.b16 %v1343
        %v1634 = vunpack.c.l.b16 %v1344
        %v1635 = vunpack.c.l.b16 %v1345
        %v1636 = vunpack.c.l.b16 %v1346
        %v1637 = vunpack.c.l.b16 %v1347
        %v1638 = vunpack.c.l.b16 %v1348
        %v1639 = vunpack.c.l.b16 %v1349
        %v1640 = vunpack.c.l.b16 %v1350
        %v1641 = vunpack.c.l.b16 %v1351
        %v1642 = vunpack.c.l.b16 %v1352
        %v1643 = vunpack.c.l.b16 %v1353
        %v1644 = vunpack.c.l.b16 %v1354
        %v1645 = vunpack.c.l.b16 %v1355
        %v1646 = vunpack.c.l.b16 %v1356
        %v1647 = vunpack.c.l.b16 %v1357
        %v1648 = vpack.c.b16 %v1630, %v1630
        %v1649 = vpack.c.b16 %v1631, %v1631
        %v1650 = vpack.c.b16 %v1632, %v1632
        %v1651 = vpack.c.b16 %v1633, %v1633
        %v1652 = vpack.c.b16 %v1634, %v1634
        %v1653 = vpack.c.b16 %v1635, %v1635
        %v1654 = vpack.c.b16 %v1636, %v1636
        %v1655 = vpack.c.b16 %v1637, %v1637
        %v1656 = vpack.c.b16 %v1638, %v1638
        %v1657 = vpack.c.b16 %v1639, %v1639
        %v1658 = vpack.c.b16 %v1640, %v1640
        %v1659 = vpack.c.b16 %v1641, %v1641
        %v1660 = vpack.c.b16 %v1642, %v1642
        %v1661 = vpack.c.b16 %v1643, %v1643
        %v1662 = vpack.c.b16 %v1644, %v1644
        %v1663 = vpack.c.b16 %v1645, %v1645
        %v1664 = vpack.c.b16 %v1646, %v1646
        %v1665 = vpack.c.b16 %v1647, %v1647
        %vm1666 = vsmask.f32 7424
        %v1668 = vshrl.u32 %v1594, 16
        %v1670 = vshll.u32 %v1594, 16
        %v1672 = vrot.slane %v1670, 1
        %v1673 = vor.u32 %v1668, %v1672
        %v1675 = vshll.u32 %v1648, 16
        %v1677 = vrot.slane %v1675, 1
        %v1678 = vsel %vm1666, %v1673, %v1677
        %v1680 = vshrl.u32 %v1595, 16
        %v1682 = vshll.u32 %v1595, 16
        %v1684 = vrot.slane %v1682, 1
        %v1685 = vor.u32 %v1680, %v1684
        %v1687 = vshll.u32 %v1649, 16
        %v1689 = vrot.slane %v1687, 1
        %v1690 = vsel %vm1666, %v1685, %v1689
        %v1692 = vshrl.u32 %v1596, 16
        %v1694 = vshll.u32 %v1596, 16
        %v1696 = vrot.slane %v1694, 1
        %v1697 = vor.u32 %v1692, %v1696
        %v1699 = vshll.u32 %v1650, 16
        %v1701 = vrot.slane %v1699, 1
        %v1702 = vsel %vm1666, %v1697, %v1701
        %v1704 = vshrl.u32 %v1597, 16
        %v1706 = vshll.u32 %v1597, 16
        %v1708 = vrot.slane %v1706, 1
        %v1709 = vor.u32 %v1704, %v1708
        %v1711 = vshll.u32 %v1651, 16
        %v1713 = vrot.slane %v1711, 1
        %v1714 = vsel %vm1666, %v1709, %v1713
        %v1716 = vshrl.u32 %v1598, 16
        %v1718 = vshll.u32 %v1598, 16
        %v1720 = vrot.slane %v1718, 1
        %v1721 = vor.u32 %v1716, %v1720
        %v1723 = vshll.u32 %v1652, 16
        %v1725 = vrot.slane %v1723, 1
        %v1726 = vsel %vm1666, %v1721, %v1725
        %v1728 = vshrl.u32 %v1599, 16
        %v1730 = vshll.u32 %v1599, 16
        %v1732 = vrot.slane %v1730, 1
        %v1733 = vor.u32 %v1728, %v1732
        %v1735 = vshll.u32 %v1653, 16
        %v1737 = vrot.slane %v1735, 1
        %v1738 = vsel %vm1666, %v1733, %v1737
        %v1740 = vshrl.u32 %v1600, 16
        %v1742 = vshll.u32 %v1600, 16
        %v1744 = vrot.slane %v1742, 1
        %v1745 = vor.u32 %v1740, %v1744
        %v1747 = vshll.u32 %v1654, 16
        %v1749 = vrot.slane %v1747, 1
        %v1750 = vsel %vm1666, %v1745, %v1749
        %v1752 = vshrl.u32 %v1601, 16
        %v1754 = vshll.u32 %v1601, 16
        %v1756 = vrot.slane %v1754, 1
        %v1757 = vor.u32 %v1752, %v1756
        %v1759 = vshll.u32 %v1655, 16
        %v1761 = vrot.slane %v1759, 1
        %v1762 = vsel %vm1666, %v1757, %v1761
        %v1764 = vshrl.u32 %v1602, 16
        %v1766 = vshll.u32 %v1602, 16
        %v1768 = vrot.slane %v1766, 1
        %v1769 = vor.u32 %v1764, %v1768
        %v1771 = vshll.u32 %v1656, 16
        %v1773 = vrot.slane %v1771, 1
        %v1774 = vsel %vm1666, %v1769, %v1773
        %v1776 = vshrl.u32 %v1603, 16
        %v1778 = vshll.u32 %v1603, 16
        %v1780 = vrot.slane %v1778, 1
        %v1781 = vor.u32 %v1776, %v1780
        %v1783 = vshll.u32 %v1657, 16
        %v1785 = vrot.slane %v1783, 1
        %v1786 = vsel %vm1666, %v1781, %v1785
        %v1788 = vshrl.u32 %v1604, 16
        %v1790 = vshll.u32 %v1604, 16
        %v1792 = vrot.slane %v1790, 1
        %v1793 = vor.u32 %v1788, %v1792
        %v1795 = vshll.u32 %v1658, 16
        %v1797 = vrot.slane %v1795, 1
        %v1798 = vsel %vm1666, %v1793, %v1797
        %v1800 = vshrl.u32 %v1605, 16
        %v1802 = vshll.u32 %v1605, 16
        %v1804 = vrot.slane %v1802, 1
        %v1805 = vor.u32 %v1800, %v1804
        %v1807 = vshll.u32 %v1659, 16
        %v1809 = vrot.slane %v1807, 1
        %v1810 = vsel %vm1666, %v1805, %v1809
        %v1812 = vshrl.u32 %v1606, 16
        %v1814 = vshll.u32 %v1606, 16
        %v1816 = vrot.slane %v1814, 1
        %v1817 = vor.u32 %v1812, %v1816
        %v1819 = vshll.u32 %v1660, 16
        %v1821 = vrot.slane %v1819, 1
        %v1822 = vsel %vm1666, %v1817, %v1821
        %v1824 = vshrl.u32 %v1607, 16
        %v1826 = vshll.u32 %v1607, 16
        %v1828 = vrot.slane %v1826, 1
        %v1829 = vor.u32 %v1824, %v1828
        %v1831 = vshll.u32 %v1661, 16
        %v1833 = vrot.slane %v1831, 1
        %v1834 = vsel %vm1666, %v1829, %v1833
        %v1836 = vshrl.u32 %v1608, 16
        %v1838 = vshll.u32 %v1608, 16
        %v1840 = vrot.slane %v1838, 1
        %v1841 = vor.u32 %v1836, %v1840
        %v1843 = vshll.u32 %v1662, 16
        %v1845 = vrot.slane %v1843, 1
        %v1846 = vsel %vm1666, %v1841, %v1845
        %v1848 = vshrl.u32 %v1609, 16
        %v1850 = vshll.u32 %v1609, 16
        %v1852 = vrot.slane %v1850, 1
        %v1853 = vor.u32 %v1848, %v1852
        %v1855 = vshll.u32 %v1663, 16
        %v1857 = vrot.slane %v1855, 1
        %v1858 = vsel %vm1666, %v1853, %v1857
        %v1860 = vshrl.u32 %v1610, 16
        %v1862 = vshll.u32 %v1610, 16
        %v1864 = vrot.slane %v1862, 1
        %v1865 = vor.u32 %v1860, %v1864
        %v1867 = vshll.u32 %v1664, 16
        %v1869 = vrot.slane %v1867, 1
        %v1870 = vsel %vm1666, %v1865, %v1869
        %v1872 = vshrl.u32 %v1611, 16
        %v1874 = vshll.u32 %v1611, 16
        %v1876 = vrot.slane %v1874, 1
        %v1877 = vor.u32 %v1872, %v1876
        %v1879 = vshll.u32 %v1665, 16
        %v1881 = vrot.slane %v1879, 1
        %v1882 = vsel %vm1666, %v1877, %v1881
        %1883 = vrot.lane.b32.xlu0 %v1678, 4
        %v1884 = vpop.permute.xlu0 %1883
        %1885 = vrot.lane.b32.xlu0 %v1690, 4
        %v1886 = vpop.permute.xlu0 %1885
        %1887 = vrot.lane.b32.xlu0 %v1702, 4
        %v1888 = vpop.permute.xlu0 %1887
        %1889 = vrot.lane.b32.xlu0 %v1714, 4
        %v1890 = vpop.permute.xlu0 %1889
        %1891 = vrot.lane.b32.xlu0 %v1726, 4
        %v1892 = vpop.permute.xlu0 %1891
        %1893 = vrot.lane.b32.xlu0 %v1738, 4
        %v1894 = vpop.permute.xlu0 %1893
        %1895 = vrot.lane.b32.xlu0 %v1750, 4
        %v1896 = vpop.permute.xlu0 %1895
        %1897 = vrot.lane.b32.xlu0 %v1762, 4
        %v1898 = vpop.permute.xlu0 %1897
        %1899 = vrot.lane.b32.xlu0 %v1774, 4
        %v1900 = vpop.permute.xlu0 %1899
        %1901 = vrot.lane.b32.xlu0 %v1786, 4
        %v1902 = vpop.permute.xlu0 %1901
        %1903 = vrot.lane.b32.xlu0 %v1798, 4
        %v1904 = vpop.permute.xlu0 %1903
        %1905 = vrot.lane.b32.xlu0 %v1810, 4
        %v1906 = vpop.permute.xlu0 %1905
        %1907 = vrot.lane.b32.xlu0 %v1822, 4
        %v1908 = vpop.permute.xlu0 %1907
        %1909 = vrot.lane.b32.xlu0 %v1834, 4
        %v1910 = vpop.permute.xlu0 %1909
        %1911 = vrot.lane.b32.xlu0 %v1846, 4
        %v1912 = vpop.permute.xlu0 %1911
        %1913 = vrot.lane.b32.xlu0 %v1858, 4
        %v1914 = vpop.permute.xlu0 %1913
        %1915 = vrot.lane.b32.xlu0 %v1870, 4
        %v1916 = vpop.permute.xlu0 %1915
        %1917 = vrot.lane.b32.xlu0 %v1882, 4
        %v1918 = vpop.permute.xlu0 %1917
        %v1937 = vunpack.c.l.b16 %v1358
        %v1938 = vunpack.c.l.b16 %v1359
        %v1939 = vunpack.c.l.b16 %v1360
        %v1940 = vunpack.c.l.b16 %v1361
        %v1941 = vunpack.c.l.b16 %v1362
        %v1942 = vunpack.c.l.b16 %v1363
        %v1943 = vunpack.c.l.b16 %v1364
        %v1944 = vunpack.c.l.b16 %v1365
        %v1945 = vunpack.c.l.b16 %v1366
        %v1946 = vunpack.c.l.b16 %v1367
        %v1947 = vunpack.c.l.b16 %v1368
        %v1948 = vunpack.c.l.b16 %v1369
        %v1949 = vunpack.c.l.b16 %v1370
        %v1950 = vunpack.c.l.b16 %v1371
        %v1951 = vunpack.c.l.b16 %v1372
        %v1952 = vunpack.c.l.b16 %v1373
        %v1953 = vunpack.c.l.b16 %v1374
        %v1954 = vunpack.c.l.b16 %v1375
        %v1955 = vpack.c.b16 %v1559, %v1937
        %v1956 = vpack.c.b16 %v1561, %v1938
        %v1957 = vpack.c.b16 %v1563, %v1939
        %v1958 = vpack.c.b16 %v1565, %v1940
        %v1959 = vpack.c.b16 %v1567, %v1941
        %v1960 = vpack.c.b16 %v1569, %v1942
        %v1961 = vpack.c.b16 %v1571, %v1943
        %v1962 = vpack.c.b16 %v1573, %v1944
        %v1963 = vpack.c.b16 %v1575, %v1945
        %v1964 = vpack.c.b16 %v1577, %v1946
        %v1965 = vpack.c.b16 %v1579, %v1947
        %v1966 = vpack.c.b16 %v1581, %v1948
        %v1967 = vpack.c.b16 %v1583, %v1949
        %v1968 = vpack.c.b16 %v1585, %v1950
        %v1969 = vpack.c.b16 %v1587, %v1951
        %v1970 = vpack.c.b16 %v1589, %v1952
        %v1971 = vpack.c.b16 %v1591, %v1953
        %v1972 = vpack.c.b16 %v1593, %v1954
        %vm1973 = vcmask 1046528
        %v1974 = vrot.slane %v1955, 1
        %v1975 = vrot.slane %v1648, 1
        %v1976 = vsel %vm1973, %v1974, %v1975
        %v1977 = vrot.slane %v1956, 1
        %v1978 = vrot.slane %v1649, 1
        %v1979 = vsel %vm1973, %v1977, %v1978
        %v1980 = vrot.slane %v1957, 1
        %v1981 = vrot.slane %v1650, 1
        %v1982 = vsel %vm1973, %v1980, %v1981
        %v1983 = vrot.slane %v1958, 1
        %v1984 = vrot.slane %v1651, 1
        %v1985 = vsel %vm1973, %v1983, %v1984
        %v1986 = vrot.slane %v1959, 1
        %v1987 = vrot.slane %v1652, 1
        %v1988 = vsel %vm1973, %v1986, %v1987
        %v1989 = vrot.slane %v1960, 1
        %v1990 = vrot.slane %v1653, 1
        %v1991 = vsel %vm1973, %v1989, %v1990
        %v1992 = vrot.slane %v1961, 1
        %v1993 = vrot.slane %v1654, 1
        %v1994 = vsel %vm1973, %v1992, %v1993
        %v1995 = vrot.slane %v1962, 1
        %v1996 = vrot.slane %v1655, 1
        %v1997 = vsel %vm1973, %v1995, %v1996
        %v1998 = vrot.slane %v1963, 1
        %v1999 = vrot.slane %v1656, 1
        %v2000 = vsel %vm1973, %v1998, %v1999
        %v2001 = vrot.slane %v1964, 1
        %v2002 = vrot.slane %v1657, 1
        %v2003 = vsel %vm1973, %v2001, %v2002
        %v2004 = vrot.slane %v1965, 1
        %v2005 = vrot.slane %v1658, 1
        %v2006 = vsel %vm1973, %v2004, %v2005
        %v2007 = vrot.slane %v1966, 1
        %v2008 = vrot.slane %v1659, 1
        %v2009 = vsel %vm1973, %v2007, %v2008
        %v2010 = vrot.slane %v1967, 1
        %v2011 = vrot.slane %v1660, 1
        %v2012 = vsel %vm1973, %v2010, %v2011
        %v2013 = vrot.slane %v1968, 1
        %v2014 = vrot.slane %v1661, 1
        %v2015 = vsel %vm1973, %v2013, %v2014
        %v2016 = vrot.slane %v1969, 1
        %v2017 = vrot.slane %v1662, 1
        %v2018 = vsel %vm1973, %v2016, %v2017
        %v2019 = vrot.slane %v1970, 1
        %v2020 = vrot.slane %v1663, 1
        %v2021 = vsel %vm1973, %v2019, %v2020
        %v2022 = vrot.slane %v1971, 1
        %v2023 = vrot.slane %v1664, 1
        %v2024 = vsel %vm1973, %v2022, %v2023
        %v2025 = vrot.slane %v1972, 1
        %v2026 = vrot.slane %v1665, 1
        %v2027 = vsel %vm1973, %v2025, %v2026
        %2028 = vrot.lane.b32.xlu0 %v1976, 8
        %v2029 = vpop.permute.xlu0 %2028
        %2030 = vrot.lane.b32.xlu0 %v1979, 8
        %v2031 = vpop.permute.xlu0 %2030
        %2032 = vrot.lane.b32.xlu0 %v1982, 8
        %v2033 = vpop.permute.xlu0 %2032
        %2034 = vrot.lane.b32.xlu0 %v1985, 8
        %v2035 = vpop.permute.xlu0 %2034
        %2036 = vrot.lane.b32.xlu0 %v1988, 8
        %v2037 = vpop.permute.xlu0 %2036
        %2038 = vrot.lane.b32.xlu0 %v1991, 8
        %v2039 = vpop.permute.xlu0 %2038
        %2040 = vrot.lane.b32.xlu0 %v1994, 8
        %v2041 = vpop.permute.xlu0 %2040
        %2042 = vrot.lane.b32.xlu0 %v1997, 8
        %v2043 = vpop.permute.xlu0 %2042
        %2044 = vrot.lane.b32.xlu0 %v2000, 8
        %v2045 = vpop.permute.xlu0 %2044
        %2046 = vrot.lane.b32.xlu0 %v2003, 8
        %v2047 = vpop.permute.xlu0 %2046
        %2048 = vrot.lane.b32.xlu0 %v2006, 8
        %v2049 = vpop.permute.xlu0 %2048
        %2050 = vrot.lane.b32.xlu0 %v2009, 8
        %v2051 = vpop.permute.xlu0 %2050
        %2052 = vrot.lane.b32.xlu0 %v2012, 8
        %v2053 = vpop.permute.xlu0 %2052
        %2054 = vrot.lane.b32.xlu0 %v2015, 8
        %v2055 = vpop.permute.xlu0 %2054
        %2056 = vrot.lane.b32.xlu0 %v2018, 8
        %v2057 = vpop.permute.xlu0 %2056
        %2058 = vrot.lane.b32.xlu0 %v2021, 8
        %v2059 = vpop.permute.xlu0 %2058
        %2060 = vrot.lane.b32.xlu0 %v2024, 8
        %v2061 = vpop.permute.xlu0 %2060
        %2062 = vrot.lane.b32.xlu0 %v2027, 8
        %v2063 = vpop.permute.xlu0 %2062
        %v2100 = vunpack.c.l.b16 %v1377
        %v2101 = vunpack.c.l.b16 %v1378
        %v2102 = vunpack.c.l.b16 %v1379
        %v2103 = vunpack.c.l.b16 %v1380
        %v2104 = vunpack.c.l.b16 %v1381
        %v2105 = vunpack.c.l.b16 %v1382
        %v2106 = vunpack.c.l.b16 %v1383
        %v2107 = vunpack.c.l.b16 %v1384
        %v2108 = vunpack.c.l.b16 %v1385
        %v2109 = vunpack.c.l.b16 %v1386
        %v2110 = vunpack.c.l.b16 %v1387
        %v2111 = vunpack.c.l.b16 %v1388
        %v2112 = vunpack.c.l.b16 %v1389
        %v2113 = vunpack.c.l.b16 %v1390
        %v2114 = vunpack.c.l.b16 %v1391
        %v2115 = vunpack.c.l.b16 %v1392
        %v2116 = vunpack.c.l.b16 %v1393
        %v2117 = vunpack.c.l.b16 %v1394
        %v2118 = vunpack.c.l.b16 %v1395
        %v2119 = vunpack.c.l.b16 %v1396
        %v2120 = vunpack.c.l.b16 %v1397
        %v2121 = vunpack.c.l.b16 %v1398
        %v2122 = vunpack.c.l.b16 %v1399
        %v2123 = vunpack.c.l.b16 %v1400
        %v2124 = vunpack.c.l.b16 %v1401
        %v2125 = vunpack.c.l.b16 %v1402
        %v2126 = vunpack.c.l.b16 %v1403
        %v2127 = vunpack.c.l.b16 %v1404
        %v2128 = vunpack.c.l.b16 %v1405
        %v2129 = vunpack.c.l.b16 %v1406
        %v2130 = vunpack.c.l.b16 %v1407
        %v2131 = vunpack.c.l.b16 %v1408
        %v2132 = vunpack.c.l.b16 %v1409
        %v2133 = vunpack.c.l.b16 %v1410
        %v2134 = vunpack.c.l.b16 %v1411
        %v2135 = vunpack.c.l.b16 %v1412
        %v2136 = vpack.c.b16 %v2101, %v2100
        %v2137 = vpack.c.b16 %v2103, %v2102
        %v2138 = vpack.c.b16 %v2105, %v2104
        %v2139 = vpack.c.b16 %v2107, %v2106
        %v2140 = vpack.c.b16 %v2109, %v2108
        %v2141 = vpack.c.b16 %v2111, %v2110
        %v2142 = vpack.c.b16 %v2113, %v2112
        %v2143 = vpack.c.b16 %v2115, %v2114
        %v2144 = vpack.c.b16 %v2117, %v2116
        %v2145 = vpack.c.b16 %v2119, %v2118
        %v2146 = vpack.c.b16 %v2121, %v2120
        %v2147 = vpack.c.b16 %v2123, %v2122
        %v2148 = vpack.c.b16 %v2125, %v2124
        %v2149 = vpack.c.b16 %v2127, %v2126
        %v2150 = vpack.c.b16 %v2129, %v2128
        %v2151 = vpack.c.b16 %v2131, %v2130
        %v2152 = vpack.c.b16 %v2133, %v2132
        %v2153 = vpack.c.b16 %v2135, %v2134
        %2154 = vrot.lane.b32.xlu0 %v2136, 12
        %v2155 = vpop.permute.xlu0 %2154
        %2156 = vrot.lane.b32.xlu0 %v2137, 12
        %v2157 = vpop.permute.xlu0 %2156
        %2158 = vrot.lane.b32.xlu0 %v2138, 12
        %v2159 = vpop.permute.xlu0 %2158
        %2160 = vrot.lane.b32.xlu0 %v2139, 12
        %v2161 = vpop.permute.xlu0 %2160
        %2162 = vrot.lane.b32.xlu0 %v2140, 12
        %v2163 = vpop.permute.xlu0 %2162
        %2164 = vrot.lane.b32.xlu0 %v2141, 12
        %v2165 = vpop.permute.xlu0 %2164
        %2166 = vrot.lane.b32.xlu0 %v2142, 12
        %v2167 = vpop.permute.xlu0 %2166
        %2168 = vrot.lane.b32.xlu0 %v2143, 12
        %v2169 = vpop.permute.xlu0 %2168
        %2170 = vrot.lane.b32.xlu0 %v2144, 12
        %v2171 = vpop.permute.xlu0 %2170
        %2172 = vrot.lane.b32.xlu0 %v2145, 12
        %v2173 = vpop.permute.xlu0 %2172
        %2174 = vrot.lane.b32.xlu0 %v2146, 12
        %v2175 = vpop.permute.xlu0 %2174
        %2176 = vrot.lane.b32.xlu0 %v2147, 12
        %v2177 = vpop.permute.xlu0 %2176
        %2178 = vrot.lane.b32.xlu0 %v2148, 12
        %v2179 = vpop.permute.xlu0 %2178
        %2180 = vrot.lane.b32.xlu0 %v2149, 12
        %v2181 = vpop.permute.xlu0 %2180
        %2182 = vrot.lane.b32.xlu0 %v2150, 12
        %v2183 = vpop.permute.xlu0 %2182
        %2184 = vrot.lane.b32.xlu0 %v2151, 12
        %v2185 = vpop.permute.xlu0 %2184
        %2186 = vrot.lane.b32.xlu0 %v2152, 12
        %v2187 = vpop.permute.xlu0 %2186
        %2188 = vrot.lane.b32.xlu0 %v2153, 12
        %v2189 = vpop.permute.xlu0 %2188
        %v2208 = vunpack.c.l.b16 %v1413
        %v2209 = vunpack.c.l.b16 %v1414
        %v2210 = vunpack.c.l.b16 %v1415
        %v2211 = vunpack.c.l.b16 %v1416
        %v2212 = vunpack.c.l.b16 %v1417
        %v2213 = vunpack.c.l.b16 %v1418
        %v2214 = vunpack.c.l.b16 %v1419
        %v2215 = vunpack.c.l.b16 %v1420
        %v2216 = vunpack.c.l.b16 %v1421
        %v2217 = vunpack.c.l.b16 %v1422
        %v2218 = vunpack.c.l.b16 %v1423
        %v2219 = vunpack.c.l.b16 %v1424
        %v2220 = vunpack.c.l.b16 %v1425
        %v2221 = vunpack.c.l.b16 %v1426
        %v2222 = vunpack.c.l.b16 %v1427
        %v2223 = vunpack.c.l.b16 %v1428
        %v2224 = vunpack.c.l.b16 %v1429
        %v2225 = vunpack.c.l.b16 %v1430
        %v2226 = vpack.c.b16 %v2208, %v2208
        %v2227 = vpack.c.b16 %v2209, %v2209
        %v2228 = vpack.c.b16 %v2210, %v2210
        %v2229 = vpack.c.b16 %v2211, %v2211
        %v2230 = vpack.c.b16 %v2212, %v2212
        %v2231 = vpack.c.b16 %v2213, %v2213
        %v2232 = vpack.c.b16 %v2214, %v2214
        %v2233 = vpack.c.b16 %v2215, %v2215
        %v2234 = vpack.c.b16 %v2216, %v2216
        %v2235 = vpack.c.b16 %v2217, %v2217
        %v2236 = vpack.c.b16 %v2218, %v2218
        %v2237 = vpack.c.b16 %v2219, %v2219
        %v2238 = vpack.c.b16 %v2220, %v2220
        %v2239 = vpack.c.b16 %v2221, %v2221
        %v2240 = vpack.c.b16 %v2222, %v2222
        %v2241 = vpack.c.b16 %v2223, %v2223
        %v2242 = vpack.c.b16 %v2224, %v2224
        %v2243 = vpack.c.b16 %v2225, %v2225
        %v2245 = vshrl.u32 %v2136, 16
        %v2247 = vshll.u32 %v2136, 16
        %v2249 = vrot.slane %v2247, 1
        %v2250 = vor.u32 %v2245, %v2249
        %v2252 = vshll.u32 %v2226, 16
        %v2254 = vrot.slane %v2252, 1
        %v2255 = vsel %vm1666, %v2250, %v2254
        %v2257 = vshrl.u32 %v2137, 16
        %v2259 = vshll.u32 %v2137, 16
        %v2261 = vrot.slane %v2259, 1
        %v2262 = vor.u32 %v2257, %v2261
        %v2264 = vshll.u32 %v2227, 16
        %v2266 = vrot.slane %v2264, 1
        %v2267 = vsel %vm1666, %v2262, %v2266
        %v2269 = vshrl.u32 %v2138, 16
        %v2271 = vshll.u32 %v2138, 16
        %v2273 = vrot.slane %v2271, 1
        %v2274 = vor.u32 %v2269, %v2273
        %v2276 = vshll.u32 %v2228, 16
        %v2278 = vrot.slane %v2276, 1
        %v2279 = vsel %vm1666, %v2274, %v2278
        %v2281 = vshrl.u32 %v2139, 16
        %v2283 = vshll.u32 %v2139, 16
        %v2285 = vrot.slane %v2283, 1
        %v2286 = vor.u32 %v2281, %v2285
        %v2288 = vshll.u32 %v2229, 16
        %v2290 = vrot.slane %v2288, 1
        %v2291 = vsel %vm1666, %v2286, %v2290
        %v2293 = vshrl.u32 %v2140, 16
        %v2295 = vshll.u32 %v2140, 16
        %v2297 = vrot.slane %v2295, 1
        %v2298 = vor.u32 %v2293, %v2297
        %v2300 = vshll.u32 %v2230, 16
        %v2302 = vrot.slane %v2300, 1
        %v2303 = vsel %vm1666, %v2298, %v2302
        %v2305 = vshrl.u32 %v2141, 16
        %v2307 = vshll.u32 %v2141, 16
        %v2309 = vrot.slane %v2307, 1
        %v2310 = vor.u32 %v2305, %v2309
        %v2312 = vshll.u32 %v2231, 16
        %v2314 = vrot.slane %v2312, 1
        %v2315 = vsel %vm1666, %v2310, %v2314
        %v2317 = vshrl.u32 %v2142, 16
        %v2319 = vshll.u32 %v2142, 16
        %v2321 = vrot.slane %v2319, 1
        %v2322 = vor.u32 %v2317, %v2321
        %v2324 = vshll.u32 %v2232, 16
        %v2326 = vrot.slane %v2324, 1
        %v2327 = vsel %vm1666, %v2322, %v2326
        %v2329 = vshrl.u32 %v2143, 16
        %v2331 = vshll.u32 %v2143, 16
        %v2333 = vrot.slane %v2331, 1
        %v2334 = vor.u32 %v2329, %v2333
        %v2336 = vshll.u32 %v2233, 16
        %v2338 = vrot.slane %v2336, 1
        %v2339 = vsel %vm1666, %v2334, %v2338
        %v2341 = vshrl.u32 %v2144, 16
        %v2343 = vshll.u32 %v2144, 16
        %v2345 = vrot.slane %v2343, 1
        %v2346 = vor.u32 %v2341, %v2345
        %v2348 = vshll.u32 %v2234, 16
        %v2350 = vrot.slane %v2348, 1
        %v2351 = vsel %vm1666, %v2346, %v2350
        %v2353 = vshrl.u32 %v2145, 16
        %v2355 = vshll.u32 %v2145, 16
        %v2357 = vrot.slane %v2355, 1
        %v2358 = vor.u32 %v2353, %v2357
        %v2360 = vshll.u32 %v2235, 16
        %v2362 = vrot.slane %v2360, 1
        %v2363 = vsel %vm1666, %v2358, %v2362
        %v2365 = vshrl.u32 %v2146, 16
        %v2367 = vshll.u32 %v2146, 16
        %v2369 = vrot.slane %v2367, 1
        %v2370 = vor.u32 %v2365, %v2369
        %v2372 = vshll.u32 %v2236, 16
        %v2374 = vrot.slane %v2372, 1
        %v2375 = vsel %vm1666, %v2370, %v2374
        %v2377 = vshrl.u32 %v2147, 16
        %v2379 = vshll.u32 %v2147, 16
        %v2381 = vrot.slane %v2379, 1
        %v2382 = vor.u32 %v2377, %v2381
        %v2384 = vshll.u32 %v2237, 16
        %v2386 = vrot.slane %v2384, 1
        %v2387 = vsel %vm1666, %v2382, %v2386
        %v2389 = vshrl.u32 %v2148, 16
        %v2391 = vshll.u32 %v2148, 16
        %v2393 = vrot.slane %v2391, 1
        %v2394 = vor.u32 %v2389, %v2393
        %v2396 = vshll.u32 %v2238, 16
        %v2398 = vrot.slane %v2396, 1
        %v2399 = vsel %vm1666, %v2394, %v2398
        %v2401 = vshrl.u32 %v2149, 16
        %v2403 = vshll.u32 %v2149, 16
        %v2405 = vrot.slane %v2403, 1
        %v2406 = vor.u32 %v2401, %v2405
        %v2408 = vshll.u32 %v2239, 16
        %v2410 = vrot.slane %v2408, 1
        %v2411 = vsel %vm1666, %v2406, %v2410
        %v2413 = vshrl.u32 %v2150, 16
        %v2415 = vshll.u32 %v2150, 16
        %v2417 = vrot.slane %v2415, 1
        %v2418 = vor.u32 %v2413, %v2417
        %v2420 = vshll.u32 %v2240, 16
        %v2422 = vrot.slane %v2420, 1
        %v2423 = vsel %vm1666, %v2418, %v2422
        %v2425 = vshrl.u32 %v2151, 16
        %v2427 = vshll.u32 %v2151, 16
        %v2429 = vrot.slane %v2427, 1
        %v2430 = vor.u32 %v2425, %v2429
        %v2432 = vshll.u32 %v2241, 16
        %v2434 = vrot.slane %v2432, 1
        %v2435 = vsel %vm1666, %v2430, %v2434
        %v2437 = vshrl.u32 %v2152, 16
        %v2439 = vshll.u32 %v2152, 16
        %v2441 = vrot.slane %v2439, 1
        %v2442 = vor.u32 %v2437, %v2441
        %v2444 = vshll.u32 %v2242, 16
        %v2446 = vrot.slane %v2444, 1
        %v2447 = vsel %vm1666, %v2442, %v2446
        %v2449 = vshrl.u32 %v2153, 16
        %v2451 = vshll.u32 %v2153, 16
        %v2453 = vrot.slane %v2451, 1
        %v2454 = vor.u32 %v2449, %v2453
        %v2456 = vshll.u32 %v2243, 16
        %v2458 = vrot.slane %v2456, 1
        %v2459 = vsel %vm1666, %v2454, %v2458
        %2460 = vrot.lane.b32.xlu0 %v2255, 16
        %v2461 = vpop.permute.xlu0 %2460
        %2462 = vrot.lane.b32.xlu0 %v2267, 16
        %v2463 = vpop.permute.xlu0 %2462
        %2464 = vrot.lane.b32.xlu0 %v2279, 16
        %v2465 = vpop.permute.xlu0 %2464
        %2466 = vrot.lane.b32.xlu0 %v2291, 16
        %v2467 = vpop.permute.xlu0 %2466
        %2468 = vrot.lane.b32.xlu0 %v2303, 16
        %v2469 = vpop.permute.xlu0 %2468
        %2470 = vrot.lane.b32.xlu0 %v2315, 16
        %v2471 = vpop.permute.xlu0 %2470
        %2472 = vrot.lane.b32.xlu0 %v2327, 16
        %v2473 = vpop.permute.xlu0 %2472
        %2474 = vrot.lane.b32.xlu0 %v2339, 16
        %v2475 = vpop.permute.xlu0 %2474
        %2476 = vrot.lane.b32.xlu0 %v2351, 16
        %v2477 = vpop.permute.xlu0 %2476
        %2478 = vrot.lane.b32.xlu0 %v2363, 16
        %v2479 = vpop.permute.xlu0 %2478
        %2480 = vrot.lane.b32.xlu0 %v2375, 16
        %v2481 = vpop.permute.xlu0 %2480
        %2482 = vrot.lane.b32.xlu0 %v2387, 16
        %v2483 = vpop.permute.xlu0 %2482
        %2484 = vrot.lane.b32.xlu0 %v2399, 16
        %v2485 = vpop.permute.xlu0 %2484
        %2486 = vrot.lane.b32.xlu0 %v2411, 16
        %v2487 = vpop.permute.xlu0 %2486
        %2488 = vrot.lane.b32.xlu0 %v2423, 16
        %v2489 = vpop.permute.xlu0 %2488
        %2490 = vrot.lane.b32.xlu0 %v2435, 16
        %v2491 = vpop.permute.xlu0 %2490
        %2492 = vrot.lane.b32.xlu0 %v2447, 16
        %v2493 = vpop.permute.xlu0 %2492
        %2494 = vrot.lane.b32.xlu0 %v2459, 16
        %v2495 = vpop.permute.xlu0 %2494
        %v2514 = vunpack.c.l.b16 %v1431
        %v2515 = vunpack.c.l.b16 %v1432
        %v2516 = vunpack.c.l.b16 %v1433
        %v2517 = vunpack.c.l.b16 %v1434
        %v2518 = vunpack.c.l.b16 %v1435
        %v2519 = vunpack.c.l.b16 %v1436
        %v2520 = vunpack.c.l.b16 %v1437
        %v2521 = vunpack.c.l.b16 %v1438
        %v2522 = vunpack.c.l.b16 %v1439
        %v2523 = vunpack.c.l.b16 %v1440
        %v2524 = vunpack.c.l.b16 %v1441
        %v2525 = vunpack.c.l.b16 %v1442
        %v2526 = vunpack.c.l.b16 %v1443
        %v2527 = vunpack.c.l.b16 %v1444
        %v2528 = vunpack.c.l.b16 %v1445
        %v2529 = vunpack.c.l.b16 %v1446
        %v2530 = vunpack.c.l.b16 %v1447
        %v2531 = vunpack.c.l.b16 %v1448
        %v2532 = vpack.c.b16 %v2101, %v2514
        %v2533 = vpack.c.b16 %v2103, %v2515
        %v2534 = vpack.c.b16 %v2105, %v2516
        %v2535 = vpack.c.b16 %v2107, %v2517
        %v2536 = vpack.c.b16 %v2109, %v2518
        %v2537 = vpack.c.b16 %v2111, %v2519
        %v2538 = vpack.c.b16 %v2113, %v2520
        %v2539 = vpack.c.b16 %v2115, %v2521
        %v2540 = vpack.c.b16 %v2117, %v2522
        %v2541 = vpack.c.b16 %v2119, %v2523
        %v2542 = vpack.c.b16 %v2121, %v2524
        %v2543 = vpack.c.b16 %v2123, %v2525
        %v2544 = vpack.c.b16 %v2125, %v2526
        %v2545 = vpack.c.b16 %v2127, %v2527
        %v2546 = vpack.c.b16 %v2129, %v2528
        %v2547 = vpack.c.b16 %v2131, %v2529
        %v2548 = vpack.c.b16 %v2133, %v2530
        %v2549 = vpack.c.b16 %v2135, %v2531
        %v2550 = vrot.slane %v2532, 1
        %v2551 = vrot.slane %v2226, 1
        %v2552 = vsel %vm1973, %v2550, %v2551
        %v2553 = vrot.slane %v2533, 1
        %v2554 = vrot.slane %v2227, 1
        %v2555 = vsel %vm1973, %v2553, %v2554
        %v2556 = vrot.slane %v2534, 1
        %v2557 = vrot.slane %v2228, 1
        %v2558 = vsel %vm1973, %v2556, %v2557
        %v2559 = vrot.slane %v2535, 1
        %v2560 = vrot.slane %v2229, 1
        %v2561 = vsel %vm1973, %v2559, %v2560
        %v2562 = vrot.slane %v2536, 1
        %v2563 = vrot.slane %v2230, 1
        %v2564 = vsel %vm1973, %v2562, %v2563
        %v2565 = vrot.slane %v2537, 1
        %v2566 = vrot.slane %v2231, 1
        %v2567 = vsel %vm1973, %v2565, %v2566
        %v2568 = vrot.slane %v2538, 1
        %v2569 = vrot.slane %v2232, 1
        %v2570 = vsel %vm1973, %v2568, %v2569
        %v2571 = vrot.slane %v2539, 1
        %v2572 = vrot.slane %v2233, 1
        %v2573 = vsel %vm1973, %v2571, %v2572
        %v2574 = vrot.slane %v2540, 1
        %v2575 = vrot.slane %v2234, 1
        %v2576 = vsel %vm1973, %v2574, %v2575
        %v2577 = vrot.slane %v2541, 1
        %v2578 = vrot.slane %v2235, 1
        %v2579 = vsel %vm1973, %v2577, %v2578
        %v2580 = vrot.slane %v2542, 1
        %v2581 = vrot.slane %v2236, 1
        %v2582 = vsel %vm1973, %v2580, %v2581
        %v2583 = vrot.slane %v2543, 1
        %v2584 = vrot.slane %v2237, 1
        %v2585 = vsel %vm1973, %v2583, %v2584
        %v2586 = vrot.slane %v2544, 1
        %v2587 = vrot.slane %v2238, 1
        %v2588 = vsel %vm1973, %v2586, %v2587
        %v2589 = vrot.slane %v2545, 1
        %v2590 = vrot.slane %v2239, 1
        %v2591 = vsel %vm1973, %v2589, %v2590
        %v2592 = vrot.slane %v2546, 1
        %v2593 = vrot.slane %v2240, 1
        %v2594 = vsel %vm1973, %v2592, %v2593
        %v2595 = vrot.slane %v2547, 1
        %v2596 = vrot.slane %v2241, 1
        %v2597 = vsel %vm1973, %v2595, %v2596
        %v2598 = vrot.slane %v2548, 1
        %v2599 = vrot.slane %v2242, 1
        %v2600 = vsel %vm1973, %v2598, %v2599
        %v2601 = vrot.slane %v2549, 1
        %v2602 = vrot.slane %v2243, 1
        %v2603 = vsel %vm1973, %v2601, %v2602
        %2604 = vrot.lane.b32.xlu0 %v2552, 20
        %v2605 = vpop.permute.xlu0 %2604
        %2606 = vrot.lane.b32.xlu0 %v2555, 20
        %v2607 = vpop.permute.xlu0 %2606
        %2608 = vrot.lane.b32.xlu0 %v2558, 20
        %v2609 = vpop.permute.xlu0 %2608
        %2610 = vrot.lane.b32.xlu0 %v2561, 20
        %v2611 = vpop.permute.xlu0 %2610
        %2612 = vrot.lane.b32.xlu0 %v2564, 20
        %v2613 = vpop.permute.xlu0 %2612
        %2614 = vrot.lane.b32.xlu0 %v2567, 20
        %v2615 = vpop.permute.xlu0 %2614
        %2616 = vrot.lane.b32.xlu0 %v2570, 20
        %v2617 = vpop.permute.xlu0 %2616
        %2618 = vrot.lane.b32.xlu0 %v2573, 20
        %v2619 = vpop.permute.xlu0 %2618
        %2620 = vrot.lane.b32.xlu0 %v2576, 20
        %v2621 = vpop.permute.xlu0 %2620
        %2622 = vrot.lane.b32.xlu0 %v2579, 20
        %v2623 = vpop.permute.xlu0 %2622
        %2624 = vrot.lane.b32.xlu0 %v2582, 20
        %v2625 = vpop.permute.xlu0 %2624
        %2626 = vrot.lane.b32.xlu0 %v2585, 20
        %v2627 = vpop.permute.xlu0 %2626
        %2628 = vrot.lane.b32.xlu0 %v2588, 20
        %v2629 = vpop.permute.xlu0 %2628
        %2630 = vrot.lane.b32.xlu0 %v2591, 20
        %v2631 = vpop.permute.xlu0 %2630
        %2632 = vrot.lane.b32.xlu0 %v2594, 20
        %v2633 = vpop.permute.xlu0 %2632
        %2634 = vrot.lane.b32.xlu0 %v2597, 20
        %v2635 = vpop.permute.xlu0 %2634
        %2636 = vrot.lane.b32.xlu0 %v2600, 20
        %v2637 = vpop.permute.xlu0 %2636
        %2638 = vrot.lane.b32.xlu0 %v2603, 20
        %v2639 = vpop.permute.xlu0 %2638
        %v2676 = vunpack.c.l.b16 %v1450
        %v2677 = vunpack.c.l.b16 %v1451
        %v2678 = vunpack.c.l.b16 %v1452
        %v2679 = vunpack.c.l.b16 %v1453
        %v2680 = vunpack.c.l.b16 %v1454
        %v2681 = vunpack.c.l.b16 %v1455
        %v2682 = vunpack.c.l.b16 %v1456
        %v2683 = vunpack.c.l.b16 %v1457
        %v2684 = vunpack.c.l.b16 %v1458
        %v2685 = vunpack.c.l.b16 %v1459
        %v2686 = vunpack.c.l.b16 %v1460
        %v2687 = vunpack.c.l.b16 %v1461
        %v2688 = vunpack.c.l.b16 %v1462
        %v2689 = vunpack.c.l.b16 %v1463
        %v2690 = vunpack.c.l.b16 %v1464
        %v2691 = vunpack.c.l.b16 %v1465
        %v2692 = vunpack.c.l.b16 %v1466
        %v2693 = vunpack.c.l.b16 %v1467
        %v2694 = vunpack.c.l.b16 %v1468
        %v2695 = vunpack.c.l.b16 %v1469
        %v2696 = vunpack.c.l.b16 %v1470
        %v2697 = vunpack.c.l.b16 %v1471
        %v2698 = vunpack.c.l.b16 %v1472
        %v2699 = vunpack.c.l.b16 %v1473
        %v2700 = vunpack.c.l.b16 %v1474
        %v2701 = vunpack.c.l.b16 %v1475
        %v2702 = vunpack.c.l.b16 %v1476
        %v2703 = vunpack.c.l.b16 %v1477
        %v2704 = vunpack.c.l.b16 %v1478
        %v2705 = vunpack.c.l.b16 %v1479
        %v2706 = vunpack.c.l.b16 %v1480
        %v2707 = vunpack.c.l.b16 %v1481
        %v2708 = vunpack.c.l.b16 %v1482
        %v2709 = vunpack.c.l.b16 %v1483
        %v2710 = vunpack.c.l.b16 %v1484
        %v2711 = vunpack.c.l.b16 %v1485
        %v2712 = vpack.c.b16 %v2677, %v2676
        %v2713 = vpack.c.b16 %v2679, %v2678
        %v2714 = vpack.c.b16 %v2681, %v2680
        %v2715 = vpack.c.b16 %v2683, %v2682
        %v2716 = vpack.c.b16 %v2685, %v2684
        %v2717 = vpack.c.b16 %v2687, %v2686
        %v2718 = vpack.c.b16 %v2689, %v2688
        %v2719 = vpack.c.b16 %v2691, %v2690
        %v2720 = vpack.c.b16 %v2693, %v2692
        %v2721 = vpack.c.b16 %v2695, %v2694
        %v2722 = vpack.c.b16 %v2697, %v2696
        %v2723 = vpack.c.b16 %v2699, %v2698
        %v2724 = vpack.c.b16 %v2701, %v2700
        %v2725 = vpack.c.b16 %v2703, %v2702
        %v2726 = vpack.c.b16 %v2705, %v2704
        %v2727 = vpack.c.b16 %v2707, %v2706
        %v2728 = vpack.c.b16 %v2709, %v2708
        %v2729 = vpack.c.b16 %v2711, %v2710
        %2730 = vrot.lane.b32.xlu0 %v2712, 24
        %v2731 = vpop.permute.xlu0 %2730
        %2732 = vrot.lane.b32.xlu0 %v2713, 24
        %v2733 = vpop.permute.xlu0 %2732
        %2734 = vrot.lane.b32.xlu0 %v2714, 24
        %v2735 = vpop.permute.xlu0 %2734
        %2736 = vrot.lane.b32.xlu0 %v2715, 24
        %v2737 = vpop.permute.xlu0 %2736
        %2738 = vrot.lane.b32.xlu0 %v2716, 24
        %v2739 = vpop.permute.xlu0 %2738
        %2740 = vrot.lane.b32.xlu0 %v2717, 24
        %v2741 = vpop.permute.xlu0 %2740
        %2742 = vrot.lane.b32.xlu0 %v2718, 24
        %v2743 = vpop.permute.xlu0 %2742
        %2744 = vrot.lane.b32.xlu0 %v2719, 24
        %v2745 = vpop.permute.xlu0 %2744
        %2746 = vrot.lane.b32.xlu0 %v2720, 24
        %v2747 = vpop.permute.xlu0 %2746
        %2748 = vrot.lane.b32.xlu0 %v2721, 24
        %v2749 = vpop.permute.xlu0 %2748
        %2750 = vrot.lane.b32.xlu0 %v2722, 24
        %v2751 = vpop.permute.xlu0 %2750
        %2752 = vrot.lane.b32.xlu0 %v2723, 24
        %v2753 = vpop.permute.xlu0 %2752
        %2754 = vrot.lane.b32.xlu0 %v2724, 24
        %v2755 = vpop.permute.xlu0 %2754
        %2756 = vrot.lane.b32.xlu0 %v2725, 24
        %v2757 = vpop.permute.xlu0 %2756
        %2758 = vrot.lane.b32.xlu0 %v2726, 24
        %v2759 = vpop.permute.xlu0 %2758
        %2760 = vrot.lane.b32.xlu0 %v2727, 24
        %v2761 = vpop.permute.xlu0 %2760
        %2762 = vrot.lane.b32.xlu0 %v2728, 24
        %v2763 = vpop.permute.xlu0 %2762
        %2764 = vrot.lane.b32.xlu0 %v2729, 24
        %v2765 = vpop.permute.xlu0 %2764
        %v2784 = vunpack.c.l.b16 %v1486
        %v2785 = vunpack.c.l.b16 %v1487
        %v2786 = vunpack.c.l.b16 %v1488
        %v2787 = vunpack.c.l.b16 %v1489
        %v2788 = vunpack.c.l.b16 %v1490
        %v2789 = vunpack.c.l.b16 %v1491
        %v2790 = vunpack.c.l.b16 %v1492
        %v2791 = vunpack.c.l.b16 %v1493
        %v2792 = vunpack.c.l.b16 %v1494
        %v2793 = vunpack.c.l.b16 %v1495
        %v2794 = vunpack.c.l.b16 %v1496
        %v2795 = vunpack.c.l.b16 %v1497
        %v2796 = vunpack.c.l.b16 %v1498
        %v2797 = vunpack.c.l.b16 %v1499
        %v2798 = vunpack.c.l.b16 %v1500
        %v2799 = vunpack.c.l.b16 %v1501
        %v2800 = vunpack.c.l.b16 %v1502
        %v2801 = vunpack.c.l.b16 %v1503
        %v2802 = vpack.c.b16 %v2784, %v2784
        %v2803 = vpack.c.b16 %v2785, %v2785
        %v2804 = vpack.c.b16 %v2786, %v2786
        %v2805 = vpack.c.b16 %v2787, %v2787
        %v2806 = vpack.c.b16 %v2788, %v2788
        %v2807 = vpack.c.b16 %v2789, %v2789
        %v2808 = vpack.c.b16 %v2790, %v2790
        %v2809 = vpack.c.b16 %v2791, %v2791
        %v2810 = vpack.c.b16 %v2792, %v2792
        %v2811 = vpack.c.b16 %v2793, %v2793
        %v2812 = vpack.c.b16 %v2794, %v2794
        %v2813 = vpack.c.b16 %v2795, %v2795
        %v2814 = vpack.c.b16 %v2796, %v2796
        %v2815 = vpack.c.b16 %v2797, %v2797
        %v2816 = vpack.c.b16 %v2798, %v2798
        %v2817 = vpack.c.b16 %v2799, %v2799
        %v2818 = vpack.c.b16 %v2800, %v2800
        %v2819 = vpack.c.b16 %v2801, %v2801
        %v2821 = vshrl.u32 %v2712, 16
        %v2823 = vshll.u32 %v2712, 16
        %v2825 = vrot.slane %v2823, 1
        %v2826 = vor.u32 %v2821, %v2825
        %v2828 = vshll.u32 %v2802, 16
        %v2830 = vrot.slane %v2828, 1
        %v2831 = vsel %vm1666, %v2826, %v2830
        %v2833 = vshrl.u32 %v2713, 16
        %v2835 = vshll.u32 %v2713, 16
        %v2837 = vrot.slane %v2835, 1
        %v2838 = vor.u32 %v2833, %v2837
        %v2840 = vshll.u32 %v2803, 16
        %v2842 = vrot.slane %v2840, 1
        %v2843 = vsel %vm1666, %v2838, %v2842
        %v2845 = vshrl.u32 %v2714, 16
        %v2847 = vshll.u32 %v2714, 16
        %v2849 = vrot.slane %v2847, 1
        %v2850 = vor.u32 %v2845, %v2849
        %v2852 = vshll.u32 %v2804, 16
        %v2854 = vrot.slane %v2852, 1
        %v2855 = vsel %vm1666, %v2850, %v2854
        %v2857 = vshrl.u32 %v2715, 16
        %v2859 = vshll.u32 %v2715, 16
        %v2861 = vrot.slane %v2859, 1
        %v2862 = vor.u32 %v2857, %v2861
        %v2864 = vshll.u32 %v2805, 16
        %v2866 = vrot.slane %v2864, 1
        %v2867 = vsel %vm1666, %v2862, %v2866
        %v2869 = vshrl.u32 %v2716, 16
        %v2871 = vshll.u32 %v2716, 16
        %v2873 = vrot.slane %v2871, 1
        %v2874 = vor.u32 %v2869, %v2873
        %v2876 = vshll.u32 %v2806, 16
        %v2878 = vrot.slane %v2876, 1
        %v2879 = vsel %vm1666, %v2874, %v2878
        %v2881 = vshrl.u32 %v2717, 16
        %v2883 = vshll.u32 %v2717, 16
        %v2885 = vrot.slane %v2883, 1
        %v2886 = vor.u32 %v2881, %v2885
        %v2888 = vshll.u32 %v2807, 16
        %v2890 = vrot.slane %v2888, 1
        %v2891 = vsel %vm1666, %v2886, %v2890
        %v2893 = vshrl.u32 %v2718, 16
        %v2895 = vshll.u32 %v2718, 16
        %v2897 = vrot.slane %v2895, 1
        %v2898 = vor.u32 %v2893, %v2897
        %v2900 = vshll.u32 %v2808, 16
        %v2902 = vrot.slane %v2900, 1
        %v2903 = vsel %vm1666, %v2898, %v2902
        %v2905 = vshrl.u32 %v2719, 16
        %v2907 = vshll.u32 %v2719, 16
        %v2909 = vrot.slane %v2907, 1
        %v2910 = vor.u32 %v2905, %v2909
        %v2912 = vshll.u32 %v2809, 16
        %v2914 = vrot.slane %v2912, 1
        %v2915 = vsel %vm1666, %v2910, %v2914
        %v2917 = vshrl.u32 %v2720, 16
        %v2919 = vshll.u32 %v2720, 16
        %v2921 = vrot.slane %v2919, 1
        %v2922 = vor.u32 %v2917, %v2921
        %v2924 = vshll.u32 %v2810, 16
        %v2926 = vrot.slane %v2924, 1
        %v2927 = vsel %vm1666, %v2922, %v2926
        %v2929 = vshrl.u32 %v2721, 16
        %v2931 = vshll.u32 %v2721, 16
        %v2933 = vrot.slane %v2931, 1
        %v2934 = vor.u32 %v2929, %v2933
        %v2936 = vshll.u32 %v2811, 16
        %v2938 = vrot.slane %v2936, 1
        %v2939 = vsel %vm1666, %v2934, %v2938
        %v2941 = vshrl.u32 %v2722, 16
        %v2943 = vshll.u32 %v2722, 16
        %v2945 = vrot.slane %v2943, 1
        %v2946 = vor.u32 %v2941, %v2945
        %v2948 = vshll.u32 %v2812, 16
        %v2950 = vrot.slane %v2948, 1
        %v2951 = vsel %vm1666, %v2946, %v2950
        %v2953 = vshrl.u32 %v2723, 16
        %v2955 = vshll.u32 %v2723, 16
        %v2957 = vrot.slane %v2955, 1
        %v2958 = vor.u32 %v2953, %v2957
        %v2960 = vshll.u32 %v2813, 16
        %v2962 = vrot.slane %v2960, 1
        %v2963 = vsel %vm1666, %v2958, %v2962
        %v2965 = vshrl.u32 %v2724, 16
        %v2967 = vshll.u32 %v2724, 16
        %v2969 = vrot.slane %v2967, 1
        %v2970 = vor.u32 %v2965, %v2969
        %v2972 = vshll.u32 %v2814, 16
        %v2974 = vrot.slane %v2972, 1
        %v2975 = vsel %vm1666, %v2970, %v2974
        %v2977 = vshrl.u32 %v2725, 16
        %v2979 = vshll.u32 %v2725, 16
        %v2981 = vrot.slane %v2979, 1
        %v2982 = vor.u32 %v2977, %v2981
        %v2984 = vshll.u32 %v2815, 16
        %v2986 = vrot.slane %v2984, 1
        %v2987 = vsel %vm1666, %v2982, %v2986
        %v2989 = vshrl.u32 %v2726, 16
        %v2991 = vshll.u32 %v2726, 16
        %v2993 = vrot.slane %v2991, 1
        %v2994 = vor.u32 %v2989, %v2993
        %v2996 = vshll.u32 %v2816, 16
        %v2998 = vrot.slane %v2996, 1
        %v2999 = vsel %vm1666, %v2994, %v2998
        %v3001 = vshrl.u32 %v2727, 16
        %v3003 = vshll.u32 %v2727, 16
        %v3005 = vrot.slane %v3003, 1
        %v3006 = vor.u32 %v3001, %v3005
        %v3008 = vshll.u32 %v2817, 16
        %v3010 = vrot.slane %v3008, 1
        %v3011 = vsel %vm1666, %v3006, %v3010
        %v3013 = vshrl.u32 %v2728, 16
        %v3015 = vshll.u32 %v2728, 16
        %v3017 = vrot.slane %v3015, 1
        %v3018 = vor.u32 %v3013, %v3017
        %v3020 = vshll.u32 %v2818, 16
        %v3022 = vrot.slane %v3020, 1
        %v3023 = vsel %vm1666, %v3018, %v3022
        %v3025 = vshrl.u32 %v2729, 16
        %v3027 = vshll.u32 %v2729, 16
        %v3029 = vrot.slane %v3027, 1
        %v3030 = vor.u32 %v3025, %v3029
        %v3032 = vshll.u32 %v2819, 16
        %v3034 = vrot.slane %v3032, 1
        %v3035 = vsel %vm1666, %v3030, %v3034
        %3036 = vrot.lane.b32.xlu0 %v2831, 28
        %v3037 = vpop.permute.xlu0 %3036
        %3038 = vrot.lane.b32.xlu0 %v2843, 28
        %v3039 = vpop.permute.xlu0 %3038
        %3040 = vrot.lane.b32.xlu0 %v2855, 28
        %v3041 = vpop.permute.xlu0 %3040
        %3042 = vrot.lane.b32.xlu0 %v2867, 28
        %v3043 = vpop.permute.xlu0 %3042
        %3044 = vrot.lane.b32.xlu0 %v2879, 28
        %v3045 = vpop.permute.xlu0 %3044
        %3046 = vrot.lane.b32.xlu0 %v2891, 28
        %v3047 = vpop.permute.xlu0 %3046
        %3048 = vrot.lane.b32.xlu0 %v2903, 28
        %v3049 = vpop.permute.xlu0 %3048
        %3050 = vrot.lane.b32.xlu0 %v2915, 28
        %v3051 = vpop.permute.xlu0 %3050
        %3052 = vrot.lane.b32.xlu0 %v2927, 28
        %v3053 = vpop.permute.xlu0 %3052
        %3054 = vrot.lane.b32.xlu0 %v2939, 28
        %v3055 = vpop.permute.xlu0 %3054
        %3056 = vrot.lane.b32.xlu0 %v2951, 28
        %v3057 = vpop.permute.xlu0 %3056
        %3058 = vrot.lane.b32.xlu0 %v2963, 28
        %v3059 = vpop.permute.xlu0 %3058
        %3060 = vrot.lane.b32.xlu0 %v2975, 28
        %v3061 = vpop.permute.xlu0 %3060
        %3062 = vrot.lane.b32.xlu0 %v2987, 28
        %v3063 = vpop.permute.xlu0 %3062
        %3064 = vrot.lane.b32.xlu0 %v2999, 28
        %v3065 = vpop.permute.xlu0 %3064
        %3066 = vrot.lane.b32.xlu0 %v3011, 28
        %v3067 = vpop.permute.xlu0 %3066
        %3068 = vrot.lane.b32.xlu0 %v3023, 28
        %v3069 = vpop.permute.xlu0 %3068
        %3070 = vrot.lane.b32.xlu0 %v3035, 28
        %v3071 = vpop.permute.xlu0 %3070
        %v3090 = vunpack.c.l.b16 %v1504
        %v3091 = vunpack.c.l.b16 %v1505
        %v3092 = vunpack.c.l.b16 %v1506
        %v3093 = vunpack.c.l.b16 %v1507
        %v3094 = vunpack.c.l.b16 %v1508
        %v3095 = vunpack.c.l.b16 %v1509
        %v3096 = vunpack.c.l.b16 %v1510
        %v3097 = vunpack.c.l.b16 %v1511
        %v3098 = vunpack.c.l.b16 %v1512
        %v3099 = vunpack.c.l.b16 %v1513
        %v3100 = vunpack.c.l.b16 %v1514
        %v3101 = vunpack.c.l.b16 %v1515
        %v3102 = vunpack.c.l.b16 %v1516
        %v3103 = vunpack.c.l.b16 %v1517
        %v3104 = vunpack.c.l.b16 %v1518
        %v3105 = vunpack.c.l.b16 %v1519
        %v3106 = vunpack.c.l.b16 %v1520
        %v3107 = vunpack.c.l.b16 %v1521
        %v3108 = vpack.c.b16 %v2677, %v3090
        %v3109 = vpack.c.b16 %v2679, %v3091
        %v3110 = vpack.c.b16 %v2681, %v3092
        %v3111 = vpack.c.b16 %v2683, %v3093
        %v3112 = vpack.c.b16 %v2685, %v3094
        %v3113 = vpack.c.b16 %v2687, %v3095
        %v3114 = vpack.c.b16 %v2689, %v3096
        %v3115 = vpack.c.b16 %v2691, %v3097
        %v3116 = vpack.c.b16 %v2693, %v3098
        %v3117 = vpack.c.b16 %v2695, %v3099
        %v3118 = vpack.c.b16 %v2697, %v3100
        %v3119 = vpack.c.b16 %v2699, %v3101
        %v3120 = vpack.c.b16 %v2701, %v3102
        %v3121 = vpack.c.b16 %v2703, %v3103
        %v3122 = vpack.c.b16 %v2705, %v3104
        %v3123 = vpack.c.b16 %v2707, %v3105
        %v3124 = vpack.c.b16 %v2709, %v3106
        %v3125 = vpack.c.b16 %v2711, %v3107
        %v3126 = vrot.slane %v3108, 1
        %v3127 = vrot.slane %v2802, 1
        %v3128 = vsel %vm1973, %v3126, %v3127
        %v3129 = vrot.slane %v3109, 1
        %v3130 = vrot.slane %v2803, 1
        %v3131 = vsel %vm1973, %v3129, %v3130
        %v3132 = vrot.slane %v3110, 1
        %v3133 = vrot.slane %v2804, 1
        %v3134 = vsel %vm1973, %v3132, %v3133
        %v3135 = vrot.slane %v3111, 1
        %v3136 = vrot.slane %v2805, 1
        %v3137 = vsel %vm1973, %v3135, %v3136
        %v3138 = vrot.slane %v3112, 1
        %v3139 = vrot.slane %v2806, 1
        %v3140 = vsel %vm1973, %v3138, %v3139
        %v3141 = vrot.slane %v3113, 1
        %v3142 = vrot.slane %v2807, 1
        %v3143 = vsel %vm1973, %v3141, %v3142
        %v3144 = vrot.slane %v3114, 1
        %v3145 = vrot.slane %v2808, 1
        %v3146 = vsel %vm1973, %v3144, %v3145
        %v3147 = vrot.slane %v3115, 1
        %v3148 = vrot.slane %v2809, 1
        %v3149 = vsel %vm1973, %v3147, %v3148
        %v3150 = vrot.slane %v3116, 1
        %v3151 = vrot.slane %v2810, 1
        %v3152 = vsel %vm1973, %v3150, %v3151
        %v3153 = vrot.slane %v3117, 1
        %v3154 = vrot.slane %v2811, 1
        %v3155 = vsel %vm1973, %v3153, %v3154
        %v3156 = vrot.slane %v3118, 1
        %v3157 = vrot.slane %v2812, 1
        %v3158 = vsel %vm1973, %v3156, %v3157
        %v3159 = vrot.slane %v3119, 1
        %v3160 = vrot.slane %v2813, 1
        %v3161 = vsel %vm1973, %v3159, %v3160
        %v3162 = vrot.slane %v3120, 1
        %v3163 = vrot.slane %v2814, 1
        %v3164 = vsel %vm1973, %v3162, %v3163
        %v3165 = vrot.slane %v3121, 1
        %v3166 = vrot.slane %v2815, 1
        %v3167 = vsel %vm1973, %v3165, %v3166
        %v3168 = vrot.slane %v3122, 1
        %v3169 = vrot.slane %v2816, 1
        %v3170 = vsel %vm1973, %v3168, %v3169
        %v3171 = vrot.slane %v3123, 1
        %v3172 = vrot.slane %v2817, 1
        %v3173 = vsel %vm1973, %v3171, %v3172
        %v3174 = vrot.slane %v3124, 1
        %v3175 = vrot.slane %v2818, 1
        %v3176 = vsel %vm1973, %v3174, %v3175
        %v3177 = vrot.slane %v3125, 1
        %v3178 = vrot.slane %v2819, 1
        %v3179 = vsel %vm1973, %v3177, %v3178
        %3180 = vrot.lane.b32.xlu0 %v3128, 32
        %v3181 = vpop.permute.xlu0 %3180
        %3182 = vrot.lane.b32.xlu0 %v3131, 32
        %v3183 = vpop.permute.xlu0 %3182
        %3184 = vrot.lane.b32.xlu0 %v3134, 32
        %v3185 = vpop.permute.xlu0 %3184
        %3186 = vrot.lane.b32.xlu0 %v3137, 32
        %v3187 = vpop.permute.xlu0 %3186
        %3188 = vrot.lane.b32.xlu0 %v3140, 32
        %v3189 = vpop.permute.xlu0 %3188
        %3190 = vrot.lane.b32.xlu0 %v3143, 32
        %v3191 = vpop.permute.xlu0 %3190
        %3192 = vrot.lane.b32.xlu0 %v3146, 32
        %v3193 = vpop.permute.xlu0 %3192
        %3194 = vrot.lane.b32.xlu0 %v3149, 32
        %v3195 = vpop.permute.xlu0 %3194
        %3196 = vrot.lane.b32.xlu0 %v3152, 32
        %v3197 = vpop.permute.xlu0 %3196
        %3198 = vrot.lane.b32.xlu0 %v3155, 32
        %v3199 = vpop.permute.xlu0 %3198
        %3200 = vrot.lane.b32.xlu0 %v3158, 32
        %v3201 = vpop.permute.xlu0 %3200
        %3202 = vrot.lane.b32.xlu0 %v3161, 32
        %v3203 = vpop.permute.xlu0 %3202
        %3204 = vrot.lane.b32.xlu0 %v3164, 32
        %v3205 = vpop.permute.xlu0 %3204
        %3206 = vrot.lane.b32.xlu0 %v3167, 32
        %v3207 = vpop.permute.xlu0 %3206
        %3208 = vrot.lane.b32.xlu0 %v3170, 32
        %v3209 = vpop.permute.xlu0 %3208
        %3210 = vrot.lane.b32.xlu0 %v3173, 32
        %v3211 = vpop.permute.xlu0 %3210
        %3212 = vrot.lane.b32.xlu0 %v3176, 32
        %v3213 = vpop.permute.xlu0 %3212
        %3214 = vrot.lane.b32.xlu0 %v3179, 32
        %v3215 = vpop.permute.xlu0 %3214
        %vm3216 = vcmask 31744
        %v3218 = vsel %vm3216, %v1594, %v1884
        %v3220 = vsel %vm3216, %v1595, %v1886
        %v3222 = vsel %vm3216, %v1596, %v1888
        %v3224 = vsel %vm3216, %v1597, %v1890
        %v3226 = vsel %vm3216, %v1598, %v1892
        %v3228 = vsel %vm3216, %v1599, %v1894
        %v3230 = vsel %vm3216, %v1600, %v1896
        %v3232 = vsel %vm3216, %v1601, %v1898
        %v3234 = vsel %vm3216, %v1602, %v1900
        %v3236 = vsel %vm3216, %v1603, %v1902
        %v3238 = vsel %vm3216, %v1604, %v1904
        %v3240 = vsel %vm3216, %v1605, %v1906
        %v3242 = vsel %vm3216, %v1606, %v1908
        %v3244 = vsel %vm3216, %v1607, %v1910
        %v3246 = vsel %vm3216, %v1608, %v1912
        %v3248 = vsel %vm3216, %v1609, %v1914
        %v3250 = vsel %vm3216, %v1610, %v1916
        %v3252 = vsel %vm3216, %v1611, %v1918
        %vm3253 = vcmask 64512
        %v3255 = vsel %vm3253, %v3218, %v2029
        %v3257 = vsel %vm3253, %v3220, %v2031
        %v3259 = vsel %vm3253, %v3222, %v2033
        %v3261 = vsel %vm3253, %v3224, %v2035
        %v3263 = vsel %vm3253, %v3226, %v2037
        %v3265 = vsel %vm3253, %v3228, %v2039
        %v3267 = vsel %vm3253, %v3230, %v2041
        %v3269 = vsel %vm3253, %v3232, %v2043
        %v3271 = vsel %vm3253, %v3234, %v2045
        %v3273 = vsel %vm3253, %v3236, %v2047
        %v3275 = vsel %vm3253, %v3238, %v2049
        %v3277 = vsel %vm3253, %v3240, %v2051
        %v3279 = vsel %vm3253, %v3242, %v2053
        %v3281 = vsel %vm3253, %v3244, %v2055
        %v3283 = vsel %vm3253, %v3246, %v2057
        %v3285 = vsel %vm3253, %v3248, %v2059
        %v3287 = vsel %vm3253, %v3250, %v2061
        %v3289 = vsel %vm3253, %v3252, %v2063
        %vm3290 = vcmask 97280
        %v3292 = vsel %vm3290, %v3255, %v2155
        %v3294 = vsel %vm3290, %v3257, %v2157
        %v3296 = vsel %vm3290, %v3259, %v2159
        %v3298 = vsel %vm3290, %v3261, %v2161
        %v3300 = vsel %vm3290, %v3263, %v2163
        %v3302 = vsel %vm3290, %v3265, %v2165
        %v3304 = vsel %vm3290, %v3267, %v2167
        %v3306 = vsel %vm3290, %v3269, %v2169
        %v3308 = vsel %vm3290, %v3271, %v2171
        %v3310 = vsel %vm3290, %v3273, %v2173
        %v3312 = vsel %vm3290, %v3275, %v2175
        %v3314 = vsel %vm3290, %v3277, %v2177
        %v3316 = vsel %vm3290, %v3279, %v2179
        %v3318 = vsel %vm3290, %v3281, %v2181
        %v3320 = vsel %vm3290, %v3283, %v2183
        %v3322 = vsel %vm3290, %v3285, %v2185
        %v3324 = vsel %vm3290, %v3287, %v2187
        %v3326 = vsel %vm3290, %v3289, %v2189
        %vm3327 = vcmask 130048
        %v3329 = vsel %vm3327, %v3292, %v2461
        %v3331 = vsel %vm3327, %v3294, %v2463
        %v3333 = vsel %vm3327, %v3296, %v2465
        %v3335 = vsel %vm3327, %v3298, %v2467
        %v3337 = vsel %vm3327, %v3300, %v2469
        %v3339 = vsel %vm3327, %v3302, %v2471
        %v3341 = vsel %vm3327, %v3304, %v2473
        %v3343 = vsel %vm3327, %v3306, %v2475
        %v3345 = vsel %vm3327, %v3308, %v2477
        %v3347 = vsel %vm3327, %v3310, %v2479
        %v3349 = vsel %vm3327, %v3312, %v2481
        %v3351 = vsel %vm3327, %v3314, %v2483
        %v3353 = vsel %vm3327, %v3316, %v2485
        %v3355 = vsel %vm3327, %v3318, %v2487
        %v3357 = vsel %vm3327, %v3320, %v2489
        %v3359 = vsel %vm3327, %v3322, %v2491
        %v3361 = vsel %vm3327, %v3324, %v2493
        %v3363 = vsel %vm3327, %v3326, %v2495
        %vm3364 = vcmask 162816
        %v3366 = vsel %vm3364, %v3329, %v2605
        %v3368 = vsel %vm3364, %v3331, %v2607
        %v3370 = vsel %vm3364, %v3333, %v2609
        %v3372 = vsel %vm3364, %v3335, %v2611
        %v3374 = vsel %vm3364, %v3337, %v2613
        %v3376 = vsel %vm3364, %v3339, %v2615
        %v3378 = vsel %vm3364, %v3341, %v2617
        %v3380 = vsel %vm3364, %v3343, %v2619
        %v3382 = vsel %vm3364, %v3345, %v2621
        %v3384 = vsel %vm3364, %v3347, %v2623
        %v3386 = vsel %vm3364, %v3349, %v2625
        %v3388 = vsel %vm3364, %v3351, %v2627
        %v3390 = vsel %vm3364, %v3353, %v2629
        %v3392 = vsel %vm3364, %v3355, %v2631
        %v3394 = vsel %vm3364, %v3357, %v2633
        %v3396 = vsel %vm3364, %v3359, %v2635
        %v3398 = vsel %vm3364, %v3361, %v2637
        %v3400 = vsel %vm3364, %v3363, %v2639
        %vm3401 = vcmask 195584
        %v3403 = vsel %vm3401, %v3366, %v2731
        %v3405 = vsel %vm3401, %v3368, %v2733
        %v3407 = vsel %vm3401, %v3370, %v2735
        %v3409 = vsel %vm3401, %v3372, %v2737
        %v3411 = vsel %vm3401, %v3374, %v2739
        %v3413 = vsel %vm3401, %v3376, %v2741
        %v3415 = vsel %vm3401, %v3378, %v2743
        %v3417 = vsel %vm3401, %v3380, %v2745
        %v3419 = vsel %vm3401, %v3382, %v2747
        %v3421 = vsel %vm3401, %v3384, %v2749
        %v3423 = vsel %vm3401, %v3386, %v2751
        %v3425 = vsel %vm3401, %v3388, %v2753
        %v3427 = vsel %vm3401, %v3390, %v2755
        %v3429 = vsel %vm3401, %v3392, %v2757
        %v3431 = vsel %vm3401, %v3394, %v2759
        %v3433 = vsel %vm3401, %v3396, %v2761
        %v3435 = vsel %vm3401, %v3398, %v2763
        %v3437 = vsel %vm3401, %v3400, %v2765
        %vm3438 = vcmask 228352
        %v3440 = vsel %vm3438, %v3403, %v3037
        %v3442 = vsel %vm3438, %v3405, %v3039
        %v3444 = vsel %vm3438, %v3407, %v3041
        %v3446 = vsel %vm3438, %v3409, %v3043
        %v3448 = vsel %vm3438, %v3411, %v3045
        %v3450 = vsel %vm3438, %v3413, %v3047
        %v3452 = vsel %vm3438, %v3415, %v3049
        %v3454 = vsel %vm3438, %v3417, %v3051
        %v3456 = vsel %vm3438, %v3419, %v3053
        %v3458 = vsel %vm3438, %v3421, %v3055
        %v3460 = vsel %vm3438, %v3423, %v3057
        %v3462 = vsel %vm3438, %v3425, %v3059
        %v3464 = vsel %vm3438, %v3427, %v3061
        %v3466 = vsel %vm3438, %v3429, %v3063
        %v3468 = vsel %vm3438, %v3431, %v3065
        %v3470 = vsel %vm3438, %v3433, %v3067
        %v3472 = vsel %vm3438, %v3435, %v3069
        %v3474 = vsel %vm3438, %v3437, %v3071
        %vm3475 = vcmask 261120
        %v3477 = vsel %vm3475, %v3440, %v3181
        %v3479 = vsel %vm3475, %v3442, %v3183
        %v3481 = vsel %vm3475, %v3444, %v3185
        %v3483 = vsel %vm3475, %v3446, %v3187
        %v3485 = vsel %vm3475, %v3448, %v3189
        %v3487 = vsel %vm3475, %v3450, %v3191
        %v3489 = vsel %vm3475, %v3452, %v3193
        %v3491 = vsel %vm3475, %v3454, %v3195
        %v3493 = vsel %vm3475, %v3456, %v3197
        %v3495 = vsel %vm3475, %v3458, %v3199
        %v3497 = vsel %vm3475, %v3460, %v3201
        %v3499 = vsel %vm3475, %v3462, %v3203
        %v3501 = vsel %vm3475, %v3464, %v3205
        %v3503 = vsel %vm3475, %v3466, %v3207
        %v3505 = vsel %vm3475, %v3468, %v3209
        %v3507 = vsel %vm3475, %v3470, %v3211
        %v3509 = vsel %vm3475, %v3472, %v3213
        %v3511 = vsel %vm3475, %v3474, %v3215
        %v3512 = vld [vmem:[%s2] sm:$0x1]
        %v3514 = vperm.slane %v3512, 0
        %v3516 = vld [vmem:[%s1] sm:$0xf]
        %v3517 = vld [vmem:[%s1 + $0x4] sm:$0xf]
        %v3518 = vld [vmem:[%s1 + $0x8] sm:$0xf]
        %v3519 = vld [vmem:[%s1 + $0xc] sm:$0xf]
        %v3520 = vld [vmem:[%s1 + $0x10] sm:$0x3]
        %v3526 = vunpack.c.l.b16 %v3516
        %v3527 = vunpack.c.l.b16 %v3517
        %v3528 = vunpack.c.l.b16 %v3518
        %v3529 = vunpack.c.l.b16 %v3519
        %v3530 = vunpack.c.l.b16 %v3520
        %v3531 = vpack.c.b16 %v3527, %v3526
        %v3532 = vpack.c.b16 %v3529, %v3528
        %v3533 = vpack.c.b16 %v3530, %v3530
        %vm3536 = vcmask 293888
        %v3537 = vsel %vm3536, %v3477, 0
        %v3539 = vsel %vm3536, %v3479, 0
        %v3541 = vsel %vm3536, %v3481, 0
        %v3543 = vsel %vm3536, %v3483, 0
        %v3545 = vsel %vm3536, %v3485, 0
        %v3547 = vsel %vm3536, %v3487, 0
        %v3549 = vsel %vm3536, %v3489, 0
        %v3551 = vsel %vm3536, %v3491, 0
        %v3553 = vsel %vm3536, %v3493, 0
        %v3555 = vsel %vm3536, %v3495, 0
        %v3557 = vsel %vm3536, %v3497, 0
        %v3559 = vsel %vm3536, %v3499, 0
        %v3561 = vsel %vm3536, %v3501, 0
        %v3563 = vsel %vm3536, %v3503, 0
        %v3565 = vsel %vm3536, %v3505, 0
        %v3567 = vsel %vm3536, %v3507, 0
        %v3569 = vsel %vm3536, %v3509, 0
        %v3571 = vsel %vm3536, %v3511, 0
        %vm3573 = vcmask 1041408
        %v3575 = vsel %vm3573, %v3533, 0
        %3577 = vmatpush.bf16.msra.mxu0 0
        %3578 = vmatpush.bf16.msra.mxu0 0
        %3579 = vmatpush.bf16.msra.mxu0 0
        %3580 = vmatpush.bf16.msra.mxu0 0
        %3581 = vmatpush.bf16.msra.mxu0 0
        %3582 = vmatpush.bf16.msra.mxu0 %v3575
        %3583 = vmatpush.bf16.msra.mxu0 %v3532
        %3584 = vmatpush.bf16.msra.mxu0 %v3531
        %3585 = vmatmul.bf16.gmra.mxu0 %v3537
        %v3586 = vpop.f32.mrf.mxu0
        %v3587 = vadd.f32 0.0, %v3586
        %v3588 = vpop.f32.mrf.mxu0
        %v3589 = vadd.f32 0.0, %v3588
        %3590 = vmatmul.bf16.gmra.mxu0 %v3539
        %v3591 = vpop.f32.mrf.mxu0
        %v3592 = vadd.f32 0.0, %v3591
        %v3593 = vpop.f32.mrf.mxu0
        %v3594 = vadd.f32 0.0, %v3593
        %3595 = vmatmul.bf16.gmra.mxu0 %v3541
        %v3596 = vpop.f32.mrf.mxu0
        %v3597 = vadd.f32 0.0, %v3596
        %v3598 = vpop.f32.mrf.mxu0
        %v3599 = vadd.f32 0.0, %v3598
        %3600 = vmatmul.bf16.gmra.mxu0 %v3543
        %v3601 = vpop.f32.mrf.mxu0
        %v3602 = vadd.f32 0.0, %v3601
        %v3603 = vpop.f32.mrf.mxu0
        %v3604 = vadd.f32 0.0, %v3603
        %3605 = vmatmul.bf16.gmra.mxu0 %v3545
        %v3606 = vpop.f32.mrf.mxu0
        %v3607 = vadd.f32 0.0, %v3606
        %v3608 = vpop.f32.mrf.mxu0
        %v3609 = vadd.f32 0.0, %v3608
        %3610 = vmatmul.bf16.gmra.mxu0 %v3547
        %v3611 = vpop.f32.mrf.mxu0
        %v3612 = vadd.f32 0.0, %v3611
        %v3613 = vpop.f32.mrf.mxu0
        %v3614 = vadd.f32 0.0, %v3613
        %3615 = vmatmul.bf16.gmra.mxu0 %v3549
        %v3616 = vpop.f32.mrf.mxu0
        %v3617 = vadd.f32 0.0, %v3616
        %v3618 = vpop.f32.mrf.mxu0
        %v3619 = vadd.f32 0.0, %v3618
        %3620 = vmatmul.bf16.gmra.mxu0 %v3551
        %v3621 = vpop.f32.mrf.mxu0
        %v3622 = vadd.f32 0.0, %v3621
        %v3623 = vpop.f32.mrf.mxu0
        %v3624 = vadd.f32 0.0, %v3623
        %3625 = vmatmul.bf16.gmra.mxu0 %v3553
        %v3626 = vpop.f32.mrf.mxu0
        %v3627 = vadd.f32 0.0, %v3626
        %v3628 = vpop.f32.mrf.mxu0
        %v3629 = vadd.f32 0.0, %v3628
        %3630 = vmatmul.bf16.gmra.mxu0 %v3555
        %v3631 = vpop.f32.mrf.mxu0
        %v3632 = vadd.f32 0.0, %v3631
        %v3633 = vpop.f32.mrf.mxu0
        %v3634 = vadd.f32 0.0, %v3633
        %3635 = vmatmul.bf16.gmra.mxu0 %v3557
        %v3636 = vpop.f32.mrf.mxu0
        %v3637 = vadd.f32 0.0, %v3636
        %v3638 = vpop.f32.mrf.mxu0
        %v3639 = vadd.f32 0.0, %v3638
        %3640 = vmatmul.bf16.gmra.mxu0 %v3559
        %v3641 = vpop.f32.mrf.mxu0
        %v3642 = vadd.f32 0.0, %v3641
        %v3643 = vpop.f32.mrf.mxu0
        %v3644 = vadd.f32 0.0, %v3643
        %3645 = vmatmul.bf16.gmra.mxu0 %v3561
        %v3646 = vpop.f32.mrf.mxu0
        %v3647 = vadd.f32 0.0, %v3646
        %v3648 = vpop.f32.mrf.mxu0
        %v3649 = vadd.f32 0.0, %v3648
        %3650 = vmatmul.bf16.gmra.mxu0 %v3563
        %v3651 = vpop.f32.mrf.mxu0
        %v3652 = vadd.f32 0.0, %v3651
        %v3653 = vpop.f32.mrf.mxu0
        %v3654 = vadd.f32 0.0, %v3653
        %3655 = vmatmul.bf16.gmra.mxu0 %v3565
        %v3656 = vpop.f32.mrf.mxu0
        %v3657 = vadd.f32 0.0, %v3656
        %v3658 = vpop.f32.mrf.mxu0
        %v3659 = vadd.f32 0.0, %v3658
        %3660 = vmatmul.bf16.gmra.mxu0 %v3567
        %v3661 = vpop.f32.mrf.mxu0
        %v3662 = vadd.f32 0.0, %v3661
        %v3663 = vpop.f32.mrf.mxu0
        %v3664 = vadd.f32 0.0, %v3663
        %3665 = vmatmul.bf16.gmra.mxu0 %v3569
        %v3666 = vpop.f32.mrf.mxu0
        %v3667 = vadd.f32 0.0, %v3666
        %v3668 = vpop.f32.mrf.mxu0
        %v3669 = vadd.f32 0.0, %v3668
        %3670 = vmatmul.bf16.gmra.mxu0 %v3571
        %v3671 = vpop.f32.mrf.mxu0
        %v3672 = vadd.f32 0.0, %v3671
        %v3673 = vpop.f32.mrf.mxu0
        %v3674 = vadd.f32 0.0, %v3673
        %3675 = vdwg.mxu0
        %v3676 = vadd.f32 %v3514, %v3587
        %v3677 = vadd.f32 %v3514, %v3589
        %v3678 = vadd.f32 %v3514, %v3592
        %v3679 = vadd.f32 %v3514, %v3594
        %v3680 = vadd.f32 %v3514, %v3597
        %v3681 = vadd.f32 %v3514, %v3599
        %v3682 = vadd.f32 %v3514, %v3602
        %v3683 = vadd.f32 %v3514, %v3604
        %v3684 = vadd.f32 %v3514, %v3607
        %v3685 = vadd.f32 %v3514, %v3609
        %v3686 = vadd.f32 %v3514, %v3612
        %v3687 = vadd.f32 %v3514, %v3614
        %v3688 = vadd.f32 %v3514, %v3617
        %v3689 = vadd.f32 %v3514, %v3619
        %v3690 = vadd.f32 %v3514, %v3622
        %v3691 = vadd.f32 %v3514, %v3624
        %v3692 = vadd.f32 %v3514, %v3627
        %v3693 = vadd.f32 %v3514, %v3629
        %v3694 = vadd.f32 %v3514, %v3632
        %v3695 = vadd.f32 %v3514, %v3634
        %v3696 = vadd.f32 %v3514, %v3637
        %v3697 = vadd.f32 %v3514, %v3639
        %v3698 = vadd.f32 %v3514, %v3642
        %v3699 = vadd.f32 %v3514, %v3644
        %v3700 = vadd.f32 %v3514, %v3647
        %v3701 = vadd.f32 %v3514, %v3649
        %v3702 = vadd.f32 %v3514, %v3652
        %v3703 = vadd.f32 %v3514, %v3654
        %v3704 = vadd.f32 %v3514, %v3657
        %v3705 = vadd.f32 %v3514, %v3659
        %v3706 = vadd.f32 %v3514, %v3662
        %v3707 = vadd.f32 %v3514, %v3664
        %v3708 = vadd.f32 %v3514, %v3667
        %v3709 = vadd.f32 %v3514, %v3669
        %v3710 = vadd.f32 %v3514, %v3672
        %v3711 = vadd.f32 %v3514, %v3674
        %v3712 = vmax.f32 %v3676, 0.0
        %v3713 = vmax.f32 %v3677, 0.0
        %v3714 = vmax.f32 %v3678, 0.0
        %v3715 = vmax.f32 %v3679, 0.0
        %v3716 = vmax.f32 %v3680, 0.0
        %v3717 = vmax.f32 %v3681, 0.0
        %v3718 = vmax.f32 %v3682, 0.0
        %v3719 = vmax.f32 %v3683, 0.0
        %v3720 = vmax.f32 %v3684, 0.0
        %v3721 = vmax.f32 %v3685, 0.0
        %v3722 = vmax.f32 %v3686, 0.0
        %v3723 = vmax.f32 %v3687, 0.0
        %v3724 = vmax.f32 %v3688, 0.0
        %v3725 = vmax.f32 %v3689, 0.0
        %v3726 = vmax.f32 %v3690, 0.0
        %v3727 = vmax.f32 %v3691, 0.0
        %v3728 = vmax.f32 %v3692, 0.0
        %v3729 = vmax.f32 %v3693, 0.0
        %v3730 = vmax.f32 %v3694, 0.0
        %v3731 = vmax.f32 %v3695, 0.0
        %v3732 = vmax.f32 %v3696, 0.0
        %v3733 = vmax.f32 %v3697, 0.0
        %v3734 = vmax.f32 %v3698, 0.0
        %v3735 = vmax.f32 %v3699, 0.0
        %v3736 = vmax.f32 %v3700, 0.0
        %v3737 = vmax.f32 %v3701, 0.0
        %v3738 = vmax.f32 %v3702, 0.0
        %v3739 = vmax.f32 %v3703, 0.0
        %v3740 = vmax.f32 %v3704, 0.0
        %v3741 = vmax.f32 %v3705, 0.0
        %v3742 = vmax.f32 %v3706, 0.0
        %v3743 = vmax.f32 %v3707, 0.0
        %v3744 = vmax.f32 %v3708, 0.0
        %v3745 = vmax.f32 %v3709, 0.0
        %v3746 = vmax.f32 %v3710, 0.0
        %v3747 = vmax.f32 %v3711, 0.0
        %v3748 = vpack.c.bf16 %v3712, %v3712
        %v3749 = vpack.c.bf16 %v3713, %v3713
        %v3750 = vpack.c.bf16 %v3714, %v3714
        %v3751 = vpack.c.bf16 %v3715, %v3715
        %v3752 = vpack.c.bf16 %v3716, %v3716
        %v3753 = vpack.c.bf16 %v3717, %v3717
        %v3754 = vpack.c.bf16 %v3718, %v3718
        %v3755 = vpack.c.bf16 %v3719, %v3719
        %v3756 = vpack.c.bf16 %v3720, %v3720
        %v3757 = vpack.c.bf16 %v3721, %v3721
        %v3758 = vpack.c.bf16 %v3722, %v3722
        %v3759 = vpack.c.bf16 %v3723, %v3723
        %v3760 = vpack.c.bf16 %v3724, %v3724
        %v3761 = vpack.c.bf16 %v3725, %v3725
        %v3762 = vpack.c.bf16 %v3726, %v3726
        %v3763 = vpack.c.bf16 %v3727, %v3727
        %v3764 = vpack.c.bf16 %v3728, %v3728
        %v3765 = vpack.c.bf16 %v3729, %v3729
        %v3766 = vpack.c.bf16 %v3730, %v3730
        %v3767 = vpack.c.bf16 %v3731, %v3731
        %v3768 = vpack.c.bf16 %v3732, %v3732
        %v3769 = vpack.c.bf16 %v3733, %v3733
        %v3770 = vpack.c.bf16 %v3734, %v3734
        %v3771 = vpack.c.bf16 %v3735, %v3735
        %v3772 = vpack.c.bf16 %v3736, %v3736
        %v3773 = vpack.c.bf16 %v3737, %v3737
        %v3774 = vpack.c.bf16 %v3738, %v3738
        %v3775 = vpack.c.bf16 %v3739, %v3739
        %v3776 = vpack.c.bf16 %v3740, %v3740
        %v3777 = vpack.c.bf16 %v3741, %v3741
        %v3778 = vpack.c.bf16 %v3742, %v3742
        %v3779 = vpack.c.bf16 %v3743, %v3743
        %v3780 = vpack.c.bf16 %v3744, %v3744
        %v3781 = vpack.c.bf16 %v3745, %v3745
        %v3782 = vpack.c.bf16 %v3746, %v3746
        %v3783 = vpack.c.bf16 %v3747, %v3747
        %vm3784 = vcmask 1040384
        %vm3785 = vsmask.f32 256
        %vm3786 = vmand %vm3784, %vm3785
        %v3787 = vld [vmem:[#allocation3] sm:$0x1]
        %v3788 = vsel %vm3786, 0, %v3787
        %3789 = vst [vmem:[#allocation3] sm:$0x1] %v3788
        %v3790 = vld [vmem:[#allocation3 + $0xc] sm:$0x1]
        %v3791 = vsel %vm3786, 0, %v3790
        %3792 = vst [vmem:[#allocation3 + $0xc] sm:$0x1] %v3791
        %v3793 = vld [vmem:[#allocation3 + $0x18] sm:$0x1]
        %v3794 = vsel %vm3786, 0, %v3793
        %3795 = vst [vmem:[#allocation3 + $0x18] sm:$0x1] %v3794
        %v3796 = vld [vmem:[#allocation3 + $0x24] sm:$0x1]
        %v3797 = vsel %vm3786, 0, %v3796
        %3798 = vst [vmem:[#allocation3 + $0x24] sm:$0x1] %v3797
        %v3799 = vld [vmem:[#allocation3 + $0x30] sm:$0x1]
        %v3800 = vsel %vm3786, 0, %v3799
        %3801 = vst [vmem:[#allocation3 + $0x30] sm:$0x1] %v3800
        %v3802 = vld [vmem:[#allocation3 + $0x3c] sm:$0x1]
        %v3803 = vsel %vm3786, 0, %v3802
        %3804 = vst [vmem:[#allocation3 + $0x3c] sm:$0x1] %v3803
        %v3805 = vld [vmem:[#allocation3 + $0x48] sm:$0x1]
        %v3806 = vsel %vm3786, 0, %v3805
        %3807 = vst [vmem:[#allocation3 + $0x48] sm:$0x1] %v3806
        %v3808 = vld [vmem:[#allocation3 + $0x54] sm:$0x1]
        %v3809 = vsel %vm3786, 0, %v3808
        %3810 = vst [vmem:[#allocation3 + $0x54] sm:$0x1] %v3809
        %v3811 = vld [vmem:[#allocation3 + $0x60] sm:$0x1]
        %v3812 = vsel %vm3786, 0, %v3811
        %3813 = vst [vmem:[#allocation3 + $0x60] sm:$0x1] %v3812
        %v3814 = vld [vmem:[#allocation3 + $0x6c] sm:$0x1]
        %v3815 = vsel %vm3786, 0, %v3814
        %3816 = vst [vmem:[#allocation3 + $0x6c] sm:$0x1] %v3815
        %v3817 = vld [vmem:[#allocation3 + $0x78] sm:$0x1]
        %v3818 = vsel %vm3786, 0, %v3817
        %3819 = vst [vmem:[#allocation3 + $0x78] sm:$0x1] %v3818
        %v3820 = vld [vmem:[#allocation3 + $0x84] sm:$0x1]
        %v3821 = vsel %vm3786, 0, %v3820
        %3822 = vst [vmem:[#allocation3 + $0x84] sm:$0x1] %v3821
        %v3823 = vld [vmem:[#allocation3 + $0x90] sm:$0x1]
        %v3824 = vsel %vm3786, 0, %v3823
        %3825 = vst [vmem:[#allocation3 + $0x90] sm:$0x1] %v3824
        %v3826 = vld [vmem:[#allocation3 + $0x9c] sm:$0x1]
        %v3827 = vsel %vm3786, 0, %v3826
        %3828 = vst [vmem:[#allocation3 + $0x9c] sm:$0x1] %v3827
        %v3829 = vld [vmem:[#allocation3 + $0xa8] sm:$0x1]
        %v3830 = vsel %vm3786, 0, %v3829
        %3831 = vst [vmem:[#allocation3 + $0xa8] sm:$0x1] %v3830
        %v3832 = vld [vmem:[#allocation3 + $0xb4] sm:$0x1]
        %v3833 = vsel %vm3786, 0, %v3832
        %3834 = vst [vmem:[#allocation3 + $0xb4] sm:$0x1] %v3833
        %v3835 = vld [vmem:[#allocation3 + $0xc0] sm:$0x1]
        %v3836 = vsel %vm3786, 0, %v3835
        %3837 = vst [vmem:[#allocation3 + $0xc0] sm:$0x1] %v3836
        %v3838 = vld [vmem:[#allocation3 + $0xcc] sm:$0x1]
        %v3839 = vsel %vm3786, 0, %v3838
        %3840 = vst [vmem:[#allocation3 + $0xcc] sm:$0x1] %v3839
        %vm3841 = vsmask.f32 7938
        %vm3842 = vmand %vm3784, %vm3841
        %v3843 = vld [vmem:[#allocation3 + $0x8] sm:$0x1]
        %v3844 = vsel %vm3842, 0, %v3843
        %3845 = vst [vmem:[#allocation3 + $0x8] sm:$0x1] %v3844
        %v3846 = vld [vmem:[#allocation3 + $0x14] sm:$0x1]
        %v3847 = vsel %vm3842, 0, %v3846
        %3848 = vst [vmem:[#allocation3 + $0x14] sm:$0x1] %v3847
        %v3849 = vld [vmem:[#allocation3 + $0x20] sm:$0x1]
        %v3850 = vsel %vm3842, 0, %v3849
        %3851 = vst [vmem:[#allocation3 + $0x20] sm:$0x1] %v3850
        %v3852 = vld [vmem:[#allocation3 + $0x2c] sm:$0x1]
        %v3853 = vsel %vm3842, 0, %v3852
        %3854 = vst [vmem:[#allocation3 + $0x2c] sm:$0x1] %v3853
        %v3855 = vld [vmem:[#allocation3 + $0x38] sm:$0x1]
        %v3856 = vsel %vm3842, 0, %v3855
        %3857 = vst [vmem:[#allocation3 + $0x38] sm:$0x1] %v3856
        %v3858 = vld [vmem:[#allocation3 + $0x44] sm:$0x1]
        %v3859 = vsel %vm3842, 0, %v3858
        %3860 = vst [vmem:[#allocation3 + $0x44] sm:$0x1] %v3859
        %v3861 = vld [vmem:[#allocation3 + $0x50] sm:$0x1]
        %v3862 = vsel %vm3842, 0, %v3861
        %3863 = vst [vmem:[#allocation3 + $0x50] sm:$0x1] %v3862
        %v3864 = vld [vmem:[#allocation3 + $0x5c] sm:$0x1]
        %v3865 = vsel %vm3842, 0, %v3864
        %3866 = vst [vmem:[#allocation3 + $0x5c] sm:$0x1] %v3865
        %v3867 = vld [vmem:[#allocation3 + $0x68] sm:$0x1]
        %v3868 = vsel %vm3842, 0, %v3867
        %3869 = vst [vmem:[#allocation3 + $0x68] sm:$0x1] %v3868
        %v3870 = vld [vmem:[#allocation3 + $0x74] sm:$0x1]
        %v3871 = vsel %vm3842, 0, %v3870
        %3872 = vst [vmem:[#allocation3 + $0x74] sm:$0x1] %v3871
        %v3873 = vld [vmem:[#allocation3 + $0x80] sm:$0x1]
        %v3874 = vsel %vm3842, 0, %v3873
        %3875 = vst [vmem:[#allocation3 + $0x80] sm:$0x1] %v3874
        %v3876 = vld [vmem:[#allocation3 + $0x8c] sm:$0x1]
        %v3877 = vsel %vm3842, 0, %v3876
        %3878 = vst [vmem:[#allocation3 + $0x8c] sm:$0x1] %v3877
        %v3879 = vld [vmem:[#allocation3 + $0x98] sm:$0x1]
        %v3880 = vsel %vm3842, 0, %v3879
        %3881 = vst [vmem:[#allocation3 + $0x98] sm:$0x1] %v3880
        %v3882 = vld [vmem:[#allocation3 + $0xa4] sm:$0x1]
        %v3883 = vsel %vm3842, 0, %v3882
        %3884 = vst [vmem:[#allocation3 + $0xa4] sm:$0x1] %v3883
        %v3885 = vld [vmem:[#allocation3 + $0xb0] sm:$0x1]
        %v3886 = vsel %vm3842, 0, %v3885
        %3887 = vst [vmem:[#allocation3 + $0xb0] sm:$0x1] %v3886
        %v3888 = vld [vmem:[#allocation3 + $0xbc] sm:$0x1]
        %v3889 = vsel %vm3842, 0, %v3888
        %3890 = vst [vmem:[#allocation3 + $0xbc] sm:$0x1] %v3889
        %v3891 = vld [vmem:[#allocation3 + $0xc8] sm:$0x1]
        %v3892 = vsel %vm3842, 0, %v3891
        %3893 = vst [vmem:[#allocation3 + $0xc8] sm:$0x1] %v3892
        %v3894 = vld [vmem:[#allocation3 + $0xd4] sm:$0x1]
        %v3895 = vsel %vm3842, 0, %v3894
        %3896 = vst [vmem:[#allocation3 + $0xd4] sm:$0x1] %v3895
        %vm3897 = vsmask.f32 4368
        %vm3898 = vmor %vm3785, %vm3897
        %v3900 = vshrl.u32 %v3748, 16
        %v3902 = vrot.slane %v3900, 7
        %v3903 = vshll.u32 %v3748, 16
        %v3905 = vor.u32 %v3902, %v3903
        %v3906 = vrot.slane %v3902, 4
        %v3908 = vshrl.u32 %v3749, 16
        %v3910 = vrot.slane %v3908, 7
        %v3911 = vshll.u32 %v3749, 16
        %v3913 = vor.u32 %v3910, %v3911
        %v3914 = vsel %vm3898, %v3906, %v3913
        %v3915 = vrot.slane %v3910, 4
        %v3917 = vshrl.u32 %v3750, 16
        %v3919 = vrot.slane %v3917, 7
        %v3920 = vshll.u32 %v3750, 16
        %v3922 = vor.u32 %v3919, %v3920
        %v3923 = vrot.slane %v3919, 4
        %v3925 = vshrl.u32 %v3751, 16
        %v3927 = vrot.slane %v3925, 7
        %v3928 = vshll.u32 %v3751, 16
        %v3930 = vor.u32 %v3927, %v3928
        %v3931 = vsel %vm3898, %v3923, %v3930
        %v3932 = vrot.slane %v3927, 4
        %v3934 = vshrl.u32 %v3752, 16
        %v3936 = vrot.slane %v3934, 7
        %v3937 = vshll.u32 %v3752, 16
        %v3939 = vor.u32 %v3936, %v3937
        %v3940 = vrot.slane %v3936, 4
        %v3942 = vshrl.u32 %v3753, 16
        %v3944 = vrot.slane %v3942, 7
        %v3945 = vshll.u32 %v3753, 16
        %v3947 = vor.u32 %v3944, %v3945
        %v3948 = vsel %vm3898, %v3940, %v3947
        %v3949 = vrot.slane %v3944, 4
        %v3951 = vshrl.u32 %v3754, 16
        %v3953 = vrot.slane %v3951, 7
        %v3954 = vshll.u32 %v3754, 16
        %v3956 = vor.u32 %v3953, %v3954
        %v3957 = vrot.slane %v3953, 4
        %v3959 = vshrl.u32 %v3755, 16
        %v3961 = vrot.slane %v3959, 7
        %v3962 = vshll.u32 %v3755, 16
        %v3964 = vor.u32 %v3961, %v3962
        %v3965 = vsel %vm3898, %v3957, %v3964
        %v3966 = vrot.slane %v3961, 4
        %v3968 = vshrl.u32 %v3756, 16
        %v3970 = vrot.slane %v3968, 7
        %v3971 = vshll.u32 %v3756, 16
        %v3973 = vor.u32 %v3970, %v3971
        %v3974 = vrot.slane %v3970, 4
        %v3976 = vshrl.u32 %v3757, 16
        %v3978 = vrot.slane %v3976, 7
        %v3979 = vshll.u32 %v3757, 16
        %v3981 = vor.u32 %v3978, %v3979
        %v3982 = vsel %vm3898, %v3974, %v3981
        %v3983 = vrot.slane %v3978, 4
        %v3985 = vshrl.u32 %v3758, 16
        %v3987 = vrot.slane %v3985, 7
        %v3988 = vshll.u32 %v3758, 16
        %v3990 = vor.u32 %v3987, %v3988
        %v3991 = vrot.slane %v3987, 4
        %v3993 = vshrl.u32 %v3759, 16
        %v3995 = vrot.slane %v3993, 7
        %v3996 = vshll.u32 %v3759, 16
        %v3998 = vor.u32 %v3995, %v3996
        %v3999 = vsel %vm3898, %v3991, %v3998
        %v4000 = vrot.slane %v3995, 4
        %v4002 = vshrl.u32 %v3760, 16
        %v4004 = vrot.slane %v4002, 7
        %v4005 = vshll.u32 %v3760, 16
        %v4007 = vor.u32 %v4004, %v4005
        %v4008 = vrot.slane %v4004, 4
        %v4010 = vshrl.u32 %v3761, 16
        %v4012 = vrot.slane %v4010, 7
        %v4013 = vshll.u32 %v3761, 16
        %v4015 = vor.u32 %v4012, %v4013
        %v4016 = vsel %vm3898, %v4008, %v4015
        %v4017 = vrot.slane %v4012, 4
        %v4019 = vshrl.u32 %v3762, 16
        %v4021 = vrot.slane %v4019, 7
        %v4022 = vshll.u32 %v3762, 16
        %v4024 = vor.u32 %v4021, %v4022
        %v4025 = vrot.slane %v4021, 4
        %v4027 = vshrl.u32 %v3763, 16
        %v4029 = vrot.slane %v4027, 7
        %v4030 = vshll.u32 %v3763, 16
        %v4032 = vor.u32 %v4029, %v4030
        %v4033 = vsel %vm3898, %v4025, %v4032
        %v4034 = vrot.slane %v4029, 4
        %v4036 = vshrl.u32 %v3764, 16
        %v4038 = vrot.slane %v4036, 7
        %v4039 = vshll.u32 %v3764, 16
        %v4041 = vor.u32 %v4038, %v4039
        %v4042 = vrot.slane %v4038, 4
        %v4044 = vshrl.u32 %v3765, 16
        %v4046 = vrot.slane %v4044, 7
        %v4047 = vshll.u32 %v3765, 16
        %v4049 = vor.u32 %v4046, %v4047
        %v4050 = vsel %vm3898, %v4042, %v4049
        %v4051 = vrot.slane %v4046, 4
        %v4053 = vshrl.u32 %v3766, 16
        %v4055 = vrot.slane %v4053, 7
        %v4056 = vshll.u32 %v3766, 16
        %v4058 = vor.u32 %v4055, %v4056
        %v4059 = vrot.slane %v4055, 4
        %v4061 = vshrl.u32 %v3767, 16
        %v4063 = vrot.slane %v4061, 7
        %v4064 = vshll.u32 %v3767, 16
        %v4066 = vor.u32 %v4063, %v4064
        %v4067 = vsel %vm3898, %v4059, %v4066
        %v4068 = vrot.slane %v4063, 4
        %v4070 = vshrl.u32 %v3768, 16
        %v4072 = vrot.slane %v4070, 7
        %v4073 = vshll.u32 %v3768, 16
        %v4075 = vor.u32 %v4072, %v4073
        %v4076 = vrot.slane %v4072, 4
        %v4078 = vshrl.u32 %v3769, 16
        %v4080 = vrot.slane %v4078, 7
        %v4081 = vshll.u32 %v3769, 16
        %v4083 = vor.u32 %v4080, %v4081
        %v4084 = vsel %vm3898, %v4076, %v4083
        %v4085 = vrot.slane %v4080, 4
        %v4087 = vshrl.u32 %v3770, 16
        %v4089 = vrot.slane %v4087, 7
        %v4090 = vshll.u32 %v3770, 16
        %v4092 = vor.u32 %v4089, %v4090
        %v4093 = vrot.slane %v4089, 4
        %v4095 = vshrl.u32 %v3771, 16
        %v4097 = vrot.slane %v4095, 7
        %v4098 = vshll.u32 %v3771, 16
        %v4100 = vor.u32 %v4097, %v4098
        %v4101 = vsel %vm3898, %v4093, %v4100
        %v4102 = vrot.slane %v4097, 4
        %v4104 = vshrl.u32 %v3772, 16
        %v4106 = vrot.slane %v4104, 7
        %v4107 = vshll.u32 %v3772, 16
        %v4109 = vor.u32 %v4106, %v4107
        %v4110 = vrot.slane %v4106, 4
        %v4112 = vshrl.u32 %v3773, 16
        %v4114 = vrot.slane %v4112, 7
        %v4115 = vshll.u32 %v3773, 16
        %v4117 = vor.u32 %v4114, %v4115
        %v4118 = vsel %vm3898, %v4110, %v4117
        %v4119 = vrot.slane %v4114, 4
        %v4121 = vshrl.u32 %v3774, 16
        %v4123 = vrot.slane %v4121, 7
        %v4124 = vshll.u32 %v3774, 16
        %v4126 = vor.u32 %v4123, %v4124
        %v4127 = vrot.slane %v4123, 4
        %v4129 = vshrl.u32 %v3775, 16
        %v4131 = vrot.slane %v4129, 7
        %v4132 = vshll.u32 %v3775, 16
        %v4134 = vor.u32 %v4131, %v4132
        %v4135 = vsel %vm3898, %v4127, %v4134
        %v4136 = vrot.slane %v4131, 4
        %v4138 = vshrl.u32 %v3776, 16
        %v4140 = vrot.slane %v4138, 7
        %v4141 = vshll.u32 %v3776, 16
        %v4143 = vor.u32 %v4140, %v4141
        %v4144 = vrot.slane %v4140, 4
        %v4146 = vshrl.u32 %v3777, 16
        %v4148 = vrot.slane %v4146, 7
        %v4149 = vshll.u32 %v3777, 16
        %v4151 = vor.u32 %v4148, %v4149
        %v4152 = vsel %vm3898, %v4144, %v4151
        %v4153 = vrot.slane %v4148, 4
        %v4155 = vshrl.u32 %v3778, 16
        %v4157 = vrot.slane %v4155, 7
        %v4158 = vshll.u32 %v3778, 16
        %v4160 = vor.u32 %v4157, %v4158
        %v4161 = vrot.slane %v4157, 4
        %v4163 = vshrl.u32 %v3779, 16
        %v4165 = vrot.slane %v4163, 7
        %v4166 = vshll.u32 %v3779, 16
        %v4168 = vor.u32 %v4165, %v4166
        %v4169 = vsel %vm3898, %v4161, %v4168
        %v4170 = vrot.slane %v4165, 4
        %v4172 = vshrl.u32 %v3780, 16
        %v4174 = vrot.slane %v4172, 7
        %v4175 = vshll.u32 %v3780, 16
        %v4177 = vor.u32 %v4174, %v4175
        %v4178 = vrot.slane %v4174, 4
        %v4180 = vshrl.u32 %v3781, 16
        %v4182 = vrot.slane %v4180, 7
        %v4183 = vshll.u32 %v3781, 16
        %v4185 = vor.u32 %v4182, %v4183
        %v4186 = vsel %vm3898, %v4178, %v4185
        %v4187 = vrot.slane %v4182, 4
        %v4189 = vshrl.u32 %v3782, 16
        %v4191 = vrot.slane %v4189, 7
        %v4192 = vshll.u32 %v3782, 16
        %v4194 = vor.u32 %v4191, %v4192
        %v4195 = vrot.slane %v4191, 4
        %v4197 = vshrl.u32 %v3783, 16
        %v4199 = vrot.slane %v4197, 7
        %v4200 = vshll.u32 %v3783, 16
        %v4202 = vor.u32 %v4199, %v4200
        %v4203 = vsel %vm3898, %v4195, %v4202
        %v4204 = vrot.slane %v4199, 4
        %vm4259 = vcmask 1043456
        %vm4260 = vmand %vm4259, %vm3841
        %v4261 = vld [vmem:[#allocation3] sm:$0xf]
        %v4262 = vsel %vm4260, %v3905, %v4261
        %4263 = vst [vmem:[#allocation3] sm:$0xf] %v4262
        %4264 = vst [vmem:[#allocation3 + $0x4] sm:$0xf] %v3914
        %v4265 = vld [vmem:[#allocation3 + $0x8] sm:$0x1]
        %v4266 = vsel %vm3786, %v3915, %v4265
        %4267 = vst [vmem:[#allocation3 + $0x8] sm:$0x1] %v4266
        %v4268 = vld [vmem:[#allocation3 + $0xc] sm:$0xf]
        %v4269 = vsel %vm4260, %v3922, %v4268
        %4270 = vst [vmem:[#allocation3 + $0xc] sm:$0xf] %v4269
        %4271 = vst [vmem:[#allocation3 + $0x10] sm:$0xf] %v3931
        %v4272 = vld [vmem:[#allocation3 + $0x14] sm:$0x1]
        %v4273 = vsel %vm3786, %v3932, %v4272
        %4274 = vst [vmem:[#allocation3 + $0x14] sm:$0x1] %v4273
        %v4275 = vld [vmem:[#allocation3 + $0x18] sm:$0xf]
        %v4276 = vsel %vm4260, %v3939, %v4275
        %4277 = vst [vmem:[#allocation3 + $0x18] sm:$0xf] %v4276
        %4278 = vst [vmem:[#allocation3 + $0x1c] sm:$0xf] %v3948
        %v4279 = vld [vmem:[#allocation3 + $0x20] sm:$0x1]
        %v4280 = vsel %vm3786, %v3949, %v4279
        %4281 = vst [vmem:[#allocation3 + $0x20] sm:$0x1] %v4280
        %v4282 = vld [vmem:[#allocation3 + $0x24] sm:$0xf]
        %v4283 = vsel %vm4260, %v3956, %v4282
        %4284 = vst [vmem:[#allocation3 + $0x24] sm:$0xf] %v4283
        %4285 = vst [vmem:[#allocation3 + $0x28] sm:$0xf] %v3965
        %v4286 = vld [vmem:[#allocation3 + $0x2c] sm:$0x1]
        %v4287 = vsel %vm3786, %v3966, %v4286
        %4288 = vst [vmem:[#allocation3 + $0x2c] sm:$0x1] %v4287
        %v4289 = vld [vmem:[#allocation3 + $0x30] sm:$0xf]
        %v4290 = vsel %vm4260, %v3973, %v4289
        %4291 = vst [vmem:[#allocation3 + $0x30] sm:$0xf] %v4290
        %4292 = vst [vmem:[#allocation3 + $0x34] sm:$0xf] %v3982
        %v4293 = vld [vmem:[#allocation3 + $0x38] sm:$0x1]
        %v4294 = vsel %vm3786, %v3983, %v4293
        %4295 = vst [vmem:[#allocation3 + $0x38] sm:$0x1] %v4294
        %v4296 = vld [vmem:[#allocation3 + $0x3c] sm:$0xf]
        %v4297 = vsel %vm4260, %v3990, %v4296
        %4298 = vst [vmem:[#allocation3 + $0x3c] sm:$0xf] %v4297
        %4299 = vst [vmem:[#allocation3 + $0x40] sm:$0xf] %v3999
        %v4300 = vld [vmem:[#allocation3 + $0x44] sm:$0x1]
        %v4301 = vsel %vm3786, %v4000, %v4300
        %4302 = vst [vmem:[#allocation3 + $0x44] sm:$0x1] %v4301
        %v4303 = vld [vmem:[#allocation3 + $0x48] sm:$0xf]
        %v4304 = vsel %vm4260, %v4007, %v4303
        %4305 = vst [vmem:[#allocation3 + $0x48] sm:$0xf] %v4304
        %4306 = vst [vmem:[#allocation3 + $0x4c] sm:$0xf] %v4016
        %v4307 = vld [vmem:[#allocation3 + $0x50] sm:$0x1]
        %v4308 = vsel %vm3786, %v4017, %v4307
        %4309 = vst [vmem:[#allocation3 + $0x50] sm:$0x1] %v4308
        %v4310 = vld [vmem:[#allocation3 + $0x54] sm:$0xf]
        %v4311 = vsel %vm4260, %v4024, %v4310
        %4312 = vst [vmem:[#allocation3 + $0x54] sm:$0xf] %v4311
        %4313 = vst [vmem:[#allocation3 + $0x58] sm:$0xf] %v4033
        %v4314 = vld [vmem:[#allocation3 + $0x5c] sm:$0x1]
        %v4315 = vsel %vm3786, %v4034, %v4314
        %4316 = vst [vmem:[#allocation3 + $0x5c] sm:$0x1] %v4315
        %v4317 = vld [vmem:[#allocation3 + $0x60] sm:$0xf]
        %v4318 = vsel %vm4260, %v4041, %v4317
        %4319 = vst [vmem:[#allocation3 + $0x60] sm:$0xf] %v4318
        %4320 = vst [vmem:[#allocation3 + $0x64] sm:$0xf] %v4050
        %v4321 = vld [vmem:[#allocation3 + $0x68] sm:$0x1]
        %v4322 = vsel %vm3786, %v4051, %v4321
        %4323 = vst [vmem:[#allocation3 + $0x68] sm:$0x1] %v4322
        %v4324 = vld [vmem:[#allocation3 + $0x6c] sm:$0xf]
        %v4325 = vsel %vm4260, %v4058, %v4324
        %4326 = vst [vmem:[#allocation3 + $0x6c] sm:$0xf] %v4325
        %4327 = vst [vmem:[#allocation3 + $0x70] sm:$0xf] %v4067
        %v4328 = vld [vmem:[#allocation3 + $0x74] sm:$0x1]
        %v4329 = vsel %vm3786, %v4068, %v4328
        %4330 = vst [vmem:[#allocation3 + $0x74] sm:$0x1] %v4329
        %v4331 = vld [vmem:[#allocation3 + $0x78] sm:$0xf]
        %v4332 = vsel %vm4260, %v4075, %v4331
        %4333 = vst [vmem:[#allocation3 + $0x78] sm:$0xf] %v4332
        %4334 = vst [vmem:[#allocation3 + $0x7c] sm:$0xf] %v4084
        %v4335 = vld [vmem:[#allocation3 + $0x80] sm:$0x1]
        %v4336 = vsel %vm3786, %v4085, %v4335
        %4337 = vst [vmem:[#allocation3 + $0x80] sm:$0x1] %v4336
        %v4338 = vld [vmem:[#allocation3 + $0x84] sm:$0xf]
        %v4339 = vsel %vm4260, %v4092, %v4338
        %4340 = vst [vmem:[#allocation3 + $0x84] sm:$0xf] %v4339
        %4341 = vst [vmem:[#allocation3 + $0x88] sm:$0xf] %v4101
        %v4342 = vld [vmem:[#allocation3 + $0x8c] sm:$0x1]
        %v4343 = vsel %vm3786, %v4102, %v4342
        %4344 = vst [vmem:[#allocation3 + $0x8c] sm:$0x1] %v4343
        %v4345 = vld [vmem:[#allocation3 + $0x90] sm:$0xf]
        %v4346 = vsel %vm4260, %v4109, %v4345
        %4347 = vst [vmem:[#allocation3 + $0x90] sm:$0xf] %v4346
        %4348 = vst [vmem:[#allocation3 + $0x94] sm:$0xf] %v4118
        %v4349 = vld [vmem:[#allocation3 + $0x98] sm:$0x1]
        %v4350 = vsel %vm3786, %v4119, %v4349
        %4351 = vst [vmem:[#allocation3 + $0x98] sm:$0x1] %v4350
        %v4352 = vld [vmem:[#allocation3 + $0x9c] sm:$0xf]
        %v4353 = vsel %vm4260, %v4126, %v4352
        %4354 = vst [vmem:[#allocation3 + $0x9c] sm:$0xf] %v4353
        %4355 = vst [vmem:[#allocation3 + $0xa0] sm:$0xf] %v4135
        %v4356 = vld [vmem:[#allocation3 + $0xa4] sm:$0x1]
        %v4357 = vsel %vm3786, %v4136, %v4356
        %4358 = vst [vmem:[#allocation3 + $0xa4] sm:$0x1] %v4357
        %v4359 = vld [vmem:[#allocation3 + $0xa8] sm:$0xf]
        %v4360 = vsel %vm4260, %v4143, %v4359
        %4361 = vst [vmem:[#allocation3 + $0xa8] sm:$0xf] %v4360
        %4362 = vst [vmem:[#allocation3 + $0xac] sm:$0xf] %v4152
        %v4363 = vld [vmem:[#allocation3 + $0xb0] sm:$0x1]
        %v4364 = vsel %vm3786, %v4153, %v4363
        %4365 = vst [vmem:[#allocation3 + $0xb0] sm:$0x1] %v4364
        %v4366 = vld [vmem:[#allocation3 + $0xb4] sm:$0xf]
        %v4367 = vsel %vm4260, %v4160, %v4366
        %4368 = vst [vmem:[#allocation3 + $0xb4] sm:$0xf] %v4367
        %4369 = vst [vmem:[#allocation3 + $0xb8] sm:$0xf] %v4169
        %v4370 = vld [vmem:[#allocation3 + $0xbc] sm:$0x1]
        %v4371 = vsel %vm3786, %v4170, %v4370
        %4372 = vst [vmem:[#allocation3 + $0xbc] sm:$0x1] %v4371
        %v4373 = vld [vmem:[#allocation3 + $0xc0] sm:$0xf]
        %v4374 = vsel %vm4260, %v4177, %v4373
        %4375 = vst [vmem:[#allocation3 + $0xc0] sm:$0xf] %v4374
        %4376 = vst [vmem:[#allocation3 + $0xc4] sm:$0xf] %v4186
        %v4377 = vld [vmem:[#allocation3 + $0xc8] sm:$0x1]
        %v4378 = vsel %vm3786, %v4187, %v4377
        %4379 = vst [vmem:[#allocation3 + $0xc8] sm:$0x1] %v4378
        %v4380 = vld [vmem:[#allocation3 + $0xcc] sm:$0xf]
        %v4381 = vsel %vm4260, %v4194, %v4380
        %4382 = vst [vmem:[#allocation3 + $0xcc] sm:$0xf] %v4381
        %4383 = vst [vmem:[#allocation3 + $0xd0] sm:$0xf] %v4203
        %v4384 = vld [vmem:[#allocation3 + $0xd4] sm:$0x1]
        %v4385 = vsel %vm3786, %v4204, %v4384
        %4386 = vst [vmem:[#allocation3 + $0xd4] sm:$0x1] %v4385
        %p4387 = scmp.eq.s32.totalorder %s26, 0
        // Predicated region
        $region129: #{tpu_custom_call.1} parent=43 // pred_check
          %p4388 = pneg %p4387
        $region130: #{tpu_custom_call.1} parent=43 // pred_check_branch
          %4390 = sbr.rel (%p4388) target = $region132
        $region131: #{tpu_custom_call.1} parent=43 // pred_region
          %4391 = vst [vmem:[#allocation3] sm:$0xf] 0
          %4392 = vst [vmem:[#allocation3 + $0x4] sm:$0xf] 0
          %4393 = vst [vmem:[#allocation3 + $0x8] sm:$0x1] 0
          %s4394 = scalar_lea.vmem [#allocation3], 204
          %4395 = vst [vmem:[%s4394] sm:$0xf] 0
          %4396 = vst [vmem:[%s4394 + $0x4] sm:$0xf] 0
          %4397 = vst [vmem:[%s4394 + $0x8] sm:$0x1] 0
        $region132: #{tpu_custom_call.1} parent=43 // pred_fallthru
          _
        %v4398 = vld [vmem:[%s4] sm:$0x1]
        %v4400 = vperm.slane %v4398, 0
        %v4402 = vld [vmem:[#allocation3] sm:$0xf]
        %v4403 = vld [vmem:[#allocation3 + $0x4] sm:$0xf]
        %v4404 = vld [vmem:[#allocation3 + $0xc] sm:$0xf]
        %v4405 = vld [vmem:[#allocation3 + $0x10] sm:$0xf]
        %v4406 = vld [vmem:[#allocation3 + $0x18] sm:$0xf]
        %v4407 = vld [vmem:[#allocation3 + $0x1c] sm:$0xf]
        %v4408 = vld [vmem:[#allocation3 + $0x24] sm:$0xf]
        %v4409 = vld [vmem:[#allocation3 + $0x28] sm:$0xf]
        %v4410 = vld [vmem:[#allocation3 + $0x30] sm:$0xf]
        %v4411 = vld [vmem:[#allocation3 + $0x34] sm:$0xf]
        %v4412 = vld [vmem:[#allocation3 + $0x3c] sm:$0xf]
        %v4413 = vld [vmem:[#allocation3 + $0x40] sm:$0xf]
        %v4414 = vld [vmem:[#allocation3 + $0x48] sm:$0xf]
        %v4415 = vld [vmem:[#allocation3 + $0x4c] sm:$0xf]
        %v4416 = vld [vmem:[#allocation3 + $0x54] sm:$0xf]
        %v4417 = vld [vmem:[#allocation3 + $0x58] sm:$0xf]
        %v4418 = vld [vmem:[#allocation3 + $0x60] sm:$0xf]
        %v4419 = vld [vmem:[#allocation3 + $0x64] sm:$0xf]
        %v4420 = vld [vmem:[#allocation3 + $0x6c] sm:$0xf]
        %v4421 = vld [vmem:[#allocation3 + $0x70] sm:$0xf]
        %v4422 = vld [vmem:[#allocation3 + $0x78] sm:$0xf]
        %v4423 = vld [vmem:[#allocation3 + $0x7c] sm:$0xf]
        %v4424 = vld [vmem:[#allocation3 + $0x84] sm:$0xf]
        %v4425 = vld [vmem:[#allocation3 + $0x88] sm:$0xf]
        %v4426 = vld [vmem:[#allocation3 + $0x90] sm:$0xf]
        %v4427 = vld [vmem:[#allocation3 + $0x94] sm:$0xf]
        %v4428 = vld [vmem:[#allocation3 + $0x9c] sm:$0xf]
        %v4429 = vld [vmem:[#allocation3 + $0xa0] sm:$0xf]
        %v4430 = vld [vmem:[#allocation3 + $0xa8] sm:$0xf]
        %v4431 = vld [vmem:[#allocation3 + $0xac] sm:$0xf]
        %v4432 = vld [vmem:[#allocation3 + $0xb4] sm:$0xf]
        %v4433 = vld [vmem:[#allocation3 + $0xb8] sm:$0xf]
        %v4434 = vld [vmem:[#allocation3 + $0x8] sm:$0x1]
        %v4435 = vld [vmem:[#allocation3 + $0x14] sm:$0x1]
        %v4436 = vld [vmem:[#allocation3 + $0x20] sm:$0x1]
        %v4437 = vld [vmem:[#allocation3 + $0x2c] sm:$0x1]
        %v4438 = vld [vmem:[#allocation3 + $0x38] sm:$0x1]
        %v4439 = vld [vmem:[#allocation3 + $0x44] sm:$0x1]
        %v4440 = vld [vmem:[#allocation3 + $0x50] sm:$0x1]
        %v4441 = vld [vmem:[#allocation3 + $0x5c] sm:$0x1]
        %v4442 = vld [vmem:[#allocation3 + $0x68] sm:$0x1]
        %v4443 = vld [vmem:[#allocation3 + $0x74] sm:$0x1]
        %v4444 = vld [vmem:[#allocation3 + $0x80] sm:$0x1]
        %v4445 = vld [vmem:[#allocation3 + $0x8c] sm:$0x1]
        %v4446 = vld [vmem:[#allocation3 + $0x98] sm:$0x1]
        %v4447 = vld [vmem:[#allocation3 + $0xa4] sm:$0x1]
        %v4448 = vld [vmem:[#allocation3 + $0xb0] sm:$0x1]
        %v4449 = vld [vmem:[#allocation3 + $0xbc] sm:$0x1]
        %v4450 = vld [vmem:[#allocation3] sm:$0xe]
        %v4451 = vld [vmem:[#allocation3 + $0xc] sm:$0xe]
        %v4452 = vld [vmem:[#allocation3 + $0x18] sm:$0xe]
        %v4453 = vld [vmem:[#allocation3 + $0x24] sm:$0xe]
        %v4454 = vld [vmem:[#allocation3 + $0x30] sm:$0xe]
        %v4455 = vld [vmem:[#allocation3 + $0x3c] sm:$0xe]
        %v4456 = vld [vmem:[#allocation3 + $0x48] sm:$0xe]
        %v4457 = vld [vmem:[#allocation3 + $0x54] sm:$0xe]
        %v4458 = vld [vmem:[#allocation3 + $0x60] sm:$0xe]
        %v4459 = vld [vmem:[#allocation3 + $0x6c] sm:$0xe]
        %v4460 = vld [vmem:[#allocation3 + $0x78] sm:$0xe]
        %v4461 = vld [vmem:[#allocation3 + $0x84] sm:$0xe]
        %v4462 = vld [vmem:[#allocation3 + $0x90] sm:$0xe]
        %v4463 = vld [vmem:[#allocation3 + $0x9c] sm:$0xe]
        %v4464 = vld [vmem:[#allocation3 + $0xa8] sm:$0xe]
        %v4465 = vld [vmem:[#allocation3 + $0xb4] sm:$0xe]
        %v4498 = vunpack.c.l.b16 %v4402
        %v4499 = vunpack.c.l.b16 %v4403
        %v4500 = vunpack.c.l.b16 %v4404
        %v4501 = vunpack.c.l.b16 %v4405
        %v4502 = vunpack.c.l.b16 %v4406
        %v4503 = vunpack.c.l.b16 %v4407
        %v4504 = vunpack.c.l.b16 %v4408
        %v4505 = vunpack.c.l.b16 %v4409
        %v4506 = vunpack.c.l.b16 %v4410
        %v4507 = vunpack.c.l.b16 %v4411
        %v4508 = vunpack.c.l.b16 %v4412
        %v4509 = vunpack.c.l.b16 %v4413
        %v4510 = vunpack.c.l.b16 %v4414
        %v4511 = vunpack.c.l.b16 %v4415
        %v4512 = vunpack.c.l.b16 %v4416
        %v4513 = vunpack.c.l.b16 %v4417
        %v4514 = vunpack.c.l.b16 %v4418
        %v4515 = vunpack.c.l.b16 %v4419
        %v4516 = vunpack.c.l.b16 %v4420
        %v4517 = vunpack.c.l.b16 %v4421
        %v4518 = vunpack.c.l.b16 %v4422
        %v4519 = vunpack.c.l.b16 %v4423
        %v4520 = vunpack.c.l.b16 %v4424
        %v4521 = vunpack.c.l.b16 %v4425
        %v4522 = vunpack.c.l.b16 %v4426
        %v4523 = vunpack.c.l.b16 %v4427
        %v4524 = vunpack.c.l.b16 %v4428
        %v4525 = vunpack.c.l.b16 %v4429
        %v4526 = vunpack.c.l.b16 %v4430
        %v4527 = vunpack.c.l.b16 %v4431
        %v4528 = vunpack.c.l.b16 %v4432
        %v4529 = vunpack.c.l.b16 %v4433
        %v4530 = vpack.c.b16 %v4499, %v4498
        %v4531 = vpack.c.b16 %v4501, %v4500
        %v4532 = vpack.c.b16 %v4503, %v4502
        %v4533 = vpack.c.b16 %v4505, %v4504
        %v4534 = vpack.c.b16 %v4507, %v4506
        %v4535 = vpack.c.b16 %v4509, %v4508
        %v4536 = vpack.c.b16 %v4511, %v4510
        %v4537 = vpack.c.b16 %v4513, %v4512
        %v4538 = vpack.c.b16 %v4515, %v4514
        %v4539 = vpack.c.b16 %v4517, %v4516
        %v4540 = vpack.c.b16 %v4519, %v4518
        %v4541 = vpack.c.b16 %v4521, %v4520
        %v4542 = vpack.c.b16 %v4523, %v4522
        %v4543 = vpack.c.b16 %v4525, %v4524
        %v4544 = vpack.c.b16 %v4527, %v4526
        %v4545 = vpack.c.b16 %v4529, %v4528
        %v4578 = vunpack.c.l.b16 %v4434
        %v4579 = vunpack.c.l.b16 %v4435
        %v4580 = vunpack.c.l.b16 %v4436
        %v4581 = vunpack.c.l.b16 %v4437
        %v4582 = vunpack.c.l.b16 %v4438
        %v4583 = vunpack.c.l.b16 %v4439
        %v4584 = vunpack.c.l.b16 %v4440
        %v4585 = vunpack.c.l.b16 %v4441
        %v4586 = vunpack.c.l.b16 %v4442
        %v4587 = vunpack.c.l.b16 %v4443
        %v4588 = vunpack.c.l.b16 %v4444
        %v4589 = vunpack.c.l.b16 %v4445
        %v4590 = vunpack.c.l.b16 %v4446
        %v4591 = vunpack.c.l.b16 %v4447
        %v4592 = vunpack.c.l.b16 %v4448
        %v4593 = vunpack.c.l.b16 %v4449
        %v4594 = vpack.c.b16 %v4578, %v4578
        %v4595 = vpack.c.b16 %v4579, %v4579
        %v4596 = vpack.c.b16 %v4580, %v4580
        %v4597 = vpack.c.b16 %v4581, %v4581
        %v4598 = vpack.c.b16 %v4582, %v4582
        %v4599 = vpack.c.b16 %v4583, %v4583
        %v4600 = vpack.c.b16 %v4584, %v4584
        %v4601 = vpack.c.b16 %v4585, %v4585
        %v4602 = vpack.c.b16 %v4586, %v4586
        %v4603 = vpack.c.b16 %v4587, %v4587
        %v4604 = vpack.c.b16 %v4588, %v4588
        %v4605 = vpack.c.b16 %v4589, %v4589
        %v4606 = vpack.c.b16 %v4590, %v4590
        %v4607 = vpack.c.b16 %v4591, %v4591
        %v4608 = vpack.c.b16 %v4592, %v4592
        %v4609 = vpack.c.b16 %v4593, %v4593
        %v4611 = vshrl.u32 %v4530, 16
        %v4613 = vshll.u32 %v4530, 16
        %v4615 = vrot.slane %v4613, 1
        %v4616 = vor.u32 %v4611, %v4615
        %v4618 = vshll.u32 %v4594, 16
        %v4620 = vrot.slane %v4618, 1
        %v4621 = vsel %vm1666, %v4616, %v4620
        %v4623 = vshrl.u32 %v4531, 16
        %v4625 = vshll.u32 %v4531, 16
        %v4627 = vrot.slane %v4625, 1
        %v4628 = vor.u32 %v4623, %v4627
        %v4630 = vshll.u32 %v4595, 16
        %v4632 = vrot.slane %v4630, 1
        %v4633 = vsel %vm1666, %v4628, %v4632
        %v4635 = vshrl.u32 %v4532, 16
        %v4637 = vshll.u32 %v4532, 16
        %v4639 = vrot.slane %v4637, 1
        %v4640 = vor.u32 %v4635, %v4639
        %v4642 = vshll.u32 %v4596, 16
        %v4644 = vrot.slane %v4642, 1
        %v4645 = vsel %vm1666, %v4640, %v4644
        %v4647 = vshrl.u32 %v4533, 16
        %v4649 = vshll.u32 %v4533, 16
        %v4651 = vrot.slane %v4649, 1
        %v4652 = vor.u32 %v4647, %v4651
        %v4654 = vshll.u32 %v4597, 16
        %v4656 = vrot.slane %v4654, 1
        %v4657 = vsel %vm1666, %v4652, %v4656
        %v4659 = vshrl.u32 %v4534, 16
        %v4661 = vshll.u32 %v4534, 16
        %v4663 = vrot.slane %v4661, 1
        %v4664 = vor.u32 %v4659, %v4663
        %v4666 = vshll.u32 %v4598, 16
        %v4668 = vrot.slane %v4666, 1
        %v4669 = vsel %vm1666, %v4664, %v4668
        %v4671 = vshrl.u32 %v4535, 16
        %v4673 = vshll.u32 %v4535, 16
        %v4675 = vrot.slane %v4673, 1
        %v4676 = vor.u32 %v4671, %v4675
        %v4678 = vshll.u32 %v4599, 16
        %v4680 = vrot.slane %v4678, 1
        %v4681 = vsel %vm1666, %v4676, %v4680
        %v4683 = vshrl.u32 %v4536, 16
        %v4685 = vshll.u32 %v4536, 16
        %v4687 = vrot.slane %v4685, 1
        %v4688 = vor.u32 %v4683, %v4687
        %v4690 = vshll.u32 %v4600, 16
        %v4692 = vrot.slane %v4690, 1
        %v4693 = vsel %vm1666, %v4688, %v4692
        %v4695 = vshrl.u32 %v4537, 16
        %v4697 = vshll.u32 %v4537, 16
        %v4699 = vrot.slane %v4697, 1
        %v4700 = vor.u32 %v4695, %v4699
        %v4702 = vshll.u32 %v4601, 16
        %v4704 = vrot.slane %v4702, 1
        %v4705 = vsel %vm1666, %v4700, %v4704
        %v4707 = vshrl.u32 %v4538, 16
        %v4709 = vshll.u32 %v4538, 16
        %v4711 = vrot.slane %v4709, 1
        %v4712 = vor.u32 %v4707, %v4711
        %v4714 = vshll.u32 %v4602, 16
        %v4716 = vrot.slane %v4714, 1
        %v4717 = vsel %vm1666, %v4712, %v4716
        %v4719 = vshrl.u32 %v4539, 16
        %v4721 = vshll.u32 %v4539, 16
        %v4723 = vrot.slane %v4721, 1
        %v4724 = vor.u32 %v4719, %v4723
        %v4726 = vshll.u32 %v4603, 16
        %v4728 = vrot.slane %v4726, 1
        %v4729 = vsel %vm1666, %v4724, %v4728
        %v4731 = vshrl.u32 %v4540, 16
        %v4733 = vshll.u32 %v4540, 16
        %v4735 = vrot.slane %v4733, 1
        %v4736 = vor.u32 %v4731, %v4735
        %v4738 = vshll.u32 %v4604, 16
        %v4740 = vrot.slane %v4738, 1
        %v4741 = vsel %vm1666, %v4736, %v4740
        %v4743 = vshrl.u32 %v4541, 16
        %v4745 = vshll.u32 %v4541, 16
        %v4747 = vrot.slane %v4745, 1
        %v4748 = vor.u32 %v4743, %v4747
        %v4750 = vshll.u32 %v4605, 16
        %v4752 = vrot.slane %v4750, 1
        %v4753 = vsel %vm1666, %v4748, %v4752
        %v4755 = vshrl.u32 %v4542, 16
        %v4757 = vshll.u32 %v4542, 16
        %v4759 = vrot.slane %v4757, 1
        %v4760 = vor.u32 %v4755, %v4759
        %v4762 = vshll.u32 %v4606, 16
        %v4764 = vrot.slane %v4762, 1
        %v4765 = vsel %vm1666, %v4760, %v4764
        %v4767 = vshrl.u32 %v4543, 16
        %v4769 = vshll.u32 %v4543, 16
        %v4771 = vrot.slane %v4769, 1
        %v4772 = vor.u32 %v4767, %v4771
        %v4774 = vshll.u32 %v4607, 16
        %v4776 = vrot.slane %v4774, 1
        %v4777 = vsel %vm1666, %v4772, %v4776
        %v4779 = vshrl.u32 %v4544, 16
        %v4781 = vshll.u32 %v4544, 16
        %v4783 = vrot.slane %v4781, 1
        %v4784 = vor.u32 %v4779, %v4783
        %v4786 = vshll.u32 %v4608, 16
        %v4788 = vrot.slane %v4786, 1
        %v4789 = vsel %vm1666, %v4784, %v4788
        %v4791 = vshrl.u32 %v4545, 16
        %v4793 = vshll.u32 %v4545, 16
        %v4795 = vrot.slane %v4793, 1
        %v4796 = vor.u32 %v4791, %v4795
        %v4798 = vshll.u32 %v4609, 16
        %v4800 = vrot.slane %v4798, 1
        %v4801 = vsel %vm1666, %v4796, %v4800
        %v4834 = vunpack.c.l.b16 %v4450
        %v4835 = vunpack.c.l.b16 %v4451
        %v4836 = vunpack.c.l.b16 %v4452
        %v4837 = vunpack.c.l.b16 %v4453
        %v4838 = vunpack.c.l.b16 %v4454
        %v4839 = vunpack.c.l.b16 %v4455
        %v4840 = vunpack.c.l.b16 %v4456
        %v4841 = vunpack.c.l.b16 %v4457
        %v4842 = vunpack.c.l.b16 %v4458
        %v4843 = vunpack.c.l.b16 %v4459
        %v4844 = vunpack.c.l.b16 %v4460
        %v4845 = vunpack.c.l.b16 %v4461
        %v4846 = vunpack.c.l.b16 %v4462
        %v4847 = vunpack.c.l.b16 %v4463
        %v4848 = vunpack.c.l.b16 %v4464
        %v4849 = vunpack.c.l.b16 %v4465
        %v4850 = vpack.c.b16 %v4499, %v4834
        %v4851 = vpack.c.b16 %v4501, %v4835
        %v4852 = vpack.c.b16 %v4503, %v4836
        %v4853 = vpack.c.b16 %v4505, %v4837
        %v4854 = vpack.c.b16 %v4507, %v4838
        %v4855 = vpack.c.b16 %v4509, %v4839
        %v4856 = vpack.c.b16 %v4511, %v4840
        %v4857 = vpack.c.b16 %v4513, %v4841
        %v4858 = vpack.c.b16 %v4515, %v4842
        %v4859 = vpack.c.b16 %v4517, %v4843
        %v4860 = vpack.c.b16 %v4519, %v4844
        %v4861 = vpack.c.b16 %v4521, %v4845
        %v4862 = vpack.c.b16 %v4523, %v4846
        %v4863 = vpack.c.b16 %v4525, %v4847
        %v4864 = vpack.c.b16 %v4527, %v4848
        %v4865 = vpack.c.b16 %v4529, %v4849
        %v4866 = vrot.slane %v4850, 1
        %v4867 = vrot.slane %v4594, 1
        %v4868 = vsel %vm1973, %v4866, %v4867
        %v4869 = vrot.slane %v4851, 1
        %v4870 = vrot.slane %v4595, 1
        %v4871 = vsel %vm1973, %v4869, %v4870
        %v4872 = vrot.slane %v4852, 1
        %v4873 = vrot.slane %v4596, 1
        %v4874 = vsel %vm1973, %v4872, %v4873
        %v4875 = vrot.slane %v4853, 1
        %v4876 = vrot.slane %v4597, 1
        %v4877 = vsel %vm1973, %v4875, %v4876
        %v4878 = vrot.slane %v4854, 1
        %v4879 = vrot.slane %v4598, 1
        %v4880 = vsel %vm1973, %v4878, %v4879
        %v4881 = vrot.slane %v4855, 1
        %v4882 = vrot.slane %v4599, 1
        %v4883 = vsel %vm1973, %v4881, %v4882
        %v4884 = vrot.slane %v4856, 1
        %v4885 = vrot.slane %v4600, 1
        %v4886 = vsel %vm1973, %v4884, %v4885
        %v4887 = vrot.slane %v4857, 1
        %v4888 = vrot.slane %v4601, 1
        %v4889 = vsel %vm1973, %v4887, %v4888
        %v4890 = vrot.slane %v4858, 1
        %v4891 = vrot.slane %v4602, 1
        %v4892 = vsel %vm1973, %v4890, %v4891
        %v4893 = vrot.slane %v4859, 1
        %v4894 = vrot.slane %v4603, 1
        %v4895 = vsel %vm1973, %v4893, %v4894
        %v4896 = vrot.slane %v4860, 1
        %v4897 = vrot.slane %v4604, 1
        %v4898 = vsel %vm1973, %v4896, %v4897
        %v4899 = vrot.slane %v4861, 1
        %v4900 = vrot.slane %v4605, 1
        %v4901 = vsel %vm1973, %v4899, %v4900
        %v4902 = vrot.slane %v4862, 1
        %v4903 = vrot.slane %v4606, 1
        %v4904 = vsel %vm1973, %v4902, %v4903
        %v4905 = vrot.slane %v4863, 1
        %v4906 = vrot.slane %v4607, 1
        %v4907 = vsel %vm1973, %v4905, %v4906
        %v4908 = vrot.slane %v4864, 1
        %v4909 = vrot.slane %v4608, 1
        %v4910 = vsel %vm1973, %v4908, %v4909
        %v4911 = vrot.slane %v4865, 1
        %v4912 = vrot.slane %v4609, 1
        %v4913 = vsel %vm1973, %v4911, %v4912
        %v4930 = vld [vmem:[#allocation4] sm:$0xf]
        %v4931 = vld [vmem:[#allocation4 + $0x4] sm:$0xf]
        %v4932 = vld [vmem:[#allocation4 + $0x8] sm:$0xf]
        %v4933 = vld [vmem:[#allocation4 + $0xc] sm:$0xf]
        %v4934 = vld [vmem:[#allocation4 + $0x10] sm:$0xf]
        %v4935 = vld [vmem:[#allocation4 + $0x14] sm:$0xf]
        %v4936 = vld [vmem:[#allocation4 + $0x18] sm:$0xf]
        %v4937 = vld [vmem:[#allocation4 + $0x1c] sm:$0xf]
        %v4938 = vld [vmem:[#allocation4 + $0x20] sm:$0xf]
        %v4939 = vld [vmem:[#allocation4 + $0x24] sm:$0xf]
        %v4940 = vld [vmem:[#allocation4 + $0x28] sm:$0xf]
        %v4941 = vld [vmem:[#allocation4 + $0x2c] sm:$0xf]
        %v4942 = vld [vmem:[#allocation4 + $0x30] sm:$0xf]
        %v4943 = vld [vmem:[#allocation4 + $0x34] sm:$0xf]
        %v4944 = vld [vmem:[#allocation4 + $0x38] sm:$0xf]
        %v4945 = vld [vmem:[#allocation4 + $0x3c] sm:$0xf]
        %v4946 = vld [vmem:[#allocation4 + $0x40] sm:$0xf]
        %v4947 = vld [vmem:[#allocation4 + $0x44] sm:$0xf]
        %v4948 = vld [vmem:[#allocation4 + $0x48] sm:$0xf]
        %v4949 = vld [vmem:[#allocation4 + $0x4c] sm:$0xf]
        %v4950 = vld [vmem:[#allocation4 + $0x50] sm:$0xf]
        %v4951 = vld [vmem:[#allocation4 + $0x54] sm:$0xf]
        %v4952 = vld [vmem:[#allocation4 + $0x58] sm:$0xf]
        %v4953 = vld [vmem:[#allocation4 + $0x5c] sm:$0xf]
        %v4954 = vld [vmem:[#allocation4 + $0x60] sm:$0xf]
        %v4955 = vld [vmem:[#allocation4 + $0x64] sm:$0xf]
        %v4956 = vld [vmem:[#allocation4 + $0x68] sm:$0xf]
        %v4957 = vld [vmem:[#allocation4 + $0x6c] sm:$0xf]
        %v4958 = vld [vmem:[#allocation4 + $0x70] sm:$0xf]
        %v4959 = vld [vmem:[#allocation4 + $0x74] sm:$0xf]
        %v4960 = vld [vmem:[#allocation4 + $0x78] sm:$0xf]
        %v4961 = vld [vmem:[#allocation4 + $0x7c] sm:$0xf]
        %v4962 = vld [vmem:[#allocation4 + $0x80] sm:$0xf]
        %v4963 = vld [vmem:[#allocation4 + $0x84] sm:$0xf]
        %v4964 = vld [vmem:[#allocation4 + $0x88] sm:$0xf]
        %v4965 = vld [vmem:[#allocation4 + $0x8c] sm:$0xf]
        %v4966 = vld [vmem:[#allocation4 + $0x90] sm:$0xf]
        %v4967 = vld [vmem:[#allocation4 + $0x94] sm:$0xf]
        %v4968 = vld [vmem:[#allocation4 + $0x98] sm:$0xf]
        %v4969 = vld [vmem:[#allocation4 + $0x9c] sm:$0xf]
        %v4970 = vld [vmem:[#allocation4 + $0xa0] sm:$0xf]
        %v4971 = vld [vmem:[#allocation4 + $0xa4] sm:$0xf]
        %v4972 = vld [vmem:[#allocation4 + $0xa8] sm:$0xf]
        %v4973 = vld [vmem:[#allocation4 + $0xac] sm:$0xf]
        %v4974 = vld [vmem:[#allocation4 + $0xb0] sm:$0xf]
        %v4975 = vld [vmem:[#allocation4 + $0xb4] sm:$0xf]
        %v4976 = vld [vmem:[#allocation4 + $0xb8] sm:$0xf]
        %v4977 = vld [vmem:[#allocation4 + $0xbc] sm:$0xf]
        %v5026 = vunpack.c.l.b16 %v4930
        %v5027 = vunpack.c.l.b16 %v4931
        %v5028 = vunpack.c.l.b16 %v4932
        %v5029 = vunpack.c.l.b16 %v4933
        %v5030 = vunpack.c.l.b16 %v4934
        %v5031 = vunpack.c.l.b16 %v4935
        %v5032 = vunpack.c.l.b16 %v4936
        %v5033 = vunpack.c.l.b16 %v4937
        %v5034 = vunpack.c.l.b16 %v4938
        %v5035 = vunpack.c.l.b16 %v4939
        %v5036 = vunpack.c.l.b16 %v4940
        %v5037 = vunpack.c.l.b16 %v4941
        %v5038 = vunpack.c.l.b16 %v4942
        %v5039 = vunpack.c.l.b16 %v4943
        %v5040 = vunpack.c.l.b16 %v4944
        %v5041 = vunpack.c.l.b16 %v4945
        %v5042 = vunpack.c.l.b16 %v4946
        %v5043 = vunpack.c.l.b16 %v4947
        %v5044 = vunpack.c.l.b16 %v4948
        %v5045 = vunpack.c.l.b16 %v4949
        %v5046 = vunpack.c.l.b16 %v4950
        %v5047 = vunpack.c.l.b16 %v4951
        %v5048 = vunpack.c.l.b16 %v4952
        %v5049 = vunpack.c.l.b16 %v4953
        %v5050 = vunpack.c.l.b16 %v4954
        %v5051 = vunpack.c.l.b16 %v4955
        %v5052 = vunpack.c.l.b16 %v4956
        %v5053 = vunpack.c.l.b16 %v4957
        %v5054 = vunpack.c.l.b16 %v4958
        %v5055 = vunpack.c.l.b16 %v4959
        %v5056 = vunpack.c.l.b16 %v4960
        %v5057 = vunpack.c.l.b16 %v4961
        %v5058 = vunpack.c.l.b16 %v4962
        %v5059 = vunpack.c.l.b16 %v4963
        %v5060 = vunpack.c.l.b16 %v4964
        %v5061 = vunpack.c.l.b16 %v4965
        %v5062 = vunpack.c.l.b16 %v4966
        %v5063 = vunpack.c.l.b16 %v4967
        %v5064 = vunpack.c.l.b16 %v4968
        %v5065 = vunpack.c.l.b16 %v4969
        %v5066 = vunpack.c.l.b16 %v4970
        %v5067 = vunpack.c.l.b16 %v4971
        %v5068 = vunpack.c.l.b16 %v4972
        %v5069 = vunpack.c.l.b16 %v4973
        %v5070 = vunpack.c.l.b16 %v4974
        %v5071 = vunpack.c.l.b16 %v4975
        %v5072 = vunpack.c.l.b16 %v4976
        %v5073 = vunpack.c.l.b16 %v4977
        %v5074 = vpack.c.b16 %v5027, %v5026
        %v5075 = vpack.c.b16 %v5029, %v5028
        %v5076 = vpack.c.b16 %v5031, %v5030
        %v5077 = vpack.c.b16 %v5033, %v5032
        %v5078 = vpack.c.b16 %v5035, %v5034
        %v5079 = vpack.c.b16 %v5037, %v5036
        %v5080 = vpack.c.b16 %v5039, %v5038
        %v5081 = vpack.c.b16 %v5041, %v5040
        %v5082 = vpack.c.b16 %v5043, %v5042
        %v5083 = vpack.c.b16 %v5045, %v5044
        %v5084 = vpack.c.b16 %v5047, %v5046
        %v5085 = vpack.c.b16 %v5049, %v5048
        %v5086 = vpack.c.b16 %v5051, %v5050
        %v5087 = vpack.c.b16 %v5053, %v5052
        %v5088 = vpack.c.b16 %v5055, %v5054
        %v5089 = vpack.c.b16 %v5057, %v5056
        %v5090 = vpack.c.b16 %v5059, %v5058
        %v5091 = vpack.c.b16 %v5061, %v5060
        %v5092 = vpack.c.b16 %v5063, %v5062
        %v5093 = vpack.c.b16 %v5065, %v5064
        %v5094 = vpack.c.b16 %v5067, %v5066
        %v5095 = vpack.c.b16 %v5069, %v5068
        %v5096 = vpack.c.b16 %v5071, %v5070
        %v5097 = vpack.c.b16 %v5073, %v5072
        %5122 = vmatpush.bf16.msra.mxu0 %v5081
        %5123 = vmatpush.bf16.msra.mxu0 %v5080
        %5124 = vmatpush.bf16.msra.mxu0 %v5079
        %5125 = vmatpush.bf16.msra.mxu0 %v5078
        %5126 = vmatpush.bf16.msra.mxu0 %v5077
        %5127 = vmatpush.bf16.msra.mxu0 %v5076
        %5128 = vmatpush.bf16.msra.mxu0 %v5075
        %5129 = vmatpush.bf16.msra.mxu0 %v5074
        %5130 = vmatmul.bf16.gmra.mxu0 %v4530
        %v5131 = vpop.f32.mrf.mxu0
        %v5132 = vadd.f32 0.0, %v5131
        %v5133 = vpop.f32.mrf.mxu0
        %v5134 = vadd.f32 0.0, %v5133
        %5135 = vmatmul.bf16.gmra.mxu0 %v4531
        %v5136 = vpop.f32.mrf.mxu0
        %v5137 = vadd.f32 0.0, %v5136
        %v5138 = vpop.f32.mrf.mxu0
        %v5139 = vadd.f32 0.0, %v5138
        %5140 = vmatmul.bf16.gmra.mxu0 %v4532
        %v5141 = vpop.f32.mrf.mxu0
        %v5142 = vadd.f32 0.0, %v5141
        %v5143 = vpop.f32.mrf.mxu0
        %v5144 = vadd.f32 0.0, %v5143
        %5145 = vmatmul.bf16.gmra.mxu0 %v4533
        %v5146 = vpop.f32.mrf.mxu0
        %v5147 = vadd.f32 0.0, %v5146
        %v5148 = vpop.f32.mrf.mxu0
        %v5149 = vadd.f32 0.0, %v5148
        %5150 = vmatmul.bf16.gmra.mxu0 %v4534
        %v5151 = vpop.f32.mrf.mxu0
        %v5152 = vadd.f32 0.0, %v5151
        %v5153 = vpop.f32.mrf.mxu0
        %v5154 = vadd.f32 0.0, %v5153
        %5155 = vmatmul.bf16.gmra.mxu0 %v4535
        %v5156 = vpop.f32.mrf.mxu0
        %v5157 = vadd.f32 0.0, %v5156
        %v5158 = vpop.f32.mrf.mxu0
        %v5159 = vadd.f32 0.0, %v5158
        %5160 = vmatmul.bf16.gmra.mxu0 %v4536
        %v5161 = vpop.f32.mrf.mxu0
        %v5162 = vadd.f32 0.0, %v5161
        %v5163 = vpop.f32.mrf.mxu0
        %v5164 = vadd.f32 0.0, %v5163
        %5165 = vmatmul.bf16.gmra.mxu0 %v4537
        %v5166 = vpop.f32.mrf.mxu0
        %v5167 = vadd.f32 0.0, %v5166
        %v5168 = vpop.f32.mrf.mxu0
        %v5169 = vadd.f32 0.0, %v5168
        %5170 = vmatmul.bf16.gmra.mxu0 %v4538
        %v5171 = vpop.f32.mrf.mxu0
        %v5172 = vadd.f32 0.0, %v5171
        %v5173 = vpop.f32.mrf.mxu0
        %v5174 = vadd.f32 0.0, %v5173
        %5175 = vmatmul.bf16.gmra.mxu0 %v4539
        %v5176 = vpop.f32.mrf.mxu0
        %v5177 = vadd.f32 0.0, %v5176
        %v5178 = vpop.f32.mrf.mxu0
        %v5179 = vadd.f32 0.0, %v5178
        %5180 = vmatmul.bf16.gmra.mxu0 %v4540
        %v5181 = vpop.f32.mrf.mxu0
        %v5182 = vadd.f32 0.0, %v5181
        %v5183 = vpop.f32.mrf.mxu0
        %v5184 = vadd.f32 0.0, %v5183
        %5185 = vmatmul.bf16.gmra.mxu0 %v4541
        %v5186 = vpop.f32.mrf.mxu0
        %v5187 = vadd.f32 0.0, %v5186
        %v5188 = vpop.f32.mrf.mxu0
        %v5189 = vadd.f32 0.0, %v5188
        %5190 = vmatmul.bf16.gmra.mxu0 %v4542
        %v5191 = vpop.f32.mrf.mxu0
        %v5192 = vadd.f32 0.0, %v5191
        %v5193 = vpop.f32.mrf.mxu0
        %v5194 = vadd.f32 0.0, %v5193
        %5195 = vmatmul.bf16.gmra.mxu0 %v4543
        %v5196 = vpop.f32.mrf.mxu0
        %v5197 = vadd.f32 0.0, %v5196
        %v5198 = vpop.f32.mrf.mxu0
        %v5199 = vadd.f32 0.0, %v5198
        %5200 = vmatmul.bf16.gmra.mxu0 %v4544
        %v5201 = vpop.f32.mrf.mxu0
        %v5202 = vadd.f32 0.0, %v5201
        %v5203 = vpop.f32.mrf.mxu0
        %v5204 = vadd.f32 0.0, %v5203
        %5205 = vmatmul.bf16.gmra.mxu0 %v4545
        %v5206 = vpop.f32.mrf.mxu0
        %v5207 = vadd.f32 0.0, %v5206
        %v5208 = vpop.f32.mrf.mxu0
        %v5209 = vadd.f32 0.0, %v5208
        %5210 = vdwg.mxu0
        %5211 = vmatpush.bf16.msra.mxu0 %v5089
        %5212 = vmatpush.bf16.msra.mxu0 %v5088
        %5213 = vmatpush.bf16.msra.mxu0 %v5087
        %5214 = vmatpush.bf16.msra.mxu0 %v5086
        %5215 = vmatpush.bf16.msra.mxu0 %v5085
        %5216 = vmatpush.bf16.msra.mxu0 %v5084
        %5217 = vmatpush.bf16.msra.mxu0 %v5083
        %5218 = vmatpush.bf16.msra.mxu0 %v5082
        %5219 = vmatmul.bf16.gmra.mxu0 %v4621
        %v5220 = vpop.f32.mrf.mxu0
        %v5221 = vadd.f32 %v5132, %v5220
        %v5222 = vpop.f32.mrf.mxu0
        %v5223 = vadd.f32 %v5134, %v5222
        %5224 = vmatmul.bf16.gmra.mxu0 %v4633
        %v5225 = vpop.f32.mrf.mxu0
        %v5226 = vadd.f32 %v5137, %v5225
        %v5227 = vpop.f32.mrf.mxu0
        %v5228 = vadd.f32 %v5139, %v5227
        %5229 = vmatmul.bf16.gmra.mxu0 %v4645
        %v5230 = vpop.f32.mrf.mxu0
        %v5231 = vadd.f32 %v5142, %v5230
        %v5232 = vpop.f32.mrf.mxu0
        %v5233 = vadd.f32 %v5144, %v5232
        %5234 = vmatmul.bf16.gmra.mxu0 %v4657
        %v5235 = vpop.f32.mrf.mxu0
        %v5236 = vadd.f32 %v5147, %v5235
        %v5237 = vpop.f32.mrf.mxu0
        %v5238 = vadd.f32 %v5149, %v5237
        %5239 = vmatmul.bf16.gmra.mxu0 %v4669
        %v5240 = vpop.f32.mrf.mxu0
        %v5241 = vadd.f32 %v5152, %v5240
        %v5242 = vpop.f32.mrf.mxu0
        %v5243 = vadd.f32 %v5154, %v5242
        %5244 = vmatmul.bf16.gmra.mxu0 %v4681
        %v5245 = vpop.f32.mrf.mxu0
        %v5246 = vadd.f32 %v5157, %v5245
        %v5247 = vpop.f32.mrf.mxu0
        %v5248 = vadd.f32 %v5159, %v5247
        %5249 = vmatmul.bf16.gmra.mxu0 %v4693
        %v5250 = vpop.f32.mrf.mxu0
        %v5251 = vadd.f32 %v5162, %v5250
        %v5252 = vpop.f32.mrf.mxu0
        %v5253 = vadd.f32 %v5164, %v5252
        %5254 = vmatmul.bf16.gmra.mxu0 %v4705
        %v5255 = vpop.f32.mrf.mxu0
        %v5256 = vadd.f32 %v5167, %v5255
        %v5257 = vpop.f32.mrf.mxu0
        %v5258 = vadd.f32 %v5169, %v5257
        %5259 = vmatmul.bf16.gmra.mxu0 %v4717
        %v5260 = vpop.f32.mrf.mxu0
        %v5261 = vadd.f32 %v5172, %v5260
        %v5262 = vpop.f32.mrf.mxu0
        %v5263 = vadd.f32 %v5174, %v5262
        %5264 = vmatmul.bf16.gmra.mxu0 %v4729
        %v5265 = vpop.f32.mrf.mxu0
        %v5266 = vadd.f32 %v5177, %v5265
        %v5267 = vpop.f32.mrf.mxu0
        %v5268 = vadd.f32 %v5179, %v5267
        %5269 = vmatmul.bf16.gmra.mxu0 %v4741
        %v5270 = vpop.f32.mrf.mxu0
        %v5271 = vadd.f32 %v5182, %v5270
        %v5272 = vpop.f32.mrf.mxu0
        %v5273 = vadd.f32 %v5184, %v5272
        %5274 = vmatmul.bf16.gmra.mxu0 %v4753
        %v5275 = vpop.f32.mrf.mxu0
        %v5276 = vadd.f32 %v5187, %v5275
        %v5277 = vpop.f32.mrf.mxu0
        %v5278 = vadd.f32 %v5189, %v5277
        %5279 = vmatmul.bf16.gmra.mxu0 %v4765
        %v5280 = vpop.f32.mrf.mxu0
        %v5281 = vadd.f32 %v5192, %v5280
        %v5282 = vpop.f32.mrf.mxu0
        %v5283 = vadd.f32 %v5194, %v5282
        %5284 = vmatmul.bf16.gmra.mxu0 %v4777
        %v5285 = vpop.f32.mrf.mxu0
        %v5286 = vadd.f32 %v5197, %v5285
        %v5287 = vpop.f32.mrf.mxu0
        %v5288 = vadd.f32 %v5199, %v5287
        %5289 = vmatmul.bf16.gmra.mxu0 %v4789
        %v5290 = vpop.f32.mrf.mxu0
        %v5291 = vadd.f32 %v5202, %v5290
        %v5292 = vpop.f32.mrf.mxu0
        %v5293 = vadd.f32 %v5204, %v5292
        %5294 = vmatmul.bf16.gmra.mxu0 %v4801
        %v5295 = vpop.f32.mrf.mxu0
        %v5296 = vadd.f32 %v5207, %v5295
        %v5297 = vpop.f32.mrf.mxu0
        %v5298 = vadd.f32 %v5209, %v5297
        %5299 = vdwg.mxu0
        %5300 = vmatpush.bf16.msra.mxu0 %v5097
        %5301 = vmatpush.bf16.msra.mxu0 %v5096
        %5302 = vmatpush.bf16.msra.mxu0 %v5095
        %5303 = vmatpush.bf16.msra.mxu0 %v5094
        %5304 = vmatpush.bf16.msra.mxu0 %v5093
        %5305 = vmatpush.bf16.msra.mxu0 %v5092
        %5306 = vmatpush.bf16.msra.mxu0 %v5091
        %5307 = vmatpush.bf16.msra.mxu0 %v5090
        %5308 = vmatmul.bf16.gmra.mxu0 %v4868
        %v5309 = vpop.f32.mrf.mxu0
        %v5310 = vadd.f32 %v5221, %v5309
        %v5311 = vpop.f32.mrf.mxu0
        %v5312 = vadd.f32 %v5223, %v5311
        %5313 = vmatmul.bf16.gmra.mxu0 %v4871
        %v5314 = vpop.f32.mrf.mxu0
        %v5315 = vadd.f32 %v5226, %v5314
        %v5316 = vpop.f32.mrf.mxu0
        %v5317 = vadd.f32 %v5228, %v5316
        %5318 = vmatmul.bf16.gmra.mxu0 %v4874
        %v5319 = vpop.f32.mrf.mxu0
        %v5320 = vadd.f32 %v5231, %v5319
        %v5321 = vpop.f32.mrf.mxu0
        %v5322 = vadd.f32 %v5233, %v5321
        %5323 = vmatmul.bf16.gmra.mxu0 %v4877
        %v5324 = vpop.f32.mrf.mxu0
        %v5325 = vadd.f32 %v5236, %v5324
        %v5326 = vpop.f32.mrf.mxu0
        %v5327 = vadd.f32 %v5238, %v5326
        %5328 = vmatmul.bf16.gmra.mxu0 %v4880
        %v5329 = vpop.f32.mrf.mxu0
        %v5330 = vadd.f32 %v5241, %v5329
        %v5331 = vpop.f32.mrf.mxu0
        %v5332 = vadd.f32 %v5243, %v5331
        %5333 = vmatmul.bf16.gmra.mxu0 %v4883
        %v5334 = vpop.f32.mrf.mxu0
        %v5335 = vadd.f32 %v5246, %v5334
        %v5336 = vpop.f32.mrf.mxu0
        %v5337 = vadd.f32 %v5248, %v5336
        %5338 = vmatmul.bf16.gmra.mxu0 %v4886
        %v5339 = vpop.f32.mrf.mxu0
        %v5340 = vadd.f32 %v5251, %v5339
        %v5341 = vpop.f32.mrf.mxu0
        %v5342 = vadd.f32 %v5253, %v5341
        %5343 = vmatmul.bf16.gmra.mxu0 %v4889
        %v5344 = vpop.f32.mrf.mxu0
        %v5345 = vadd.f32 %v5256, %v5344
        %v5346 = vpop.f32.mrf.mxu0
        %v5347 = vadd.f32 %v5258, %v5346
        %5348 = vmatmul.bf16.gmra.mxu0 %v4892
        %v5349 = vpop.f32.mrf.mxu0
        %v5350 = vadd.f32 %v5261, %v5349
        %v5351 = vpop.f32.mrf.mxu0
        %v5352 = vadd.f32 %v5263, %v5351
        %5353 = vmatmul.bf16.gmra.mxu0 %v4895
        %v5354 = vpop.f32.mrf.mxu0
        %v5355 = vadd.f32 %v5266, %v5354
        %v5356 = vpop.f32.mrf.mxu0
        %v5357 = vadd.f32 %v5268, %v5356
        %5358 = vmatmul.bf16.gmra.mxu0 %v4898
        %v5359 = vpop.f32.mrf.mxu0
        %v5360 = vadd.f32 %v5271, %v5359
        %v5361 = vpop.f32.mrf.mxu0
        %v5362 = vadd.f32 %v5273, %v5361
        %5363 = vmatmul.bf16.gmra.mxu0 %v4901
        %v5364 = vpop.f32.mrf.mxu0
        %v5365 = vadd.f32 %v5276, %v5364
        %v5366 = vpop.f32.mrf.mxu0
        %v5367 = vadd.f32 %v5278, %v5366
        %5368 = vmatmul.bf16.gmra.mxu0 %v4904
        %v5369 = vpop.f32.mrf.mxu0
        %v5370 = vadd.f32 %v5281, %v5369
        %v5371 = vpop.f32.mrf.mxu0
        %v5372 = vadd.f32 %v5283, %v5371
        %5373 = vmatmul.bf16.gmra.mxu0 %v4907
        %v5374 = vpop.f32.mrf.mxu0
        %v5375 = vadd.f32 %v5286, %v5374
        %v5376 = vpop.f32.mrf.mxu0
        %v5377 = vadd.f32 %v5288, %v5376
        %5378 = vmatmul.bf16.gmra.mxu0 %v4910
        %v5379 = vpop.f32.mrf.mxu0
        %v5380 = vadd.f32 %v5291, %v5379
        %v5381 = vpop.f32.mrf.mxu0
        %v5382 = vadd.f32 %v5293, %v5381
        %5383 = vmatmul.bf16.gmra.mxu0 %v4913
        %v5384 = vpop.f32.mrf.mxu0
        %v5385 = vadd.f32 %v5296, %v5384
        %v5386 = vpop.f32.mrf.mxu0
        %v5387 = vadd.f32 %v5298, %v5386
        %5388 = vdwg.mxu0
        %v5389 = vadd.f32 %v4400, %v5310
        %v5390 = vadd.f32 %v4400, %v5312
        %v5391 = vadd.f32 %v4400, %v5315
        %v5392 = vadd.f32 %v4400, %v5317
        %v5393 = vadd.f32 %v4400, %v5320
        %v5394 = vadd.f32 %v4400, %v5322
        %v5395 = vadd.f32 %v4400, %v5325
        %v5396 = vadd.f32 %v4400, %v5327
        %v5397 = vadd.f32 %v4400, %v5330
        %v5398 = vadd.f32 %v4400, %v5332
        %v5399 = vadd.f32 %v4400, %v5335
        %v5400 = vadd.f32 %v4400, %v5337
        %v5401 = vadd.f32 %v4400, %v5340
        %v5402 = vadd.f32 %v4400, %v5342
        %v5403 = vadd.f32 %v4400, %v5345
        %v5404 = vadd.f32 %v4400, %v5347
        %v5405 = vadd.f32 %v4400, %v5350
        %v5406 = vadd.f32 %v4400, %v5352
        %v5407 = vadd.f32 %v4400, %v5355
        %v5408 = vadd.f32 %v4400, %v5357
        %v5409 = vadd.f32 %v4400, %v5360
        %v5410 = vadd.f32 %v4400, %v5362
        %v5411 = vadd.f32 %v4400, %v5365
        %v5412 = vadd.f32 %v4400, %v5367
        %v5413 = vadd.f32 %v4400, %v5370
        %v5414 = vadd.f32 %v4400, %v5372
        %v5415 = vadd.f32 %v4400, %v5375
        %v5416 = vadd.f32 %v4400, %v5377
        %v5417 = vadd.f32 %v4400, %v5380
        %v5418 = vadd.f32 %v4400, %v5382
        %v5419 = vadd.f32 %v4400, %v5385
        %v5420 = vadd.f32 %v4400, %v5387
        %s5421 = scalar_lea.vmem [#allocation3], 12
        %v5422 = vld [vmem:[%s5421] sm:$0xf]
        %v5423 = vld [vmem:[%s5421 + $0x4] sm:$0xf]
        %v5424 = vld [vmem:[%s5421 + $0xc] sm:$0xf]
        %v5425 = vld [vmem:[%s5421 + $0x10] sm:$0xf]
        %v5426 = vld [vmem:[%s5421 + $0x18] sm:$0xf]
        %v5427 = vld [vmem:[%s5421 + $0x1c] sm:$0xf]
        %v5428 = vld [vmem:[%s5421 + $0x24] sm:$0xf]
        %v5429 = vld [vmem:[%s5421 + $0x28] sm:$0xf]
        %v5430 = vld [vmem:[%s5421 + $0x30] sm:$0xf]
        %v5431 = vld [vmem:[%s5421 + $0x34] sm:$0xf]
        %v5432 = vld [vmem:[%s5421 + $0x3c] sm:$0xf]
        %v5433 = vld [vmem:[%s5421 + $0x40] sm:$0xf]
        %v5434 = vld [vmem:[%s5421 + $0x48] sm:$0xf]
        %v5435 = vld [vmem:[%s5421 + $0x4c] sm:$0xf]
        %v5436 = vld [vmem:[%s5421 + $0x54] sm:$0xf]
        %v5437 = vld [vmem:[%s5421 + $0x58] sm:$0xf]
        %v5438 = vld [vmem:[%s5421 + $0x60] sm:$0xf]
        %v5439 = vld [vmem:[%s5421 + $0x64] sm:$0xf]
        %v5440 = vld [vmem:[%s5421 + $0x6c] sm:$0xf]
        %v5441 = vld [vmem:[%s5421 + $0x70] sm:$0xf]
        %v5442 = vld [vmem:[%s5421 + $0x78] sm:$0xf]
        %v5443 = vld [vmem:[%s5421 + $0x7c] sm:$0xf]
        %v5444 = vld [vmem:[%s5421 + $0x84] sm:$0xf]
        %v5445 = vld [vmem:[%s5421 + $0x88] sm:$0xf]
        %v5446 = vld [vmem:[%s5421 + $0x90] sm:$0xf]
        %v5447 = vld [vmem:[%s5421 + $0x94] sm:$0xf]
        %v5448 = vld [vmem:[%s5421 + $0x9c] sm:$0xf]
        %v5449 = vld [vmem:[%s5421 + $0xa0] sm:$0xf]
        %v5450 = vld [vmem:[%s5421 + $0xa8] sm:$0xf]
        %v5451 = vld [vmem:[%s5421 + $0xac] sm:$0xf]
        %v5452 = vld [vmem:[%s5421 + $0xb4] sm:$0xf]
        %v5453 = vld [vmem:[%s5421 + $0xb8] sm:$0xf]
        %v5454 = vld [vmem:[%s5421 + $0x8] sm:$0x1]
        %v5455 = vld [vmem:[%s5421 + $0x14] sm:$0x1]
        %v5456 = vld [vmem:[%s5421 + $0x20] sm:$0x1]
        %v5457 = vld [vmem:[%s5421 + $0x2c] sm:$0x1]
        %v5458 = vld [vmem:[%s5421 + $0x38] sm:$0x1]
        %v5459 = vld [vmem:[%s5421 + $0x44] sm:$0x1]
        %v5460 = vld [vmem:[%s5421 + $0x50] sm:$0x1]
        %v5461 = vld [vmem:[%s5421 + $0x5c] sm:$0x1]
        %v5462 = vld [vmem:[%s5421 + $0x68] sm:$0x1]
        %v5463 = vld [vmem:[%s5421 + $0x74] sm:$0x1]
        %v5464 = vld [vmem:[%s5421 + $0x80] sm:$0x1]
        %v5465 = vld [vmem:[%s5421 + $0x8c] sm:$0x1]
        %v5466 = vld [vmem:[%s5421 + $0x98] sm:$0x1]
        %v5467 = vld [vmem:[%s5421 + $0xa4] sm:$0x1]
        %v5468 = vld [vmem:[%s5421 + $0xb0] sm:$0x1]
        %v5469 = vld [vmem:[%s5421 + $0xbc] sm:$0x1]
        %v5470 = vld [vmem:[%s5421] sm:$0xe]
        %v5471 = vld [vmem:[%s5421 + $0xc] sm:$0xe]
        %v5472 = vld [vmem:[%s5421 + $0x18] sm:$0xe]
        %v5473 = vld [vmem:[%s5421 + $0x24] sm:$0xe]
        %v5474 = vld [vmem:[%s5421 + $0x30] sm:$0xe]
        %v5475 = vld [vmem:[%s5421 + $0x3c] sm:$0xe]
        %v5476 = vld [vmem:[%s5421 + $0x48] sm:$0xe]
        %v5477 = vld [vmem:[%s5421 + $0x54] sm:$0xe]
        %v5478 = vld [vmem:[%s5421 + $0x60] sm:$0xe]
        %v5479 = vld [vmem:[%s5421 + $0x6c] sm:$0xe]
        %v5480 = vld [vmem:[%s5421 + $0x78] sm:$0xe]
        %v5481 = vld [vmem:[%s5421 + $0x84] sm:$0xe]
        %v5482 = vld [vmem:[%s5421 + $0x90] sm:$0xe]
        %v5483 = vld [vmem:[%s5421 + $0x9c] sm:$0xe]
        %v5484 = vld [vmem:[%s5421 + $0xa8] sm:$0xe]
        %v5485 = vld [vmem:[%s5421 + $0xb4] sm:$0xe]
        %v5518 = vunpack.c.l.b16 %v5422
        %v5519 = vunpack.c.l.b16 %v5423
        %v5520 = vunpack.c.l.b16 %v5424
        %v5521 = vunpack.c.l.b16 %v5425
        %v5522 = vunpack.c.l.b16 %v5426
        %v5523 = vunpack.c.l.b16 %v5427
        %v5524 = vunpack.c.l.b16 %v5428
        %v5525 = vunpack.c.l.b16 %v5429
        %v5526 = vunpack.c.l.b16 %v5430
        %v5527 = vunpack.c.l.b16 %v5431
        %v5528 = vunpack.c.l.b16 %v5432
        %v5529 = vunpack.c.l.b16 %v5433
        %v5530 = vunpack.c.l.b16 %v5434
        %v5531 = vunpack.c.l.b16 %v5435
        %v5532 = vunpack.c.l.b16 %v5436
        %v5533 = vunpack.c.l.b16 %v5437
        %v5534 = vunpack.c.l.b16 %v5438
        %v5535 = vunpack.c.l.b16 %v5439
        %v5536 = vunpack.c.l.b16 %v5440
        %v5537 = vunpack.c.l.b16 %v5441
        %v5538 = vunpack.c.l.b16 %v5442
        %v5539 = vunpack.c.l.b16 %v5443
        %v5540 = vunpack.c.l.b16 %v5444
        %v5541 = vunpack.c.l.b16 %v5445
        %v5542 = vunpack.c.l.b16 %v5446
        %v5543 = vunpack.c.l.b16 %v5447
        %v5544 = vunpack.c.l.b16 %v5448
        %v5545 = vunpack.c.l.b16 %v5449
        %v5546 = vunpack.c.l.b16 %v5450
        %v5547 = vunpack.c.l.b16 %v5451
        %v5548 = vunpack.c.l.b16 %v5452
        %v5549 = vunpack.c.l.b16 %v5453
        %v5550 = vpack.c.b16 %v5519, %v5518
        %v5551 = vpack.c.b16 %v5521, %v5520
        %v5552 = vpack.c.b16 %v5523, %v5522
        %v5553 = vpack.c.b16 %v5525, %v5524
        %v5554 = vpack.c.b16 %v5527, %v5526
        %v5555 = vpack.c.b16 %v5529, %v5528
        %v5556 = vpack.c.b16 %v5531, %v5530
        %v5557 = vpack.c.b16 %v5533, %v5532
        %v5558 = vpack.c.b16 %v5535, %v5534
        %v5559 = vpack.c.b16 %v5537, %v5536
        %v5560 = vpack.c.b16 %v5539, %v5538
        %v5561 = vpack.c.b16 %v5541, %v5540
        %v5562 = vpack.c.b16 %v5543, %v5542
        %v5563 = vpack.c.b16 %v5545, %v5544
        %v5564 = vpack.c.b16 %v5547, %v5546
        %v5565 = vpack.c.b16 %v5549, %v5548
        %v5598 = vunpack.c.l.b16 %v5454
        %v5599 = vunpack.c.l.b16 %v5455
        %v5600 = vunpack.c.l.b16 %v5456
        %v5601 = vunpack.c.l.b16 %v5457
        %v5602 = vunpack.c.l.b16 %v5458
        %v5603 = vunpack.c.l.b16 %v5459
        %v5604 = vunpack.c.l.b16 %v5460
        %v5605 = vunpack.c.l.b16 %v5461
        %v5606 = vunpack.c.l.b16 %v5462
        %v5607 = vunpack.c.l.b16 %v5463
        %v5608 = vunpack.c.l.b16 %v5464
        %v5609 = vunpack.c.l.b16 %v5465
        %v5610 = vunpack.c.l.b16 %v5466
        %v5611 = vunpack.c.l.b16 %v5467
        %v5612 = vunpack.c.l.b16 %v5468
        %v5613 = vunpack.c.l.b16 %v5469
        %v5614 = vpack.c.b16 %v5598, %v5598
        %v5615 = vpack.c.b16 %v5599, %v5599
        %v5616 = vpack.c.b16 %v5600, %v5600
        %v5617 = vpack.c.b16 %v5601, %v5601
        %v5618 = vpack.c.b16 %v5602, %v5602
        %v5619 = vpack.c.b16 %v5603, %v5603
        %v5620 = vpack.c.b16 %v5604, %v5604
        %v5621 = vpack.c.b16 %v5605, %v5605
        %v5622 = vpack.c.b16 %v5606, %v5606
        %v5623 = vpack.c.b16 %v5607, %v5607
        %v5624 = vpack.c.b16 %v5608, %v5608
        %v5625 = vpack.c.b16 %v5609, %v5609
        %v5626 = vpack.c.b16 %v5610, %v5610
        %v5627 = vpack.c.b16 %v5611, %v5611
        %v5628 = vpack.c.b16 %v5612, %v5612
        %v5629 = vpack.c.b16 %v5613, %v5613
        %v5631 = vshrl.u32 %v5550, 16
        %v5633 = vshll.u32 %v5550, 16
        %v5635 = vrot.slane %v5633, 1
        %v5636 = vor.u32 %v5631, %v5635
        %v5638 = vshll.u32 %v5614, 16
        %v5640 = vrot.slane %v5638, 1
        %v5641 = vsel %vm1666, %v5636, %v5640
        %v5643 = vshrl.u32 %v5551, 16
        %v5645 = vshll.u32 %v5551, 16
        %v5647 = vrot.slane %v5645, 1
        %v5648 = vor.u32 %v5643, %v5647
        %v5650 = vshll.u32 %v5615, 16
        %v5652 = vrot.slane %v5650, 1
        %v5653 = vsel %vm1666, %v5648, %v5652
        %v5655 = vshrl.u32 %v5552, 16
        %v5657 = vshll.u32 %v5552, 16
        %v5659 = vrot.slane %v5657, 1
        %v5660 = vor.u32 %v5655, %v5659
        %v5662 = vshll.u32 %v5616, 16
        %v5664 = vrot.slane %v5662, 1
        %v5665 = vsel %vm1666, %v5660, %v5664
        %v5667 = vshrl.u32 %v5553, 16
        %v5669 = vshll.u32 %v5553, 16
        %v5671 = vrot.slane %v5669, 1
        %v5672 = vor.u32 %v5667, %v5671
        %v5674 = vshll.u32 %v5617, 16
        %v5676 = vrot.slane %v5674, 1
        %v5677 = vsel %vm1666, %v5672, %v5676
        %v5679 = vshrl.u32 %v5554, 16
        %v5681 = vshll.u32 %v5554, 16
        %v5683 = vrot.slane %v5681, 1
        %v5684 = vor.u32 %v5679, %v5683
        %v5686 = vshll.u32 %v5618, 16
        %v5688 = vrot.slane %v5686, 1
        %v5689 = vsel %vm1666, %v5684, %v5688
        %v5691 = vshrl.u32 %v5555, 16
        %v5693 = vshll.u32 %v5555, 16
        %v5695 = vrot.slane %v5693, 1
        %v5696 = vor.u32 %v5691, %v5695
        %v5698 = vshll.u32 %v5619, 16
        %v5700 = vrot.slane %v5698, 1
        %v5701 = vsel %vm1666, %v5696, %v5700
        %v5703 = vshrl.u32 %v5556, 16
        %v5705 = vshll.u32 %v5556, 16
        %v5707 = vrot.slane %v5705, 1
        %v5708 = vor.u32 %v5703, %v5707
        %v5710 = vshll.u32 %v5620, 16
        %v5712 = vrot.slane %v5710, 1
        %v5713 = vsel %vm1666, %v5708, %v5712
        %v5715 = vshrl.u32 %v5557, 16
        %v5717 = vshll.u32 %v5557, 16
        %v5719 = vrot.slane %v5717, 1
        %v5720 = vor.u32 %v5715, %v5719
        %v5722 = vshll.u32 %v5621, 16
        %v5724 = vrot.slane %v5722, 1
        %v5725 = vsel %vm1666, %v5720, %v5724
        %v5727 = vshrl.u32 %v5558, 16
        %v5729 = vshll.u32 %v5558, 16
        %v5731 = vrot.slane %v5729, 1
        %v5732 = vor.u32 %v5727, %v5731
        %v5734 = vshll.u32 %v5622, 16
        %v5736 = vrot.slane %v5734, 1
        %v5737 = vsel %vm1666, %v5732, %v5736
        %v5739 = vshrl.u32 %v5559, 16
        %v5741 = vshll.u32 %v5559, 16
        %v5743 = vrot.slane %v5741, 1
        %v5744 = vor.u32 %v5739, %v5743
        %v5746 = vshll.u32 %v5623, 16
        %v5748 = vrot.slane %v5746, 1
        %v5749 = vsel %vm1666, %v5744, %v5748
        %v5751 = vshrl.u32 %v5560, 16
        %v5753 = vshll.u32 %v5560, 16
        %v5755 = vrot.slane %v5753, 1
        %v5756 = vor.u32 %v5751, %v5755
        %v5758 = vshll.u32 %v5624, 16
        %v5760 = vrot.slane %v5758, 1
        %v5761 = vsel %vm1666, %v5756, %v5760
        %v5763 = vshrl.u32 %v5561, 16
        %v5765 = vshll.u32 %v5561, 16
        %v5767 = vrot.slane %v5765, 1
        %v5768 = vor.u32 %v5763, %v5767
        %v5770 = vshll.u32 %v5625, 16
        %v5772 = vrot.slane %v5770, 1
        %v5773 = vsel %vm1666, %v5768, %v5772
        %v5775 = vshrl.u32 %v5562, 16
        %v5777 = vshll.u32 %v5562, 16
        %v5779 = vrot.slane %v5777, 1
        %v5780 = vor.u32 %v5775, %v5779
        %v5782 = vshll.u32 %v5626, 16
        %v5784 = vrot.slane %v5782, 1
        %v5785 = vsel %vm1666, %v5780, %v5784
        %v5787 = vshrl.u32 %v5563, 16
        %v5789 = vshll.u32 %v5563, 16
        %v5791 = vrot.slane %v5789, 1
        %v5792 = vor.u32 %v5787, %v5791
        %v5794 = vshll.u32 %v5627, 16
        %v5796 = vrot.slane %v5794, 1
        %v5797 = vsel %vm1666, %v5792, %v5796
        %v5799 = vshrl.u32 %v5564, 16
        %v5801 = vshll.u32 %v5564, 16
        %v5803 = vrot.slane %v5801, 1
        %v5804 = vor.u32 %v5799, %v5803
        %v5806 = vshll.u32 %v5628, 16
        %v5808 = vrot.slane %v5806, 1
        %v5809 = vsel %vm1666, %v5804, %v5808
        %v5811 = vshrl.u32 %v5565, 16
        %v5813 = vshll.u32 %v5565, 16
        %v5815 = vrot.slane %v5813, 1
        %v5816 = vor.u32 %v5811, %v5815
        %v5818 = vshll.u32 %v5629, 16
        %v5820 = vrot.slane %v5818, 1
        %v5821 = vsel %vm1666, %v5816, %v5820
        %v5854 = vunpack.c.l.b16 %v5470
        %v5855 = vunpack.c.l.b16 %v5471
        %v5856 = vunpack.c.l.b16 %v5472
        %v5857 = vunpack.c.l.b16 %v5473
        %v5858 = vunpack.c.l.b16 %v5474
        %v5859 = vunpack.c.l.b16 %v5475
        %v5860 = vunpack.c.l.b16 %v5476
        %v5861 = vunpack.c.l.b16 %v5477
        %v5862 = vunpack.c.l.b16 %v5478
        %v5863 = vunpack.c.l.b16 %v5479
        %v5864 = vunpack.c.l.b16 %v5480
        %v5865 = vunpack.c.l.b16 %v5481
        %v5866 = vunpack.c.l.b16 %v5482
        %v5867 = vunpack.c.l.b16 %v5483
        %v5868 = vunpack.c.l.b16 %v5484
        %v5869 = vunpack.c.l.b16 %v5485
        %v5870 = vpack.c.b16 %v5519, %v5854
        %v5871 = vpack.c.b16 %v5521, %v5855
        %v5872 = vpack.c.b16 %v5523, %v5856
        %v5873 = vpack.c.b16 %v5525, %v5857
        %v5874 = vpack.c.b16 %v5527, %v5858
        %v5875 = vpack.c.b16 %v5529, %v5859
        %v5876 = vpack.c.b16 %v5531, %v5860
        %v5877 = vpack.c.b16 %v5533, %v5861
        %v5878 = vpack.c.b16 %v5535, %v5862
        %v5879 = vpack.c.b16 %v5537, %v5863
        %v5880 = vpack.c.b16 %v5539, %v5864
        %v5881 = vpack.c.b16 %v5541, %v5865
        %v5882 = vpack.c.b16 %v5543, %v5866
        %v5883 = vpack.c.b16 %v5545, %v5867
        %v5884 = vpack.c.b16 %v5547, %v5868
        %v5885 = vpack.c.b16 %v5549, %v5869
        %v5886 = vrot.slane %v5870, 1
        %v5887 = vrot.slane %v5614, 1
        %v5888 = vsel %vm1973, %v5886, %v5887
        %v5889 = vrot.slane %v5871, 1
        %v5890 = vrot.slane %v5615, 1
        %v5891 = vsel %vm1973, %v5889, %v5890
        %v5892 = vrot.slane %v5872, 1
        %v5893 = vrot.slane %v5616, 1
        %v5894 = vsel %vm1973, %v5892, %v5893
        %v5895 = vrot.slane %v5873, 1
        %v5896 = vrot.slane %v5617, 1
        %v5897 = vsel %vm1973, %v5895, %v5896
        %v5898 = vrot.slane %v5874, 1
        %v5899 = vrot.slane %v5618, 1
        %v5900 = vsel %vm1973, %v5898, %v5899
        %v5901 = vrot.slane %v5875, 1
        %v5902 = vrot.slane %v5619, 1
        %v5903 = vsel %vm1973, %v5901, %v5902
        %v5904 = vrot.slane %v5876, 1
        %v5905 = vrot.slane %v5620, 1
        %v5906 = vsel %vm1973, %v5904, %v5905
        %v5907 = vrot.slane %v5877, 1
        %v5908 = vrot.slane %v5621, 1
        %v5909 = vsel %vm1973, %v5907, %v5908
        %v5910 = vrot.slane %v5878, 1
        %v5911 = vrot.slane %v5622, 1
        %v5912 = vsel %vm1973, %v5910, %v5911
        %v5913 = vrot.slane %v5879, 1
        %v5914 = vrot.slane %v5623, 1
        %v5915 = vsel %vm1973, %v5913, %v5914
        %v5916 = vrot.slane %v5880, 1
        %v5917 = vrot.slane %v5624, 1
        %v5918 = vsel %vm1973, %v5916, %v5917
        %v5919 = vrot.slane %v5881, 1
        %v5920 = vrot.slane %v5625, 1
        %v5921 = vsel %vm1973, %v5919, %v5920
        %v5922 = vrot.slane %v5882, 1
        %v5923 = vrot.slane %v5626, 1
        %v5924 = vsel %vm1973, %v5922, %v5923
        %v5925 = vrot.slane %v5883, 1
        %v5926 = vrot.slane %v5627, 1
        %v5927 = vsel %vm1973, %v5925, %v5926
        %v5928 = vrot.slane %v5884, 1
        %v5929 = vrot.slane %v5628, 1
        %v5930 = vsel %vm1973, %v5928, %v5929
        %v5931 = vrot.slane %v5885, 1
        %v5932 = vrot.slane %v5629, 1
        %v5933 = vsel %vm1973, %v5931, %v5932
        %s5950 = scalar_lea.vmem [#allocation4], 192
        %v5951 = vld [vmem:[%s5950] sm:$0xf]
        %v5952 = vld [vmem:[%s5950 + $0x4] sm:$0xf]
        %v5953 = vld [vmem:[%s5950 + $0x8] sm:$0xf]
        %v5954 = vld [vmem:[%s5950 + $0xc] sm:$0xf]
        %v5955 = vld [vmem:[%s5950 + $0x10] sm:$0xf]
        %v5956 = vld [vmem:[%s5950 + $0x14] sm:$0xf]
        %v5957 = vld [vmem:[%s5950 + $0x18] sm:$0xf]
        %v5958 = vld [vmem:[%s5950 + $0x1c] sm:$0xf]
        %v5959 = vld [vmem:[%s5950 + $0x20] sm:$0xf]
        %v5960 = vld [vmem:[%s5950 + $0x24] sm:$0xf]
        %v5961 = vld [vmem:[%s5950 + $0x28] sm:$0xf]
        %v5962 = vld [vmem:[%s5950 + $0x2c] sm:$0xf]
        %v5963 = vld [vmem:[%s5950 + $0x30] sm:$0xf]
        %v5964 = vld [vmem:[%s5950 + $0x34] sm:$0xf]
        %v5965 = vld [vmem:[%s5950 + $0x38] sm:$0xf]
        %v5966 = vld [vmem:[%s5950 + $0x3c] sm:$0xf]
        %v5967 = vld [vmem:[%s5950 + $0x40] sm:$0xf]
        %v5968 = vld [vmem:[%s5950 + $0x44] sm:$0xf]
        %v5969 = vld [vmem:[%s5950 + $0x48] sm:$0xf]
        %v5970 = vld [vmem:[%s5950 + $0x4c] sm:$0xf]
        %v5971 = vld [vmem:[%s5950 + $0x50] sm:$0xf]
        %v5972 = vld [vmem:[%s5950 + $0x54] sm:$0xf]
        %v5973 = vld [vmem:[%s5950 + $0x58] sm:$0xf]
        %v5974 = vld [vmem:[%s5950 + $0x5c] sm:$0xf]
        %v5975 = vld [vmem:[%s5950 + $0x60] sm:$0xf]
        %v5976 = vld [vmem:[%s5950 + $0x64] sm:$0xf]
        %v5977 = vld [vmem:[%s5950 + $0x68] sm:$0xf]
        %v5978 = vld [vmem:[%s5950 + $0x6c] sm:$0xf]
        %v5979 = vld [vmem:[%s5950 + $0x70] sm:$0xf]
        %v5980 = vld [vmem:[%s5950 + $0x74] sm:$0xf]
        %v5981 = vld [vmem:[%s5950 + $0x78] sm:$0xf]
        %v5982 = vld [vmem:[%s5950 + $0x7c] sm:$0xf]
        %v5983 = vld [vmem:[%s5950 + $0x80] sm:$0xf]
        %v5984 = vld [vmem:[%s5950 + $0x84] sm:$0xf]
        %v5985 = vld [vmem:[%s5950 + $0x88] sm:$0xf]
        %v5986 = vld [vmem:[%s5950 + $0x8c] sm:$0xf]
        %v5987 = vld [vmem:[%s5950 + $0x90] sm:$0xf]
        %v5988 = vld [vmem:[%s5950 + $0x94] sm:$0xf]
        %v5989 = vld [vmem:[%s5950 + $0x98] sm:$0xf]
        %v5990 = vld [vmem:[%s5950 + $0x9c] sm:$0xf]
        %v5991 = vld [vmem:[%s5950 + $0xa0] sm:$0xf]
        %v5992 = vld [vmem:[%s5950 + $0xa4] sm:$0xf]
        %v5993 = vld [vmem:[%s5950 + $0xa8] sm:$0xf]
        %v5994 = vld [vmem:[%s5950 + $0xac] sm:$0xf]
        %v5995 = vld [vmem:[%s5950 + $0xb0] sm:$0xf]
        %v5996 = vld [vmem:[%s5950 + $0xb4] sm:$0xf]
        %v5997 = vld [vmem:[%s5950 + $0xb8] sm:$0xf]
        %v5998 = vld [vmem:[%s5950 + $0xbc] sm:$0xf]
        %v6047 = vunpack.c.l.b16 %v5951
        %v6048 = vunpack.c.l.b16 %v5952
        %v6049 = vunpack.c.l.b16 %v5953
        %v6050 = vunpack.c.l.b16 %v5954
        %v6051 = vunpack.c.l.b16 %v5955
        %v6052 = vunpack.c.l.b16 %v5956
        %v6053 = vunpack.c.l.b16 %v5957
        %v6054 = vunpack.c.l.b16 %v5958
        %v6055 = vunpack.c.l.b16 %v5959
        %v6056 = vunpack.c.l.b16 %v5960
        %v6057 = vunpack.c.l.b16 %v5961
        %v6058 = vunpack.c.l.b16 %v5962
        %v6059 = vunpack.c.l.b16 %v5963
        %v6060 = vunpack.c.l.b16 %v5964
        %v6061 = vunpack.c.l.b16 %v5965
        %v6062 = vunpack.c.l.b16 %v5966
        %v6063 = vunpack.c.l.b16 %v5967
        %v6064 = vunpack.c.l.b16 %v5968
        %v6065 = vunpack.c.l.b16 %v5969
        %v6066 = vunpack.c.l.b16 %v5970
        %v6067 = vunpack.c.l.b16 %v5971
        %v6068 = vunpack.c.l.b16 %v5972
        %v6069 = vunpack.c.l.b16 %v5973
        %v6070 = vunpack.c.l.b16 %v5974
        %v6071 = vunpack.c.l.b16 %v5975
        %v6072 = vunpack.c.l.b16 %v5976
        %v6073 = vunpack.c.l.b16 %v5977
        %v6074 = vunpack.c.l.b16 %v5978
        %v6075 = vunpack.c.l.b16 %v5979
        %v6076 = vunpack.c.l.b16 %v5980
        %v6077 = vunpack.c.l.b16 %v5981
        %v6078 = vunpack.c.l.b16 %v5982
        %v6079 = vunpack.c.l.b16 %v5983
        %v6080 = vunpack.c.l.b16 %v5984
        %v6081 = vunpack.c.l.b16 %v5985
        %v6082 = vunpack.c.l.b16 %v5986
        %v6083 = vunpack.c.l.b16 %v5987
        %v6084 = vunpack.c.l.b16 %v5988
        %v6085 = vunpack.c.l.b16 %v5989
        %v6086 = vunpack.c.l.b16 %v5990
        %v6087 = vunpack.c.l.b16 %v5991
        %v6088 = vunpack.c.l.b16 %v5992
        %v6089 = vunpack.c.l.b16 %v5993
        %v6090 = vunpack.c.l.b16 %v5994
        %v6091 = vunpack.c.l.b16 %v5995
        %v6092 = vunpack.c.l.b16 %v5996
        %v6093 = vunpack.c.l.b16 %v5997
        %v6094 = vunpack.c.l.b16 %v5998
        %v6095 = vpack.c.b16 %v6048, %v6047
        %v6096 = vpack.c.b16 %v6050, %v6049
        %v6097 = vpack.c.b16 %v6052, %v6051
        %v6098 = vpack.c.b16 %v6054, %v6053
        %v6099 = vpack.c.b16 %v6056, %v6055
        %v6100 = vpack.c.b16 %v6058, %v6057
        %v6101 = vpack.c.b16 %v6060, %v6059
        %v6102 = vpack.c.b16 %v6062, %v6061
        %v6103 = vpack.c.b16 %v6064, %v6063
        %v6104 = vpack.c.b16 %v6066, %v6065
        %v6105 = vpack.c.b16 %v6068, %v6067
        %v6106 = vpack.c.b16 %v6070, %v6069
        %v6107 = vpack.c.b16 %v6072, %v6071
        %v6108 = vpack.c.b16 %v6074, %v6073
        %v6109 = vpack.c.b16 %v6076, %v6075
        %v6110 = vpack.c.b16 %v6078, %v6077
        %v6111 = vpack.c.b16 %v6080, %v6079
        %v6112 = vpack.c.b16 %v6082, %v6081
        %v6113 = vpack.c.b16 %v6084, %v6083
        %v6114 = vpack.c.b16 %v6086, %v6085
        %v6115 = vpack.c.b16 %v6088, %v6087
        %v6116 = vpack.c.b16 %v6090, %v6089
        %v6117 = vpack.c.b16 %v6092, %v6091
        %v6118 = vpack.c.b16 %v6094, %v6093
        %6143 = vmatpush.bf16.msra.mxu0 %v6102
        %6144 = vmatpush.bf16.msra.mxu0 %v6101
        %6145 = vmatpush.bf16.msra.mxu0 %v6100
        %6146 = vmatpush.bf16.msra.mxu0 %v6099
        %6147 = vmatpush.bf16.msra.mxu0 %v6098
        %6148 = vmatpush.bf16.msra.mxu0 %v6097
        %6149 = vmatpush.bf16.msra.mxu0 %v6096
        %6150 = vmatpush.bf16.msra.mxu0 %v6095
        %6151 = vmatmul.bf16.gmra.mxu0 %v5550
        %v6152 = vpop.f32.mrf.mxu0
        %v6153 = vadd.f32 0.0, %v6152
        %v6154 = vpop.f32.mrf.mxu0
        %v6155 = vadd.f32 0.0, %v6154
        %6156 = vmatmul.bf16.gmra.mxu0 %v5551
        %v6157 = vpop.f32.mrf.mxu0
        %v6158 = vadd.f32 0.0, %v6157
        %v6159 = vpop.f32.mrf.mxu0
        %v6160 = vadd.f32 0.0, %v6159
        %6161 = vmatmul.bf16.gmra.mxu0 %v5552
        %v6162 = vpop.f32.mrf.mxu0
        %v6163 = vadd.f32 0.0, %v6162
        %v6164 = vpop.f32.mrf.mxu0
        %v6165 = vadd.f32 0.0, %v6164
        %6166 = vmatmul.bf16.gmra.mxu0 %v5553
        %v6167 = vpop.f32.mrf.mxu0
        %v6168 = vadd.f32 0.0, %v6167
        %v6169 = vpop.f32.mrf.mxu0
        %v6170 = vadd.f32 0.0, %v6169
        %6171 = vmatmul.bf16.gmra.mxu0 %v5554
        %v6172 = vpop.f32.mrf.mxu0
        %v6173 = vadd.f32 0.0, %v6172
        %v6174 = vpop.f32.mrf.mxu0
        %v6175 = vadd.f32 0.0, %v6174
        %6176 = vmatmul.bf16.gmra.mxu0 %v5555
        %v6177 = vpop.f32.mrf.mxu0
        %v6178 = vadd.f32 0.0, %v6177
        %v6179 = vpop.f32.mrf.mxu0
        %v6180 = vadd.f32 0.0, %v6179
        %6181 = vmatmul.bf16.gmra.mxu0 %v5556
        %v6182 = vpop.f32.mrf.mxu0
        %v6183 = vadd.f32 0.0, %v6182
        %v6184 = vpop.f32.mrf.mxu0
        %v6185 = vadd.f32 0.0, %v6184
        %6186 = vmatmul.bf16.gmra.mxu0 %v5557
        %v6187 = vpop.f32.mrf.mxu0
        %v6188 = vadd.f32 0.0, %v6187
        %v6189 = vpop.f32.mrf.mxu0
        %v6190 = vadd.f32 0.0, %v6189
        %6191 = vmatmul.bf16.gmra.mxu0 %v5558
        %v6192 = vpop.f32.mrf.mxu0
        %v6193 = vadd.f32 0.0, %v6192
        %v6194 = vpop.f32.mrf.mxu0
        %v6195 = vadd.f32 0.0, %v6194
        %6196 = vmatmul.bf16.gmra.mxu0 %v5559
        %v6197 = vpop.f32.mrf.mxu0
        %v6198 = vadd.f32 0.0, %v6197
        %v6199 = vpop.f32.mrf.mxu0
        %v6200 = vadd.f32 0.0, %v6199
        %6201 = vmatmul.bf16.gmra.mxu0 %v5560
        %v6202 = vpop.f32.mrf.mxu0
        %v6203 = vadd.f32 0.0, %v6202
        %v6204 = vpop.f32.mrf.mxu0
        %v6205 = vadd.f32 0.0, %v6204
        %6206 = vmatmul.bf16.gmra.mxu0 %v5561
        %v6207 = vpop.f32.mrf.mxu0
        %v6208 = vadd.f32 0.0, %v6207
        %v6209 = vpop.f32.mrf.mxu0
        %v6210 = vadd.f32 0.0, %v6209
        %6211 = vmatmul.bf16.gmra.mxu0 %v5562
        %v6212 = vpop.f32.mrf.mxu0
        %v6213 = vadd.f32 0.0, %v6212
        %v6214 = vpop.f32.mrf.mxu0
        %v6215 = vadd.f32 0.0, %v6214
        %6216 = vmatmul.bf16.gmra.mxu0 %v5563
        %v6217 = vpop.f32.mrf.mxu0
        %v6218 = vadd.f32 0.0, %v6217
        %v6219 = vpop.f32.mrf.mxu0
        %v6220 = vadd.f32 0.0, %v6219
        %6221 = vmatmul.bf16.gmra.mxu0 %v5564
        %v6222 = vpop.f32.mrf.mxu0
        %v6223 = vadd.f32 0.0, %v6222
        %v6224 = vpop.f32.mrf.mxu0
        %v6225 = vadd.f32 0.0, %v6224
        %6226 = vmatmul.bf16.gmra.mxu0 %v5565
        %v6227 = vpop.f32.mrf.mxu0
        %v6228 = vadd.f32 0.0, %v6227
        %v6229 = vpop.f32.mrf.mxu0
        %v6230 = vadd.f32 0.0, %v6229
        %6231 = vdwg.mxu0
        %6232 = vmatpush.bf16.msra.mxu0 %v6110
        %6233 = vmatpush.bf16.msra.mxu0 %v6109
        %6234 = vmatpush.bf16.msra.mxu0 %v6108
        %6235 = vmatpush.bf16.msra.mxu0 %v6107
        %6236 = vmatpush.bf16.msra.mxu0 %v6106
        %6237 = vmatpush.bf16.msra.mxu0 %v6105
        %6238 = vmatpush.bf16.msra.mxu0 %v6104
        %6239 = vmatpush.bf16.msra.mxu0 %v6103
        %6240 = vmatmul.bf16.gmra.mxu0 %v5641
        %v6241 = vpop.f32.mrf.mxu0
        %v6242 = vadd.f32 %v6153, %v6241
        %v6243 = vpop.f32.mrf.mxu0
        %v6244 = vadd.f32 %v6155, %v6243
        %6245 = vmatmul.bf16.gmra.mxu0 %v5653
        %v6246 = vpop.f32.mrf.mxu0
        %v6247 = vadd.f32 %v6158, %v6246
        %v6248 = vpop.f32.mrf.mxu0
        %v6249 = vadd.f32 %v6160, %v6248
        %6250 = vmatmul.bf16.gmra.mxu0 %v5665
        %v6251 = vpop.f32.mrf.mxu0
        %v6252 = vadd.f32 %v6163, %v6251
        %v6253 = vpop.f32.mrf.mxu0
        %v6254 = vadd.f32 %v6165, %v6253
        %6255 = vmatmul.bf16.gmra.mxu0 %v5677
        %v6256 = vpop.f32.mrf.mxu0
        %v6257 = vadd.f32 %v6168, %v6256
        %v6258 = vpop.f32.mrf.mxu0
        %v6259 = vadd.f32 %v6170, %v6258
        %6260 = vmatmul.bf16.gmra.mxu0 %v5689
        %v6261 = vpop.f32.mrf.mxu0
        %v6262 = vadd.f32 %v6173, %v6261
        %v6263 = vpop.f32.mrf.mxu0
        %v6264 = vadd.f32 %v6175, %v6263
        %6265 = vmatmul.bf16.gmra.mxu0 %v5701
        %v6266 = vpop.f32.mrf.mxu0
        %v6267 = vadd.f32 %v6178, %v6266
        %v6268 = vpop.f32.mrf.mxu0
        %v6269 = vadd.f32 %v6180, %v6268
        %6270 = vmatmul.bf16.gmra.mxu0 %v5713
        %v6271 = vpop.f32.mrf.mxu0
        %v6272 = vadd.f32 %v6183, %v6271
        %v6273 = vpop.f32.mrf.mxu0
        %v6274 = vadd.f32 %v6185, %v6273
        %6275 = vmatmul.bf16.gmra.mxu0 %v5725
        %v6276 = vpop.f32.mrf.mxu0
        %v6277 = vadd.f32 %v6188, %v6276
        %v6278 = vpop.f32.mrf.mxu0
        %v6279 = vadd.f32 %v6190, %v6278
        %6280 = vmatmul.bf16.gmra.mxu0 %v5737
        %v6281 = vpop.f32.mrf.mxu0
        %v6282 = vadd.f32 %v6193, %v6281
        %v6283 = vpop.f32.mrf.mxu0
        %v6284 = vadd.f32 %v6195, %v6283
        %6285 = vmatmul.bf16.gmra.mxu0 %v5749
        %v6286 = vpop.f32.mrf.mxu0
        %v6287 = vadd.f32 %v6198, %v6286
        %v6288 = vpop.f32.mrf.mxu0
        %v6289 = vadd.f32 %v6200, %v6288
        %6290 = vmatmul.bf16.gmra.mxu0 %v5761
        %v6291 = vpop.f32.mrf.mxu0
        %v6292 = vadd.f32 %v6203, %v6291
        %v6293 = vpop.f32.mrf.mxu0
        %v6294 = vadd.f32 %v6205, %v6293
        %6295 = vmatmul.bf16.gmra.mxu0 %v5773
        %v6296 = vpop.f32.mrf.mxu0
        %v6297 = vadd.f32 %v6208, %v6296
        %v6298 = vpop.f32.mrf.mxu0
        %v6299 = vadd.f32 %v6210, %v6298
        %6300 = vmatmul.bf16.gmra.mxu0 %v5785
        %v6301 = vpop.f32.mrf.mxu0
        %v6302 = vadd.f32 %v6213, %v6301
        %v6303 = vpop.f32.mrf.mxu0
        %v6304 = vadd.f32 %v6215, %v6303
        %6305 = vmatmul.bf16.gmra.mxu0 %v5797
        %v6306 = vpop.f32.mrf.mxu0
        %v6307 = vadd.f32 %v6218, %v6306
        %v6308 = vpop.f32.mrf.mxu0
        %v6309 = vadd.f32 %v6220, %v6308
        %6310 = vmatmul.bf16.gmra.mxu0 %v5809
        %v6311 = vpop.f32.mrf.mxu0
        %v6312 = vadd.f32 %v6223, %v6311
        %v6313 = vpop.f32.mrf.mxu0
        %v6314 = vadd.f32 %v6225, %v6313
        %6315 = vmatmul.bf16.gmra.mxu0 %v5821
        %v6316 = vpop.f32.mrf.mxu0
        %v6317 = vadd.f32 %v6228, %v6316
        %v6318 = vpop.f32.mrf.mxu0
        %v6319 = vadd.f32 %v6230, %v6318
        %6320 = vdwg.mxu0
        %6321 = vmatpush.bf16.msra.mxu0 %v6118
        %6322 = vmatpush.bf16.msra.mxu0 %v6117
        %6323 = vmatpush.bf16.msra.mxu0 %v6116
        %6324 = vmatpush.bf16.msra.mxu0 %v6115
        %6325 = vmatpush.bf16.msra.mxu0 %v6114
        %6326 = vmatpush.bf16.msra.mxu0 %v6113
        %6327 = vmatpush.bf16.msra.mxu0 %v6112
        %6328 = vmatpush.bf16.msra.mxu0 %v6111
        %6329 = vmatmul.bf16.gmra.mxu0 %v5888
        %v6330 = vpop.f32.mrf.mxu0
        %v6331 = vadd.f32 %v6242, %v6330
        %v6332 = vpop.f32.mrf.mxu0
        %v6333 = vadd.f32 %v6244, %v6332
        %6334 = vmatmul.bf16.gmra.mxu0 %v5891
        %v6335 = vpop.f32.mrf.mxu0
        %v6336 = vadd.f32 %v6247, %v6335
        %v6337 = vpop.f32.mrf.mxu0
        %v6338 = vadd.f32 %v6249, %v6337
        %6339 = vmatmul.bf16.gmra.mxu0 %v5894
        %v6340 = vpop.f32.mrf.mxu0
        %v6341 = vadd.f32 %v6252, %v6340
        %v6342 = vpop.f32.mrf.mxu0
        %v6343 = vadd.f32 %v6254, %v6342
        %6344 = vmatmul.bf16.gmra.mxu0 %v5897
        %v6345 = vpop.f32.mrf.mxu0
        %v6346 = vadd.f32 %v6257, %v6345
        %v6347 = vpop.f32.mrf.mxu0
        %v6348 = vadd.f32 %v6259, %v6347
        %6349 = vmatmul.bf16.gmra.mxu0 %v5900
        %v6350 = vpop.f32.mrf.mxu0
        %v6351 = vadd.f32 %v6262, %v6350
        %v6352 = vpop.f32.mrf.mxu0
        %v6353 = vadd.f32 %v6264, %v6352
        %6354 = vmatmul.bf16.gmra.mxu0 %v5903
        %v6355 = vpop.f32.mrf.mxu0
        %v6356 = vadd.f32 %v6267, %v6355
        %v6357 = vpop.f32.mrf.mxu0
        %v6358 = vadd.f32 %v6269, %v6357
        %6359 = vmatmul.bf16.gmra.mxu0 %v5906
        %v6360 = vpop.f32.mrf.mxu0
        %v6361 = vadd.f32 %v6272, %v6360
        %v6362 = vpop.f32.mrf.mxu0
        %v6363 = vadd.f32 %v6274, %v6362
        %6364 = vmatmul.bf16.gmra.mxu0 %v5909
        %v6365 = vpop.f32.mrf.mxu0
        %v6366 = vadd.f32 %v6277, %v6365
        %v6367 = vpop.f32.mrf.mxu0
        %v6368 = vadd.f32 %v6279, %v6367
        %6369 = vmatmul.bf16.gmra.mxu0 %v5912
        %v6370 = vpop.f32.mrf.mxu0
        %v6371 = vadd.f32 %v6282, %v6370
        %v6372 = vpop.f32.mrf.mxu0
        %v6373 = vadd.f32 %v6284, %v6372
        %6374 = vmatmul.bf16.gmra.mxu0 %v5915
        %v6375 = vpop.f32.mrf.mxu0
        %v6376 = vadd.f32 %v6287, %v6375
        %v6377 = vpop.f32.mrf.mxu0
        %v6378 = vadd.f32 %v6289, %v6377
        %6379 = vmatmul.bf16.gmra.mxu0 %v5918
        %v6380 = vpop.f32.mrf.mxu0
        %v6381 = vadd.f32 %v6292, %v6380
        %v6382 = vpop.f32.mrf.mxu0
        %v6383 = vadd.f32 %v6294, %v6382
        %6384 = vmatmul.bf16.gmra.mxu0 %v5921
        %v6385 = vpop.f32.mrf.mxu0
        %v6386 = vadd.f32 %v6297, %v6385
        %v6387 = vpop.f32.mrf.mxu0
        %v6388 = vadd.f32 %v6299, %v6387
        %6389 = vmatmul.bf16.gmra.mxu0 %v5924
        %v6390 = vpop.f32.mrf.mxu0
        %v6391 = vadd.f32 %v6302, %v6390
        %v6392 = vpop.f32.mrf.mxu0
        %v6393 = vadd.f32 %v6304, %v6392
        %6394 = vmatmul.bf16.gmra.mxu0 %v5927
        %v6395 = vpop.f32.mrf.mxu0
        %v6396 = vadd.f32 %v6307, %v6395
        %v6397 = vpop.f32.mrf.mxu0
        %v6398 = vadd.f32 %v6309, %v6397
        %6399 = vmatmul.bf16.gmra.mxu0 %v5930
        %v6400 = vpop.f32.mrf.mxu0
        %v6401 = vadd.f32 %v6312, %v6400
        %v6402 = vpop.f32.mrf.mxu0
        %v6403 = vadd.f32 %v6314, %v6402
        %6404 = vmatmul.bf16.gmra.mxu0 %v5933
        %v6405 = vpop.f32.mrf.mxu0
        %v6406 = vadd.f32 %v6317, %v6405
        %v6407 = vpop.f32.mrf.mxu0
        %v6408 = vadd.f32 %v6319, %v6407
        %6409 = vdwg.mxu0
        %v6410 = vadd.f32 %v5389, %v6331
        %v6411 = vadd.f32 %v5390, %v6333
        %v6412 = vadd.f32 %v5391, %v6336
        %v6413 = vadd.f32 %v5392, %v6338
        %v6414 = vadd.f32 %v5393, %v6341
        %v6415 = vadd.f32 %v5394, %v6343
        %v6416 = vadd.f32 %v5395, %v6346
        %v6417 = vadd.f32 %v5396, %v6348
        %v6418 = vadd.f32 %v5397, %v6351
        %v6419 = vadd.f32 %v5398, %v6353
        %v6420 = vadd.f32 %v5399, %v6356
        %v6421 = vadd.f32 %v5400, %v6358
        %v6422 = vadd.f32 %v5401, %v6361
        %v6423 = vadd.f32 %v5402, %v6363
        %v6424 = vadd.f32 %v5403, %v6366
        %v6425 = vadd.f32 %v5404, %v6368
        %v6426 = vadd.f32 %v5405, %v6371
        %v6427 = vadd.f32 %v5406, %v6373
        %v6428 = vadd.f32 %v5407, %v6376
        %v6429 = vadd.f32 %v5408, %v6378
        %v6430 = vadd.f32 %v5409, %v6381
        %v6431 = vadd.f32 %v5410, %v6383
        %v6432 = vadd.f32 %v5411, %v6386
        %v6433 = vadd.f32 %v5412, %v6388
        %v6434 = vadd.f32 %v5413, %v6391
        %v6435 = vadd.f32 %v5414, %v6393
        %v6436 = vadd.f32 %v5415, %v6396
        %v6437 = vadd.f32 %v5416, %v6398
        %v6438 = vadd.f32 %v5417, %v6401
        %v6439 = vadd.f32 %v5418, %v6403
        %v6440 = vadd.f32 %v5419, %v6406
        %v6441 = vadd.f32 %v5420, %v6408
        %s6442 = scalar_lea.vmem [#allocation3], 24
        %v6443 = vld [vmem:[%s6442] sm:$0xf]
        %v6444 = vld [vmem:[%s6442 + $0x4] sm:$0xf]
        %v6445 = vld [vmem:[%s6442 + $0xc] sm:$0xf]
        %v6446 = vld [vmem:[%s6442 + $0x10] sm:$0xf]
        %v6447 = vld [vmem:[%s6442 + $0x18] sm:$0xf]
        %v6448 = vld [vmem:[%s6442 + $0x1c] sm:$0xf]
        %v6449 = vld [vmem:[%s6442 + $0x24] sm:$0xf]
        %v6450 = vld [vmem:[%s6442 + $0x28] sm:$0xf]
        %v6451 = vld [vmem:[%s6442 + $0x30] sm:$0xf]
        %v6452 = vld [vmem:[%s6442 + $0x34] sm:$0xf]
        %v6453 = vld [vmem:[%s6442 + $0x3c] sm:$0xf]
        %v6454 = vld [vmem:[%s6442 + $0x40] sm:$0xf]
        %v6455 = vld [vmem:[%s6442 + $0x48] sm:$0xf]
        %v6456 = vld [vmem:[%s6442 + $0x4c] sm:$0xf]
        %v6457 = vld [vmem:[%s6442 + $0x54] sm:$0xf]
        %v6458 = vld [vmem:[%s6442 + $0x58] sm:$0xf]
        %v6459 = vld [vmem:[%s6442 + $0x60] sm:$0xf]
        %v6460 = vld [vmem:[%s6442 + $0x64] sm:$0xf]
        %v6461 = vld [vmem:[%s6442 + $0x6c] sm:$0xf]
        %v6462 = vld [vmem:[%s6442 + $0x70] sm:$0xf]
        %v6463 = vld [vmem:[%s6442 + $0x78] sm:$0xf]
        %v6464 = vld [vmem:[%s6442 + $0x7c] sm:$0xf]
        %v6465 = vld [vmem:[%s6442 + $0x84] sm:$0xf]
        %v6466 = vld [vmem:[%s6442 + $0x88] sm:$0xf]
        %v6467 = vld [vmem:[%s6442 + $0x90] sm:$0xf]
        %v6468 = vld [vmem:[%s6442 + $0x94] sm:$0xf]
        %v6469 = vld [vmem:[%s6442 + $0x9c] sm:$0xf]
        %v6470 = vld [vmem:[%s6442 + $0xa0] sm:$0xf]
        %v6471 = vld [vmem:[%s6442 + $0xa8] sm:$0xf]
        %v6472 = vld [vmem:[%s6442 + $0xac] sm:$0xf]
        %v6473 = vld [vmem:[%s6442 + $0xb4] sm:$0xf]
        %v6474 = vld [vmem:[%s6442 + $0xb8] sm:$0xf]
        %v6475 = vld [vmem:[%s6442 + $0x8] sm:$0x1]
        %v6476 = vld [vmem:[%s6442 + $0x14] sm:$0x1]
        %v6477 = vld [vmem:[%s6442 + $0x20] sm:$0x1]
        %v6478 = vld [vmem:[%s6442 + $0x2c] sm:$0x1]
        %v6479 = vld [vmem:[%s6442 + $0x38] sm:$0x1]
        %v6480 = vld [vmem:[%s6442 + $0x44] sm:$0x1]
        %v6481 = vld [vmem:[%s6442 + $0x50] sm:$0x1]
        %v6482 = vld [vmem:[%s6442 + $0x5c] sm:$0x1]
        %v6483 = vld [vmem:[%s6442 + $0x68] sm:$0x1]
        %v6484 = vld [vmem:[%s6442 + $0x74] sm:$0x1]
        %v6485 = vld [vmem:[%s6442 + $0x80] sm:$0x1]
        %v6486 = vld [vmem:[%s6442 + $0x8c] sm:$0x1]
        %v6487 = vld [vmem:[%s6442 + $0x98] sm:$0x1]
        %v6488 = vld [vmem:[%s6442 + $0xa4] sm:$0x1]
        %v6489 = vld [vmem:[%s6442 + $0xb0] sm:$0x1]
        %v6490 = vld [vmem:[%s6442 + $0xbc] sm:$0x1]
        %v6491 = vld [vmem:[%s6442] sm:$0xe]
        %v6492 = vld [vmem:[%s6442 + $0xc] sm:$0xe]
        %v6493 = vld [vmem:[%s6442 + $0x18] sm:$0xe]
        %v6494 = vld [vmem:[%s6442 + $0x24] sm:$0xe]
        %v6495 = vld [vmem:[%s6442 + $0x30] sm:$0xe]
        %v6496 = vld [vmem:[%s6442 + $0x3c] sm:$0xe]
        %v6497 = vld [vmem:[%s6442 + $0x48] sm:$0xe]
        %v6498 = vld [vmem:[%s6442 + $0x54] sm:$0xe]
        %v6499 = vld [vmem:[%s6442 + $0x60] sm:$0xe]
        %v6500 = vld [vmem:[%s6442 + $0x6c] sm:$0xe]
        %v6501 = vld [vmem:[%s6442 + $0x78] sm:$0xe]
        %v6502 = vld [vmem:[%s6442 + $0x84] sm:$0xe]
        %v6503 = vld [vmem:[%s6442 + $0x90] sm:$0xe]
        %v6504 = vld [vmem:[%s6442 + $0x9c] sm:$0xe]
        %v6505 = vld [vmem:[%s6442 + $0xa8] sm:$0xe]
        %v6506 = vld [vmem:[%s6442 + $0xb4] sm:$0xe]
        %v6539 = vunpack.c.l.b16 %v6443
        %v6540 = vunpack.c.l.b16 %v6444
        %v6541 = vunpack.c.l.b16 %v6445
        %v6542 = vunpack.c.l.b16 %v6446
        %v6543 = vunpack.c.l.b16 %v6447
        %v6544 = vunpack.c.l.b16 %v6448
        %v6545 = vunpack.c.l.b16 %v6449
        %v6546 = vunpack.c.l.b16 %v6450
        %v6547 = vunpack.c.l.b16 %v6451
        %v6548 = vunpack.c.l.b16 %v6452
        %v6549 = vunpack.c.l.b16 %v6453
        %v6550 = vunpack.c.l.b16 %v6454
        %v6551 = vunpack.c.l.b16 %v6455
        %v6552 = vunpack.c.l.b16 %v6456
        %v6553 = vunpack.c.l.b16 %v6457
        %v6554 = vunpack.c.l.b16 %v6458
        %v6555 = vunpack.c.l.b16 %v6459
        %v6556 = vunpack.c.l.b16 %v6460
        %v6557 = vunpack.c.l.b16 %v6461
        %v6558 = vunpack.c.l.b16 %v6462
        %v6559 = vunpack.c.l.b16 %v6463
        %v6560 = vunpack.c.l.b16 %v6464
        %v6561 = vunpack.c.l.b16 %v6465
        %v6562 = vunpack.c.l.b16 %v6466
        %v6563 = vunpack.c.l.b16 %v6467
        %v6564 = vunpack.c.l.b16 %v6468
        %v6565 = vunpack.c.l.b16 %v6469
        %v6566 = vunpack.c.l.b16 %v6470
        %v6567 = vunpack.c.l.b16 %v6471
        %v6568 = vunpack.c.l.b16 %v6472
        %v6569 = vunpack.c.l.b16 %v6473
        %v6570 = vunpack.c.l.b16 %v6474
        %v6571 = vpack.c.b16 %v6540, %v6539
        %v6572 = vpack.c.b16 %v6542, %v6541
        %v6573 = vpack.c.b16 %v6544, %v6543
        %v6574 = vpack.c.b16 %v6546, %v6545
        %v6575 = vpack.c.b16 %v6548, %v6547
        %v6576 = vpack.c.b16 %v6550, %v6549
        %v6577 = vpack.c.b16 %v6552, %v6551
        %v6578 = vpack.c.b16 %v6554, %v6553
        %v6579 = vpack.c.b16 %v6556, %v6555
        %v6580 = vpack.c.b16 %v6558, %v6557
        %v6581 = vpack.c.b16 %v6560, %v6559
        %v6582 = vpack.c.b16 %v6562, %v6561
        %v6583 = vpack.c.b16 %v6564, %v6563
        %v6584 = vpack.c.b16 %v6566, %v6565
        %v6585 = vpack.c.b16 %v6568, %v6567
        %v6586 = vpack.c.b16 %v6570, %v6569
        %v6619 = vunpack.c.l.b16 %v6475
        %v6620 = vunpack.c.l.b16 %v6476
        %v6621 = vunpack.c.l.b16 %v6477
        %v6622 = vunpack.c.l.b16 %v6478
        %v6623 = vunpack.c.l.b16 %v6479
        %v6624 = vunpack.c.l.b16 %v6480
        %v6625 = vunpack.c.l.b16 %v6481
        %v6626 = vunpack.c.l.b16 %v6482
        %v6627 = vunpack.c.l.b16 %v6483
        %v6628 = vunpack.c.l.b16 %v6484
        %v6629 = vunpack.c.l.b16 %v6485
        %v6630 = vunpack.c.l.b16 %v6486
        %v6631 = vunpack.c.l.b16 %v6487
        %v6632 = vunpack.c.l.b16 %v6488
        %v6633 = vunpack.c.l.b16 %v6489
        %v6634 = vunpack.c.l.b16 %v6490
        %v6635 = vpack.c.b16 %v6619, %v6619
        %v6636 = vpack.c.b16 %v6620, %v6620
        %v6637 = vpack.c.b16 %v6621, %v6621
        %v6638 = vpack.c.b16 %v6622, %v6622
        %v6639 = vpack.c.b16 %v6623, %v6623
        %v6640 = vpack.c.b16 %v6624, %v6624
        %v6641 = vpack.c.b16 %v6625, %v6625
        %v6642 = vpack.c.b16 %v6626, %v6626
        %v6643 = vpack.c.b16 %v6627, %v6627
        %v6644 = vpack.c.b16 %v6628, %v6628
        %v6645 = vpack.c.b16 %v6629, %v6629
        %v6646 = vpack.c.b16 %v6630, %v6630
        %v6647 = vpack.c.b16 %v6631, %v6631
        %v6648 = vpack.c.b16 %v6632, %v6632
        %v6649 = vpack.c.b16 %v6633, %v6633
        %v6650 = vpack.c.b16 %v6634, %v6634
        %v6652 = vshrl.u32 %v6571, 16
        %v6654 = vshll.u32 %v6571, 16
        %v6656 = vrot.slane %v6654, 1
        %v6657 = vor.u32 %v6652, %v6656
        %v6659 = vshll.u32 %v6635, 16
        %v6661 = vrot.slane %v6659, 1
        %v6662 = vsel %vm1666, %v6657, %v6661
        %v6664 = vshrl.u32 %v6572, 16
        %v6666 = vshll.u32 %v6572, 16
        %v6668 = vrot.slane %v6666, 1
        %v6669 = vor.u32 %v6664, %v6668
        %v6671 = vshll.u32 %v6636, 16
        %v6673 = vrot.slane %v6671, 1
        %v6674 = vsel %vm1666, %v6669, %v6673
        %v6676 = vshrl.u32 %v6573, 16
        %v6678 = vshll.u32 %v6573, 16
        %v6680 = vrot.slane %v6678, 1
        %v6681 = vor.u32 %v6676, %v6680
        %v6683 = vshll.u32 %v6637, 16
        %v6685 = vrot.slane %v6683, 1
        %v6686 = vsel %vm1666, %v6681, %v6685
        %v6688 = vshrl.u32 %v6574, 16
        %v6690 = vshll.u32 %v6574, 16
        %v6692 = vrot.slane %v6690, 1
        %v6693 = vor.u32 %v6688, %v6692
        %v6695 = vshll.u32 %v6638, 16
        %v6697 = vrot.slane %v6695, 1
        %v6698 = vsel %vm1666, %v6693, %v6697
        %v6700 = vshrl.u32 %v6575, 16
        %v6702 = vshll.u32 %v6575, 16
        %v6704 = vrot.slane %v6702, 1
        %v6705 = vor.u32 %v6700, %v6704
        %v6707 = vshll.u32 %v6639, 16
        %v6709 = vrot.slane %v6707, 1
        %v6710 = vsel %vm1666, %v6705, %v6709
        %v6712 = vshrl.u32 %v6576, 16
        %v6714 = vshll.u32 %v6576, 16
        %v6716 = vrot.slane %v6714, 1
        %v6717 = vor.u32 %v6712, %v6716
        %v6719 = vshll.u32 %v6640, 16
        %v6721 = vrot.slane %v6719, 1
        %v6722 = vsel %vm1666, %v6717, %v6721
        %v6724 = vshrl.u32 %v6577, 16
        %v6726 = vshll.u32 %v6577, 16
        %v6728 = vrot.slane %v6726, 1
        %v6729 = vor.u32 %v6724, %v6728
        %v6731 = vshll.u32 %v6641, 16
        %v6733 = vrot.slane %v6731, 1
        %v6734 = vsel %vm1666, %v6729, %v6733
        %v6736 = vshrl.u32 %v6578, 16
        %v6738 = vshll.u32 %v6578, 16
        %v6740 = vrot.slane %v6738, 1
        %v6741 = vor.u32 %v6736, %v6740
        %v6743 = vshll.u32 %v6642, 16
        %v6745 = vrot.slane %v6743, 1
        %v6746 = vsel %vm1666, %v6741, %v6745
        %v6748 = vshrl.u32 %v6579, 16
        %v6750 = vshll.u32 %v6579, 16
        %v6752 = vrot.slane %v6750, 1
        %v6753 = vor.u32 %v6748, %v6752
        %v6755 = vshll.u32 %v6643, 16
        %v6757 = vrot.slane %v6755, 1
        %v6758 = vsel %vm1666, %v6753, %v6757
        %v6760 = vshrl.u32 %v6580, 16
        %v6762 = vshll.u32 %v6580, 16
        %v6764 = vrot.slane %v6762, 1
        %v6765 = vor.u32 %v6760, %v6764
        %v6767 = vshll.u32 %v6644, 16
        %v6769 = vrot.slane %v6767, 1
        %v6770 = vsel %vm1666, %v6765, %v6769
        %v6772 = vshrl.u32 %v6581, 16
        %v6774 = vshll.u32 %v6581, 16
        %v6776 = vrot.slane %v6774, 1
        %v6777 = vor.u32 %v6772, %v6776
        %v6779 = vshll.u32 %v6645, 16
        %v6781 = vrot.slane %v6779, 1
        %v6782 = vsel %vm1666, %v6777, %v6781
        %v6784 = vshrl.u32 %v6582, 16
        %v6786 = vshll.u32 %v6582, 16
        %v6788 = vrot.slane %v6786, 1
        %v6789 = vor.u32 %v6784, %v6788
        %v6791 = vshll.u32 %v6646, 16
        %v6793 = vrot.slane %v6791, 1
        %v6794 = vsel %vm1666, %v6789, %v6793
        %v6796 = vshrl.u32 %v6583, 16
        %v6798 = vshll.u32 %v6583, 16
        %v6800 = vrot.slane %v6798, 1
        %v6801 = vor.u32 %v6796, %v6800
        %v6803 = vshll.u32 %v6647, 16
        %v6805 = vrot.slane %v6803, 1
        %v6806 = vsel %vm1666, %v6801, %v6805
        %v6808 = vshrl.u32 %v6584, 16
        %v6810 = vshll.u32 %v6584, 16
        %v6812 = vrot.slane %v6810, 1
        %v6813 = vor.u32 %v6808, %v6812
        %v6815 = vshll.u32 %v6648, 16
        %v6817 = vrot.slane %v6815, 1
        %v6818 = vsel %vm1666, %v6813, %v6817
        %v6820 = vshrl.u32 %v6585, 16
        %v6822 = vshll.u32 %v6585, 16
        %v6824 = vrot.slane %v6822, 1
        %v6825 = vor.u32 %v6820, %v6824
        %v6827 = vshll.u32 %v6649, 16
        %v6829 = vrot.slane %v6827, 1
        %v6830 = vsel %vm1666, %v6825, %v6829
        %v6832 = vshrl.u32 %v6586, 16
        %v6834 = vshll.u32 %v6586, 16
        %v6836 = vrot.slane %v6834, 1
        %v6837 = vor.u32 %v6832, %v6836
        %v6839 = vshll.u32 %v6650, 16
        %v6841 = vrot.slane %v6839, 1
        %v6842 = vsel %vm1666, %v6837, %v6841
        %v6875 = vunpack.c.l.b16 %v6491
        %v6876 = vunpack.c.l.b16 %v6492
        %v6877 = vunpack.c.l.b16 %v6493
        %v6878 = vunpack.c.l.b16 %v6494
        %v6879 = vunpack.c.l.b16 %v6495
        %v6880 = vunpack.c.l.b16 %v6496
        %v6881 = vunpack.c.l.b16 %v6497
        %v6882 = vunpack.c.l.b16 %v6498
        %v6883 = vunpack.c.l.b16 %v6499
        %v6884 = vunpack.c.l.b16 %v6500
        %v6885 = vunpack.c.l.b16 %v6501
        %v6886 = vunpack.c.l.b16 %v6502
        %v6887 = vunpack.c.l.b16 %v6503
        %v6888 = vunpack.c.l.b16 %v6504
        %v6889 = vunpack.c.l.b16 %v6505
        %v6890 = vunpack.c.l.b16 %v6506
        %v6891 = vpack.c.b16 %v6540, %v6875
        %v6892 = vpack.c.b16 %v6542, %v6876
        %v6893 = vpack.c.b16 %v6544, %v6877
        %v6894 = vpack.c.b16 %v6546, %v6878
        %v6895 = vpack.c.b16 %v6548, %v6879
        %v6896 = vpack.c.b16 %v6550, %v6880
        %v6897 = vpack.c.b16 %v6552, %v6881
        %v6898 = vpack.c.b16 %v6554, %v6882
        %v6899 = vpack.c.b16 %v6556, %v6883
        %v6900 = vpack.c.b16 %v6558, %v6884
        %v6901 = vpack.c.b16 %v6560, %v6885
        %v6902 = vpack.c.b16 %v6562, %v6886
        %v6903 = vpack.c.b16 %v6564, %v6887
        %v6904 = vpack.c.b16 %v6566, %v6888
        %v6905 = vpack.c.b16 %v6568, %v6889
        %v6906 = vpack.c.b16 %v6570, %v6890
        %v6907 = vrot.slane %v6891, 1
        %v6908 = vrot.slane %v6635, 1
        %v6909 = vsel %vm1973, %v6907, %v6908
        %v6910 = vrot.slane %v6892, 1
        %v6911 = vrot.slane %v6636, 1
        %v6912 = vsel %vm1973, %v6910, %v6911
        %v6913 = vrot.slane %v6893, 1
        %v6914 = vrot.slane %v6637, 1
        %v6915 = vsel %vm1973, %v6913, %v6914
        %v6916 = vrot.slane %v6894, 1
        %v6917 = vrot.slane %v6638, 1
        %v6918 = vsel %vm1973, %v6916, %v6917
        %v6919 = vrot.slane %v6895, 1
        %v6920 = vrot.slane %v6639, 1
        %v6921 = vsel %vm1973, %v6919, %v6920
        %v6922 = vrot.slane %v6896, 1
        %v6923 = vrot.slane %v6640, 1
        %v6924 = vsel %vm1973, %v6922, %v6923
        %v6925 = vrot.slane %v6897, 1
        %v6926 = vrot.slane %v6641, 1
        %v6927 = vsel %vm1973, %v6925, %v6926
        %v6928 = vrot.slane %v6898, 1
        %v6929 = vrot.slane %v6642, 1
        %v6930 = vsel %vm1973, %v6928, %v6929
        %v6931 = vrot.slane %v6899, 1
        %v6932 = vrot.slane %v6643, 1
        %v6933 = vsel %vm1973, %v6931, %v6932
        %v6934 = vrot.slane %v6900, 1
        %v6935 = vrot.slane %v6644, 1
        %v6936 = vsel %vm1973, %v6934, %v6935
        %v6937 = vrot.slane %v6901, 1
        %v6938 = vrot.slane %v6645, 1
        %v6939 = vsel %vm1973, %v6937, %v6938
        %v6940 = vrot.slane %v6902, 1
        %v6941 = vrot.slane %v6646, 1
        %v6942 = vsel %vm1973, %v6940, %v6941
        %v6943 = vrot.slane %v6903, 1
        %v6944 = vrot.slane %v6647, 1
        %v6945 = vsel %vm1973, %v6943, %v6944
        %v6946 = vrot.slane %v6904, 1
        %v6947 = vrot.slane %v6648, 1
        %v6948 = vsel %vm1973, %v6946, %v6947
        %v6949 = vrot.slane %v6905, 1
        %v6950 = vrot.slane %v6649, 1
        %v6951 = vsel %vm1973, %v6949, %v6950
        %v6952 = vrot.slane %v6906, 1
        %v6953 = vrot.slane %v6650, 1
        %v6954 = vsel %vm1973, %v6952, %v6953
        %s6971 = scalar_lea.vmem [#allocation4], 384
        %v6972 = vld [vmem:[%s6971] sm:$0xf]
        %v6973 = vld [vmem:[%s6971 + $0x4] sm:$0xf]
        %v6974 = vld [vmem:[%s6971 + $0x8] sm:$0xf]
        %v6975 = vld [vmem:[%s6971 + $0xc] sm:$0xf]
        %v6976 = vld [vmem:[%s6971 + $0x10] sm:$0xf]
        %v6977 = vld [vmem:[%s6971 + $0x14] sm:$0xf]
        %v6978 = vld [vmem:[%s6971 + $0x18] sm:$0xf]
        %v6979 = vld [vmem:[%s6971 + $0x1c] sm:$0xf]
        %v6980 = vld [vmem:[%s6971 + $0x20] sm:$0xf]
        %v6981 = vld [vmem:[%s6971 + $0x24] sm:$0xf]
        %v6982 = vld [vmem:[%s6971 + $0x28] sm:$0xf]
        %v6983 = vld [vmem:[%s6971 + $0x2c] sm:$0xf]
        %v6984 = vld [vmem:[%s6971 + $0x30] sm:$0xf]
        %v6985 = vld [vmem:[%s6971 + $0x34] sm:$0xf]
        %v6986 = vld [vmem:[%s6971 + $0x38] sm:$0xf]
        %v6987 = vld [vmem:[%s6971 + $0x3c] sm:$0xf]
        %v6988 = vld [vmem:[%s6971 + $0x40] sm:$0xf]
        %v6989 = vld [vmem:[%s6971 + $0x44] sm:$0xf]
        %v6990 = vld [vmem:[%s6971 + $0x48] sm:$0xf]
        %v6991 = vld [vmem:[%s6971 + $0x4c] sm:$0xf]
        %v6992 = vld [vmem:[%s6971 + $0x50] sm:$0xf]
        %v6993 = vld [vmem:[%s6971 + $0x54] sm:$0xf]
        %v6994 = vld [vmem:[%s6971 + $0x58] sm:$0xf]
        %v6995 = vld [vmem:[%s6971 + $0x5c] sm:$0xf]
        %v6996 = vld [vmem:[%s6971 + $0x60] sm:$0xf]
        %v6997 = vld [vmem:[%s6971 + $0x64] sm:$0xf]
        %v6998 = vld [vmem:[%s6971 + $0x68] sm:$0xf]
        %v6999 = vld [vmem:[%s6971 + $0x6c] sm:$0xf]
        %v7000 = vld [vmem:[%s6971 + $0x70] sm:$0xf]
        %v7001 = vld [vmem:[%s6971 + $0x74] sm:$0xf]
        %v7002 = vld [vmem:[%s6971 + $0x78] sm:$0xf]
        %v7003 = vld [vmem:[%s6971 + $0x7c] sm:$0xf]
        %v7004 = vld [vmem:[%s6971 + $0x80] sm:$0xf]
        %v7005 = vld [vmem:[%s6971 + $0x84] sm:$0xf]
        %v7006 = vld [vmem:[%s6971 + $0x88] sm:$0xf]
        %v7007 = vld [vmem:[%s6971 + $0x8c] sm:$0xf]
        %v7008 = vld [vmem:[%s6971 + $0x90] sm:$0xf]
        %v7009 = vld [vmem:[%s6971 + $0x94] sm:$0xf]
        %v7010 = vld [vmem:[%s6971 + $0x98] sm:$0xf]
        %v7011 = vld [vmem:[%s6971 + $0x9c] sm:$0xf]
        %v7012 = vld [vmem:[%s6971 + $0xa0] sm:$0xf]
        %v7013 = vld [vmem:[%s6971 + $0xa4] sm:$0xf]
        %v7014 = vld [vmem:[%s6971 + $0xa8] sm:$0xf]
        %v7015 = vld [vmem:[%s6971 + $0xac] sm:$0xf]
        %v7016 = vld [vmem:[%s6971 + $0xb0] sm:$0xf]
        %v7017 = vld [vmem:[%s6971 + $0xb4] sm:$0xf]
        %v7018 = vld [vmem:[%s6971 + $0xb8] sm:$0xf]
        %v7019 = vld [vmem:[%s6971 + $0xbc] sm:$0xf]
        %v7068 = vunpack.c.l.b16 %v6972
        %v7069 = vunpack.c.l.b16 %v6973
        %v7070 = vunpack.c.l.b16 %v6974
        %v7071 = vunpack.c.l.b16 %v6975
        %v7072 = vunpack.c.l.b16 %v6976
        %v7073 = vunpack.c.l.b16 %v6977
        %v7074 = vunpack.c.l.b16 %v6978
        %v7075 = vunpack.c.l.b16 %v6979
        %v7076 = vunpack.c.l.b16 %v6980
        %v7077 = vunpack.c.l.b16 %v6981
        %v7078 = vunpack.c.l.b16 %v6982
        %v7079 = vunpack.c.l.b16 %v6983
        %v7080 = vunpack.c.l.b16 %v6984
        %v7081 = vunpack.c.l.b16 %v6985
        %v7082 = vunpack.c.l.b16 %v6986
        %v7083 = vunpack.c.l.b16 %v6987
        %v7084 = vunpack.c.l.b16 %v6988
        %v7085 = vunpack.c.l.b16 %v6989
        %v7086 = vunpack.c.l.b16 %v6990
        %v7087 = vunpack.c.l.b16 %v6991
        %v7088 = vunpack.c.l.b16 %v6992
        %v7089 = vunpack.c.l.b16 %v6993
        %v7090 = vunpack.c.l.b16 %v6994
        %v7091 = vunpack.c.l.b16 %v6995
        %v7092 = vunpack.c.l.b16 %v6996
        %v7093 = vunpack.c.l.b16 %v6997
        %v7094 = vunpack.c.l.b16 %v6998
        %v7095 = vunpack.c.l.b16 %v6999
        %v7096 = vunpack.c.l.b16 %v7000
        %v7097 = vunpack.c.l.b16 %v7001
        %v7098 = vunpack.c.l.b16 %v7002
        %v7099 = vunpack.c.l.b16 %v7003
        %v7100 = vunpack.c.l.b16 %v7004
        %v7101 = vunpack.c.l.b16 %v7005
        %v7102 = vunpack.c.l.b16 %v7006
        %v7103 = vunpack.c.l.b16 %v7007
        %v7104 = vunpack.c.l.b16 %v7008
        %v7105 = vunpack.c.l.b16 %v7009
        %v7106 = vunpack.c.l.b16 %v7010
        %v7107 = vunpack.c.l.b16 %v7011
        %v7108 = vunpack.c.l.b16 %v7012
        %v7109 = vunpack.c.l.b16 %v7013
        %v7110 = vunpack.c.l.b16 %v7014
        %v7111 = vunpack.c.l.b16 %v7015
        %v7112 = vunpack.c.l.b16 %v7016
        %v7113 = vunpack.c.l.b16 %v7017
        %v7114 = vunpack.c.l.b16 %v7018
        %v7115 = vunpack.c.l.b16 %v7019
        %v7116 = vpack.c.b16 %v7069, %v7068
        %v7117 = vpack.c.b16 %v7071, %v7070
        %v7118 = vpack.c.b16 %v7073, %v7072
        %v7119 = vpack.c.b16 %v7075, %v7074
        %v7120 = vpack.c.b16 %v7077, %v7076
        %v7121 = vpack.c.b16 %v7079, %v7078
        %v7122 = vpack.c.b16 %v7081, %v7080
        %v7123 = vpack.c.b16 %v7083, %v7082
        %v7124 = vpack.c.b16 %v7085, %v7084
        %v7125 = vpack.c.b16 %v7087, %v7086
        %v7126 = vpack.c.b16 %v7089, %v7088
        %v7127 = vpack.c.b16 %v7091, %v7090
        %v7128 = vpack.c.b16 %v7093, %v7092
        %v7129 = vpack.c.b16 %v7095, %v7094
        %v7130 = vpack.c.b16 %v7097, %v7096
        %v7131 = vpack.c.b16 %v7099, %v7098
        %v7132 = vpack.c.b16 %v7101, %v7100
        %v7133 = vpack.c.b16 %v7103, %v7102
        %v7134 = vpack.c.b16 %v7105, %v7104
        %v7135 = vpack.c.b16 %v7107, %v7106
        %v7136 = vpack.c.b16 %v7109, %v7108
        %v7137 = vpack.c.b16 %v7111, %v7110
        %v7138 = vpack.c.b16 %v7113, %v7112
        %v7139 = vpack.c.b16 %v7115, %v7114
        %7164 = vmatpush.bf16.msra.mxu0 %v7123
        %7165 = vmatpush.bf16.msra.mxu0 %v7122
        %7166 = vmatpush.bf16.msra.mxu0 %v7121
        %7167 = vmatpush.bf16.msra.mxu0 %v7120
        %7168 = vmatpush.bf16.msra.mxu0 %v7119
        %7169 = vmatpush.bf16.msra.mxu0 %v7118
        %7170 = vmatpush.bf16.msra.mxu0 %v7117
        %7171 = vmatpush.bf16.msra.mxu0 %v7116
        %7172 = vmatmul.bf16.gmra.mxu0 %v6571
        %v7173 = vpop.f32.mrf.mxu0
        %v7174 = vadd.f32 0.0, %v7173
        %v7175 = vpop.f32.mrf.mxu0
        %v7176 = vadd.f32 0.0, %v7175
        %7177 = vmatmul.bf16.gmra.mxu0 %v6572
        %v7178 = vpop.f32.mrf.mxu0
        %v7179 = vadd.f32 0.0, %v7178
        %v7180 = vpop.f32.mrf.mxu0
        %v7181 = vadd.f32 0.0, %v7180
        %7182 = vmatmul.bf16.gmra.mxu0 %v6573
        %v7183 = vpop.f32.mrf.mxu0
        %v7184 = vadd.f32 0.0, %v7183
        %v7185 = vpop.f32.mrf.mxu0
        %v7186 = vadd.f32 0.0, %v7185
        %7187 = vmatmul.bf16.gmra.mxu0 %v6574
        %v7188 = vpop.f32.mrf.mxu0
        %v7189 = vadd.f32 0.0, %v7188
        %v7190 = vpop.f32.mrf.mxu0
        %v7191 = vadd.f32 0.0, %v7190
        %7192 = vmatmul.bf16.gmra.mxu0 %v6575
        %v7193 = vpop.f32.mrf.mxu0
        %v7194 = vadd.f32 0.0, %v7193
        %v7195 = vpop.f32.mrf.mxu0
        %v7196 = vadd.f32 0.0, %v7195
        %7197 = vmatmul.bf16.gmra.mxu0 %v6576
        %v7198 = vpop.f32.mrf.mxu0
        %v7199 = vadd.f32 0.0, %v7198
        %v7200 = vpop.f32.mrf.mxu0
        %v7201 = vadd.f32 0.0, %v7200
        %7202 = vmatmul.bf16.gmra.mxu0 %v6577
        %v7203 = vpop.f32.mrf.mxu0
        %v7204 = vadd.f32 0.0, %v7203
        %v7205 = vpop.f32.mrf.mxu0
        %v7206 = vadd.f32 0.0, %v7205
        %7207 = vmatmul.bf16.gmra.mxu0 %v6578
        %v7208 = vpop.f32.mrf.mxu0
        %v7209 = vadd.f32 0.0, %v7208
        %v7210 = vpop.f32.mrf.mxu0
        %v7211 = vadd.f32 0.0, %v7210
        %7212 = vmatmul.bf16.gmra.mxu0 %v6579
        %v7213 = vpop.f32.mrf.mxu0
        %v7214 = vadd.f32 0.0, %v7213
        %v7215 = vpop.f32.mrf.mxu0
        %v7216 = vadd.f32 0.0, %v7215
        %7217 = vmatmul.bf16.gmra.mxu0 %v6580
        %v7218 = vpop.f32.mrf.mxu0
        %v7219 = vadd.f32 0.0, %v7218
        %v7220 = vpop.f32.mrf.mxu0
        %v7221 = vadd.f32 0.0, %v7220
        %7222 = vmatmul.bf16.gmra.mxu0 %v6581
        %v7223 = vpop.f32.mrf.mxu0
        %v7224 = vadd.f32 0.0, %v7223
        %v7225 = vpop.f32.mrf.mxu0
        %v7226 = vadd.f32 0.0, %v7225
        %7227 = vmatmul.bf16.gmra.mxu0 %v6582
        %v7228 = vpop.f32.mrf.mxu0
        %v7229 = vadd.f32 0.0, %v7228
        %v7230 = vpop.f32.mrf.mxu0
        %v7231 = vadd.f32 0.0, %v7230
        %7232 = vmatmul.bf16.gmra.mxu0 %v6583
        %v7233 = vpop.f32.mrf.mxu0
        %v7234 = vadd.f32 0.0, %v7233
        %v7235 = vpop.f32.mrf.mxu0
        %v7236 = vadd.f32 0.0, %v7235
        %7237 = vmatmul.bf16.gmra.mxu0 %v6584
        %v7238 = vpop.f32.mrf.mxu0
        %v7239 = vadd.f32 0.0, %v7238
        %v7240 = vpop.f32.mrf.mxu0
        %v7241 = vadd.f32 0.0, %v7240
        %7242 = vmatmul.bf16.gmra.mxu0 %v6585
        %v7243 = vpop.f32.mrf.mxu0
        %v7244 = vadd.f32 0.0, %v7243
        %v7245 = vpop.f32.mrf.mxu0
        %v7246 = vadd.f32 0.0, %v7245
        %7247 = vmatmul.bf16.gmra.mxu0 %v6586
        %v7248 = vpop.f32.mrf.mxu0
        %v7249 = vadd.f32 0.0, %v7248
        %v7250 = vpop.f32.mrf.mxu0
        %v7251 = vadd.f32 0.0, %v7250
        %7252 = vdwg.mxu0
        %7253 = vmatpush.bf16.msra.mxu0 %v7131
        %7254 = vmatpush.bf16.msra.mxu0 %v7130
        %7255 = vmatpush.bf16.msra.mxu0 %v7129
        %7256 = vmatpush.bf16.msra.mxu0 %v7128
        %7257 = vmatpush.bf16.msra.mxu0 %v7127
        %7258 = vmatpush.bf16.msra.mxu0 %v7126
        %7259 = vmatpush.bf16.msra.mxu0 %v7125
        %7260 = vmatpush.bf16.msra.mxu0 %v7124
        %7261 = vmatmul.bf16.gmra.mxu0 %v6662
        %v7262 = vpop.f32.mrf.mxu0
        %v7263 = vadd.f32 %v7174, %v7262
        %v7264 = vpop.f32.mrf.mxu0
        %v7265 = vadd.f32 %v7176, %v7264
        %7266 = vmatmul.bf16.gmra.mxu0 %v6674
        %v7267 = vpop.f32.mrf.mxu0
        %v7268 = vadd.f32 %v7179, %v7267
        %v7269 = vpop.f32.mrf.mxu0
        %v7270 = vadd.f32 %v7181, %v7269
        %7271 = vmatmul.bf16.gmra.mxu0 %v6686
        %v7272 = vpop.f32.mrf.mxu0
        %v7273 = vadd.f32 %v7184, %v7272
        %v7274 = vpop.f32.mrf.mxu0
        %v7275 = vadd.f32 %v7186, %v7274
        %7276 = vmatmul.bf16.gmra.mxu0 %v6698
        %v7277 = vpop.f32.mrf.mxu0
        %v7278 = vadd.f32 %v7189, %v7277
        %v7279 = vpop.f32.mrf.mxu0
        %v7280 = vadd.f32 %v7191, %v7279
        %7281 = vmatmul.bf16.gmra.mxu0 %v6710
        %v7282 = vpop.f32.mrf.mxu0
        %v7283 = vadd.f32 %v7194, %v7282
        %v7284 = vpop.f32.mrf.mxu0
        %v7285 = vadd.f32 %v7196, %v7284
        %7286 = vmatmul.bf16.gmra.mxu0 %v6722
        %v7287 = vpop.f32.mrf.mxu0
        %v7288 = vadd.f32 %v7199, %v7287
        %v7289 = vpop.f32.mrf.mxu0
        %v7290 = vadd.f32 %v7201, %v7289
        %7291 = vmatmul.bf16.gmra.mxu0 %v6734
        %v7292 = vpop.f32.mrf.mxu0
        %v7293 = vadd.f32 %v7204, %v7292
        %v7294 = vpop.f32.mrf.mxu0
        %v7295 = vadd.f32 %v7206, %v7294
        %7296 = vmatmul.bf16.gmra.mxu0 %v6746
        %v7297 = vpop.f32.mrf.mxu0
        %v7298 = vadd.f32 %v7209, %v7297
        %v7299 = vpop.f32.mrf.mxu0
        %v7300 = vadd.f32 %v7211, %v7299
        %7301 = vmatmul.bf16.gmra.mxu0 %v6758
        %v7302 = vpop.f32.mrf.mxu0
        %v7303 = vadd.f32 %v7214, %v7302
        %v7304 = vpop.f32.mrf.mxu0
        %v7305 = vadd.f32 %v7216, %v7304
        %7306 = vmatmul.bf16.gmra.mxu0 %v6770
        %v7307 = vpop.f32.mrf.mxu0
        %v7308 = vadd.f32 %v7219, %v7307
        %v7309 = vpop.f32.mrf.mxu0
        %v7310 = vadd.f32 %v7221, %v7309
        %7311 = vmatmul.bf16.gmra.mxu0 %v6782
        %v7312 = vpop.f32.mrf.mxu0
        %v7313 = vadd.f32 %v7224, %v7312
        %v7314 = vpop.f32.mrf.mxu0
        %v7315 = vadd.f32 %v7226, %v7314
        %7316 = vmatmul.bf16.gmra.mxu0 %v6794
        %v7317 = vpop.f32.mrf.mxu0
        %v7318 = vadd.f32 %v7229, %v7317
        %v7319 = vpop.f32.mrf.mxu0
        %v7320 = vadd.f32 %v7231, %v7319
        %7321 = vmatmul.bf16.gmra.mxu0 %v6806
        %v7322 = vpop.f32.mrf.mxu0
        %v7323 = vadd.f32 %v7234, %v7322
        %v7324 = vpop.f32.mrf.mxu0
        %v7325 = vadd.f32 %v7236, %v7324
        %7326 = vmatmul.bf16.gmra.mxu0 %v6818
        %v7327 = vpop.f32.mrf.mxu0
        %v7328 = vadd.f32 %v7239, %v7327
        %v7329 = vpop.f32.mrf.mxu0
        %v7330 = vadd.f32 %v7241, %v7329
        %7331 = vmatmul.bf16.gmra.mxu0 %v6830
        %v7332 = vpop.f32.mrf.mxu0
        %v7333 = vadd.f32 %v7244, %v7332
        %v7334 = vpop.f32.mrf.mxu0
        %v7335 = vadd.f32 %v7246, %v7334
        %7336 = vmatmul.bf16.gmra.mxu0 %v6842
        %v7337 = vpop.f32.mrf.mxu0
        %v7338 = vadd.f32 %v7249, %v7337
        %v7339 = vpop.f32.mrf.mxu0
        %v7340 = vadd.f32 %v7251, %v7339
        %7341 = vdwg.mxu0
        %7342 = vmatpush.bf16.msra.mxu0 %v7139
        %7343 = vmatpush.bf16.msra.mxu0 %v7138
        %7344 = vmatpush.bf16.msra.mxu0 %v7137
        %7345 = vmatpush.bf16.msra.mxu0 %v7136
        %7346 = vmatpush.bf16.msra.mxu0 %v7135
        %7347 = vmatpush.bf16.msra.mxu0 %v7134
        %7348 = vmatpush.bf16.msra.mxu0 %v7133
        %7349 = vmatpush.bf16.msra.mxu0 %v7132
        %7350 = vmatmul.bf16.gmra.mxu0 %v6909
        %v7351 = vpop.f32.mrf.mxu0
        %v7352 = vadd.f32 %v7263, %v7351
        %v7353 = vpop.f32.mrf.mxu0
        %v7354 = vadd.f32 %v7265, %v7353
        %7355 = vmatmul.bf16.gmra.mxu0 %v6912
        %v7356 = vpop.f32.mrf.mxu0
        %v7357 = vadd.f32 %v7268, %v7356
        %v7358 = vpop.f32.mrf.mxu0
        %v7359 = vadd.f32 %v7270, %v7358
        %7360 = vmatmul.bf16.gmra.mxu0 %v6915
        %v7361 = vpop.f32.mrf.mxu0
        %v7362 = vadd.f32 %v7273, %v7361
        %v7363 = vpop.f32.mrf.mxu0
        %v7364 = vadd.f32 %v7275, %v7363
        %7365 = vmatmul.bf16.gmra.mxu0 %v6918
        %v7366 = vpop.f32.mrf.mxu0
        %v7367 = vadd.f32 %v7278, %v7366
        %v7368 = vpop.f32.mrf.mxu0
        %v7369 = vadd.f32 %v7280, %v7368
        %7370 = vmatmul.bf16.gmra.mxu0 %v6921
        %v7371 = vpop.f32.mrf.mxu0
        %v7372 = vadd.f32 %v7283, %v7371
        %v7373 = vpop.f32.mrf.mxu0
        %v7374 = vadd.f32 %v7285, %v7373
        %7375 = vmatmul.bf16.gmra.mxu0 %v6924
        %v7376 = vpop.f32.mrf.mxu0
        %v7377 = vadd.f32 %v7288, %v7376
        %v7378 = vpop.f32.mrf.mxu0
        %v7379 = vadd.f32 %v7290, %v7378
        %7380 = vmatmul.bf16.gmra.mxu0 %v6927
        %v7381 = vpop.f32.mrf.mxu0
        %v7382 = vadd.f32 %v7293, %v7381
        %v7383 = vpop.f32.mrf.mxu0
        %v7384 = vadd.f32 %v7295, %v7383
        %7385 = vmatmul.bf16.gmra.mxu0 %v6930
        %v7386 = vpop.f32.mrf.mxu0
        %v7387 = vadd.f32 %v7298, %v7386
        %v7388 = vpop.f32.mrf.mxu0
        %v7389 = vadd.f32 %v7300, %v7388
        %7390 = vmatmul.bf16.gmra.mxu0 %v6933
        %v7391 = vpop.f32.mrf.mxu0
        %v7392 = vadd.f32 %v7303, %v7391
        %v7393 = vpop.f32.mrf.mxu0
        %v7394 = vadd.f32 %v7305, %v7393
        %7395 = vmatmul.bf16.gmra.mxu0 %v6936
        %v7396 = vpop.f32.mrf.mxu0
        %v7397 = vadd.f32 %v7308, %v7396
        %v7398 = vpop.f32.mrf.mxu0
        %v7399 = vadd.f32 %v7310, %v7398
        %7400 = vmatmul.bf16.gmra.mxu0 %v6939
        %v7401 = vpop.f32.mrf.mxu0
        %v7402 = vadd.f32 %v7313, %v7401
        %v7403 = vpop.f32.mrf.mxu0
        %v7404 = vadd.f32 %v7315, %v7403
        %7405 = vmatmul.bf16.gmra.mxu0 %v6942
        %v7406 = vpop.f32.mrf.mxu0
        %v7407 = vadd.f32 %v7318, %v7406
        %v7408 = vpop.f32.mrf.mxu0
        %v7409 = vadd.f32 %v7320, %v7408
        %7410 = vmatmul.bf16.gmra.mxu0 %v6945
        %v7411 = vpop.f32.mrf.mxu0
        %v7412 = vadd.f32 %v7323, %v7411
        %v7413 = vpop.f32.mrf.mxu0
        %v7414 = vadd.f32 %v7325, %v7413
        %7415 = vmatmul.bf16.gmra.mxu0 %v6948
        %v7416 = vpop.f32.mrf.mxu0
        %v7417 = vadd.f32 %v7328, %v7416
        %v7418 = vpop.f32.mrf.mxu0
        %v7419 = vadd.f32 %v7330, %v7418
        %7420 = vmatmul.bf16.gmra.mxu0 %v6951
        %v7421 = vpop.f32.mrf.mxu0
        %v7422 = vadd.f32 %v7333, %v7421
        %v7423 = vpop.f32.mrf.mxu0
        %v7424 = vadd.f32 %v7335, %v7423
        %7425 = vmatmul.bf16.gmra.mxu0 %v6954
        %v7426 = vpop.f32.mrf.mxu0
        %v7427 = vadd.f32 %v7338, %v7426
        %v7428 = vpop.f32.mrf.mxu0
        %v7429 = vadd.f32 %v7340, %v7428
        %7430 = vdwg.mxu0
        %v7431 = vadd.f32 %v6410, %v7352
        %v7432 = vadd.f32 %v6411, %v7354
        %v7433 = vadd.f32 %v6412, %v7357
        %v7434 = vadd.f32 %v6413, %v7359
        %v7435 = vadd.f32 %v6414, %v7362
        %v7436 = vadd.f32 %v6415, %v7364
        %v7437 = vadd.f32 %v6416, %v7367
        %v7438 = vadd.f32 %v6417, %v7369
        %v7439 = vadd.f32 %v6418, %v7372
        %v7440 = vadd.f32 %v6419, %v7374
        %v7441 = vadd.f32 %v6420, %v7377
        %v7442 = vadd.f32 %v6421, %v7379
        %v7443 = vadd.f32 %v6422, %v7382
        %v7444 = vadd.f32 %v6423, %v7384
        %v7445 = vadd.f32 %v6424, %v7387
        %v7446 = vadd.f32 %v6425, %v7389
        %v7447 = vadd.f32 %v6426, %v7392
        %v7448 = vadd.f32 %v6427, %v7394
        %v7449 = vadd.f32 %v6428, %v7397
        %v7450 = vadd.f32 %v6429, %v7399
        %v7451 = vadd.f32 %v6430, %v7402
        %v7452 = vadd.f32 %v6431, %v7404
        %v7453 = vadd.f32 %v6432, %v7407
        %v7454 = vadd.f32 %v6433, %v7409
        %v7455 = vadd.f32 %v6434, %v7412
        %v7456 = vadd.f32 %v6435, %v7414
        %v7457 = vadd.f32 %v6436, %v7417
        %v7458 = vadd.f32 %v6437, %v7419
        %v7459 = vadd.f32 %v6438, %v7422
        %v7460 = vadd.f32 %v6439, %v7424
        %v7461 = vadd.f32 %v6440, %v7427
        %v7462 = vadd.f32 %v6441, %v7429
        %s7463 = smul.u32 %s345, 2
        %s7464 = smul.addr %s7463, 4
        %s7465 = scalar_lea.vmem %s280, %s7464
        %v7466 = vld [vmem:[%s7465] sm:$0xf]
        %v7467 = vld [vmem:[%s7465 + $0x4] sm:$0xf]
        %v7468 = vld [vmem:[%s7465 + $0x8] sm:$0xf]
        %v7469 = vld [vmem:[%s7465 + $0xc] sm:$0xf]
        %v7470 = vld [vmem:[%s7465 + $0x10] sm:$0xf]
        %v7471 = vld [vmem:[%s7465 + $0x14] sm:$0xf]
        %v7472 = vld [vmem:[%s7465 + $0x18] sm:$0xf]
        %v7473 = vld [vmem:[%s7465 + $0x1c] sm:$0xf]
        %v7474 = vld [vmem:[%s7465 + $0x20] sm:$0xf]
        %v7475 = vld [vmem:[%s7465 + $0x24] sm:$0xf]
        %v7476 = vld [vmem:[%s7465 + $0x28] sm:$0xf]
        %v7477 = vld [vmem:[%s7465 + $0x2c] sm:$0xf]
        %v7478 = vld [vmem:[%s7465 + $0x30] sm:$0xf]
        %v7479 = vld [vmem:[%s7465 + $0x34] sm:$0xf]
        %v7480 = vld [vmem:[%s7465 + $0x38] sm:$0xf]
        %v7481 = vld [vmem:[%s7465 + $0x3c] sm:$0xf]
        %v7482 = vld [vmem:[%s7465 + $0x40] sm:$0xf]
        %v7483 = vld [vmem:[%s7465 + $0x44] sm:$0xf]
        %v7484 = vld [vmem:[%s7465 + $0x48] sm:$0xf]
        %v7485 = vld [vmem:[%s7465 + $0x4c] sm:$0xf]
        %v7486 = vld [vmem:[%s7465 + $0x50] sm:$0xf]
        %v7487 = vld [vmem:[%s7465 + $0x54] sm:$0xf]
        %v7488 = vld [vmem:[%s7465 + $0x58] sm:$0xf]
        %v7489 = vld [vmem:[%s7465 + $0x5c] sm:$0xf]
        %v7490 = vld [vmem:[%s7465 + $0x60] sm:$0xf]
        %v7491 = vld [vmem:[%s7465 + $0x64] sm:$0xf]
        %v7492 = vld [vmem:[%s7465 + $0x68] sm:$0xf]
        %v7493 = vld [vmem:[%s7465 + $0x6c] sm:$0xf]
        %v7494 = vld [vmem:[%s7465 + $0x70] sm:$0xf]
        %v7495 = vld [vmem:[%s7465 + $0x74] sm:$0xf]
        %v7496 = vld [vmem:[%s7465 + $0x78] sm:$0xf]
        %v7497 = vld [vmem:[%s7465 + $0x7c] sm:$0xf]
        %v7498 = vld [vmem:[%s5] sm:$0x3]
        %v7531 = vunpack.c.l.b16 %v7466
        %v7532 = vunpack.c.l.b16 %v7467
        %v7533 = vunpack.c.l.b16 %v7468
        %v7534 = vunpack.c.l.b16 %v7469
        %v7535 = vunpack.c.l.b16 %v7470
        %v7536 = vunpack.c.l.b16 %v7471
        %v7537 = vunpack.c.l.b16 %v7472
        %v7538 = vunpack.c.l.b16 %v7473
        %v7539 = vunpack.c.l.b16 %v7474
        %v7540 = vunpack.c.l.b16 %v7475
        %v7541 = vunpack.c.l.b16 %v7476
        %v7542 = vunpack.c.l.b16 %v7477
        %v7543 = vunpack.c.l.b16 %v7478
        %v7544 = vunpack.c.l.b16 %v7479
        %v7545 = vunpack.c.l.b16 %v7480
        %v7546 = vunpack.c.l.b16 %v7481
        %v7547 = vunpack.c.l.b16 %v7482
        %v7548 = vunpack.c.l.b16 %v7483
        %v7549 = vunpack.c.l.b16 %v7484
        %v7550 = vunpack.c.l.b16 %v7485
        %v7551 = vunpack.c.l.b16 %v7486
        %v7552 = vunpack.c.l.b16 %v7487
        %v7553 = vunpack.c.l.b16 %v7488
        %v7554 = vunpack.c.l.b16 %v7489
        %v7555 = vunpack.c.l.b16 %v7490
        %v7556 = vunpack.c.l.b16 %v7491
        %v7557 = vunpack.c.l.b16 %v7492
        %v7558 = vunpack.c.l.b16 %v7493
        %v7559 = vunpack.c.l.b16 %v7494
        %v7560 = vunpack.c.l.b16 %v7495
        %v7561 = vunpack.c.l.b16 %v7496
        %v7562 = vunpack.c.l.b16 %v7497
        %v7563 = vpack.c.b16 %v7532, %v7531
        %v7564 = vpack.c.b16 %v7534, %v7533
        %v7565 = vpack.c.b16 %v7536, %v7535
        %v7566 = vpack.c.b16 %v7538, %v7537
        %v7567 = vpack.c.b16 %v7540, %v7539
        %v7568 = vpack.c.b16 %v7542, %v7541
        %v7569 = vpack.c.b16 %v7544, %v7543
        %v7570 = vpack.c.b16 %v7546, %v7545
        %v7571 = vpack.c.b16 %v7548, %v7547
        %v7572 = vpack.c.b16 %v7550, %v7549
        %v7573 = vpack.c.b16 %v7552, %v7551
        %v7574 = vpack.c.b16 %v7554, %v7553
        %v7575 = vpack.c.b16 %v7556, %v7555
        %v7576 = vpack.c.b16 %v7558, %v7557
        %v7577 = vpack.c.b16 %v7560, %v7559
        %v7578 = vpack.c.b16 %v7562, %v7561
        %v7580 = vsel %vm3216, %v7563, 0
        %v7583 = vsel %vm3216, %v7564, 0
        %v7586 = vsel %vm3216, %v7565, 0
        %v7589 = vsel %vm3216, %v7566, 0
        %v7592 = vsel %vm3216, %v7567, 0
        %v7595 = vsel %vm3216, %v7568, 0
        %v7598 = vsel %vm3216, %v7569, 0
        %v7601 = vsel %vm3216, %v7570, 0
        %v7604 = vsel %vm3216, %v7571, 0
        %v7607 = vsel %vm3216, %v7572, 0
        %v7610 = vsel %vm3216, %v7573, 0
        %v7613 = vsel %vm3216, %v7574, 0
        %v7616 = vsel %vm3216, %v7575, 0
        %v7619 = vsel %vm3216, %v7576, 0
        %v7622 = vsel %vm3216, %v7577, 0
        %v7625 = vsel %vm3216, %v7578, 0
        %v7628 = vsel %vm3573, %v7498, 0
        %7630 = vmatpush.bf16.msra.mxu0 0
        %7631 = vmatpush.bf16.msra.mxu0 0
        %7632 = vmatpush.bf16.msra.mxu0 0
        %7633 = vmatpush.bf16.msra.mxu0 0
        %7634 = vmatpush.bf16.msra.mxu0 0
        %7635 = vmatpush.bf16.msra.mxu0 0
        %7636 = vmatpush.bf16.msra.mxu0 0
        %7637 = vmatpush.bf16.msra.mxu0 %v7628
        %7638 = vmatmul.bf16.gmra.mxu0 %v7580
        %v7639 = vpop.f32.mrf.mxu0
        %v7640 = vadd.f32 0.0, %v7639
        %v7641 = vpop.f32.mrf.mxu0
        %v7642 = vadd.f32 0.0, %v7641
        %7643 = vmatmul.bf16.gmra.mxu0 %v7583
        %v7644 = vpop.f32.mrf.mxu0
        %v7645 = vadd.f32 0.0, %v7644
        %v7646 = vpop.f32.mrf.mxu0
        %v7647 = vadd.f32 0.0, %v7646
        %7648 = vmatmul.bf16.gmra.mxu0 %v7586
        %v7649 = vpop.f32.mrf.mxu0
        %v7650 = vadd.f32 0.0, %v7649
        %v7651 = vpop.f32.mrf.mxu0
        %v7652 = vadd.f32 0.0, %v7651
        %7653 = vmatmul.bf16.gmra.mxu0 %v7589
        %v7654 = vpop.f32.mrf.mxu0
        %v7655 = vadd.f32 0.0, %v7654
        %v7656 = vpop.f32.mrf.mxu0
        %v7657 = vadd.f32 0.0, %v7656
        %7658 = vmatmul.bf16.gmra.mxu0 %v7592
        %v7659 = vpop.f32.mrf.mxu0
        %v7660 = vadd.f32 0.0, %v7659
        %v7661 = vpop.f32.mrf.mxu0
        %v7662 = vadd.f32 0.0, %v7661
        %7663 = vmatmul.bf16.gmra.mxu0 %v7595
        %v7664 = vpop.f32.mrf.mxu0
        %v7665 = vadd.f32 0.0, %v7664
        %v7666 = vpop.f32.mrf.mxu0
        %v7667 = vadd.f32 0.0, %v7666
        %7668 = vmatmul.bf16.gmra.mxu0 %v7598
        %v7669 = vpop.f32.mrf.mxu0
        %v7670 = vadd.f32 0.0, %v7669
        %v7671 = vpop.f32.mrf.mxu0
        %v7672 = vadd.f32 0.0, %v7671
        %7673 = vmatmul.bf16.gmra.mxu0 %v7601
        %v7674 = vpop.f32.mrf.mxu0
        %v7675 = vadd.f32 0.0, %v7674
        %v7676 = vpop.f32.mrf.mxu0
        %v7677 = vadd.f32 0.0, %v7676
        %7678 = vmatmul.bf16.gmra.mxu0 %v7604
        %v7679 = vpop.f32.mrf.mxu0
        %v7680 = vadd.f32 0.0, %v7679
        %v7681 = vpop.f32.mrf.mxu0
        %v7682 = vadd.f32 0.0, %v7681
        %7683 = vmatmul.bf16.gmra.mxu0 %v7607
        %v7684 = vpop.f32.mrf.mxu0
        %v7685 = vadd.f32 0.0, %v7684
        %v7686 = vpop.f32.mrf.mxu0
        %v7687 = vadd.f32 0.0, %v7686
        %7688 = vmatmul.bf16.gmra.mxu0 %v7610
        %v7689 = vpop.f32.mrf.mxu0
        %v7690 = vadd.f32 0.0, %v7689
        %v7691 = vpop.f32.mrf.mxu0
        %v7692 = vadd.f32 0.0, %v7691
        %7693 = vmatmul.bf16.gmra.mxu0 %v7613
        %v7694 = vpop.f32.mrf.mxu0
        %v7695 = vadd.f32 0.0, %v7694
        %v7696 = vpop.f32.mrf.mxu0
        %v7697 = vadd.f32 0.0, %v7696
        %7698 = vmatmul.bf16.gmra.mxu0 %v7616
        %v7699 = vpop.f32.mrf.mxu0
        %v7700 = vadd.f32 0.0, %v7699
        %v7701 = vpop.f32.mrf.mxu0
        %v7702 = vadd.f32 0.0, %v7701
        %7703 = vmatmul.bf16.gmra.mxu0 %v7619
        %v7704 = vpop.f32.mrf.mxu0
        %v7705 = vadd.f32 0.0, %v7704
        %v7706 = vpop.f32.mrf.mxu0
        %v7707 = vadd.f32 0.0, %v7706
        %7708 = vmatmul.bf16.gmra.mxu0 %v7622
        %v7709 = vpop.f32.mrf.mxu0
        %v7710 = vadd.f32 0.0, %v7709
        %v7711 = vpop.f32.mrf.mxu0
        %v7712 = vadd.f32 0.0, %v7711
        %7713 = vmatmul.bf16.gmra.mxu0 %v7625
        %v7714 = vpop.f32.mrf.mxu0
        %v7715 = vadd.f32 0.0, %v7714
        %v7716 = vpop.f32.mrf.mxu0
        %v7717 = vadd.f32 0.0, %v7716
        %7718 = vdwg.mxu0
        %v7719 = vadd.f32 %v7431, %v7640
        %v7720 = vadd.f32 %v7432, %v7642
        %v7721 = vadd.f32 %v7433, %v7645
        %v7722 = vadd.f32 %v7434, %v7647
        %v7723 = vadd.f32 %v7435, %v7650
        %v7724 = vadd.f32 %v7436, %v7652
        %v7725 = vadd.f32 %v7437, %v7655
        %v7726 = vadd.f32 %v7438, %v7657
        %v7727 = vadd.f32 %v7439, %v7660
        %v7728 = vadd.f32 %v7440, %v7662
        %v7729 = vadd.f32 %v7441, %v7665
        %v7730 = vadd.f32 %v7442, %v7667
        %v7731 = vadd.f32 %v7443, %v7670
        %v7732 = vadd.f32 %v7444, %v7672
        %v7733 = vadd.f32 %v7445, %v7675
        %v7734 = vadd.f32 %v7446, %v7677
        %v7735 = vadd.f32 %v7447, %v7680
        %v7736 = vadd.f32 %v7448, %v7682
        %v7737 = vadd.f32 %v7449, %v7685
        %v7738 = vadd.f32 %v7450, %v7687
        %v7739 = vadd.f32 %v7451, %v7690
        %v7740 = vadd.f32 %v7452, %v7692
        %v7741 = vadd.f32 %v7453, %v7695
        %v7742 = vadd.f32 %v7454, %v7697
        %v7743 = vadd.f32 %v7455, %v7700
        %v7744 = vadd.f32 %v7456, %v7702
        %v7745 = vadd.f32 %v7457, %v7705
        %v7746 = vadd.f32 %v7458, %v7707
        %v7747 = vadd.f32 %v7459, %v7710
        %v7748 = vadd.f32 %v7460, %v7712
        %v7749 = vadd.f32 %v7461, %v7715
        %v7750 = vadd.f32 %v7462, %v7717
        %v7751 = vmax.f32 %v7719, 0.0
        %v7752 = vmax.f32 %v7720, 0.0
        %v7753 = vmax.f32 %v7721, 0.0
        %v7754 = vmax.f32 %v7722, 0.0
        %v7755 = vmax.f32 %v7723, 0.0
        %v7756 = vmax.f32 %v7724, 0.0
        %v7757 = vmax.f32 %v7725, 0.0
        %v7758 = vmax.f32 %v7726, 0.0
        %v7759 = vmax.f32 %v7727, 0.0
        %v7760 = vmax.f32 %v7728, 0.0
        %v7761 = vmax.f32 %v7729, 0.0
        %v7762 = vmax.f32 %v7730, 0.0
        %v7763 = vmax.f32 %v7731, 0.0
        %v7764 = vmax.f32 %v7732, 0.0
        %v7765 = vmax.f32 %v7733, 0.0
        %v7766 = vmax.f32 %v7734, 0.0
        %v7767 = vmax.f32 %v7735, 0.0
        %v7768 = vmax.f32 %v7736, 0.0
        %v7769 = vmax.f32 %v7737, 0.0
        %v7770 = vmax.f32 %v7738, 0.0
        %v7771 = vmax.f32 %v7739, 0.0
        %v7772 = vmax.f32 %v7740, 0.0
        %v7773 = vmax.f32 %v7741, 0.0
        %v7774 = vmax.f32 %v7742, 0.0
        %v7775 = vmax.f32 %v7743, 0.0
        %v7776 = vmax.f32 %v7744, 0.0
        %v7777 = vmax.f32 %v7745, 0.0
        %v7778 = vmax.f32 %v7746, 0.0
        %v7779 = vmax.f32 %v7747, 0.0
        %v7780 = vmax.f32 %v7748, 0.0
        %v7781 = vmax.f32 %v7749, 0.0
        %v7782 = vmax.f32 %v7750, 0.0
        %v7783 = vpack.c.bf16 %v7751, %v7751
        %v7784 = vpack.c.bf16 %v7752, %v7752
        %v7785 = vpack.c.bf16 %v7753, %v7753
        %v7786 = vpack.c.bf16 %v7754, %v7754
        %v7787 = vpack.c.bf16 %v7755, %v7755
        %v7788 = vpack.c.bf16 %v7756, %v7756
        %v7789 = vpack.c.bf16 %v7757, %v7757
        %v7790 = vpack.c.bf16 %v7758, %v7758
        %v7791 = vpack.c.bf16 %v7759, %v7759
        %v7792 = vpack.c.bf16 %v7760, %v7760
        %v7793 = vpack.c.bf16 %v7761, %v7761
        %v7794 = vpack.c.bf16 %v7762, %v7762
        %v7795 = vpack.c.bf16 %v7763, %v7763
        %v7796 = vpack.c.bf16 %v7764, %v7764
        %v7797 = vpack.c.bf16 %v7765, %v7765
        %v7798 = vpack.c.bf16 %v7766, %v7766
        %v7799 = vpack.c.bf16 %v7767, %v7767
        %v7800 = vpack.c.bf16 %v7768, %v7768
        %v7801 = vpack.c.bf16 %v7769, %v7769
        %v7802 = vpack.c.bf16 %v7770, %v7770
        %v7803 = vpack.c.bf16 %v7771, %v7771
        %v7804 = vpack.c.bf16 %v7772, %v7772
        %v7805 = vpack.c.bf16 %v7773, %v7773
        %v7806 = vpack.c.bf16 %v7774, %v7774
        %v7807 = vpack.c.bf16 %v7775, %v7775
        %v7808 = vpack.c.bf16 %v7776, %v7776
        %v7809 = vpack.c.bf16 %v7777, %v7777
        %v7810 = vpack.c.bf16 %v7778, %v7778
        %v7811 = vpack.c.bf16 %v7779, %v7779
        %v7812 = vpack.c.bf16 %v7780, %v7780
        %v7813 = vpack.c.bf16 %v7781, %v7781
        %v7814 = vpack.c.bf16 %v7782, %v7782
        %7815 = vst [vmem:[%s275] sm:$0xf] %v7783
        %7816 = vst [vmem:[%s275 + $0x4] sm:$0xf] %v7784
        %7817 = vst [vmem:[%s275 + $0x8] sm:$0xf] %v7785
        %7818 = vst [vmem:[%s275 + $0xc] sm:$0xf] %v7786
        %7819 = vst [vmem:[%s275 + $0x10] sm:$0xf] %v7787
        %7820 = vst [vmem:[%s275 + $0x14] sm:$0xf] %v7788
        %7821 = vst [vmem:[%s275 + $0x18] sm:$0xf] %v7789
        %7822 = vst [vmem:[%s275 + $0x1c] sm:$0xf] %v7790
        %7823 = vst [vmem:[%s275 + $0x20] sm:$0xf] %v7791
        %7824 = vst [vmem:[%s275 + $0x24] sm:$0xf] %v7792
        %7825 = vst [vmem:[%s275 + $0x28] sm:$0xf] %v7793
        %7826 = vst [vmem:[%s275 + $0x2c] sm:$0xf] %v7794
        %7827 = vst [vmem:[%s275 + $0x30] sm:$0xf] %v7795
        %7828 = vst [vmem:[%s275 + $0x34] sm:$0xf] %v7796
        %7829 = vst [vmem:[%s275 + $0x38] sm:$0xf] %v7797
        %7830 = vst [vmem:[%s275 + $0x3c] sm:$0xf] %v7798
        %7831 = vst [vmem:[%s275 + $0x40] sm:$0xf] %v7799
        %7832 = vst [vmem:[%s275 + $0x44] sm:$0xf] %v7800
        %7833 = vst [vmem:[%s275 + $0x48] sm:$0xf] %v7801
        %7834 = vst [vmem:[%s275 + $0x4c] sm:$0xf] %v7802
        %7835 = vst [vmem:[%s275 + $0x50] sm:$0xf] %v7803
        %7836 = vst [vmem:[%s275 + $0x54] sm:$0xf] %v7804
        %7837 = vst [vmem:[%s275 + $0x58] sm:$0xf] %v7805
        %7838 = vst [vmem:[%s275 + $0x5c] sm:$0xf] %v7806
        %7839 = vst [vmem:[%s275 + $0x60] sm:$0xf] %v7807
        %7840 = vst [vmem:[%s275 + $0x64] sm:$0xf] %v7808
        %7841 = vst [vmem:[%s275 + $0x68] sm:$0xf] %v7809
        %7842 = vst [vmem:[%s275 + $0x6c] sm:$0xf] %v7810
        %7843 = vst [vmem:[%s275 + $0x70] sm:$0xf] %v7811
        %7844 = vst [vmem:[%s275 + $0x74] sm:$0xf] %v7812
        %7845 = vst [vmem:[%s275 + $0x78] sm:$0xf] %v7813
        %7846 = vst [vmem:[%s275 + $0x7c] sm:$0xf] %v7814
        %s7847 = sand.u32 %s174, 1
        %s7848 = scalar_lea.sflag [#allocation6], %s7847
        %s7849 = sand.u32 %s174, 1
        %s7850 = smul.addr %s7849, 128
        %s7851 = scalar_lea.vmem [#allocation7], %s7850
        // Predicated region
        $region133: #{tpu_custom_call.1} parent=43 // pred_check
          %p7852 = pneg %p184
        $region134: #{tpu_custom_call.1} parent=43 // pred_check_branch
          %7854 = sbr.rel (%p7852) target = $region136
        $region135: #{tpu_custom_call.1} parent=43 // pred_region
          %s7855 = smul.u32 16, %s26
          %7857 = vsyncadd %s7848, 0
          %s7858 = smul.addr %s7855, 2
          %s7859 = smul.addr %s25, 32
          %s7860 = sadd.s32 %s7858, %s7859
          %s7861 = smul.addr %s7860, 4
          %s7862 = scalar_lea.hbm %s6, %s7861
          %s7863 = sshll.u32 %s7851, 4
          %s7864 = int_to_ptr.vmem [resolvable:$true] %s7863
          %s7865 = sshll.u32 %s7862, 4
          %s7866 = int_to_ptr.hbm [resolvable:$true] %s7865
          %7871 = dma.vmem_to_hbm [thread:$0]  %s7864, 2048, %s7866, %s7848, 64, 64, 4
        $region136: #{tpu_custom_call.1} parent=43 // pred_fallthru
          _
      $region44: #{tpu_custom_call.1} parent=5 // pred_fallthru
        _
      %p7872 = scmp.le.s32.totalorder 2, %s16
      // Predicated region
      $region137: #{tpu_custom_call.1} parent=5 // pred_check
        %p7873 = pneg %p7872
      $region138: #{tpu_custom_call.1} parent=5 // pred_check_branch
        %7875 = sbr.rel (%p7873) target = $region140
      $region139: #{tpu_custom_call.1} parent=5 // pred_region
        %s7876 = ssub.s32 %s16, 2
        // Predicated region
        $region141: #{tpu_custom_call.1} parent=139 // pred_check
          %p7877 = pneg %p190
        $region142: #{tpu_custom_call.1} parent=139 // pred_check_branch
          %7879 = sbr.rel (%p7877) target = $region144
        $region143: #{tpu_custom_call.1} parent=139 // pred_region
          %s7880 = sand.u32 %s175, 1
          %s7881 = scalar_lea.sflag [#allocation6], %s7880
          %s7882 = sand.u32 %s175, 1
          %s7883 = smul.addr %s7882, 128
          %s7884 = scalar_lea.vmem [#allocation7], %s7883
          %7886 = dma.done %s7881, 2048
        $region144: #{tpu_custom_call.1} parent=139 // pred_fallthru
          _
      $region140: #{tpu_custom_call.1} parent=5 // pred_fallthru
        _
    $region6: #{tpu_custom_call.1} parent=1 // loop_footer
      %s20 = sadd.s32 1, %s16
    $region7: #{tpu_custom_call.1} parent=1 // loop_footer_branch
      %15 = sbr.rel target = $region3
    $region8: #{tpu_custom_call.1} parent=1 // loop_exit
      _
    %7887 = vsyncpa [#allocation5], 1
    %s7888 = scalar_lea.sflag [#allocation5], 1
    %7889 = vsyncpa %s7888, 1
    %7890 = vsyncpa [#allocation6], 1
    %s7891 = scalar_lea.sflag [#allocation6], 1
    %7892 = vsyncpa %s7891, 1

</llo_original>
